<compile_context>
chip_gen: v7x
topology: tpu7x:2x2x1
jax: 0.10.0
libtpu: 0.0.40
codegen_flags: <defaults>
</compile_context>

<pallas_src>
import functools
import math

import jax
import jax.numpy as jnp
from jax.experimental import pallas as pl
from jax.experimental.pallas import tpu as pltpu

# ----------------------------- small synthetic config -----------------------------
VOCAB = 100
D = 32            # "bert_dim" (scaled down from 768)
NH = 2            # attention heads
DH = D // NH      # head dim
FF = 64           # intermediate size
NLAYERS = 2
MAX_POS = 32
H_LSTM = D        # lstm_dim == -1  -> hidden_size = bert_dim
OUT_DIM = 2
B, S = 2, 8

LN_EPS = 1e-12

# MXU operand dtype: keep f32 at toy size to match the torch reference numerics;
# flip to jnp.bfloat16 when scaling on v6e/v7x (accumulation stays f32 below).
MXU_DTYPE = jnp.float32

_VMEM_SPEC = pl.BlockSpec(memory_space=pltpu.MemorySpace.VMEM)


def _mxu_dot(a, b):
    return jnp.dot(a.astype(MXU_DTYPE), b.astype(MXU_DTYPE),
                   preferred_element_type=jnp.float32)


# ----------------------------- the fused forward kernel -----------------------------
def _hesitator_kernel(emb_ref, mask_ref, eg_ref, eb_ref,
                      wqkv_ref, bqkv_ref, wo_ref, bo_ref, ln1g_ref, ln1b_ref,
                      w1_ref, b1_ref, w2_ref, b2_ref, ln2g_ref, ln2b_ref,
                      wif_ref, whf_ref, bf_ref,
                      wib_ref, whb_ref, bb_ref,
                      wcf_ref, wcb_ref, bc_ref,
                      o_ref, *, nlayers, nheads, nbatch, seq, hidden):
    d = emb_ref.shape[-1]
    dh = d // nheads
    hsz = hidden

    def ln(v, g, b):
        mu = jnp.mean(v, axis=-1, keepdims=True)
        var = jnp.mean(jnp.square(v - mu), axis=-1, keepdims=True)
        return (v - mu) * jax.lax.rsqrt(var + LN_EPS) * g + b

    # ------------------------ BERT encoder (all layers fused) ------------------------
    x = ln(emb_ref[...], eg_ref[...], eb_ref[...])        # (B*S, D), row = b*S + s
    bias = (1.0 - mask_ref[...]) * -1e9                   # (B, S) additive key mask

    for l in range(nlayers):                              # static unroll over layers
        # fused Q|K|V matmul; the 1/sqrt(dh) scale is already folded into the Q slice.
        qkv = _mxu_dot(x, wqkv_ref[l]) + bqkv_ref[l]      # (B*S, 3D)
        ctx_rows = []
        for b in range(nbatch):                           # static unroll, no (B,NH) grid
            r0, r1 = b * seq, (b + 1) * seq
            bias_b = bias[b:b + 1, :]                     # (1, S)
            heads = []
            for h in range(nheads):
                q = qkv[r0:r1, h * dh:(h + 1) * dh]
                k = qkv[r0:r1, d + h * dh:d + (h + 1) * dh]
                v = qkv[r0:r1, 2 * d + h * dh:2 * d + (h + 1) * dh]
                s = _mxu_dot(q, k.T) + bias_b             # (S, S)  (scale pre-folded)
                s = s - jnp.max(s, axis=-1, keepdims=True)
                p = jnp.exp(s)
                p = p * pl.reciprocal(jnp.sum(p, axis=-1, keepdims=True), approx=True)
                heads.append(_mxu_dot(p, v))              # (S, DH)
            ctx_rows.append(jnp.concatenate(heads, axis=-1))   # (S, D)
        ctx = jnp.concatenate(ctx_rows, axis=0)           # (B*S, D)
        attn = _mxu_dot(ctx, wo_ref[l]) + bo_ref[l]
        x = ln(x + attn, ln1g_ref[l], ln1b_ref[l])
        # TODO(synk): HF ruBert-base uses exact erf GELU; tanh approximation kept here.
        hmid = jax.nn.gelu(_mxu_dot(x, w1_ref[l]) + b1_ref[l], approximate=True)
        ffn = _mxu_dot(hmid, w2_ref[l]) + b2_ref[l]
        x = ln(x + ffn, ln2g_ref[l], ln2b_ref[l])

    # ------------------------ BiLSTM + classifier (fused, in-register) ------------------------
    # hoisted input projections: one wide MXU matmul per direction, biases
    # (b_ih + b_hh) folded at pack time -> off the recurrent path.  Reshape ONCE
    # to (B, S, 4H) so each time step is a single contiguous (B, 4H) slice.
    gx_f = (_mxu_dot(x, wif_ref[...]) + bf_ref[...]).reshape(nbatch, seq, 4 * hsz)
    gx_b = (_mxu_dot(x, wib_ref[...]) + bb_ref[...]).reshape(nbatch, seq, 4 * hsz)

    # recurrent weights split per gate once, so each h @ W yields a full-width
    # (B, H) gate pre-activation on the serial path.
    whf = whf_ref[...]
    whb = whb_ref[...]
    whf_g = [whf[:, k * hsz:(k + 1) * hsz] for k in range(4)]   # i, f, g, o
    whb_g = [whb[:, k * hsz:(k + 1) * hsz] for k in range(4)]

    def cell(g_t, wg, hs, cs):
        i = jax.nn.sigmoid(g_t[:, 0 * hsz:1 * hsz] + _mxu_dot(hs, wg[0]))
        f = jax.nn.sigmoid(g_t[:, 1 * hsz:2 * hsz] + _mxu_dot(hs, wg[1]))
        g = jnp.tanh(g_t[:, 2 * hsz:3 * hsz] + _mxu_dot(hs, wg[2]))
        o = jax.nn.sigmoid(g_t[:, 3 * hsz:4 * hsz] + _mxu_dot(hs, wg[3]))
        c_new = f * cs + i * g
        h_new = o * jnp.tanh(c_new)
        return h_new, c_new

    hf = jnp.zeros((nbatch, hsz), jnp.float32)
    cf = jnp.zeros((nbatch, hsz), jnp.float32)
    hb = jnp.zeros((nbatch, hsz), jnp.float32)
    cb = jnp.zeros((nbatch, hsz), jnp.float32)
    hf_out = [None] * seq
    hb_out = [None] * seq
    # fully (statically) unrolled time loop; forward & backward interleaved so the
    # two directions' recurrent MXU pushes overlap.
    for t in range(seq):
        tb = seq - 1 - t
        hf, cf = cell(gx_f[:, t, :], whf_g, hf, cf)
        hb, cb = cell(gx_b[:, tb, :], whb_g, hb, cb)
        hf_out[t] = hf
        hb_out[tb] = hb

    hf_all = jnp.concatenate(hf_out, axis=0)              # (S*B, H), row = t*B + b
    hb_all = jnp.concatenate(hb_out, axis=0)
    # fused classifier Linear(2H -> OUT) with the weight pre-split per direction.
    y = _mxu_dot(hf_all, wcf_ref[...]) + _mxu_dot(hb_all, wcb_ref[...]) + bc_ref[...]
    o_ref[...] = y.astype(o_ref.dtype)                    # (S*B, OUT), time-major


# ----------------------------- forward pass -----------------------------
def hesitator_forward(pp, x, attn_masks):
    if x.ndim == 1:
        x = x.reshape(1, x.shape[0])
        attn_masks = attn_masks.reshape(1, -1)
    nb, seq = x.shape
    emb = (pp['word_emb'][x]
           + pp['pos_emb'][:seq][None, :, :]
           + pp['type_emb'][0][None, None, :])                      # (B, S, D)
    kern = functools.partial(_hesitator_kernel, nlayers=NLAYERS, nheads=NH,
                             nbatch=nb, seq=seq, hidden=H_LSTM)
    y = pl.pallas_call(
        kern,
        out_shape=jax.ShapeDtypeStruct((nb * seq, OUT_DIM), jnp.float32),
        in_specs=[_VMEM_SPEC] * 25,
        out_specs=_VMEM_SPEC,
    )(emb.reshape(nb * seq, D).astype(jnp.float32),
      attn_masks.astype(jnp.float32),
      pp['emb_ln_g'], pp['emb_ln_b'],
      pp['wqkv'], pp['bqkv'], pp['wo'], pp['bo'], pp['ln1g'], pp['ln1b'],
      pp['w1'], pp['b1'], pp['w2'], pp['b2'], pp['ln2g'], pp['ln2b'],
      pp['wih_f'], pp['whh_f'], pp['b_f'],
      pp['wih_b'], pp['whh_b'], pp['b_b'],
      pp['wcls_f'], pp['wcls_b'], pp['b_cls'])
    # reinterpret (S*B, OUT) as (S, B, OUT) and permute to (B, OUT, S); 128-byte relayout.
    return y.reshape(seq, nb, OUT_DIM).transpose(1, 2, 0)


# ----------------------------- deterministic init + one-time packing -----------------------------
def init_params(key):
    keys = iter(jax.random.split(key, 40))

    def nrm(shape):
        return 0.02 * jax.random.normal(next(keys), shape, dtype=jnp.float32)

    def zeros(shape):
        return jnp.zeros(shape, jnp.float32)

    def ones(shape):
        return jnp.ones(shape, jnp.float32)

    bert = {
        'word_emb': nrm((VOCAB, D)),
        'pos_emb': nrm((MAX_POS, D)),
        'type_emb': nrm((2, D)),
        'emb_ln_g': ones((D,)), 'emb_ln_b': zeros((D,)),
        'layers': [],
    }
    for _ in range(NLAYERS):
        bert['layers'].append({
            'wq': nrm((D, D)), 'bq': zeros((D,)),
            'wk': nrm((D, D)), 'bk': zeros((D,)),
            'wv': nrm((D, D)), 'bv': zeros((D,)),
            'wo': nrm((D, D)), 'bo': zeros((D,)),
            'ln1_g': ones((D,)), 'ln1_b': zeros((D,)),
            'w1': nrm((FF, D)), 'b1': zeros((FF,)),
            'w2': nrm((D, FF)), 'b2': zeros((D,)),
            'ln2_g': ones((D,)), 'ln2_b': zeros((D,)),
        })
    lstm = {
        'w_ih_f': nrm((4 * H_LSTM, D)), 'w_hh_f': nrm((4 * H_LSTM, H_LSTM)),
        'b_ih_f': zeros((4 * H_LSTM,)), 'b_hh_f': zeros((4 * H_LSTM,)),
        'w_ih_b': nrm((4 * H_LSTM, D)), 'w_hh_b': nrm((4 * H_LSTM, H_LSTM)),
        'b_ih_b': zeros((4 * H_LSTM,)), 'b_hh_b': zeros((4 * H_LSTM,)),
    }
    cls = {'w': nrm((OUT_DIM, 2 * H_LSTM)), 'b': zeros((OUT_DIM,))}
    return {'bert': bert, 'lstm': lstm, 'cls': cls}


def pack_params(p):
    """One-time preprocessing (NOT part of the forward): transpose Linear/LSTM weights
    into (in, out) layout, concatenate Q/K/V (with the attention scale folded into the
    Q slice), stack per-layer weights, fold LSTM biases and split the classifier
    weight per direction."""
    bert, lstm, cls = p['bert'], p['lstm'], p['cls']
    layers = bert['layers']
    scale = 1.0 / math.sqrt(DH)

    def stack(fn):
        return jnp.stack([fn(l) for l in layers], axis=0)

    return {
        'word_emb': bert['word_emb'],
        'pos_emb': bert['pos_emb'],
        'type_emb': bert['type_emb'],
        'emb_ln_g': bert['emb_ln_g'].reshape(1, D),
        'emb_ln_b': bert['emb_ln_b'].reshape(1, D),
        'wqkv': stack(lambda l: jnp.concatenate(
            [l['wq'].T * scale, l['wk'].T, l['wv'].T], axis=1)),
        'bqkv': stack(lambda l: jnp.concatenate(
            [l['bq'] * scale, l['bk'], l['bv']]).reshape(1, 3 * D)),
        'wo': stack(lambda l: l['wo'].T),
        'bo': stack(lambda l: l['bo'].reshape(1, D)),
        'ln1g': stack(lambda l: l['ln1_g'].reshape(1, D)),
        'ln1b': stack(lambda l: l['ln1_b'].reshape(1, D)),
        'w1': stack(lambda l: l['w1'].T),
        'b1': stack(lambda l: l['b1'].reshape(1, FF)),
        'w2': stack(lambda l: l['w2'].T),
        'b2': stack(lambda l: l['b2'].reshape(1, D)),
        'ln2g': stack(lambda l: l['ln2_g'].reshape(1, D)),
        'ln2b': stack(lambda l: l['ln2_b'].reshape(1, D)),
        'wih_f': lstm['w_ih_f'].T,
        'whh_f': lstm['w_hh_f'].T,
        'b_f': (lstm['b_ih_f'] + lstm['b_hh_f']).reshape(1, 4 * H_LSTM),
        'wih_b': lstm['w_ih_b'].T,
        'whh_b': lstm['w_hh_b'].T,
        'b_b': (lstm['b_ih_b'] + lstm['b_hh_b']).reshape(1, 4 * H_LSTM),
        'wcls_f': cls['w'][:, :H_LSTM].T,
        'wcls_b': cls['w'][:, H_LSTM:].T,
        'b_cls': cls['b'].reshape(1, OUT_DIM),
    }


# ----------------------------- main -----------------------------
if __name__ == "__main__":
    key = jax.random.PRNGKey(0)
    pkey, ikey = jax.random.split(key)
    params = init_params(pkey)
    packed = pack_params(params)          # all weight transposes/concats happen once here

    ids = jax.random.randint(ikey, (B, S), 0, VOCAB, dtype=jnp.int32)
    attn_masks = jnp.ones((B, S), dtype=jnp.float32).at[1, 6:].set(0.0)

    fwd = jax.jit(hesitator_forward)
    out = jax.block_until_ready(fwd(packed, ids, attn_masks))
    assert out.shape == (B, OUT_DIM, S), out.shape
    assert bool(jnp.all(jnp.isfinite(out)))
    print("KERNEL_OK")
</pallas_src>

<mosaic_0001>
module attributes {stable_mosaic.version = 11 : i64} {
  func.func @_hesitator_kernel(%arg0: memref<16x32xf32, #tpu.memory_space<vmem>>, %arg1: memref<2x8xf32, #tpu.memory_space<vmem>>, %arg2: memref<1x32xf32, #tpu.memory_space<vmem>>, %arg3: memref<1x32xf32, #tpu.memory_space<vmem>>, %arg4: memref<2x32x96xf32, #tpu.memory_space<vmem>>, %arg5: memref<2x1x96xf32, #tpu.memory_space<vmem>>, %arg6: memref<2x32x32xf32, #tpu.memory_space<vmem>>, %arg7: memref<2x1x32xf32, #tpu.memory_space<vmem>>, %arg8: memref<2x1x32xf32, #tpu.memory_space<vmem>>, %arg9: memref<2x1x32xf32, #tpu.memory_space<vmem>>, %arg10: memref<2x32x64xf32, #tpu.memory_space<vmem>>, %arg11: memref<2x1x64xf32, #tpu.memory_space<vmem>>, %arg12: memref<2x64x32xf32, #tpu.memory_space<vmem>>, %arg13: memref<2x1x32xf32, #tpu.memory_space<vmem>>, %arg14: memref<2x1x32xf32, #tpu.memory_space<vmem>>, %arg15: memref<2x1x32xf32, #tpu.memory_space<vmem>>, %arg16: memref<32x128xf32, #tpu.memory_space<vmem>>, %arg17: memref<32x128xf32, #tpu.memory_space<vmem>>, %arg18: memref<1x128xf32, #tpu.memory_space<vmem>>, %arg19: memref<32x128xf32, #tpu.memory_space<vmem>>, %arg20: memref<32x128xf32, #tpu.memory_space<vmem>>, %arg21: memref<1x128xf32, #tpu.memory_space<vmem>>, %arg22: memref<32x2xf32, #tpu.memory_space<vmem>>, %arg23: memref<32x2xf32, #tpu.memory_space<vmem>>, %arg24: memref<1x2xf32, #tpu.memory_space<vmem>>, %arg25: memref<16x2xf32, #tpu.memory_space<vmem>>) attributes {dimension_semantics = [], scalar_prefetch = 0 : i64, scratch_operands = 0 : i64, tpu.core_type = #tpu.core_type<tc>} {
    %c0 = arith.constant 0 : index
    %c0_0 = arith.constant 0 : index
    %0 = vector.load %arg0[%c0, %c0_0] : memref<16x32xf32, #tpu.memory_space<vmem>>, vector<16x32xf32>
    %c0_1 = arith.constant 0 : index
    %c0_2 = arith.constant 0 : index
    %1 = vector.load %arg2[%c0_1, %c0_2] : memref<1x32xf32, #tpu.memory_space<vmem>>, vector<1x32xf32>
    %c0_3 = arith.constant 0 : index
    %c0_4 = arith.constant 0 : index
    %2 = vector.load %arg3[%c0_3, %c0_4] : memref<1x32xf32, #tpu.memory_space<vmem>>, vector<1x32xf32>
    %cst = arith.constant dense<0.000000e+00> : vector<16xf32>
    %3 = vector.multi_reduction <add>, %0, %cst [1] : vector<16x32xf32> to vector<16xf32>
    %4 = vector.shape_cast %3 : vector<16xf32> to vector<16x1xf32>
    %cst_5 = arith.constant 3.200000e+01 : f32
    %5 = vector.broadcast %cst_5 : f32 to vector<16x1xf32>
    %6 = arith.divf %4, %5 : vector<16x1xf32>
    %7 = vector.broadcast %6 : vector<16x1xf32> to vector<16x32xf32>
    %8 = arith.subf %0, %7 : vector<16x32xf32>
    %9 = arith.mulf %8, %8 : vector<16x32xf32>
    %cst_6 = arith.constant dense<0.000000e+00> : vector<16xf32>
    %10 = vector.multi_reduction <add>, %9, %cst_6 [1] : vector<16x32xf32> to vector<16xf32>
    %11 = vector.shape_cast %10 : vector<16xf32> to vector<16x1xf32>
    %cst_7 = arith.constant 3.200000e+01 : f32
    %12 = vector.broadcast %cst_7 : f32 to vector<16x1xf32>
    %13 = arith.divf %11, %12 : vector<16x1xf32>
    %14 = vector.broadcast %6 : vector<16x1xf32> to vector<16x32xf32>
    %15 = arith.subf %0, %14 : vector<16x32xf32>
    %cst_8 = arith.constant 9.99999996E-13 : f32
    %16 = vector.broadcast %cst_8 : f32 to vector<16x1xf32>
    %17 = arith.addf %13, %16 : vector<16x1xf32>
    %18 = math.rsqrt %17 : vector<16x1xf32>
    %19 = vector.broadcast %18 : vector<16x1xf32> to vector<16x32xf32>
    %20 = arith.mulf %15, %19 : vector<16x32xf32>
    %21 = vector.broadcast %1 : vector<1x32xf32> to vector<16x32xf32>
    %22 = arith.mulf %20, %21 : vector<16x32xf32>
    %23 = vector.broadcast %2 : vector<1x32xf32> to vector<16x32xf32>
    %24 = arith.addf %22, %23 : vector<16x32xf32>
    %c0_9 = arith.constant 0 : index
    %c0_10 = arith.constant 0 : index
    %25 = vector.load %arg1[%c0_9, %c0_10] : memref<2x8xf32, #tpu.memory_space<vmem>>, vector<2x8xf32>
    %cst_11 = arith.constant 1.000000e+00 : f32
    %26 = vector.broadcast %cst_11 : f32 to vector<2x8xf32>
    %27 = arith.subf %26, %25 : vector<2x8xf32>
    %cst_12 = arith.constant -1.000000e+09 : f32
    %28 = vector.broadcast %cst_12 : f32 to vector<2x8xf32>
    %29 = arith.mulf %27, %28 : vector<2x8xf32>
    %c0_13 = arith.constant 0 : index
    %c0_14 = arith.constant 0 : index
    %c0_15 = arith.constant 0 : index
    %30 = vector.load %arg4[%c0_13, %c0_14, %c0_15] : memref<2x32x96xf32, #tpu.memory_space<vmem>>, vector<1x32x96xf32>
    %31 = vector.shape_cast %30 : vector<1x32x96xf32> to vector<32x96xf32>
    %cst_16 = arith.constant dense<0.000000e+00> : vector<16x96xf32>
    %32 = tpu.matmul %24, %31, %cst_16 {dimension_numbers = #tpu.dot_dimension_numbers<[1], [0], [0], [1], [0, 0, 1, 1], [], []>} : vector<16x32xf32>, vector<32x96xf32>, vector<16x96xf32> -> vector<16x96xf32>
    %c0_17 = arith.constant 0 : index
    %c0_18 = arith.constant 0 : index
    %c0_19 = arith.constant 0 : index
    %33 = vector.load %arg5[%c0_17, %c0_18, %c0_19] : memref<2x1x96xf32, #tpu.memory_space<vmem>>, vector<1x1x96xf32>
    %34 = vector.shape_cast %33 : vector<1x1x96xf32> to vector<1x96xf32>
    %35 = vector.broadcast %34 : vector<1x96xf32> to vector<16x96xf32>
    %36 = arith.addf %32, %35 : vector<16x96xf32>
    %37 = vector.extract_strided_slice %29 {offsets = [0, 0], sizes = [1, 8], strides = [1, 1]} : vector<2x8xf32> to vector<1x8xf32>
    %38 = vector.extract_strided_slice %36 {offsets = [0, 0], sizes = [8, 16], strides = [1, 1]} : vector<16x96xf32> to vector<8x16xf32>
    %39 = vector.extract_strided_slice %36 {offsets = [0, 32], sizes = [8, 16], strides = [1, 1]} : vector<16x96xf32> to vector<8x16xf32>
    %40 = vector.extract_strided_slice %36 {offsets = [0, 64], sizes = [8, 16], strides = [1, 1]} : vector<16x96xf32> to vector<8x16xf32>
    %41 = tpu.transpose %39, [1, 0] : vector<8x16xf32> -> vector<16x8xf32>
    %cst_20 = arith.constant dense<0.000000e+00> : vector<8x8xf32>
    %42 = tpu.matmul %38, %41, %cst_20 {dimension_numbers = #tpu.dot_dimension_numbers<[1], [0], [0], [1], [0, 0, 1, 1], [], []>} : vector<8x16xf32>, vector<16x8xf32>, vector<8x8xf32> -> vector<8x8xf32>
    %43 = vector.broadcast %37 : vector<1x8xf32> to vector<8x8xf32>
    %44 = arith.addf %42, %43 : vector<8x8xf32>
    %cst_21 = arith.constant dense<0xFF800000> : vector<8xf32>
    %45 = vector.multi_reduction <maximumf>, %44, %cst_21 [1] : vector<8x8xf32> to vector<8xf32>
    %46 = vector.shape_cast %45 : vector<8xf32> to vector<8x1xf32>
    %47 = vector.broadcast %46 : vector<8x1xf32> to vector<8x8xf32>
    %48 = arith.subf %44, %47 : vector<8x8xf32>
    %49 = math.exp %48 : vector<8x8xf32>
    %cst_22 = arith.constant dense<0.000000e+00> : vector<8xf32>
    %50 = vector.multi_reduction <add>, %49, %cst_22 [1] : vector<8x8xf32> to vector<8xf32>
    %51 = vector.shape_cast %50 : vector<8xf32> to vector<8x1xf32>
    %52 = tpu.reciprocal %51 {approx = true} : vector<8x1xf32> -> vector<8x1xf32>
    %53 = vector.broadcast %52 : vector<8x1xf32> to vector<8x8xf32>
    %54 = arith.mulf %49, %53 : vector<8x8xf32>
    %cst_23 = arith.constant dense<0.000000e+00> : vector<8x16xf32>
    %55 = tpu.matmul %54, %40, %cst_23 {dimension_numbers = #tpu.dot_dimension_numbers<[1], [0], [0], [1], [0, 0, 1, 1], [], []>} : vector<8x8xf32>, vector<8x16xf32>, vector<8x16xf32> -> vector<8x16xf32>
    %56 = vector.extract_strided_slice %36 {offsets = [0, 16], sizes = [8, 16], strides = [1, 1]} : vector<16x96xf32> to vector<8x16xf32>
    %57 = vector.extract_strided_slice %36 {offsets = [0, 48], sizes = [8, 16], strides = [1, 1]} : vector<16x96xf32> to vector<8x16xf32>
    %58 = vector.extract_strided_slice %36 {offsets = [0, 80], sizes = [8, 16], strides = [1, 1]} : vector<16x96xf32> to vector<8x16xf32>
    %59 = tpu.transpose %57, [1, 0] : vector<8x16xf32> -> vector<16x8xf32>
    %cst_24 = arith.constant dense<0.000000e+00> : vector<8x8xf32>
    %60 = tpu.matmul %56, %59, %cst_24 {dimension_numbers = #tpu.dot_dimension_numbers<[1], [0], [0], [1], [0, 0, 1, 1], [], []>} : vector<8x16xf32>, vector<16x8xf32>, vector<8x8xf32> -> vector<8x8xf32>
    %61 = vector.broadcast %37 : vector<1x8xf32> to vector<8x8xf32>
    %62 = arith.addf %60, %61 : vector<8x8xf32>
    %cst_25 = arith.constant dense<0xFF800000> : vector<8xf32>
    %63 = vector.multi_reduction <maximumf>, %62, %cst_25 [1] : vector<8x8xf32> to vector<8xf32>
    %64 = vector.shape_cast %63 : vector<8xf32> to vector<8x1xf32>
    %65 = vector.broadcast %64 : vector<8x1xf32> to vector<8x8xf32>
    %66 = arith.subf %62, %65 : vector<8x8xf32>
    %67 = math.exp %66 : vector<8x8xf32>
    %cst_26 = arith.constant dense<0.000000e+00> : vector<8xf32>
    %68 = vector.multi_reduction <add>, %67, %cst_26 [1] : vector<8x8xf32> to vector<8xf32>
    %69 = vector.shape_cast %68 : vector<8xf32> to vector<8x1xf32>
    %70 = tpu.reciprocal %69 {approx = true} : vector<8x1xf32> -> vector<8x1xf32>
    %71 = vector.broadcast %70 : vector<8x1xf32> to vector<8x8xf32>
    %72 = arith.mulf %67, %71 : vector<8x8xf32>
    %cst_27 = arith.constant dense<0.000000e+00> : vector<8x16xf32>
    %73 = tpu.matmul %72, %58, %cst_27 {dimension_numbers = #tpu.dot_dimension_numbers<[1], [0], [0], [1], [0, 0, 1, 1], [], []>} : vector<8x8xf32>, vector<8x16xf32>, vector<8x16xf32> -> vector<8x16xf32>
    %74 = tpu.concatenate %55, %73 in 1 : vector<8x16xf32>, vector<8x16xf32> -> vector<8x32xf32>
    %75 = vector.extract_strided_slice %29 {offsets = [1, 0], sizes = [1, 8], strides = [1, 1]} : vector<2x8xf32> to vector<1x8xf32>
    %76 = vector.extract_strided_slice %36 {offsets = [8, 0], sizes = [8, 16], strides = [1, 1]} : vector<16x96xf32> to vector<8x16xf32>
    %77 = vector.extract_strided_slice %36 {offsets = [8, 32], sizes = [8, 16], strides = [1, 1]} : vector<16x96xf32> to vector<8x16xf32>
    %78 = vector.extract_strided_slice %36 {offsets = [8, 64], sizes = [8, 16], strides = [1, 1]} : vector<16x96xf32> to vector<8x16xf32>
    %79 = tpu.transpose %77, [1, 0] : vector<8x16xf32> -> vector<16x8xf32>
    %cst_28 = arith.constant dense<0.000000e+00> : vector<8x8xf32>
    %80 = tpu.matmul %76, %79, %cst_28 {dimension_numbers = #tpu.dot_dimension_numbers<[1], [0], [0], [1], [0, 0, 1, 1], [], []>} : vector<8x16xf32>, vector<16x8xf32>, vector<8x8xf32> -> vector<8x8xf32>
    %81 = vector.broadcast %75 : vector<1x8xf32> to vector<8x8xf32>
    %82 = arith.addf %80, %81 : vector<8x8xf32>
    %cst_29 = arith.constant dense<0xFF800000> : vector<8xf32>
    %83 = vector.multi_reduction <maximumf>, %82, %cst_29 [1] : vector<8x8xf32> to vector<8xf32>
    %84 = vector.shape_cast %83 : vector<8xf32> to vector<8x1xf32>
    %85 = vector.broadcast %84 : vector<8x1xf32> to vector<8x8xf32>
    %86 = arith.subf %82, %85 : vector<8x8xf32>
    %87 = math.exp %86 : vector<8x8xf32>
    %cst_30 = arith.constant dense<0.000000e+00> : vector<8xf32>
    %88 = vector.multi_reduction <add>, %87, %cst_30 [1] : vector<8x8xf32> to vector<8xf32>
    %89 = vector.shape_cast %88 : vector<8xf32> to vector<8x1xf32>
    %90 = tpu.reciprocal %89 {approx = true} : vector<8x1xf32> -> vector<8x1xf32>
    %91 = vector.broadcast %90 : vector<8x1xf32> to vector<8x8xf32>
    %92 = arith.mulf %87, %91 : vector<8x8xf32>
    %cst_31 = arith.constant dense<0.000000e+00> : vector<8x16xf32>
    %93 = tpu.matmul %92, %78, %cst_31 {dimension_numbers = #tpu.dot_dimension_numbers<[1], [0], [0], [1], [0, 0, 1, 1], [], []>} : vector<8x8xf32>, vector<8x16xf32>, vector<8x16xf32> -> vector<8x16xf32>
    %94 = vector.extract_strided_slice %36 {offsets = [8, 16], sizes = [8, 16], strides = [1, 1]} : vector<16x96xf32> to vector<8x16xf32>
    %95 = vector.extract_strided_slice %36 {offsets = [8, 48], sizes = [8, 16], strides = [1, 1]} : vector<16x96xf32> to vector<8x16xf32>
    %96 = vector.extract_strided_slice %36 {offsets = [8, 80], sizes = [8, 16], strides = [1, 1]} : vector<16x96xf32> to vector<8x16xf32>
    %97 = tpu.transpose %95, [1, 0] : vector<8x16xf32> -> vector<16x8xf32>
    %cst_32 = arith.constant dense<0.000000e+00> : vector<8x8xf32>
    %98 = tpu.matmul %94, %97, %cst_32 {dimension_numbers = #tpu.dot_dimension_numbers<[1], [0], [0], [1], [0, 0, 1, 1], [], []>} : vector<8x16xf32>, vector<16x8xf32>, vector<8x8xf32> -> vector<8x8xf32>
    %99 = vector.broadcast %75 : vector<1x8xf32> to vector<8x8xf32>
    %100 = arith.addf %98, %99 : vector<8x8xf32>
    %cst_33 = arith.constant dense<0xFF800000> : vector<8xf32>
    %101 = vector.multi_reduction <maximumf>, %100, %cst_33 [1] : vector<8x8xf32> to vector<8xf32>
    %102 = vector.shape_cast %101 : vector<8xf32> to vector<8x1xf32>
    %103 = vector.broadcast %102 : vector<8x1xf32> to vector<8x8xf32>
    %104 = arith.subf %100, %103 : vector<8x8xf32>
    %105 = math.exp %104 : vector<8x8xf32>
    %cst_34 = arith.constant dense<0.000000e+00> : vector<8xf32>
    %106 = vector.multi_reduction <add>, %105, %cst_34 [1] : vector<8x8xf32> to vector<8xf32>
    %107 = vector.shape_cast %106 : vector<8xf32> to vector<8x1xf32>
    %108 = tpu.reciprocal %107 {approx = true} : vector<8x1xf32> -> vector<8x1xf32>
    %109 = vector.broadcast %108 : vector<8x1xf32> to vector<8x8xf32>
    %110 = arith.mulf %105, %109 : vector<8x8xf32>
    %cst_35 = arith.constant dense<0.000000e+00> : vector<8x16xf32>
    %111 = tpu.matmul %110, %96, %cst_35 {dimension_numbers = #tpu.dot_dimension_numbers<[1], [0], [0], [1], [0, 0, 1, 1], [], []>} : vector<8x8xf32>, vector<8x16xf32>, vector<8x16xf32> -> vector<8x16xf32>
    %112 = tpu.concatenate %93, %111 in 1 : vector<8x16xf32>, vector<8x16xf32> -> vector<8x32xf32>
    %113 = tpu.concatenate %74, %112 in 0 : vector<8x32xf32>, vector<8x32xf32> -> vector<16x32xf32>
    %c0_36 = arith.constant 0 : index
    %c0_37 = arith.constant 0 : index
    %c0_38 = arith.constant 0 : index
    %114 = vector.load %arg6[%c0_36, %c0_37, %c0_38] : memref<2x32x32xf32, #tpu.memory_space<vmem>>, vector<1x32x32xf32>
    %115 = vector.shape_cast %114 : vector<1x32x32xf32> to vector<32x32xf32>
    %cst_39 = arith.constant dense<0.000000e+00> : vector<16x32xf32>
    %116 = tpu.matmul %113, %115, %cst_39 {dimension_numbers = #tpu.dot_dimension_numbers<[1], [0], [0], [1], [0, 0, 1, 1], [], []>} : vector<16x32xf32>, vector<32x32xf32>, vector<16x32xf32> -> vector<16x32xf32>
    %c0_40 = arith.constant 0 : index
    %c0_41 = arith.constant 0 : index
    %c0_42 = arith.constant 0 : index
    %117 = vector.load %arg7[%c0_40, %c0_41, %c0_42] : memref<2x1x32xf32, #tpu.memory_space<vmem>>, vector<1x1x32xf32>
    %118 = vector.shape_cast %117 : vector<1x1x32xf32> to vector<1x32xf32>
    %119 = vector.broadcast %118 : vector<1x32xf32> to vector<16x32xf32>
    %120 = arith.addf %116, %119 : vector<16x32xf32>
    %121 = arith.addf %24, %120 : vector<16x32xf32>
    %c0_43 = arith.constant 0 : index
    %c0_44 = arith.constant 0 : index
    %c0_45 = arith.constant 0 : index
    %122 = vector.load %arg8[%c0_43, %c0_44, %c0_45] : memref<2x1x32xf32, #tpu.memory_space<vmem>>, vector<1x1x32xf32>
    %123 = vector.shape_cast %122 : vector<1x1x32xf32> to vector<1x32xf32>
    %c0_46 = arith.constant 0 : index
    %c0_47 = arith.constant 0 : index
    %c0_48 = arith.constant 0 : index
    %124 = vector.load %arg9[%c0_46, %c0_47, %c0_48] : memref<2x1x32xf32, #tpu.memory_space<vmem>>, vector<1x1x32xf32>
    %125 = vector.shape_cast %124 : vector<1x1x32xf32> to vector<1x32xf32>
    %cst_49 = arith.constant dense<0.000000e+00> : vector<16xf32>
    %126 = vector.multi_reduction <add>, %121, %cst_49 [1] : vector<16x32xf32> to vector<16xf32>
    %127 = vector.shape_cast %126 : vector<16xf32> to vector<16x1xf32>
    %cst_50 = arith.constant 3.200000e+01 : f32
    %128 = vector.broadcast %cst_50 : f32 to vector<16x1xf32>
    %129 = arith.divf %127, %128 : vector<16x1xf32>
    %130 = vector.broadcast %129 : vector<16x1xf32> to vector<16x32xf32>
    %131 = arith.subf %121, %130 : vector<16x32xf32>
    %132 = arith.mulf %131, %131 : vector<16x32xf32>
    %cst_51 = arith.constant dense<0.000000e+00> : vector<16xf32>
    %133 = vector.multi_reduction <add>, %132, %cst_51 [1] : vector<16x32xf32> to vector<16xf32>
    %134 = vector.shape_cast %133 : vector<16xf32> to vector<16x1xf32>
    %cst_52 = arith.constant 3.200000e+01 : f32
    %135 = vector.broadcast %cst_52 : f32 to vector<16x1xf32>
    %136 = arith.divf %134, %135 : vector<16x1xf32>
    %137 = vector.broadcast %129 : vector<16x1xf32> to vector<16x32xf32>
    %138 = arith.subf %121, %137 : vector<16x32xf32>
    %cst_53 = arith.constant 9.99999996E-13 : f32
    %139 = vector.broadcast %cst_53 : f32 to vector<16x1xf32>
    %140 = arith.addf %136, %139 : vector<16x1xf32>
    %141 = math.rsqrt %140 : vector<16x1xf32>
    %142 = vector.broadcast %141 : vector<16x1xf32> to vector<16x32xf32>
    %143 = arith.mulf %138, %142 : vector<16x32xf32>
    %144 = vector.broadcast %123 : vector<1x32xf32> to vector<16x32xf32>
    %145 = arith.mulf %143, %144 : vector<16x32xf32>
    %146 = vector.broadcast %125 : vector<1x32xf32> to vector<16x32xf32>
    %147 = arith.addf %145, %146 : vector<16x32xf32>
    %c0_54 = arith.constant 0 : index
    %c0_55 = arith.constant 0 : index
    %c0_56 = arith.constant 0 : index
    %148 = vector.load %arg10[%c0_54, %c0_55, %c0_56] : memref<2x32x64xf32, #tpu.memory_space<vmem>>, vector<1x32x64xf32>
    %149 = vector.shape_cast %148 : vector<1x32x64xf32> to vector<32x64xf32>
    %cst_57 = arith.constant dense<0.000000e+00> : vector<16x64xf32>
    %150 = tpu.matmul %147, %149, %cst_57 {dimension_numbers = #tpu.dot_dimension_numbers<[1], [0], [0], [1], [0, 0, 1, 1], [], []>} : vector<16x32xf32>, vector<32x64xf32>, vector<16x64xf32> -> vector<16x64xf32>
    %c0_58 = arith.constant 0 : index
    %c0_59 = arith.constant 0 : index
    %c0_60 = arith.constant 0 : index
    %151 = vector.load %arg11[%c0_58, %c0_59, %c0_60] : memref<2x1x64xf32, #tpu.memory_space<vmem>>, vector<1x1x64xf32>
    %152 = vector.shape_cast %151 : vector<1x1x64xf32> to vector<1x64xf32>
    %153 = vector.broadcast %152 : vector<1x64xf32> to vector<16x64xf32>
    %154 = arith.addf %150, %153 : vector<16x64xf32>
    %155 = arith.mulf %154, %154 : vector<16x64xf32>
    %156 = arith.mulf %154, %155 : vector<16x64xf32>
    %cst_61 = arith.constant 4.471500e-02 : f32
    %157 = vector.broadcast %cst_61 : f32 to vector<16x64xf32>
    %158 = arith.mulf %157, %156 : vector<16x64xf32>
    %159 = arith.addf %154, %158 : vector<16x64xf32>
    %cst_62 = arith.constant 0.797884583 : f32
    %160 = vector.broadcast %cst_62 : f32 to vector<16x64xf32>
    %161 = arith.mulf %160, %159 : vector<16x64xf32>
    %162 = math.tanh %161 : vector<16x64xf32>
    %cst_63 = arith.constant 1.000000e+00 : f32
    %163 = vector.broadcast %cst_63 : f32 to vector<16x64xf32>
    %164 = arith.addf %163, %162 : vector<16x64xf32>
    %cst_64 = arith.constant 5.000000e-01 : f32
    %165 = vector.broadcast %cst_64 : f32 to vector<16x64xf32>
    %166 = arith.mulf %165, %164 : vector<16x64xf32>
    %167 = arith.mulf %154, %166 : vector<16x64xf32>
    %c0_65 = arith.constant 0 : index
    %c0_66 = arith.constant 0 : index
    %c0_67 = arith.constant 0 : index
    %168 = vector.load %arg12[%c0_65, %c0_66, %c0_67] : memref<2x64x32xf32, #tpu.memory_space<vmem>>, vector<1x64x32xf32>
    %169 = vector.shape_cast %168 : vector<1x64x32xf32> to vector<64x32xf32>
    %cst_68 = arith.constant dense<0.000000e+00> : vector<16x32xf32>
    %170 = tpu.matmul %167, %169, %cst_68 {dimension_numbers = #tpu.dot_dimension_numbers<[1], [0], [0], [1], [0, 0, 1, 1], [], []>} : vector<16x64xf32>, vector<64x32xf32>, vector<16x32xf32> -> vector<16x32xf32>
    %c0_69 = arith.constant 0 : index
    %c0_70 = arith.constant 0 : index
    %c0_71 = arith.constant 0 : index
    %171 = vector.load %arg13[%c0_69, %c0_70, %c0_71] : memref<2x1x32xf32, #tpu.memory_space<vmem>>, vector<1x1x32xf32>
    %172 = vector.shape_cast %171 : vector<1x1x32xf32> to vector<1x32xf32>
    %173 = vector.broadcast %172 : vector<1x32xf32> to vector<16x32xf32>
    %174 = arith.addf %170, %173 : vector<16x32xf32>
    %175 = arith.addf %147, %174 : vector<16x32xf32>
    %c0_72 = arith.constant 0 : index
    %c0_73 = arith.constant 0 : index
    %c0_74 = arith.constant 0 : index
    %176 = vector.load %arg14[%c0_72, %c0_73, %c0_74] : memref<2x1x32xf32, #tpu.memory_space<vmem>>, vector<1x1x32xf32>
    %177 = vector.shape_cast %176 : vector<1x1x32xf32> to vector<1x32xf32>
    %c0_75 = arith.constant 0 : index
    %c0_76 = arith.constant 0 : index
    %c0_77 = arith.constant 0 : index
    %178 = vector.load %arg15[%c0_75, %c0_76, %c0_77] : memref<2x1x32xf32, #tpu.memory_space<vmem>>, vector<1x1x32xf32>
    %179 = vector.shape_cast %178 : vector<1x1x32xf32> to vector<1x32xf32>
    %cst_78 = arith.constant dense<0.000000e+00> : vector<16xf32>
    %180 = vector.multi_reduction <add>, %175, %cst_78 [1] : vector<16x32xf32> to vector<16xf32>
    %181 = vector.shape_cast %180 : vector<16xf32> to vector<16x1xf32>
    %cst_79 = arith.constant 3.200000e+01 : f32
    %182 = vector.broadcast %cst_79 : f32 to vector<16x1xf32>
    %183 = arith.divf %181, %182 : vector<16x1xf32>
    %184 = vector.broadcast %183 : vector<16x1xf32> to vector<16x32xf32>
    %185 = arith.subf %175, %184 : vector<16x32xf32>
    %186 = arith.mulf %185, %185 : vector<16x32xf32>
    %cst_80 = arith.constant dense<0.000000e+00> : vector<16xf32>
    %187 = vector.multi_reduction <add>, %186, %cst_80 [1] : vector<16x32xf32> to vector<16xf32>
    %188 = vector.shape_cast %187 : vector<16xf32> to vector<16x1xf32>
    %cst_81 = arith.constant 3.200000e+01 : f32
    %189 = vector.broadcast %cst_81 : f32 to vector<16x1xf32>
    %190 = arith.divf %188, %189 : vector<16x1xf32>
    %191 = vector.broadcast %183 : vector<16x1xf32> to vector<16x32xf32>
    %192 = arith.subf %175, %191 : vector<16x32xf32>
    %cst_82 = arith.constant 9.99999996E-13 : f32
    %193 = vector.broadcast %cst_82 : f32 to vector<16x1xf32>
    %194 = arith.addf %190, %193 : vector<16x1xf32>
    %195 = math.rsqrt %194 : vector<16x1xf32>
    %196 = vector.broadcast %195 : vector<16x1xf32> to vector<16x32xf32>
    %197 = arith.mulf %192, %196 : vector<16x32xf32>
    %198 = vector.broadcast %177 : vector<1x32xf32> to vector<16x32xf32>
    %199 = arith.mulf %197, %198 : vector<16x32xf32>
    %200 = vector.broadcast %179 : vector<1x32xf32> to vector<16x32xf32>
    %201 = arith.addf %199, %200 : vector<16x32xf32>
    %c1 = arith.constant 1 : index
    %c0_83 = arith.constant 0 : index
    %c0_84 = arith.constant 0 : index
    %202 = vector.load %arg4[%c1, %c0_83, %c0_84] : memref<2x32x96xf32, #tpu.memory_space<vmem>>, vector<1x32x96xf32>
    %203 = vector.shape_cast %202 : vector<1x32x96xf32> to vector<32x96xf32>
    %cst_85 = arith.constant dense<0.000000e+00> : vector<16x96xf32>
    %204 = tpu.matmul %201, %203, %cst_85 {dimension_numbers = #tpu.dot_dimension_numbers<[1], [0], [0], [1], [0, 0, 1, 1], [], []>} : vector<16x32xf32>, vector<32x96xf32>, vector<16x96xf32> -> vector<16x96xf32>
    %c1_86 = arith.constant 1 : index
    %c0_87 = arith.constant 0 : index
    %c0_88 = arith.constant 0 : index
    %205 = vector.load %arg5[%c1_86, %c0_87, %c0_88] : memref<2x1x96xf32, #tpu.memory_space<vmem>>, vector<1x1x96xf32>
    %206 = vector.shape_cast %205 : vector<1x1x96xf32> to vector<1x96xf32>
    %207 = vector.broadcast %206 : vector<1x96xf32> to vector<16x96xf32>
    %208 = arith.addf %204, %207 : vector<16x96xf32>
    %209 = vector.extract_strided_slice %29 {offsets = [0, 0], sizes = [1, 8], strides = [1, 1]} : vector<2x8xf32> to vector<1x8xf32>
    %210 = vector.extract_strided_slice %208 {offsets = [0, 0], sizes = [8, 16], strides = [1, 1]} : vector<16x96xf32> to vector<8x16xf32>
    %211 = vector.extract_strided_slice %208 {offsets = [0, 32], sizes = [8, 16], strides = [1, 1]} : vector<16x96xf32> to vector<8x16xf32>
    %212 = vector.extract_strided_slice %208 {offsets = [0, 64], sizes = [8, 16], strides = [1, 1]} : vector<16x96xf32> to vector<8x16xf32>
    %213 = tpu.transpose %211, [1, 0] : vector<8x16xf32> -> vector<16x8xf32>
    %cst_89 = arith.constant dense<0.000000e+00> : vector<8x8xf32>
    %214 = tpu.matmul %210, %213, %cst_89 {dimension_numbers = #tpu.dot_dimension_numbers<[1], [0], [0], [1], [0, 0, 1, 1], [], []>} : vector<8x16xf32>, vector<16x8xf32>, vector<8x8xf32> -> vector<8x8xf32>
    %215 = vector.broadcast %209 : vector<1x8xf32> to vector<8x8xf32>
    %216 = arith.addf %214, %215 : vector<8x8xf32>
    %cst_90 = arith.constant dense<0xFF800000> : vector<8xf32>
    %217 = vector.multi_reduction <maximumf>, %216, %cst_90 [1] : vector<8x8xf32> to vector<8xf32>
    %218 = vector.shape_cast %217 : vector<8xf32> to vector<8x1xf32>
    %219 = vector.broadcast %218 : vector<8x1xf32> to vector<8x8xf32>
    %220 = arith.subf %216, %219 : vector<8x8xf32>
    %221 = math.exp %220 : vector<8x8xf32>
    %cst_91 = arith.constant dense<0.000000e+00> : vector<8xf32>
    %222 = vector.multi_reduction <add>, %221, %cst_91 [1] : vector<8x8xf32> to vector<8xf32>
    %223 = vector.shape_cast %222 : vector<8xf32> to vector<8x1xf32>
    %224 = tpu.reciprocal %223 {approx = true} : vector<8x1xf32> -> vector<8x1xf32>
    %225 = vector.broadcast %224 : vector<8x1xf32> to vector<8x8xf32>
    %226 = arith.mulf %221, %225 : vector<8x8xf32>
    %cst_92 = arith.constant dense<0.000000e+00> : vector<8x16xf32>
    %227 = tpu.matmul %226, %212, %cst_92 {dimension_numbers = #tpu.dot_dimension_numbers<[1], [0], [0], [1], [0, 0, 1, 1], [], []>} : vector<8x8xf32>, vector<8x16xf32>, vector<8x16xf32> -> vector<8x16xf32>
    %228 = vector.extract_strided_slice %208 {offsets = [0, 16], sizes = [8, 16], strides = [1, 1]} : vector<16x96xf32> to vector<8x16xf32>
    %229 = vector.extract_strided_slice %208 {offsets = [0, 48], sizes = [8, 16], strides = [1, 1]} : vector<16x96xf32> to vector<8x16xf32>
    %230 = vector.extract_strided_slice %208 {offsets = [0, 80], sizes = [8, 16], strides = [1, 1]} : vector<16x96xf32> to vector<8x16xf32>
    %231 = tpu.transpose %229, [1, 0] : vector<8x16xf32> -> vector<16x8xf32>
    %cst_93 = arith.constant dense<0.000000e+00> : vector<8x8xf32>
    %232 = tpu.matmul %228, %231, %cst_93 {dimension_numbers = #tpu.dot_dimension_numbers<[1], [0], [0], [1], [0, 0, 1, 1], [], []>} : vector<8x16xf32>, vector<16x8xf32>, vector<8x8xf32> -> vector<8x8xf32>
    %233 = vector.broadcast %209 : vector<1x8xf32> to vector<8x8xf32>
    %234 = arith.addf %232, %233 : vector<8x8xf32>
    %cst_94 = arith.constant dense<0xFF800000> : vector<8xf32>
    %235 = vector.multi_reduction <maximumf>, %234, %cst_94 [1] : vector<8x8xf32> to vector<8xf32>
    %236 = vector.shape_cast %235 : vector<8xf32> to vector<8x1xf32>
    %237 = vector.broadcast %236 : vector<8x1xf32> to vector<8x8xf32>
    %238 = arith.subf %234, %237 : vector<8x8xf32>
    %239 = math.exp %238 : vector<8x8xf32>
    %cst_95 = arith.constant dense<0.000000e+00> : vector<8xf32>
    %240 = vector.multi_reduction <add>, %239, %cst_95 [1] : vector<8x8xf32> to vector<8xf32>
    %241 = vector.shape_cast %240 : vector<8xf32> to vector<8x1xf32>
    %242 = tpu.reciprocal %241 {approx = true} : vector<8x1xf32> -> vector<8x1xf32>
    %243 = vector.broadcast %242 : vector<8x1xf32> to vector<8x8xf32>
    %244 = arith.mulf %239, %243 : vector<8x8xf32>
    %cst_96 = arith.constant dense<0.000000e+00> : vector<8x16xf32>
    %245 = tpu.matmul %244, %230, %cst_96 {dimension_numbers = #tpu.dot_dimension_numbers<[1], [0], [0], [1], [0, 0, 1, 1], [], []>} : vector<8x8xf32>, vector<8x16xf32>, vector<8x16xf32> -> vector<8x16xf32>
    %246 = tpu.concatenate %227, %245 in 1 : vector<8x16xf32>, vector<8x16xf32> -> vector<8x32xf32>
    %247 = vector.extract_strided_slice %29 {offsets = [1, 0], sizes = [1, 8], strides = [1, 1]} : vector<2x8xf32> to vector<1x8xf32>
    %248 = vector.extract_strided_slice %208 {offsets = [8, 0], sizes = [8, 16], strides = [1, 1]} : vector<16x96xf32> to vector<8x16xf32>
    %249 = vector.extract_strided_slice %208 {offsets = [8, 32], sizes = [8, 16], strides = [1, 1]} : vector<16x96xf32> to vector<8x16xf32>
    %250 = vector.extract_strided_slice %208 {offsets = [8, 64], sizes = [8, 16], strides = [1, 1]} : vector<16x96xf32> to vector<8x16xf32>
    %251 = tpu.transpose %249, [1, 0] : vector<8x16xf32> -> vector<16x8xf32>
    %cst_97 = arith.constant dense<0.000000e+00> : vector<8x8xf32>
    %252 = tpu.matmul %248, %251, %cst_97 {dimension_numbers = #tpu.dot_dimension_numbers<[1], [0], [0], [1], [0, 0, 1, 1], [], []>} : vector<8x16xf32>, vector<16x8xf32>, vector<8x8xf32> -> vector<8x8xf32>
    %253 = vector.broadcast %247 : vector<1x8xf32> to vector<8x8xf32>
    %254 = arith.addf %252, %253 : vector<8x8xf32>
    %cst_98 = arith.constant dense<0xFF800000> : vector<8xf32>
    %255 = vector.multi_reduction <maximumf>, %254, %cst_98 [1] : vector<8x8xf32> to vector<8xf32>
    %256 = vector.shape_cast %255 : vector<8xf32> to vector<8x1xf32>
    %257 = vector.broadcast %256 : vector<8x1xf32> to vector<8x8xf32>
    %258 = arith.subf %254, %257 : vector<8x8xf32>
    %259 = math.exp %258 : vector<8x8xf32>
    %cst_99 = arith.constant dense<0.000000e+00> : vector<8xf32>
    %260 = vector.multi_reduction <add>, %259, %cst_99 [1] : vector<8x8xf32> to vector<8xf32>
    %261 = vector.shape_cast %260 : vector<8xf32> to vector<8x1xf32>
    %262 = tpu.reciprocal %261 {approx = true} : vector<8x1xf32> -> vector<8x1xf32>
    %263 = vector.broadcast %262 : vector<8x1xf32> to vector<8x8xf32>
    %264 = arith.mulf %259, %263 : vector<8x8xf32>
    %cst_100 = arith.constant dense<0.000000e+00> : vector<8x16xf32>
    %265 = tpu.matmul %264, %250, %cst_100 {dimension_numbers = #tpu.dot_dimension_numbers<[1], [0], [0], [1], [0, 0, 1, 1], [], []>} : vector<8x8xf32>, vector<8x16xf32>, vector<8x16xf32> -> vector<8x16xf32>
    %266 = vector.extract_strided_slice %208 {offsets = [8, 16], sizes = [8, 16], strides = [1, 1]} : vector<16x96xf32> to vector<8x16xf32>
    %267 = vector.extract_strided_slice %208 {offsets = [8, 48], sizes = [8, 16], strides = [1, 1]} : vector<16x96xf32> to vector<8x16xf32>
    %268 = vector.extract_strided_slice %208 {offsets = [8, 80], sizes = [8, 16], strides = [1, 1]} : vector<16x96xf32> to vector<8x16xf32>
    %269 = tpu.transpose %267, [1, 0] : vector<8x16xf32> -> vector<16x8xf32>
    %cst_101 = arith.constant dense<0.000000e+00> : vector<8x8xf32>
    %270 = tpu.matmul %266, %269, %cst_101 {dimension_numbers = #tpu.dot_dimension_numbers<[1], [0], [0], [1], [0, 0, 1, 1], [], []>} : vector<8x16xf32>, vector<16x8xf32>, vector<8x8xf32> -> vector<8x8xf32>
    %271 = vector.broadcast %247 : vector<1x8xf32> to vector<8x8xf32>
    %272 = arith.addf %270, %271 : vector<8x8xf32>
    %cst_102 = arith.constant dense<0xFF800000> : vector<8xf32>
    %273 = vector.multi_reduction <maximumf>, %272, %cst_102 [1] : vector<8x8xf32> to vector<8xf32>
    %274 = vector.shape_cast %273 : vector<8xf32> to vector<8x1xf32>
    %275 = vector.broadcast %274 : vector<8x1xf32> to vector<8x8xf32>
    %276 = arith.subf %272, %275 : vector<8x8xf32>
    %277 = math.exp %276 : vector<8x8xf32>
    %cst_103 = arith.constant dense<0.000000e+00> : vector<8xf32>
    %278 = vector.multi_reduction <add>, %277, %cst_103 [1] : vector<8x8xf32> to vector<8xf32>
    %279 = vector.shape_cast %278 : vector<8xf32> to vector<8x1xf32>
    %280 = tpu.reciprocal %279 {approx = true} : vector<8x1xf32> -> vector<8x1xf32>
    %281 = vector.broadcast %280 : vector<8x1xf32> to vector<8x8xf32>
    %282 = arith.mulf %277, %281 : vector<8x8xf32>
    %cst_104 = arith.constant dense<0.000000e+00> : vector<8x16xf32>
    %283 = tpu.matmul %282, %268, %cst_104 {dimension_numbers = #tpu.dot_dimension_numbers<[1], [0], [0], [1], [0, 0, 1, 1], [], []>} : vector<8x8xf32>, vector<8x16xf32>, vector<8x16xf32> -> vector<8x16xf32>
    %284 = tpu.concatenate %265, %283 in 1 : vector<8x16xf32>, vector<8x16xf32> -> vector<8x32xf32>
    %285 = tpu.concatenate %246, %284 in 0 : vector<8x32xf32>, vector<8x32xf32> -> vector<16x32xf32>
    %c1_105 = arith.constant 1 : index
    %c0_106 = arith.constant 0 : index
    %c0_107 = arith.constant 0 : index
    %286 = vector.load %arg6[%c1_105, %c0_106, %c0_107] : memref<2x32x32xf32, #tpu.memory_space<vmem>>, vector<1x32x32xf32>
    %287 = vector.shape_cast %286 : vector<1x32x32xf32> to vector<32x32xf32>
    %cst_108 = arith.constant dense<0.000000e+00> : vector<16x32xf32>
    %288 = tpu.matmul %285, %287, %cst_108 {dimension_numbers = #tpu.dot_dimension_numbers<[1], [0], [0], [1], [0, 0, 1, 1], [], []>} : vector<16x32xf32>, vector<32x32xf32>, vector<16x32xf32> -> vector<16x32xf32>
    %c1_109 = arith.constant 1 : index
    %c0_110 = arith.constant 0 : index
    %c0_111 = arith.constant 0 : index
    %289 = vector.load %arg7[%c1_109, %c0_110, %c0_111] : memref<2x1x32xf32, #tpu.memory_space<vmem>>, vector<1x1x32xf32>
    %290 = vector.shape_cast %289 : vector<1x1x32xf32> to vector<1x32xf32>
    %291 = vector.broadcast %290 : vector<1x32xf32> to vector<16x32xf32>
    %292 = arith.addf %288, %291 : vector<16x32xf32>
    %293 = arith.addf %201, %292 : vector<16x32xf32>
    %c1_112 = arith.constant 1 : index
    %c0_113 = arith.constant 0 : index
    %c0_114 = arith.constant 0 : index
    %294 = vector.load %arg8[%c1_112, %c0_113, %c0_114] : memref<2x1x32xf32, #tpu.memory_space<vmem>>, vector<1x1x32xf32>
    %295 = vector.shape_cast %294 : vector<1x1x32xf32> to vector<1x32xf32>
    %c1_115 = arith.constant 1 : index
    %c0_116 = arith.constant 0 : index
    %c0_117 = arith.constant 0 : index
    %296 = vector.load %arg9[%c1_115, %c0_116, %c0_117] : memref<2x1x32xf32, #tpu.memory_space<vmem>>, vector<1x1x32xf32>
    %297 = vector.shape_cast %296 : vector<1x1x32xf32> to vector<1x32xf32>
    %cst_118 = arith.constant dense<0.000000e+00> : vector<16xf32>
    %298 = vector.multi_reduction <add>, %293, %cst_118 [1] : vector<16x32xf32> to vector<16xf32>
    %299 = vector.shape_cast %298 : vector<16xf32> to vector<16x1xf32>
    %cst_119 = arith.constant 3.200000e+01 : f32
    %300 = vector.broadcast %cst_119 : f32 to vector<16x1xf32>
    %301 = arith.divf %299, %300 : vector<16x1xf32>
    %302 = vector.broadcast %301 : vector<16x1xf32> to vector<16x32xf32>
    %303 = arith.subf %293, %302 : vector<16x32xf32>
    %304 = arith.mulf %303, %303 : vector<16x32xf32>
    %cst_120 = arith.constant dense<0.000000e+00> : vector<16xf32>
    %305 = vector.multi_reduction <add>, %304, %cst_120 [1] : vector<16x32xf32> to vector<16xf32>
    %306 = vector.shape_cast %305 : vector<16xf32> to vector<16x1xf32>
    %cst_121 = arith.constant 3.200000e+01 : f32
    %307 = vector.broadcast %cst_121 : f32 to vector<16x1xf32>
    %308 = arith.divf %306, %307 : vector<16x1xf32>
    %309 = vector.broadcast %301 : vector<16x1xf32> to vector<16x32xf32>
    %310 = arith.subf %293, %309 : vector<16x32xf32>
    %cst_122 = arith.constant 9.99999996E-13 : f32
    %311 = vector.broadcast %cst_122 : f32 to vector<16x1xf32>
    %312 = arith.addf %308, %311 : vector<16x1xf32>
    %313 = math.rsqrt %312 : vector<16x1xf32>
    %314 = vector.broadcast %313 : vector<16x1xf32> to vector<16x32xf32>
    %315 = arith.mulf %310, %314 : vector<16x32xf32>
    %316 = vector.broadcast %295 : vector<1x32xf32> to vector<16x32xf32>
    %317 = arith.mulf %315, %316 : vector<16x32xf32>
    %318 = vector.broadcast %297 : vector<1x32xf32> to vector<16x32xf32>
    %319 = arith.addf %317, %318 : vector<16x32xf32>
    %c1_123 = arith.constant 1 : index
    %c0_124 = arith.constant 0 : index
    %c0_125 = arith.constant 0 : index
    %320 = vector.load %arg10[%c1_123, %c0_124, %c0_125] : memref<2x32x64xf32, #tpu.memory_space<vmem>>, vector<1x32x64xf32>
    %321 = vector.shape_cast %320 : vector<1x32x64xf32> to vector<32x64xf32>
    %cst_126 = arith.constant dense<0.000000e+00> : vector<16x64xf32>
    %322 = tpu.matmul %319, %321, %cst_126 {dimension_numbers = #tpu.dot_dimension_numbers<[1], [0], [0], [1], [0, 0, 1, 1], [], []>} : vector<16x32xf32>, vector<32x64xf32>, vector<16x64xf32> -> vector<16x64xf32>
    %c1_127 = arith.constant 1 : index
    %c0_128 = arith.constant 0 : index
    %c0_129 = arith.constant 0 : index
    %323 = vector.load %arg11[%c1_127, %c0_128, %c0_129] : memref<2x1x64xf32, #tpu.memory_space<vmem>>, vector<1x1x64xf32>
    %324 = vector.shape_cast %323 : vector<1x1x64xf32> to vector<1x64xf32>
    %325 = vector.broadcast %324 : vector<1x64xf32> to vector<16x64xf32>
    %326 = arith.addf %322, %325 : vector<16x64xf32>
    %327 = arith.mulf %326, %326 : vector<16x64xf32>
    %328 = arith.mulf %326, %327 : vector<16x64xf32>
    %cst_130 = arith.constant 4.471500e-02 : f32
    %329 = vector.broadcast %cst_130 : f32 to vector<16x64xf32>
    %330 = arith.mulf %329, %328 : vector<16x64xf32>
    %331 = arith.addf %326, %330 : vector<16x64xf32>
    %cst_131 = arith.constant 0.797884583 : f32
    %332 = vector.broadcast %cst_131 : f32 to vector<16x64xf32>
    %333 = arith.mulf %332, %331 : vector<16x64xf32>
    %334 = math.tanh %333 : vector<16x64xf32>
    %cst_132 = arith.constant 1.000000e+00 : f32
    %335 = vector.broadcast %cst_132 : f32 to vector<16x64xf32>
    %336 = arith.addf %335, %334 : vector<16x64xf32>
    %cst_133 = arith.constant 5.000000e-01 : f32
    %337 = vector.broadcast %cst_133 : f32 to vector<16x64xf32>
    %338 = arith.mulf %337, %336 : vector<16x64xf32>
    %339 = arith.mulf %326, %338 : vector<16x64xf32>
    %c1_134 = arith.constant 1 : index
    %c0_135 = arith.constant 0 : index
    %c0_136 = arith.constant 0 : index
    %340 = vector.load %arg12[%c1_134, %c0_135, %c0_136] : memref<2x64x32xf32, #tpu.memory_space<vmem>>, vector<1x64x32xf32>
    %341 = vector.shape_cast %340 : vector<1x64x32xf32> to vector<64x32xf32>
    %cst_137 = arith.constant dense<0.000000e+00> : vector<16x32xf32>
    %342 = tpu.matmul %339, %341, %cst_137 {dimension_numbers = #tpu.dot_dimension_numbers<[1], [0], [0], [1], [0, 0, 1, 1], [], []>} : vector<16x64xf32>, vector<64x32xf32>, vector<16x32xf32> -> vector<16x32xf32>
    %c1_138 = arith.constant 1 : index
    %c0_139 = arith.constant 0 : index
    %c0_140 = arith.constant 0 : index
    %343 = vector.load %arg13[%c1_138, %c0_139, %c0_140] : memref<2x1x32xf32, #tpu.memory_space<vmem>>, vector<1x1x32xf32>
    %344 = vector.shape_cast %343 : vector<1x1x32xf32> to vector<1x32xf32>
    %345 = vector.broadcast %344 : vector<1x32xf32> to vector<16x32xf32>
    %346 = arith.addf %342, %345 : vector<16x32xf32>
    %347 = arith.addf %319, %346 : vector<16x32xf32>
    %c1_141 = arith.constant 1 : index
    %c0_142 = arith.constant 0 : index
    %c0_143 = arith.constant 0 : index
    %348 = vector.load %arg14[%c1_141, %c0_142, %c0_143] : memref<2x1x32xf32, #tpu.memory_space<vmem>>, vector<1x1x32xf32>
    %349 = vector.shape_cast %348 : vector<1x1x32xf32> to vector<1x32xf32>
    %c1_144 = arith.constant 1 : index
    %c0_145 = arith.constant 0 : index
    %c0_146 = arith.constant 0 : index
    %350 = vector.load %arg15[%c1_144, %c0_145, %c0_146] : memref<2x1x32xf32, #tpu.memory_space<vmem>>, vector<1x1x32xf32>
    %351 = vector.shape_cast %350 : vector<1x1x32xf32> to vector<1x32xf32>
    %cst_147 = arith.constant dense<0.000000e+00> : vector<16xf32>
    %352 = vector.multi_reduction <add>, %347, %cst_147 [1] : vector<16x32xf32> to vector<16xf32>
    %353 = vector.shape_cast %352 : vector<16xf32> to vector<16x1xf32>
    %cst_148 = arith.constant 3.200000e+01 : f32
    %354 = vector.broadcast %cst_148 : f32 to vector<16x1xf32>
    %355 = arith.divf %353, %354 : vector<16x1xf32>
    %356 = vector.broadcast %355 : vector<16x1xf32> to vector<16x32xf32>
    %357 = arith.subf %347, %356 : vector<16x32xf32>
    %358 = arith.mulf %357, %357 : vector<16x32xf32>
    %cst_149 = arith.constant dense<0.000000e+00> : vector<16xf32>
    %359 = vector.multi_reduction <add>, %358, %cst_149 [1] : vector<16x32xf32> to vector<16xf32>
    %360 = vector.shape_cast %359 : vector<16xf32> to vector<16x1xf32>
    %cst_150 = arith.constant 3.200000e+01 : f32
    %361 = vector.broadcast %cst_150 : f32 to vector<16x1xf32>
    %362 = arith.divf %360, %361 : vector<16x1xf32>
    %363 = vector.broadcast %355 : vector<16x1xf32> to vector<16x32xf32>
    %364 = arith.subf %347, %363 : vector<16x32xf32>
    %cst_151 = arith.constant 9.99999996E-13 : f32
    %365 = vector.broadcast %cst_151 : f32 to vector<16x1xf32>
    %366 = arith.addf %362, %365 : vector<16x1xf32>
    %367 = math.rsqrt %366 : vector<16x1xf32>
    %368 = vector.broadcast %367 : vector<16x1xf32> to vector<16x32xf32>
    %369 = arith.mulf %364, %368 : vector<16x32xf32>
    %370 = vector.broadcast %349 : vector<1x32xf32> to vector<16x32xf32>
    %371 = arith.mulf %369, %370 : vector<16x32xf32>
    %372 = vector.broadcast %351 : vector<1x32xf32> to vector<16x32xf32>
    %373 = arith.addf %371, %372 : vector<16x32xf32>
    %c0_152 = arith.constant 0 : index
    %c0_153 = arith.constant 0 : index
    %374 = vector.load %arg16[%c0_152, %c0_153] : memref<32x128xf32, #tpu.memory_space<vmem>>, vector<32x128xf32>
    %cst_154 = arith.constant dense<0.000000e+00> : vector<16x128xf32>
    %375 = tpu.matmul %373, %374, %cst_154 {dimension_numbers = #tpu.dot_dimension_numbers<[1], [0], [0], [1], [0, 0, 1, 1], [], []>} : vector<16x32xf32>, vector<32x128xf32>, vector<16x128xf32> -> vector<16x128xf32>
    %c0_155 = arith.constant 0 : index
    %c0_156 = arith.constant 0 : index
    %376 = vector.load %arg18[%c0_155, %c0_156] : memref<1x128xf32, #tpu.memory_space<vmem>>, vector<1x128xf32>
    %377 = vector.broadcast %376 : vector<1x128xf32> to vector<16x128xf32>
    %378 = arith.addf %375, %377 : vector<16x128xf32>
    %379 = vector.shape_cast %378 : vector<16x128xf32> to vector<2x8x128xf32>
    %c0_157 = arith.constant 0 : index
    %c0_158 = arith.constant 0 : index
    %380 = vector.load %arg19[%c0_157, %c0_158] : memref<32x128xf32, #tpu.memory_space<vmem>>, vector<32x128xf32>
    %cst_159 = arith.constant dense<0.000000e+00> : vector<16x128xf32>
    %381 = tpu.matmul %373, %380, %cst_159 {dimension_numbers = #tpu.dot_dimension_numbers<[1], [0], [0], [1], [0, 0, 1, 1], [], []>} : vector<16x32xf32>, vector<32x128xf32>, vector<16x128xf32> -> vector<16x128xf32>
    %c0_160 = arith.constant 0 : index
    %c0_161 = arith.constant 0 : index
    %382 = vector.load %arg21[%c0_160, %c0_161] : memref<1x128xf32, #tpu.memory_space<vmem>>, vector<1x128xf32>
    %383 = vector.broadcast %382 : vector<1x128xf32> to vector<16x128xf32>
    %384 = arith.addf %381, %383 : vector<16x128xf32>
    %385 = vector.shape_cast %384 : vector<16x128xf32> to vector<2x8x128xf32>
    %c0_162 = arith.constant 0 : index
    %c0_163 = arith.constant 0 : index
    %386 = vector.load %arg17[%c0_162, %c0_163] : memref<32x128xf32, #tpu.memory_space<vmem>>, vector<32x128xf32>
    %c0_164 = arith.constant 0 : index
    %c0_165 = arith.constant 0 : index
    %387 = vector.load %arg20[%c0_164, %c0_165] : memref<32x128xf32, #tpu.memory_space<vmem>>, vector<32x128xf32>
    %388 = vector.extract_strided_slice %386 {offsets = [0, 0], sizes = [32, 32], strides = [1, 1]} : vector<32x128xf32> to vector<32x32xf32>
    %389 = vector.extract_strided_slice %386 {offsets = [0, 32], sizes = [32, 32], strides = [1, 1]} : vector<32x128xf32> to vector<32x32xf32>
    %390 = vector.extract_strided_slice %386 {offsets = [0, 64], sizes = [32, 32], strides = [1, 1]} : vector<32x128xf32> to vector<32x32xf32>
    %391 = vector.extract_strided_slice %386 {offsets = [0, 96], sizes = [32, 32], strides = [1, 1]} : vector<32x128xf32> to vector<32x32xf32>
    %392 = vector.extract_strided_slice %387 {offsets = [0, 0], sizes = [32, 32], strides = [1, 1]} : vector<32x128xf32> to vector<32x32xf32>
    %393 = vector.extract_strided_slice %387 {offsets = [0, 32], sizes = [32, 32], strides = [1, 1]} : vector<32x128xf32> to vector<32x32xf32>
    %394 = vector.extract_strided_slice %387 {offsets = [0, 64], sizes = [32, 32], strides = [1, 1]} : vector<32x128xf32> to vector<32x32xf32>
    %395 = vector.extract_strided_slice %387 {offsets = [0, 96], sizes = [32, 32], strides = [1, 1]} : vector<32x128xf32> to vector<32x32xf32>
    %cst_166 = arith.constant 0.000000e+00 : f32
    %396 = vector.broadcast %cst_166 : f32 to vector<2x32xf32>
    %cst_167 = arith.constant 0.000000e+00 : f32
    %397 = vector.broadcast %cst_167 : f32 to vector<2x32xf32>
    %cst_168 = arith.constant 0.000000e+00 : f32
    %398 = vector.broadcast %cst_168 : f32 to vector<2x32xf32>
    %cst_169 = arith.constant 0.000000e+00 : f32
    %399 = vector.broadcast %cst_169 : f32 to vector<2x32xf32>
    %400 = vector.extract_strided_slice %379 {offsets = [0, 0, 0], sizes = [2, 1, 128], strides = [1, 1, 1]} : vector<2x8x128xf32> to vector<2x1x128xf32>
    %401 = vector.shape_cast %400 : vector<2x1x128xf32> to vector<2x128xf32>
    %402 = vector.extract_strided_slice %401 {offsets = [0, 0], sizes = [2, 32], strides = [1, 1]} : vector<2x128xf32> to vector<2x32xf32>
    %cst_170 = arith.constant dense<0.000000e+00> : vector<2x32xf32>
    %403 = tpu.matmul %396, %388, %cst_170 {dimension_numbers = #tpu.dot_dimension_numbers<[1], [0], [0], [1], [0, 0, 1, 1], [], []>} : vector<2x32xf32>, vector<32x32xf32>, vector<2x32xf32> -> vector<2x32xf32>
    %404 = arith.addf %402, %403 : vector<2x32xf32>
    %405 = arith.negf %404 : vector<2x32xf32>
    %406 = math.exp %405 : vector<2x32xf32>
    %cst_171 = arith.constant 1.000000e+00 : f32
    %407 = vector.broadcast %cst_171 : f32 to vector<2x32xf32>
    %408 = arith.addf %407, %406 : vector<2x32xf32>
    %409 = arith.divf %407, %408 : vector<2x32xf32>
    %410 = vector.extract_strided_slice %401 {offsets = [0, 32], sizes = [2, 32], strides = [1, 1]} : vector<2x128xf32> to vector<2x32xf32>
    %cst_172 = arith.constant dense<0.000000e+00> : vector<2x32xf32>
    %411 = tpu.matmul %396, %389, %cst_172 {dimension_numbers = #tpu.dot_dimension_numbers<[1], [0], [0], [1], [0, 0, 1, 1], [], []>} : vector<2x32xf32>, vector<32x32xf32>, vector<2x32xf32> -> vector<2x32xf32>
    %412 = arith.addf %410, %411 : vector<2x32xf32>
    %413 = arith.negf %412 : vector<2x32xf32>
    %414 = math.exp %413 : vector<2x32xf32>
    %cst_173 = arith.constant 1.000000e+00 : f32
    %415 = vector.broadcast %cst_173 : f32 to vector<2x32xf32>
    %416 = arith.addf %415, %414 : vector<2x32xf32>
    %417 = arith.divf %415, %416 : vector<2x32xf32>
    %418 = vector.extract_strided_slice %401 {offsets = [0, 64], sizes = [2, 32], strides = [1, 1]} : vector<2x128xf32> to vector<2x32xf32>
    %cst_174 = arith.constant dense<0.000000e+00> : vector<2x32xf32>
    %419 = tpu.matmul %396, %390, %cst_174 {dimension_numbers = #tpu.dot_dimension_numbers<[1], [0], [0], [1], [0, 0, 1, 1], [], []>} : vector<2x32xf32>, vector<32x32xf32>, vector<2x32xf32> -> vector<2x32xf32>
    %420 = arith.addf %418, %419 : vector<2x32xf32>
    %421 = math.tanh %420 : vector<2x32xf32>
    %422 = vector.extract_strided_slice %401 {offsets = [0, 96], sizes = [2, 32], strides = [1, 1]} : vector<2x128xf32> to vector<2x32xf32>
    %cst_175 = arith.constant dense<0.000000e+00> : vector<2x32xf32>
    %423 = tpu.matmul %396, %391, %cst_175 {dimension_numbers = #tpu.dot_dimension_numbers<[1], [0], [0], [1], [0, 0, 1, 1], [], []>} : vector<2x32xf32>, vector<32x32xf32>, vector<2x32xf32> -> vector<2x32xf32>
    %424 = arith.addf %422, %423 : vector<2x32xf32>
    %425 = arith.negf %424 : vector<2x32xf32>
    %426 = math.exp %425 : vector<2x32xf32>
    %cst_176 = arith.constant 1.000000e+00 : f32
    %427 = vector.broadcast %cst_176 : f32 to vector<2x32xf32>
    %428 = arith.addf %427, %426 : vector<2x32xf32>
    %429 = arith.divf %427, %428 : vector<2x32xf32>
    %430 = arith.mulf %417, %397 : vector<2x32xf32>
    %431 = arith.mulf %409, %421 : vector<2x32xf32>
    %432 = arith.addf %430, %431 : vector<2x32xf32>
    %433 = math.tanh %432 : vector<2x32xf32>
    %434 = arith.mulf %429, %433 : vector<2x32xf32>
    %435 = vector.extract_strided_slice %385 {offsets = [0, 7, 0], sizes = [2, 1, 128], strides = [1, 1, 1]} : vector<2x8x128xf32> to vector<2x1x128xf32>
    %436 = vector.shape_cast %435 : vector<2x1x128xf32> to vector<2x128xf32>
    %437 = vector.extract_strided_slice %436 {offsets = [0, 0], sizes = [2, 32], strides = [1, 1]} : vector<2x128xf32> to vector<2x32xf32>
    %cst_177 = arith.constant dense<0.000000e+00> : vector<2x32xf32>
    %438 = tpu.matmul %398, %392, %cst_177 {dimension_numbers = #tpu.dot_dimension_numbers<[1], [0], [0], [1], [0, 0, 1, 1], [], []>} : vector<2x32xf32>, vector<32x32xf32>, vector<2x32xf32> -> vector<2x32xf32>
    %439 = arith.addf %437, %438 : vector<2x32xf32>
    %440 = arith.negf %439 : vector<2x32xf32>
    %441 = math.exp %440 : vector<2x32xf32>
    %cst_178 = arith.constant 1.000000e+00 : f32
    %442 = vector.broadcast %cst_178 : f32 to vector<2x32xf32>
    %443 = arith.addf %442, %441 : vector<2x32xf32>
    %444 = arith.divf %442, %443 : vector<2x32xf32>
    %445 = vector.extract_strided_slice %436 {offsets = [0, 32], sizes = [2, 32], strides = [1, 1]} : vector<2x128xf32> to vector<2x32xf32>
    %cst_179 = arith.constant dense<0.000000e+00> : vector<2x32xf32>
    %446 = tpu.matmul %398, %393, %cst_179 {dimension_numbers = #tpu.dot_dimension_numbers<[1], [0], [0], [1], [0, 0, 1, 1], [], []>} : vector<2x32xf32>, vector<32x32xf32>, vector<2x32xf32> -> vector<2x32xf32>
    %447 = arith.addf %445, %446 : vector<2x32xf32>
    %448 = arith.negf %447 : vector<2x32xf32>
    %449 = math.exp %448 : vector<2x32xf32>
    %cst_180 = arith.constant 1.000000e+00 : f32
    %450 = vector.broadcast %cst_180 : f32 to vector<2x32xf32>
    %451 = arith.addf %450, %449 : vector<2x32xf32>
    %452 = arith.divf %450, %451 : vector<2x32xf32>
    %453 = vector.extract_strided_slice %436 {offsets = [0, 64], sizes = [2, 32], strides = [1, 1]} : vector<2x128xf32> to vector<2x32xf32>
    %cst_181 = arith.constant dense<0.000000e+00> : vector<2x32xf32>
    %454 = tpu.matmul %398, %394, %cst_181 {dimension_numbers = #tpu.dot_dimension_numbers<[1], [0], [0], [1], [0, 0, 1, 1], [], []>} : vector<2x32xf32>, vector<32x32xf32>, vector<2x32xf32> -> vector<2x32xf32>
    %455 = arith.addf %453, %454 : vector<2x32xf32>
    %456 = math.tanh %455 : vector<2x32xf32>
    %457 = vector.extract_strided_slice %436 {offsets = [0, 96], sizes = [2, 32], strides = [1, 1]} : vector<2x128xf32> to vector<2x32xf32>
    %cst_182 = arith.constant dense<0.000000e+00> : vector<2x32xf32>
    %458 = tpu.matmul %398, %395, %cst_182 {dimension_numbers = #tpu.dot_dimension_numbers<[1], [0], [0], [1], [0, 0, 1, 1], [], []>} : vector<2x32xf32>, vector<32x32xf32>, vector<2x32xf32> -> vector<2x32xf32>
    %459 = arith.addf %457, %458 : vector<2x32xf32>
    %460 = arith.negf %459 : vector<2x32xf32>
    %461 = math.exp %460 : vector<2x32xf32>
    %cst_183 = arith.constant 1.000000e+00 : f32
    %462 = vector.broadcast %cst_183 : f32 to vector<2x32xf32>
    %463 = arith.addf %462, %461 : vector<2x32xf32>
    %464 = arith.divf %462, %463 : vector<2x32xf32>
    %465 = arith.mulf %452, %399 : vector<2x32xf32>
    %466 = arith.mulf %444, %456 : vector<2x32xf32>
    %467 = arith.addf %465, %466 : vector<2x32xf32>
    %468 = math.tanh %467 : vector<2x32xf32>
    %469 = arith.mulf %464, %468 : vector<2x32xf32>
    %470 = vector.extract_strided_slice %379 {offsets = [0, 1, 0], sizes = [2, 1, 128], strides = [1, 1, 1]} : vector<2x8x128xf32> to vector<2x1x128xf32>
    %471 = vector.shape_cast %470 : vector<2x1x128xf32> to vector<2x128xf32>
    %472 = vector.extract_strided_slice %471 {offsets = [0, 0], sizes = [2, 32], strides = [1, 1]} : vector<2x128xf32> to vector<2x32xf32>
    %cst_184 = arith.constant dense<0.000000e+00> : vector<2x32xf32>
    %473 = tpu.matmul %434, %388, %cst_184 {dimension_numbers = #tpu.dot_dimension_numbers<[1], [0], [0], [1], [0, 0, 1, 1], [], []>} : vector<2x32xf32>, vector<32x32xf32>, vector<2x32xf32> -> vector<2x32xf32>
    %474 = arith.addf %472, %473 : vector<2x32xf32>
    %475 = arith.negf %474 : vector<2x32xf32>
    %476 = math.exp %475 : vector<2x32xf32>
    %cst_185 = arith.constant 1.000000e+00 : f32
    %477 = vector.broadcast %cst_185 : f32 to vector<2x32xf32>
    %478 = arith.addf %477, %476 : vector<2x32xf32>
    %479 = arith.divf %477, %478 : vector<2x32xf32>
    %480 = vector.extract_strided_slice %471 {offsets = [0, 32], sizes = [2, 32], strides = [1, 1]} : vector<2x128xf32> to vector<2x32xf32>
    %cst_186 = arith.constant dense<0.000000e+00> : vector<2x32xf32>
    %481 = tpu.matmul %434, %389, %cst_186 {dimension_numbers = #tpu.dot_dimension_numbers<[1], [0], [0], [1], [0, 0, 1, 1], [], []>} : vector<2x32xf32>, vector<32x32xf32>, vector<2x32xf32> -> vector<2x32xf32>
    %482 = arith.addf %480, %481 : vector<2x32xf32>
    %483 = arith.negf %482 : vector<2x32xf32>
    %484 = math.exp %483 : vector<2x32xf32>
    %cst_187 = arith.constant 1.000000e+00 : f32
    %485 = vector.broadcast %cst_187 : f32 to vector<2x32xf32>
    %486 = arith.addf %485, %484 : vector<2x32xf32>
    %487 = arith.divf %485, %486 : vector<2x32xf32>
    %488 = vector.extract_strided_slice %471 {offsets = [0, 64], sizes = [2, 32], strides = [1, 1]} : vector<2x128xf32> to vector<2x32xf32>
    %cst_188 = arith.constant dense<0.000000e+00> : vector<2x32xf32>
    %489 = tpu.matmul %434, %390, %cst_188 {dimension_numbers = #tpu.dot_dimension_numbers<[1], [0], [0], [1], [0, 0, 1, 1], [], []>} : vector<2x32xf32>, vector<32x32xf32>, vector<2x32xf32> -> vector<2x32xf32>
    %490 = arith.addf %488, %489 : vector<2x32xf32>
    %491 = math.tanh %490 : vector<2x32xf32>
    %492 = vector.extract_strided_slice %471 {offsets = [0, 96], sizes = [2, 32], strides = [1, 1]} : vector<2x128xf32> to vector<2x32xf32>
    %cst_189 = arith.constant dense<0.000000e+00> : vector<2x32xf32>
    %493 = tpu.matmul %434, %391, %cst_189 {dimension_numbers = #tpu.dot_dimension_numbers<[1], [0], [0], [1], [0, 0, 1, 1], [], []>} : vector<2x32xf32>, vector<32x32xf32>, vector<2x32xf32> -> vector<2x32xf32>
    %494 = arith.addf %492, %493 : vector<2x32xf32>
    %495 = arith.negf %494 : vector<2x32xf32>
    %496 = math.exp %495 : vector<2x32xf32>
    %cst_190 = arith.constant 1.000000e+00 : f32
    %497 = vector.broadcast %cst_190 : f32 to vector<2x32xf32>
    %498 = arith.addf %497, %496 : vector<2x32xf32>
    %499 = arith.divf %497, %498 : vector<2x32xf32>
    %500 = arith.mulf %487, %432 : vector<2x32xf32>
    %501 = arith.mulf %479, %491 : vector<2x32xf32>
    %502 = arith.addf %500, %501 : vector<2x32xf32>
    %503 = math.tanh %502 : vector<2x32xf32>
    %504 = arith.mulf %499, %503 : vector<2x32xf32>
    %505 = vector.extract_strided_slice %385 {offsets = [0, 6, 0], sizes = [2, 1, 128], strides = [1, 1, 1]} : vector<2x8x128xf32> to vector<2x1x128xf32>
    %506 = vector.shape_cast %505 : vector<2x1x128xf32> to vector<2x128xf32>
    %507 = vector.extract_strided_slice %506 {offsets = [0, 0], sizes = [2, 32], strides = [1, 1]} : vector<2x128xf32> to vector<2x32xf32>
    %cst_191 = arith.constant dense<0.000000e+00> : vector<2x32xf32>
    %508 = tpu.matmul %469, %392, %cst_191 {dimension_numbers = #tpu.dot_dimension_numbers<[1], [0], [0], [1], [0, 0, 1, 1], [], []>} : vector<2x32xf32>, vector<32x32xf32>, vector<2x32xf32> -> vector<2x32xf32>
    %509 = arith.addf %507, %508 : vector<2x32xf32>
    %510 = arith.negf %509 : vector<2x32xf32>
    %511 = math.exp %510 : vector<2x32xf32>
    %cst_192 = arith.constant 1.000000e+00 : f32
    %512 = vector.broadcast %cst_192 : f32 to vector<2x32xf32>
    %513 = arith.addf %512, %511 : vector<2x32xf32>
    %514 = arith.divf %512, %513 : vector<2x32xf32>
    %515 = vector.extract_strided_slice %506 {offsets = [0, 32], sizes = [2, 32], strides = [1, 1]} : vector<2x128xf32> to vector<2x32xf32>
    %cst_193 = arith.constant dense<0.000000e+00> : vector<2x32xf32>
    %516 = tpu.matmul %469, %393, %cst_193 {dimension_numbers = #tpu.dot_dimension_numbers<[1], [0], [0], [1], [0, 0, 1, 1], [], []>} : vector<2x32xf32>, vector<32x32xf32>, vector<2x32xf32> -> vector<2x32xf32>
    %517 = arith.addf %515, %516 : vector<2x32xf32>
    %518 = arith.negf %517 : vector<2x32xf32>
    %519 = math.exp %518 : vector<2x32xf32>
    %cst_194 = arith.constant 1.000000e+00 : f32
    %520 = vector.broadcast %cst_194 : f32 to vector<2x32xf32>
    %521 = arith.addf %520, %519 : vector<2x32xf32>
    %522 = arith.divf %520, %521 : vector<2x32xf32>
    %523 = vector.extract_strided_slice %506 {offsets = [0, 64], sizes = [2, 32], strides = [1, 1]} : vector<2x128xf32> to vector<2x32xf32>
    %cst_195 = arith.constant dense<0.000000e+00> : vector<2x32xf32>
    %524 = tpu.matmul %469, %394, %cst_195 {dimension_numbers = #tpu.dot_dimension_numbers<[1], [0], [0], [1], [0, 0, 1, 1], [], []>} : vector<2x32xf32>, vector<32x32xf32>, vector<2x32xf32> -> vector<2x32xf32>
    %525 = arith.addf %523, %524 : vector<2x32xf32>
    %526 = math.tanh %525 : vector<2x32xf32>
    %527 = vector.extract_strided_slice %506 {offsets = [0, 96], sizes = [2, 32], strides = [1, 1]} : vector<2x128xf32> to vector<2x32xf32>
    %cst_196 = arith.constant dense<0.000000e+00> : vector<2x32xf32>
    %528 = tpu.matmul %469, %395, %cst_196 {dimension_numbers = #tpu.dot_dimension_numbers<[1], [0], [0], [1], [0, 0, 1, 1], [], []>} : vector<2x32xf32>, vector<32x32xf32>, vector<2x32xf32> -> vector<2x32xf32>
    %529 = arith.addf %527, %528 : vector<2x32xf32>
    %530 = arith.negf %529 : vector<2x32xf32>
    %531 = math.exp %530 : vector<2x32xf32>
    %cst_197 = arith.constant 1.000000e+00 : f32
    %532 = vector.broadcast %cst_197 : f32 to vector<2x32xf32>
    %533 = arith.addf %532, %531 : vector<2x32xf32>
    %534 = arith.divf %532, %533 : vector<2x32xf32>
    %535 = arith.mulf %522, %467 : vector<2x32xf32>
    %536 = arith.mulf %514, %526 : vector<2x32xf32>
    %537 = arith.addf %535, %536 : vector<2x32xf32>
    %538 = math.tanh %537 : vector<2x32xf32>
    %539 = arith.mulf %534, %538 : vector<2x32xf32>
    %540 = vector.extract_strided_slice %379 {offsets = [0, 2, 0], sizes = [2, 1, 128], strides = [1, 1, 1]} : vector<2x8x128xf32> to vector<2x1x128xf32>
    %541 = vector.shape_cast %540 : vector<2x1x128xf32> to vector<2x128xf32>
    %542 = vector.extract_strided_slice %541 {offsets = [0, 0], sizes = [2, 32], strides = [1, 1]} : vector<2x128xf32> to vector<2x32xf32>
    %cst_198 = arith.constant dense<0.000000e+00> : vector<2x32xf32>
    %543 = tpu.matmul %504, %388, %cst_198 {dimension_numbers = #tpu.dot_dimension_numbers<[1], [0], [0], [1], [0, 0, 1, 1], [], []>} : vector<2x32xf32>, vector<32x32xf32>, vector<2x32xf32> -> vector<2x32xf32>
    %544 = arith.addf %542, %543 : vector<2x32xf32>
    %545 = arith.negf %544 : vector<2x32xf32>
    %546 = math.exp %545 : vector<2x32xf32>
    %cst_199 = arith.constant 1.000000e+00 : f32
    %547 = vector.broadcast %cst_199 : f32 to vector<2x32xf32>
    %548 = arith.addf %547, %546 : vector<2x32xf32>
    %549 = arith.divf %547, %548 : vector<2x32xf32>
    %550 = vector.extract_strided_slice %541 {offsets = [0, 32], sizes = [2, 32], strides = [1, 1]} : vector<2x128xf32> to vector<2x32xf32>
    %cst_200 = arith.constant dense<0.000000e+00> : vector<2x32xf32>
    %551 = tpu.matmul %504, %389, %cst_200 {dimension_numbers = #tpu.dot_dimension_numbers<[1], [0], [0], [1], [0, 0, 1, 1], [], []>} : vector<2x32xf32>, vector<32x32xf32>, vector<2x32xf32> -> vector<2x32xf32>
    %552 = arith.addf %550, %551 : vector<2x32xf32>
    %553 = arith.negf %552 : vector<2x32xf32>
    %554 = math.exp %553 : vector<2x32xf32>
    %cst_201 = arith.constant 1.000000e+00 : f32
    %555 = vector.broadcast %cst_201 : f32 to vector<2x32xf32>
    %556 = arith.addf %555, %554 : vector<2x32xf32>
    %557 = arith.divf %555, %556 : vector<2x32xf32>
    %558 = vector.extract_strided_slice %541 {offsets = [0, 64], sizes = [2, 32], strides = [1, 1]} : vector<2x128xf32> to vector<2x32xf32>
    %cst_202 = arith.constant dense<0.000000e+00> : vector<2x32xf32>
    %559 = tpu.matmul %504, %390, %cst_202 {dimension_numbers = #tpu.dot_dimension_numbers<[1], [0], [0], [1], [0, 0, 1, 1], [], []>} : vector<2x32xf32>, vector<32x32xf32>, vector<2x32xf32> -> vector<2x32xf32>
    %560 = arith.addf %558, %559 : vector<2x32xf32>
    %561 = math.tanh %560 : vector<2x32xf32>
    %562 = vector.extract_strided_slice %541 {offsets = [0, 96], sizes = [2, 32], strides = [1, 1]} : vector<2x128xf32> to vector<2x32xf32>
    %cst_203 = arith.constant dense<0.000000e+00> : vector<2x32xf32>
    %563 = tpu.matmul %504, %391, %cst_203 {dimension_numbers = #tpu.dot_dimension_numbers<[1], [0], [0], [1], [0, 0, 1, 1], [], []>} : vector<2x32xf32>, vector<32x32xf32>, vector<2x32xf32> -> vector<2x32xf32>
    %564 = arith.addf %562, %563 : vector<2x32xf32>
    %565 = arith.negf %564 : vector<2x32xf32>
    %566 = math.exp %565 : vector<2x32xf32>
    %cst_204 = arith.constant 1.000000e+00 : f32
    %567 = vector.broadcast %cst_204 : f32 to vector<2x32xf32>
    %568 = arith.addf %567, %566 : vector<2x32xf32>
    %569 = arith.divf %567, %568 : vector<2x32xf32>
    %570 = arith.mulf %557, %502 : vector<2x32xf32>
    %571 = arith.mulf %549, %561 : vector<2x32xf32>
    %572 = arith.addf %570, %571 : vector<2x32xf32>
    %573 = math.tanh %572 : vector<2x32xf32>
    %574 = arith.mulf %569, %573 : vector<2x32xf32>
    %575 = vector.extract_strided_slice %385 {offsets = [0, 5, 0], sizes = [2, 1, 128], strides = [1, 1, 1]} : vector<2x8x128xf32> to vector<2x1x128xf32>
    %576 = vector.shape_cast %575 : vector<2x1x128xf32> to vector<2x128xf32>
    %577 = vector.extract_strided_slice %576 {offsets = [0, 0], sizes = [2, 32], strides = [1, 1]} : vector<2x128xf32> to vector<2x32xf32>
    %cst_205 = arith.constant dense<0.000000e+00> : vector<2x32xf32>
    %578 = tpu.matmul %539, %392, %cst_205 {dimension_numbers = #tpu.dot_dimension_numbers<[1], [0], [0], [1], [0, 0, 1, 1], [], []>} : vector<2x32xf32>, vector<32x32xf32>, vector<2x32xf32> -> vector<2x32xf32>
    %579 = arith.addf %577, %578 : vector<2x32xf32>
    %580 = arith.negf %579 : vector<2x32xf32>
    %581 = math.exp %580 : vector<2x32xf32>
    %cst_206 = arith.constant 1.000000e+00 : f32
    %582 = vector.broadcast %cst_206 : f32 to vector<2x32xf32>
    %583 = arith.addf %582, %581 : vector<2x32xf32>
    %584 = arith.divf %582, %583 : vector<2x32xf32>
    %585 = vector.extract_strided_slice %576 {offsets = [0, 32], sizes = [2, 32], strides = [1, 1]} : vector<2x128xf32> to vector<2x32xf32>
    %cst_207 = arith.constant dense<0.000000e+00> : vector<2x32xf32>
    %586 = tpu.matmul %539, %393, %cst_207 {dimension_numbers = #tpu.dot_dimension_numbers<[1], [0], [0], [1], [0, 0, 1, 1], [], []>} : vector<2x32xf32>, vector<32x32xf32>, vector<2x32xf32> -> vector<2x32xf32>
    %587 = arith.addf %585, %586 : vector<2x32xf32>
    %588 = arith.negf %587 : vector<2x32xf32>
    %589 = math.exp %588 : vector<2x32xf32>
    %cst_208 = arith.constant 1.000000e+00 : f32
    %590 = vector.broadcast %cst_208 : f32 to vector<2x32xf32>
    %591 = arith.addf %590, %589 : vector<2x32xf32>
    %592 = arith.divf %590, %591 : vector<2x32xf32>
    %593 = vector.extract_strided_slice %576 {offsets = [0, 64], sizes = [2, 32], strides = [1, 1]} : vector<2x128xf32> to vector<2x32xf32>
    %cst_209 = arith.constant dense<0.000000e+00> : vector<2x32xf32>
    %594 = tpu.matmul %539, %394, %cst_209 {dimension_numbers = #tpu.dot_dimension_numbers<[1], [0], [0], [1], [0, 0, 1, 1], [], []>} : vector<2x32xf32>, vector<32x32xf32>, vector<2x32xf32> -> vector<2x32xf32>
    %595 = arith.addf %593, %594 : vector<2x32xf32>
    %596 = math.tanh %595 : vector<2x32xf32>
    %597 = vector.extract_strided_slice %576 {offsets = [0, 96], sizes = [2, 32], strides = [1, 1]} : vector<2x128xf32> to vector<2x32xf32>
    %cst_210 = arith.constant dense<0.000000e+00> : vector<2x32xf32>
    %598 = tpu.matmul %539, %395, %cst_210 {dimension_numbers = #tpu.dot_dimension_numbers<[1], [0], [0], [1], [0, 0, 1, 1], [], []>} : vector<2x32xf32>, vector<32x32xf32>, vector<2x32xf32> -> vector<2x32xf32>
    %599 = arith.addf %597, %598 : vector<2x32xf32>
    %600 = arith.negf %599 : vector<2x32xf32>
    %601 = math.exp %600 : vector<2x32xf32>
    %cst_211 = arith.constant 1.000000e+00 : f32
    %602 = vector.broadcast %cst_211 : f32 to vector<2x32xf32>
    %603 = arith.addf %602, %601 : vector<2x32xf32>
    %604 = arith.divf %602, %603 : vector<2x32xf32>
    %605 = arith.mulf %592, %537 : vector<2x32xf32>
    %606 = arith.mulf %584, %596 : vector<2x32xf32>
    %607 = arith.addf %605, %606 : vector<2x32xf32>
    %608 = math.tanh %607 : vector<2x32xf32>
    %609 = arith.mulf %604, %608 : vector<2x32xf32>
    %610 = vector.extract_strided_slice %379 {offsets = [0, 3, 0], sizes = [2, 1, 128], strides = [1, 1, 1]} : vector<2x8x128xf32> to vector<2x1x128xf32>
    %611 = vector.shape_cast %610 : vector<2x1x128xf32> to vector<2x128xf32>
    %612 = vector.extract_strided_slice %611 {offsets = [0, 0], sizes = [2, 32], strides = [1, 1]} : vector<2x128xf32> to vector<2x32xf32>
    %cst_212 = arith.constant dense<0.000000e+00> : vector<2x32xf32>
    %613 = tpu.matmul %574, %388, %cst_212 {dimension_numbers = #tpu.dot_dimension_numbers<[1], [0], [0], [1], [0, 0, 1, 1], [], []>} : vector<2x32xf32>, vector<32x32xf32>, vector<2x32xf32> -> vector<2x32xf32>
    %614 = arith.addf %612, %613 : vector<2x32xf32>
    %615 = arith.negf %614 : vector<2x32xf32>
    %616 = math.exp %615 : vector<2x32xf32>
    %cst_213 = arith.constant 1.000000e+00 : f32
    %617 = vector.broadcast %cst_213 : f32 to vector<2x32xf32>
    %618 = arith.addf %617, %616 : vector<2x32xf32>
    %619 = arith.divf %617, %618 : vector<2x32xf32>
    %620 = vector.extract_strided_slice %611 {offsets = [0, 32], sizes = [2, 32], strides = [1, 1]} : vector<2x128xf32> to vector<2x32xf32>
    %cst_214 = arith.constant dense<0.000000e+00> : vector<2x32xf32>
    %621 = tpu.matmul %574, %389, %cst_214 {dimension_numbers = #tpu.dot_dimension_numbers<[1], [0], [0], [1], [0, 0, 1, 1], [], []>} : vector<2x32xf32>, vector<32x32xf32>, vector<2x32xf32> -> vector<2x32xf32>
    %622 = arith.addf %620, %621 : vector<2x32xf32>
    %623 = arith.negf %622 : vector<2x32xf32>
    %624 = math.exp %623 : vector<2x32xf32>
    %cst_215 = arith.constant 1.000000e+00 : f32
    %625 = vector.broadcast %cst_215 : f32 to vector<2x32xf32>
    %626 = arith.addf %625, %624 : vector<2x32xf32>
    %627 = arith.divf %625, %626 : vector<2x32xf32>
    %628 = vector.extract_strided_slice %611 {offsets = [0, 64], sizes = [2, 32], strides = [1, 1]} : vector<2x128xf32> to vector<2x32xf32>
    %cst_216 = arith.constant dense<0.000000e+00> : vector<2x32xf32>
    %629 = tpu.matmul %574, %390, %cst_216 {dimension_numbers = #tpu.dot_dimension_numbers<[1], [0], [0], [1], [0, 0, 1, 1], [], []>} : vector<2x32xf32>, vector<32x32xf32>, vector<2x32xf32> -> vector<2x32xf32>
    %630 = arith.addf %628, %629 : vector<2x32xf32>
    %631 = math.tanh %630 : vector<2x32xf32>
    %632 = vector.extract_strided_slice %611 {offsets = [0, 96], sizes = [2, 32], strides = [1, 1]} : vector<2x128xf32> to vector<2x32xf32>
    %cst_217 = arith.constant dense<0.000000e+00> : vector<2x32xf32>
    %633 = tpu.matmul %574, %391, %cst_217 {dimension_numbers = #tpu.dot_dimension_numbers<[1], [0], [0], [1], [0, 0, 1, 1], [], []>} : vector<2x32xf32>, vector<32x32xf32>, vector<2x32xf32> -> vector<2x32xf32>
    %634 = arith.addf %632, %633 : vector<2x32xf32>
    %635 = arith.negf %634 : vector<2x32xf32>
    %636 = math.exp %635 : vector<2x32xf32>
    %cst_218 = arith.constant 1.000000e+00 : f32
    %637 = vector.broadcast %cst_218 : f32 to vector<2x32xf32>
    %638 = arith.addf %637, %636 : vector<2x32xf32>
    %639 = arith.divf %637, %638 : vector<2x32xf32>
    %640 = arith.mulf %627, %572 : vector<2x32xf32>
    %641 = arith.mulf %619, %631 : vector<2x32xf32>
    %642 = arith.addf %640, %641 : vector<2x32xf32>
    %643 = math.tanh %642 : vector<2x32xf32>
    %644 = arith.mulf %639, %643 : vector<2x32xf32>
    %645 = vector.extract_strided_slice %385 {offsets = [0, 4, 0], sizes = [2, 1, 128], strides = [1, 1, 1]} : vector<2x8x128xf32> to vector<2x1x128xf32>
    %646 = vector.shape_cast %645 : vector<2x1x128xf32> to vector<2x128xf32>
    %647 = vector.extract_strided_slice %646 {offsets = [0, 0], sizes = [2, 32], strides = [1, 1]} : vector<2x128xf32> to vector<2x32xf32>
    %cst_219 = arith.constant dense<0.000000e+00> : vector<2x32xf32>
    %648 = tpu.matmul %609, %392, %cst_219 {dimension_numbers = #tpu.dot_dimension_numbers<[1], [0], [0], [1], [0, 0, 1, 1], [], []>} : vector<2x32xf32>, vector<32x32xf32>, vector<2x32xf32> -> vector<2x32xf32>
    %649 = arith.addf %647, %648 : vector<2x32xf32>
    %650 = arith.negf %649 : vector<2x32xf32>
    %651 = math.exp %650 : vector<2x32xf32>
    %cst_220 = arith.constant 1.000000e+00 : f32
    %652 = vector.broadcast %cst_220 : f32 to vector<2x32xf32>
    %653 = arith.addf %652, %651 : vector<2x32xf32>
    %654 = arith.divf %652, %653 : vector<2x32xf32>
    %655 = vector.extract_strided_slice %646 {offsets = [0, 32], sizes = [2, 32], strides = [1, 1]} : vector<2x128xf32> to vector<2x32xf32>
    %cst_221 = arith.constant dense<0.000000e+00> : vector<2x32xf32>
    %656 = tpu.matmul %609, %393, %cst_221 {dimension_numbers = #tpu.dot_dimension_numbers<[1], [0], [0], [1], [0, 0, 1, 1], [], []>} : vector<2x32xf32>, vector<32x32xf32>, vector<2x32xf32> -> vector<2x32xf32>
    %657 = arith.addf %655, %656 : vector<2x32xf32>
    %658 = arith.negf %657 : vector<2x32xf32>
    %659 = math.exp %658 : vector<2x32xf32>
    %cst_222 = arith.constant 1.000000e+00 : f32
    %660 = vector.broadcast %cst_222 : f32 to vector<2x32xf32>
    %661 = arith.addf %660, %659 : vector<2x32xf32>
    %662 = arith.divf %660, %661 : vector<2x32xf32>
    %663 = vector.extract_strided_slice %646 {offsets = [0, 64], sizes = [2, 32], strides = [1, 1]} : vector<2x128xf32> to vector<2x32xf32>
    %cst_223 = arith.constant dense<0.000000e+00> : vector<2x32xf32>
    %664 = tpu.matmul %609, %394, %cst_223 {dimension_numbers = #tpu.dot_dimension_numbers<[1], [0], [0], [1], [0, 0, 1, 1], [], []>} : vector<2x32xf32>, vector<32x32xf32>, vector<2x32xf32> -> vector<2x32xf32>
    %665 = arith.addf %663, %664 : vector<2x32xf32>
    %666 = math.tanh %665 : vector<2x32xf32>
    %667 = vector.extract_strided_slice %646 {offsets = [0, 96], sizes = [2, 32], strides = [1, 1]} : vector<2x128xf32> to vector<2x32xf32>
    %cst_224 = arith.constant dense<0.000000e+00> : vector<2x32xf32>
    %668 = tpu.matmul %609, %395, %cst_224 {dimension_numbers = #tpu.dot_dimension_numbers<[1], [0], [0], [1], [0, 0, 1, 1], [], []>} : vector<2x32xf32>, vector<32x32xf32>, vector<2x32xf32> -> vector<2x32xf32>
    %669 = arith.addf %667, %668 : vector<2x32xf32>
    %670 = arith.negf %669 : vector<2x32xf32>
    %671 = math.exp %670 : vector<2x32xf32>
    %cst_225 = arith.constant 1.000000e+00 : f32
    %672 = vector.broadcast %cst_225 : f32 to vector<2x32xf32>
    %673 = arith.addf %672, %671 : vector<2x32xf32>
    %674 = arith.divf %672, %673 : vector<2x32xf32>
    %675 = arith.mulf %662, %607 : vector<2x32xf32>
    %676 = arith.mulf %654, %666 : vector<2x32xf32>
    %677 = arith.addf %675, %676 : vector<2x32xf32>
    %678 = math.tanh %677 : vector<2x32xf32>
    %679 = arith.mulf %674, %678 : vector<2x32xf32>
    %680 = vector.extract_strided_slice %379 {offsets = [0, 4, 0], sizes = [2, 1, 128], strides = [1, 1, 1]} : vector<2x8x128xf32> to vector<2x1x128xf32>
    %681 = vector.shape_cast %680 : vector<2x1x128xf32> to vector<2x128xf32>
    %682 = vector.extract_strided_slice %681 {offsets = [0, 0], sizes = [2, 32], strides = [1, 1]} : vector<2x128xf32> to vector<2x32xf32>
    %cst_226 = arith.constant dense<0.000000e+00> : vector<2x32xf32>
    %683 = tpu.matmul %644, %388, %cst_226 {dimension_numbers = #tpu.dot_dimension_numbers<[1], [0], [0], [1], [0, 0, 1, 1], [], []>} : vector<2x32xf32>, vector<32x32xf32>, vector<2x32xf32> -> vector<2x32xf32>
    %684 = arith.addf %682, %683 : vector<2x32xf32>
    %685 = arith.negf %684 : vector<2x32xf32>
    %686 = math.exp %685 : vector<2x32xf32>
    %cst_227 = arith.constant 1.000000e+00 : f32
    %687 = vector.broadcast %cst_227 : f32 to vector<2x32xf32>
    %688 = arith.addf %687, %686 : vector<2x32xf32>
    %689 = arith.divf %687, %688 : vector<2x32xf32>
    %690 = vector.extract_strided_slice %681 {offsets = [0, 32], sizes = [2, 32], strides = [1, 1]} : vector<2x128xf32> to vector<2x32xf32>
    %cst_228 = arith.constant dense<0.000000e+00> : vector<2x32xf32>
    %691 = tpu.matmul %644, %389, %cst_228 {dimension_numbers = #tpu.dot_dimension_numbers<[1], [0], [0], [1], [0, 0, 1, 1], [], []>} : vector<2x32xf32>, vector<32x32xf32>, vector<2x32xf32> -> vector<2x32xf32>
    %692 = arith.addf %690, %691 : vector<2x32xf32>
    %693 = arith.negf %692 : vector<2x32xf32>
    %694 = math.exp %693 : vector<2x32xf32>
    %cst_229 = arith.constant 1.000000e+00 : f32
    %695 = vector.broadcast %cst_229 : f32 to vector<2x32xf32>
    %696 = arith.addf %695, %694 : vector<2x32xf32>
    %697 = arith.divf %695, %696 : vector<2x32xf32>
    %698 = vector.extract_strided_slice %681 {offsets = [0, 64], sizes = [2, 32], strides = [1, 1]} : vector<2x128xf32> to vector<2x32xf32>
    %cst_230 = arith.constant dense<0.000000e+00> : vector<2x32xf32>
    %699 = tpu.matmul %644, %390, %cst_230 {dimension_numbers = #tpu.dot_dimension_numbers<[1], [0], [0], [1], [0, 0, 1, 1], [], []>} : vector<2x32xf32>, vector<32x32xf32>, vector<2x32xf32> -> vector<2x32xf32>
    %700 = arith.addf %698, %699 : vector<2x32xf32>
    %701 = math.tanh %700 : vector<2x32xf32>
    %702 = vector.extract_strided_slice %681 {offsets = [0, 96], sizes = [2, 32], strides = [1, 1]} : vector<2x128xf32> to vector<2x32xf32>
    %cst_231 = arith.constant dense<0.000000e+00> : vector<2x32xf32>
    %703 = tpu.matmul %644, %391, %cst_231 {dimension_numbers = #tpu.dot_dimension_numbers<[1], [0], [0], [1], [0, 0, 1, 1], [], []>} : vector<2x32xf32>, vector<32x32xf32>, vector<2x32xf32> -> vector<2x32xf32>
    %704 = arith.addf %702, %703 : vector<2x32xf32>
    %705 = arith.negf %704 : vector<2x32xf32>
    %706 = math.exp %705 : vector<2x32xf32>
    %cst_232 = arith.constant 1.000000e+00 : f32
    %707 = vector.broadcast %cst_232 : f32 to vector<2x32xf32>
    %708 = arith.addf %707, %706 : vector<2x32xf32>
    %709 = arith.divf %707, %708 : vector<2x32xf32>
    %710 = arith.mulf %697, %642 : vector<2x32xf32>
    %711 = arith.mulf %689, %701 : vector<2x32xf32>
    %712 = arith.addf %710, %711 : vector<2x32xf32>
    %713 = math.tanh %712 : vector<2x32xf32>
    %714 = arith.mulf %709, %713 : vector<2x32xf32>
    %715 = vector.extract_strided_slice %385 {offsets = [0, 3, 0], sizes = [2, 1, 128], strides = [1, 1, 1]} : vector<2x8x128xf32> to vector<2x1x128xf32>
    %716 = vector.shape_cast %715 : vector<2x1x128xf32> to vector<2x128xf32>
    %717 = vector.extract_strided_slice %716 {offsets = [0, 0], sizes = [2, 32], strides = [1, 1]} : vector<2x128xf32> to vector<2x32xf32>
    %cst_233 = arith.constant dense<0.000000e+00> : vector<2x32xf32>
    %718 = tpu.matmul %679, %392, %cst_233 {dimension_numbers = #tpu.dot_dimension_numbers<[1], [0], [0], [1], [0, 0, 1, 1], [], []>} : vector<2x32xf32>, vector<32x32xf32>, vector<2x32xf32> -> vector<2x32xf32>
    %719 = arith.addf %717, %718 : vector<2x32xf32>
    %720 = arith.negf %719 : vector<2x32xf32>
    %721 = math.exp %720 : vector<2x32xf32>
    %cst_234 = arith.constant 1.000000e+00 : f32
    %722 = vector.broadcast %cst_234 : f32 to vector<2x32xf32>
    %723 = arith.addf %722, %721 : vector<2x32xf32>
    %724 = arith.divf %722, %723 : vector<2x32xf32>
    %725 = vector.extract_strided_slice %716 {offsets = [0, 32], sizes = [2, 32], strides = [1, 1]} : vector<2x128xf32> to vector<2x32xf32>
    %cst_235 = arith.constant dense<0.000000e+00> : vector<2x32xf32>
    %726 = tpu.matmul %679, %393, %cst_235 {dimension_numbers = #tpu.dot_dimension_numbers<[1], [0], [0], [1], [0, 0, 1, 1], [], []>} : vector<2x32xf32>, vector<32x32xf32>, vector<2x32xf32> -> vector<2x32xf32>
    %727 = arith.addf %725, %726 : vector<2x32xf32>
    %728 = arith.negf %727 : vector<2x32xf32>
    %729 = math.exp %728 : vector<2x32xf32>
    %cst_236 = arith.constant 1.000000e+00 : f32
    %730 = vector.broadcast %cst_236 : f32 to vector<2x32xf32>
    %731 = arith.addf %730, %729 : vector<2x32xf32>
    %732 = arith.divf %730, %731 : vector<2x32xf32>
    %733 = vector.extract_strided_slice %716 {offsets = [0, 64], sizes = [2, 32], strides = [1, 1]} : vector<2x128xf32> to vector<2x32xf32>
    %cst_237 = arith.constant dense<0.000000e+00> : vector<2x32xf32>
    %734 = tpu.matmul %679, %394, %cst_237 {dimension_numbers = #tpu.dot_dimension_numbers<[1], [0], [0], [1], [0, 0, 1, 1], [], []>} : vector<2x32xf32>, vector<32x32xf32>, vector<2x32xf32> -> vector<2x32xf32>
    %735 = arith.addf %733, %734 : vector<2x32xf32>
    %736 = math.tanh %735 : vector<2x32xf32>
    %737 = vector.extract_strided_slice %716 {offsets = [0, 96], sizes = [2, 32], strides = [1, 1]} : vector<2x128xf32> to vector<2x32xf32>
    %cst_238 = arith.constant dense<0.000000e+00> : vector<2x32xf32>
    %738 = tpu.matmul %679, %395, %cst_238 {dimension_numbers = #tpu.dot_dimension_numbers<[1], [0], [0], [1], [0, 0, 1, 1], [], []>} : vector<2x32xf32>, vector<32x32xf32>, vector<2x32xf32> -> vector<2x32xf32>
    %739 = arith.addf %737, %738 : vector<2x32xf32>
    %740 = arith.negf %739 : vector<2x32xf32>
    %741 = math.exp %740 : vector<2x32xf32>
    %cst_239 = arith.constant 1.000000e+00 : f32
    %742 = vector.broadcast %cst_239 : f32 to vector<2x32xf32>
    %743 = arith.addf %742, %741 : vector<2x32xf32>
    %744 = arith.divf %742, %743 : vector<2x32xf32>
    %745 = arith.mulf %732, %677 : vector<2x32xf32>
    %746 = arith.mulf %724, %736 : vector<2x32xf32>
    %747 = arith.addf %745, %746 : vector<2x32xf32>
    %748 = math.tanh %747 : vector<2x32xf32>
    %749 = arith.mulf %744, %748 : vector<2x32xf32>
    %750 = vector.extract_strided_slice %379 {offsets = [0, 5, 0], sizes = [2, 1, 128], strides = [1, 1, 1]} : vector<2x8x128xf32> to vector<2x1x128xf32>
    %751 = vector.shape_cast %750 : vector<2x1x128xf32> to vector<2x128xf32>
    %752 = vector.extract_strided_slice %751 {offsets = [0, 0], sizes = [2, 32], strides = [1, 1]} : vector<2x128xf32> to vector<2x32xf32>
    %cst_240 = arith.constant dense<0.000000e+00> : vector<2x32xf32>
    %753 = tpu.matmul %714, %388, %cst_240 {dimension_numbers = #tpu.dot_dimension_numbers<[1], [0], [0], [1], [0, 0, 1, 1], [], []>} : vector<2x32xf32>, vector<32x32xf32>, vector<2x32xf32> -> vector<2x32xf32>
    %754 = arith.addf %752, %753 : vector<2x32xf32>
    %755 = arith.negf %754 : vector<2x32xf32>
    %756 = math.exp %755 : vector<2x32xf32>
    %cst_241 = arith.constant 1.000000e+00 : f32
    %757 = vector.broadcast %cst_241 : f32 to vector<2x32xf32>
    %758 = arith.addf %757, %756 : vector<2x32xf32>
    %759 = arith.divf %757, %758 : vector<2x32xf32>
    %760 = vector.extract_strided_slice %751 {offsets = [0, 32], sizes = [2, 32], strides = [1, 1]} : vector<2x128xf32> to vector<2x32xf32>
    %cst_242 = arith.constant dense<0.000000e+00> : vector<2x32xf32>
    %761 = tpu.matmul %714, %389, %cst_242 {dimension_numbers = #tpu.dot_dimension_numbers<[1], [0], [0], [1], [0, 0, 1, 1], [], []>} : vector<2x32xf32>, vector<32x32xf32>, vector<2x32xf32> -> vector<2x32xf32>
    %762 = arith.addf %760, %761 : vector<2x32xf32>
    %763 = arith.negf %762 : vector<2x32xf32>
    %764 = math.exp %763 : vector<2x32xf32>
    %cst_243 = arith.constant 1.000000e+00 : f32
    %765 = vector.broadcast %cst_243 : f32 to vector<2x32xf32>
    %766 = arith.addf %765, %764 : vector<2x32xf32>
    %767 = arith.divf %765, %766 : vector<2x32xf32>
    %768 = vector.extract_strided_slice %751 {offsets = [0, 64], sizes = [2, 32], strides = [1, 1]} : vector<2x128xf32> to vector<2x32xf32>
    %cst_244 = arith.constant dense<0.000000e+00> : vector<2x32xf32>
    %769 = tpu.matmul %714, %390, %cst_244 {dimension_numbers = #tpu.dot_dimension_numbers<[1], [0], [0], [1], [0, 0, 1, 1], [], []>} : vector<2x32xf32>, vector<32x32xf32>, vector<2x32xf32> -> vector<2x32xf32>
    %770 = arith.addf %768, %769 : vector<2x32xf32>
    %771 = math.tanh %770 : vector<2x32xf32>
    %772 = vector.extract_strided_slice %751 {offsets = [0, 96], sizes = [2, 32], strides = [1, 1]} : vector<2x128xf32> to vector<2x32xf32>
    %cst_245 = arith.constant dense<0.000000e+00> : vector<2x32xf32>
    %773 = tpu.matmul %714, %391, %cst_245 {dimension_numbers = #tpu.dot_dimension_numbers<[1], [0], [0], [1], [0, 0, 1, 1], [], []>} : vector<2x32xf32>, vector<32x32xf32>, vector<2x32xf32> -> vector<2x32xf32>
    %774 = arith.addf %772, %773 : vector<2x32xf32>
    %775 = arith.negf %774 : vector<2x32xf32>
    %776 = math.exp %775 : vector<2x32xf32>
    %cst_246 = arith.constant 1.000000e+00 : f32
    %777 = vector.broadcast %cst_246 : f32 to vector<2x32xf32>
    %778 = arith.addf %777, %776 : vector<2x32xf32>
    %779 = arith.divf %777, %778 : vector<2x32xf32>
    %780 = arith.mulf %767, %712 : vector<2x32xf32>
    %781 = arith.mulf %759, %771 : vector<2x32xf32>
    %782 = arith.addf %780, %781 : vector<2x32xf32>
    %783 = math.tanh %782 : vector<2x32xf32>
    %784 = arith.mulf %779, %783 : vector<2x32xf32>
    %785 = vector.extract_strided_slice %385 {offsets = [0, 2, 0], sizes = [2, 1, 128], strides = [1, 1, 1]} : vector<2x8x128xf32> to vector<2x1x128xf32>
    %786 = vector.shape_cast %785 : vector<2x1x128xf32> to vector<2x128xf32>
    %787 = vector.extract_strided_slice %786 {offsets = [0, 0], sizes = [2, 32], strides = [1, 1]} : vector<2x128xf32> to vector<2x32xf32>
    %cst_247 = arith.constant dense<0.000000e+00> : vector<2x32xf32>
    %788 = tpu.matmul %749, %392, %cst_247 {dimension_numbers = #tpu.dot_dimension_numbers<[1], [0], [0], [1], [0, 0, 1, 1], [], []>} : vector<2x32xf32>, vector<32x32xf32>, vector<2x32xf32> -> vector<2x32xf32>
    %789 = arith.addf %787, %788 : vector<2x32xf32>
    %790 = arith.negf %789 : vector<2x32xf32>
    %791 = math.exp %790 : vector<2x32xf32>
    %cst_248 = arith.constant 1.000000e+00 : f32
    %792 = vector.broadcast %cst_248 : f32 to vector<2x32xf32>
    %793 = arith.addf %792, %791 : vector<2x32xf32>
    %794 = arith.divf %792, %793 : vector<2x32xf32>
    %795 = vector.extract_strided_slice %786 {offsets = [0, 32], sizes = [2, 32], strides = [1, 1]} : vector<2x128xf32> to vector<2x32xf32>
    %cst_249 = arith.constant dense<0.000000e+00> : vector<2x32xf32>
    %796 = tpu.matmul %749, %393, %cst_249 {dimension_numbers = #tpu.dot_dimension_numbers<[1], [0], [0], [1], [0, 0, 1, 1], [], []>} : vector<2x32xf32>, vector<32x32xf32>, vector<2x32xf32> -> vector<2x32xf32>
    %797 = arith.addf %795, %796 : vector<2x32xf32>
    %798 = arith.negf %797 : vector<2x32xf32>
    %799 = math.exp %798 : vector<2x32xf32>
    %cst_250 = arith.constant 1.000000e+00 : f32
    %800 = vector.broadcast %cst_250 : f32 to vector<2x32xf32>
    %801 = arith.addf %800, %799 : vector<2x32xf32>
    %802 = arith.divf %800, %801 : vector<2x32xf32>
    %803 = vector.extract_strided_slice %786 {offsets = [0, 64], sizes = [2, 32], strides = [1, 1]} : vector<2x128xf32> to vector<2x32xf32>
    %cst_251 = arith.constant dense<0.000000e+00> : vector<2x32xf32>
    %804 = tpu.matmul %749, %394, %cst_251 {dimension_numbers = #tpu.dot_dimension_numbers<[1], [0], [0], [1], [0, 0, 1, 1], [], []>} : vector<2x32xf32>, vector<32x32xf32>, vector<2x32xf32> -> vector<2x32xf32>
    %805 = arith.addf %803, %804 : vector<2x32xf32>
    %806 = math.tanh %805 : vector<2x32xf32>
    %807 = vector.extract_strided_slice %786 {offsets = [0, 96], sizes = [2, 32], strides = [1, 1]} : vector<2x128xf32> to vector<2x32xf32>
    %cst_252 = arith.constant dense<0.000000e+00> : vector<2x32xf32>
    %808 = tpu.matmul %749, %395, %cst_252 {dimension_numbers = #tpu.dot_dimension_numbers<[1], [0], [0], [1], [0, 0, 1, 1], [], []>} : vector<2x32xf32>, vector<32x32xf32>, vector<2x32xf32> -> vector<2x32xf32>
    %809 = arith.addf %807, %808 : vector<2x32xf32>
    %810 = arith.negf %809 : vector<2x32xf32>
    %811 = math.exp %810 : vector<2x32xf32>
    %cst_253 = arith.constant 1.000000e+00 : f32
    %812 = vector.broadcast %cst_253 : f32 to vector<2x32xf32>
    %813 = arith.addf %812, %811 : vector<2x32xf32>
    %814 = arith.divf %812, %813 : vector<2x32xf32>
    %815 = arith.mulf %802, %747 : vector<2x32xf32>
    %816 = arith.mulf %794, %806 : vector<2x32xf32>
    %817 = arith.addf %815, %816 : vector<2x32xf32>
    %818 = math.tanh %817 : vector<2x32xf32>
    %819 = arith.mulf %814, %818 : vector<2x32xf32>
    %820 = vector.extract_strided_slice %379 {offsets = [0, 6, 0], sizes = [2, 1, 128], strides = [1, 1, 1]} : vector<2x8x128xf32> to vector<2x1x128xf32>
    %821 = vector.shape_cast %820 : vector<2x1x128xf32> to vector<2x128xf32>
    %822 = vector.extract_strided_slice %821 {offsets = [0, 0], sizes = [2, 32], strides = [1, 1]} : vector<2x128xf32> to vector<2x32xf32>
    %cst_254 = arith.constant dense<0.000000e+00> : vector<2x32xf32>
    %823 = tpu.matmul %784, %388, %cst_254 {dimension_numbers = #tpu.dot_dimension_numbers<[1], [0], [0], [1], [0, 0, 1, 1], [], []>} : vector<2x32xf32>, vector<32x32xf32>, vector<2x32xf32> -> vector<2x32xf32>
    %824 = arith.addf %822, %823 : vector<2x32xf32>
    %825 = arith.negf %824 : vector<2x32xf32>
    %826 = math.exp %825 : vector<2x32xf32>
    %cst_255 = arith.constant 1.000000e+00 : f32
    %827 = vector.broadcast %cst_255 : f32 to vector<2x32xf32>
    %828 = arith.addf %827, %826 : vector<2x32xf32>
    %829 = arith.divf %827, %828 : vector<2x32xf32>
    %830 = vector.extract_strided_slice %821 {offsets = [0, 32], sizes = [2, 32], strides = [1, 1]} : vector<2x128xf32> to vector<2x32xf32>
    %cst_256 = arith.constant dense<0.000000e+00> : vector<2x32xf32>
    %831 = tpu.matmul %784, %389, %cst_256 {dimension_numbers = #tpu.dot_dimension_numbers<[1], [0], [0], [1], [0, 0, 1, 1], [], []>} : vector<2x32xf32>, vector<32x32xf32>, vector<2x32xf32> -> vector<2x32xf32>
    %832 = arith.addf %830, %831 : vector<2x32xf32>
    %833 = arith.negf %832 : vector<2x32xf32>
    %834 = math.exp %833 : vector<2x32xf32>
    %cst_257 = arith.constant 1.000000e+00 : f32
    %835 = vector.broadcast %cst_257 : f32 to vector<2x32xf32>
    %836 = arith.addf %835, %834 : vector<2x32xf32>
    %837 = arith.divf %835, %836 : vector<2x32xf32>
    %838 = vector.extract_strided_slice %821 {offsets = [0, 64], sizes = [2, 32], strides = [1, 1]} : vector<2x128xf32> to vector<2x32xf32>
    %cst_258 = arith.constant dense<0.000000e+00> : vector<2x32xf32>
    %839 = tpu.matmul %784, %390, %cst_258 {dimension_numbers = #tpu.dot_dimension_numbers<[1], [0], [0], [1], [0, 0, 1, 1], [], []>} : vector<2x32xf32>, vector<32x32xf32>, vector<2x32xf32> -> vector<2x32xf32>
    %840 = arith.addf %838, %839 : vector<2x32xf32>
    %841 = math.tanh %840 : vector<2x32xf32>
    %842 = vector.extract_strided_slice %821 {offsets = [0, 96], sizes = [2, 32], strides = [1, 1]} : vector<2x128xf32> to vector<2x32xf32>
    %cst_259 = arith.constant dense<0.000000e+00> : vector<2x32xf32>
    %843 = tpu.matmul %784, %391, %cst_259 {dimension_numbers = #tpu.dot_dimension_numbers<[1], [0], [0], [1], [0, 0, 1, 1], [], []>} : vector<2x32xf32>, vector<32x32xf32>, vector<2x32xf32> -> vector<2x32xf32>
    %844 = arith.addf %842, %843 : vector<2x32xf32>
    %845 = arith.negf %844 : vector<2x32xf32>
    %846 = math.exp %845 : vector<2x32xf32>
    %cst_260 = arith.constant 1.000000e+00 : f32
    %847 = vector.broadcast %cst_260 : f32 to vector<2x32xf32>
    %848 = arith.addf %847, %846 : vector<2x32xf32>
    %849 = arith.divf %847, %848 : vector<2x32xf32>
    %850 = arith.mulf %837, %782 : vector<2x32xf32>
    %851 = arith.mulf %829, %841 : vector<2x32xf32>
    %852 = arith.addf %850, %851 : vector<2x32xf32>
    %853 = math.tanh %852 : vector<2x32xf32>
    %854 = arith.mulf %849, %853 : vector<2x32xf32>
    %855 = vector.extract_strided_slice %385 {offsets = [0, 1, 0], sizes = [2, 1, 128], strides = [1, 1, 1]} : vector<2x8x128xf32> to vector<2x1x128xf32>
    %856 = vector.shape_cast %855 : vector<2x1x128xf32> to vector<2x128xf32>
    %857 = vector.extract_strided_slice %856 {offsets = [0, 0], sizes = [2, 32], strides = [1, 1]} : vector<2x128xf32> to vector<2x32xf32>
    %cst_261 = arith.constant dense<0.000000e+00> : vector<2x32xf32>
    %858 = tpu.matmul %819, %392, %cst_261 {dimension_numbers = #tpu.dot_dimension_numbers<[1], [0], [0], [1], [0, 0, 1, 1], [], []>} : vector<2x32xf32>, vector<32x32xf32>, vector<2x32xf32> -> vector<2x32xf32>
    %859 = arith.addf %857, %858 : vector<2x32xf32>
    %860 = arith.negf %859 : vector<2x32xf32>
    %861 = math.exp %860 : vector<2x32xf32>
    %cst_262 = arith.constant 1.000000e+00 : f32
    %862 = vector.broadcast %cst_262 : f32 to vector<2x32xf32>
    %863 = arith.addf %862, %861 : vector<2x32xf32>
    %864 = arith.divf %862, %863 : vector<2x32xf32>
    %865 = vector.extract_strided_slice %856 {offsets = [0, 32], sizes = [2, 32], strides = [1, 1]} : vector<2x128xf32> to vector<2x32xf32>
    %cst_263 = arith.constant dense<0.000000e+00> : vector<2x32xf32>
    %866 = tpu.matmul %819, %393, %cst_263 {dimension_numbers = #tpu.dot_dimension_numbers<[1], [0], [0], [1], [0, 0, 1, 1], [], []>} : vector<2x32xf32>, vector<32x32xf32>, vector<2x32xf32> -> vector<2x32xf32>
    %867 = arith.addf %865, %866 : vector<2x32xf32>
    %868 = arith.negf %867 : vector<2x32xf32>
    %869 = math.exp %868 : vector<2x32xf32>
    %cst_264 = arith.constant 1.000000e+00 : f32
    %870 = vector.broadcast %cst_264 : f32 to vector<2x32xf32>
    %871 = arith.addf %870, %869 : vector<2x32xf32>
    %872 = arith.divf %870, %871 : vector<2x32xf32>
    %873 = vector.extract_strided_slice %856 {offsets = [0, 64], sizes = [2, 32], strides = [1, 1]} : vector<2x128xf32> to vector<2x32xf32>
    %cst_265 = arith.constant dense<0.000000e+00> : vector<2x32xf32>
    %874 = tpu.matmul %819, %394, %cst_265 {dimension_numbers = #tpu.dot_dimension_numbers<[1], [0], [0], [1], [0, 0, 1, 1], [], []>} : vector<2x32xf32>, vector<32x32xf32>, vector<2x32xf32> -> vector<2x32xf32>
    %875 = arith.addf %873, %874 : vector<2x32xf32>
    %876 = math.tanh %875 : vector<2x32xf32>
    %877 = vector.extract_strided_slice %856 {offsets = [0, 96], sizes = [2, 32], strides = [1, 1]} : vector<2x128xf32> to vector<2x32xf32>
    %cst_266 = arith.constant dense<0.000000e+00> : vector<2x32xf32>
    %878 = tpu.matmul %819, %395, %cst_266 {dimension_numbers = #tpu.dot_dimension_numbers<[1], [0], [0], [1], [0, 0, 1, 1], [], []>} : vector<2x32xf32>, vector<32x32xf32>, vector<2x32xf32> -> vector<2x32xf32>
    %879 = arith.addf %877, %878 : vector<2x32xf32>
    %880 = arith.negf %879 : vector<2x32xf32>
    %881 = math.exp %880 : vector<2x32xf32>
    %cst_267 = arith.constant 1.000000e+00 : f32
    %882 = vector.broadcast %cst_267 : f32 to vector<2x32xf32>
    %883 = arith.addf %882, %881 : vector<2x32xf32>
    %884 = arith.divf %882, %883 : vector<2x32xf32>
    %885 = arith.mulf %872, %817 : vector<2x32xf32>
    %886 = arith.mulf %864, %876 : vector<2x32xf32>
    %887 = arith.addf %885, %886 : vector<2x32xf32>
    %888 = math.tanh %887 : vector<2x32xf32>
    %889 = arith.mulf %884, %888 : vector<2x32xf32>
    %890 = vector.extract_strided_slice %379 {offsets = [0, 7, 0], sizes = [2, 1, 128], strides = [1, 1, 1]} : vector<2x8x128xf32> to vector<2x1x128xf32>
    %891 = vector.shape_cast %890 : vector<2x1x128xf32> to vector<2x128xf32>
    %892 = vector.extract_strided_slice %891 {offsets = [0, 0], sizes = [2, 32], strides = [1, 1]} : vector<2x128xf32> to vector<2x32xf32>
    %cst_268 = arith.constant dense<0.000000e+00> : vector<2x32xf32>
    %893 = tpu.matmul %854, %388, %cst_268 {dimension_numbers = #tpu.dot_dimension_numbers<[1], [0], [0], [1], [0, 0, 1, 1], [], []>} : vector<2x32xf32>, vector<32x32xf32>, vector<2x32xf32> -> vector<2x32xf32>
    %894 = arith.addf %892, %893 : vector<2x32xf32>
    %895 = arith.negf %894 : vector<2x32xf32>
    %896 = math.exp %895 : vector<2x32xf32>
    %cst_269 = arith.constant 1.000000e+00 : f32
    %897 = vector.broadcast %cst_269 : f32 to vector<2x32xf32>
    %898 = arith.addf %897, %896 : vector<2x32xf32>
    %899 = arith.divf %897, %898 : vector<2x32xf32>
    %900 = vector.extract_strided_slice %891 {offsets = [0, 32], sizes = [2, 32], strides = [1, 1]} : vector<2x128xf32> to vector<2x32xf32>
    %cst_270 = arith.constant dense<0.000000e+00> : vector<2x32xf32>
    %901 = tpu.matmul %854, %389, %cst_270 {dimension_numbers = #tpu.dot_dimension_numbers<[1], [0], [0], [1], [0, 0, 1, 1], [], []>} : vector<2x32xf32>, vector<32x32xf32>, vector<2x32xf32> -> vector<2x32xf32>
    %902 = arith.addf %900, %901 : vector<2x32xf32>
    %903 = arith.negf %902 : vector<2x32xf32>
    %904 = math.exp %903 : vector<2x32xf32>
    %cst_271 = arith.constant 1.000000e+00 : f32
    %905 = vector.broadcast %cst_271 : f32 to vector<2x32xf32>
    %906 = arith.addf %905, %904 : vector<2x32xf32>
    %907 = arith.divf %905, %906 : vector<2x32xf32>
    %908 = vector.extract_strided_slice %891 {offsets = [0, 64], sizes = [2, 32], strides = [1, 1]} : vector<2x128xf32> to vector<2x32xf32>
    %cst_272 = arith.constant dense<0.000000e+00> : vector<2x32xf32>
    %909 = tpu.matmul %854, %390, %cst_272 {dimension_numbers = #tpu.dot_dimension_numbers<[1], [0], [0], [1], [0, 0, 1, 1], [], []>} : vector<2x32xf32>, vector<32x32xf32>, vector<2x32xf32> -> vector<2x32xf32>
    %910 = arith.addf %908, %909 : vector<2x32xf32>
    %911 = math.tanh %910 : vector<2x32xf32>
    %912 = vector.extract_strided_slice %891 {offsets = [0, 96], sizes = [2, 32], strides = [1, 1]} : vector<2x128xf32> to vector<2x32xf32>
    %cst_273 = arith.constant dense<0.000000e+00> : vector<2x32xf32>
    %913 = tpu.matmul %854, %391, %cst_273 {dimension_numbers = #tpu.dot_dimension_numbers<[1], [0], [0], [1], [0, 0, 1, 1], [], []>} : vector<2x32xf32>, vector<32x32xf32>, vector<2x32xf32> -> vector<2x32xf32>
    %914 = arith.addf %912, %913 : vector<2x32xf32>
    %915 = arith.negf %914 : vector<2x32xf32>
    %916 = math.exp %915 : vector<2x32xf32>
    %cst_274 = arith.constant 1.000000e+00 : f32
    %917 = vector.broadcast %cst_274 : f32 to vector<2x32xf32>
    %918 = arith.addf %917, %916 : vector<2x32xf32>
    %919 = arith.divf %917, %918 : vector<2x32xf32>
    %920 = arith.mulf %907, %852 : vector<2x32xf32>
    %921 = arith.mulf %899, %911 : vector<2x32xf32>
    %922 = arith.addf %920, %921 : vector<2x32xf32>
    %923 = math.tanh %922 : vector<2x32xf32>
    %924 = arith.mulf %919, %923 : vector<2x32xf32>
    %925 = vector.extract_strided_slice %385 {offsets = [0, 0, 0], sizes = [2, 1, 128], strides = [1, 1, 1]} : vector<2x8x128xf32> to vector<2x1x128xf32>
    %926 = vector.shape_cast %925 : vector<2x1x128xf32> to vector<2x128xf32>
    %927 = vector.extract_strided_slice %926 {offsets = [0, 0], sizes = [2, 32], strides = [1, 1]} : vector<2x128xf32> to vector<2x32xf32>
    %cst_275 = arith.constant dense<0.000000e+00> : vector<2x32xf32>
    %928 = tpu.matmul %889, %392, %cst_275 {dimension_numbers = #tpu.dot_dimension_numbers<[1], [0], [0], [1], [0, 0, 1, 1], [], []>} : vector<2x32xf32>, vector<32x32xf32>, vector<2x32xf32> -> vector<2x32xf32>
    %929 = arith.addf %927, %928 : vector<2x32xf32>
    %930 = arith.negf %929 : vector<2x32xf32>
    %931 = math.exp %930 : vector<2x32xf32>
    %cst_276 = arith.constant 1.000000e+00 : f32
    %932 = vector.broadcast %cst_276 : f32 to vector<2x32xf32>
    %933 = arith.addf %932, %931 : vector<2x32xf32>
    %934 = arith.divf %932, %933 : vector<2x32xf32>
    %935 = vector.extract_strided_slice %926 {offsets = [0, 32], sizes = [2, 32], strides = [1, 1]} : vector<2x128xf32> to vector<2x32xf32>
    %cst_277 = arith.constant dense<0.000000e+00> : vector<2x32xf32>
    %936 = tpu.matmul %889, %393, %cst_277 {dimension_numbers = #tpu.dot_dimension_numbers<[1], [0], [0], [1], [0, 0, 1, 1], [], []>} : vector<2x32xf32>, vector<32x32xf32>, vector<2x32xf32> -> vector<2x32xf32>
    %937 = arith.addf %935, %936 : vector<2x32xf32>
    %938 = arith.negf %937 : vector<2x32xf32>
    %939 = math.exp %938 : vector<2x32xf32>
    %cst_278 = arith.constant 1.000000e+00 : f32
    %940 = vector.broadcast %cst_278 : f32 to vector<2x32xf32>
    %941 = arith.addf %940, %939 : vector<2x32xf32>
    %942 = arith.divf %940, %941 : vector<2x32xf32>
    %943 = vector.extract_strided_slice %926 {offsets = [0, 64], sizes = [2, 32], strides = [1, 1]} : vector<2x128xf32> to vector<2x32xf32>
    %cst_279 = arith.constant dense<0.000000e+00> : vector<2x32xf32>
    %944 = tpu.matmul %889, %394, %cst_279 {dimension_numbers = #tpu.dot_dimension_numbers<[1], [0], [0], [1], [0, 0, 1, 1], [], []>} : vector<2x32xf32>, vector<32x32xf32>, vector<2x32xf32> -> vector<2x32xf32>
    %945 = arith.addf %943, %944 : vector<2x32xf32>
    %946 = math.tanh %945 : vector<2x32xf32>
    %947 = vector.extract_strided_slice %926 {offsets = [0, 96], sizes = [2, 32], strides = [1, 1]} : vector<2x128xf32> to vector<2x32xf32>
    %cst_280 = arith.constant dense<0.000000e+00> : vector<2x32xf32>
    %948 = tpu.matmul %889, %395, %cst_280 {dimension_numbers = #tpu.dot_dimension_numbers<[1], [0], [0], [1], [0, 0, 1, 1], [], []>} : vector<2x32xf32>, vector<32x32xf32>, vector<2x32xf32> -> vector<2x32xf32>
    %949 = arith.addf %947, %948 : vector<2x32xf32>
    %950 = arith.negf %949 : vector<2x32xf32>
    %951 = math.exp %950 : vector<2x32xf32>
    %cst_281 = arith.constant 1.000000e+00 : f32
    %952 = vector.broadcast %cst_281 : f32 to vector<2x32xf32>
    %953 = arith.addf %952, %951 : vector<2x32xf32>
    %954 = arith.divf %952, %953 : vector<2x32xf32>
    %955 = arith.mulf %942, %887 : vector<2x32xf32>
    %956 = arith.mulf %934, %946 : vector<2x32xf32>
    %957 = arith.addf %955, %956 : vector<2x32xf32>
    %958 = math.tanh %957 : vector<2x32xf32>
    %959 = arith.mulf %954, %958 : vector<2x32xf32>
    %960 = tpu.concatenate %434, %504, %574, %644, %714, %784, %854, %924 in 0 : vector<2x32xf32>, vector<2x32xf32>, vector<2x32xf32>, vector<2x32xf32>, vector<2x32xf32>, vector<2x32xf32>, vector<2x32xf32>, vector<2x32xf32> -> vector<16x32xf32>
    %961 = tpu.concatenate %959, %889, %819, %749, %679, %609, %539, %469 in 0 : vector<2x32xf32>, vector<2x32xf32>, vector<2x32xf32>, vector<2x32xf32>, vector<2x32xf32>, vector<2x32xf32>, vector<2x32xf32>, vector<2x32xf32> -> vector<16x32xf32>
    %c0_282 = arith.constant 0 : index
    %c0_283 = arith.constant 0 : index
    %962 = vector.load %arg22[%c0_282, %c0_283] : memref<32x2xf32, #tpu.memory_space<vmem>>, vector<32x2xf32>
    %cst_284 = arith.constant dense<0.000000e+00> : vector<16x2xf32>
    %963 = tpu.matmul %960, %962, %cst_284 {dimension_numbers = #tpu.dot_dimension_numbers<[1], [0], [0], [1], [0, 0, 1, 1], [], []>} : vector<16x32xf32>, vector<32x2xf32>, vector<16x2xf32> -> vector<16x2xf32>
    %c0_285 = arith.constant 0 : index
    %c0_286 = arith.constant 0 : index
    %964 = vector.load %arg23[%c0_285, %c0_286] : memref<32x2xf32, #tpu.memory_space<vmem>>, vector<32x2xf32>
    %cst_287 = arith.constant dense<0.000000e+00> : vector<16x2xf32>
    %965 = tpu.matmul %961, %964, %cst_287 {dimension_numbers = #tpu.dot_dimension_numbers<[1], [0], [0], [1], [0, 0, 1, 1], [], []>} : vector<16x32xf32>, vector<32x2xf32>, vector<16x2xf32> -> vector<16x2xf32>
    %966 = arith.addf %963, %965 : vector<16x2xf32>
    %c0_288 = arith.constant 0 : index
    %c0_289 = arith.constant 0 : index
    %967 = vector.load %arg24[%c0_288, %c0_289] : memref<1x2xf32, #tpu.memory_space<vmem>>, vector<1x2xf32>
    %968 = vector.broadcast %967 : vector<1x2xf32> to vector<16x2xf32>
    %969 = arith.addf %966, %968 : vector<16x2xf32>
    %c0_290 = arith.constant 0 : index
    %c0_291 = arith.constant 0 : index
    %970 = vector.load %arg25[%c0_290, %c0_291] : memref<16x2xf32, #tpu.memory_space<vmem>>, vector<16x2xf32>
    tpu.vector_store %arg25[%c0_290, %c0_291], %969 {strides = array<i32>} : memref<16x2xf32, #tpu.memory_space<vmem>>, vector<16x2xf32>,
    return
  }
}

</mosaic_0001>

<llo_original>
// kernel: hesitator_forward.1
$region0: #{hesitator_forward.1}
  #allocation0 [shape = 'u32[]', space=smem, size = 0x4, offset = 0x4, fixed_abs, tag = 'smem constant byte address 0x4 - core index']
  #allocation1 [shape = 'u32[144,128]{1,0:T(1,128)}', space=vmem, size = 0x12000, scoped, tag = 'internal scratch']
  %s0 = inlined_call_operand.vmem [shape: f32[16,32], index: 0, kind: input, shape index: {}]
  %s1 = inlined_call_operand.vmem [shape: f32[2,8], index: 1, kind: input, shape index: {}]
  %s2 = inlined_call_operand.vmem [shape: f32[1,32], index: 2, kind: input, shape index: {}]
  %s3 = inlined_call_operand.vmem [shape: f32[1,32], index: 3, kind: input, shape index: {}]
  %s4 = inlined_call_operand.vmem [shape: f32[2,32,96], index: 4, kind: input, shape index: {}]
  %s5 = inlined_call_operand.vmem [shape: f32[2,1,96], index: 5, kind: input, shape index: {}]
  %s6 = inlined_call_operand.vmem [shape: f32[2,32,32], index: 6, kind: input, shape index: {}]
  %s7 = inlined_call_operand.vmem [shape: f32[2,1,32], index: 7, kind: input, shape index: {}]
  %s8 = inlined_call_operand.vmem [shape: f32[2,1,32], index: 8, kind: input, shape index: {}]
  %s9 = inlined_call_operand.vmem [shape: f32[2,1,32], index: 9, kind: input, shape index: {}]
  %s10 = inlined_call_operand.vmem [shape: f32[2,32,64], index: 10, kind: input, shape index: {}]
  %s11 = inlined_call_operand.vmem [shape: f32[2,1,64], index: 11, kind: input, shape index: {}]
  %s12 = inlined_call_operand.vmem [shape: f32[2,64,32], index: 12, kind: input, shape index: {}]
  %s13 = inlined_call_operand.vmem [shape: f32[2,1,32], index: 13, kind: input, shape index: {}]
  %s14 = inlined_call_operand.vmem [shape: f32[2,1,32], index: 14, kind: input, shape index: {}]
  %s15 = inlined_call_operand.vmem [shape: f32[2,1,32], index: 15, kind: input, shape index: {}]
  %s16 = inlined_call_operand.vmem [shape: f32[32,128], index: 16, kind: input, shape index: {}]
  %s17 = inlined_call_operand.vmem [shape: f32[32,128], index: 17, kind: input, shape index: {}]
  %s18 = inlined_call_operand.vmem [shape: f32[1,128], index: 18, kind: input, shape index: {}]
  %s19 = inlined_call_operand.vmem [shape: f32[32,128], index: 19, kind: input, shape index: {}]
  %s20 = inlined_call_operand.vmem [shape: f32[32,128], index: 20, kind: input, shape index: {}]
  %s21 = inlined_call_operand.vmem [shape: f32[1,128], index: 21, kind: input, shape index: {}]
  %s22 = inlined_call_operand.vmem [shape: f32[32,2], index: 22, kind: input, shape index: {}]
  %s23 = inlined_call_operand.vmem [shape: f32[32,2], index: 23, kind: input, shape index: {}]
  %s24 = inlined_call_operand.vmem [shape: f32[1,2], index: 24, kind: input, shape index: {}]
  %s25 = inlined_call_operand.vmem [shape: f32[16,2], index: 25, kind: output, shape index: {}]
  %s26 = sld [smem:[#allocation0]]
  $region110: #{hesitator_forward.1} parent=0
    _
  %s28 = ssub.s32 1, %s26
  %s29 = scalar_select 0, %s28, %s26
  // Predicated region
  $region2: #{hesitator_forward.1} parent=0 // pred_check
    _
  $region3: #{hesitator_forward.1} parent=0 // pred_check_branch
    %31 = sbr.rel (0) target = $region5
  $region4: #{hesitator_forward.1} parent=0 // pred_region
    _
  $region5: #{hesitator_forward.1} parent=0 // pred_fallthru
    _
  // Predicated region
  $region6: #{hesitator_forward.1} parent=0 // pred_check
    _
  $region7: #{hesitator_forward.1} parent=0 // pred_check_branch
    %33 = sbr.rel (0) target = $region9
  $region8: #{hesitator_forward.1} parent=0 // pred_region
    _
  $region9: #{hesitator_forward.1} parent=0 // pred_fallthru
    _
  // Predicated region
  $region10: #{hesitator_forward.1} parent=0 // pred_check
    _
  $region11: #{hesitator_forward.1} parent=0 // pred_check_branch
    %35 = sbr.rel (0) target = $region13
  $region12: #{hesitator_forward.1} parent=0 // pred_region
    _
  $region13: #{hesitator_forward.1} parent=0 // pred_fallthru
    _
  // Predicated region
  $region14: #{hesitator_forward.1} parent=0 // pred_check
    _
  $region15: #{hesitator_forward.1} parent=0 // pred_check_branch
    %37 = sbr.rel (0) target = $region17
  $region16: #{hesitator_forward.1} parent=0 // pred_region
    _
  $region17: #{hesitator_forward.1} parent=0 // pred_fallthru
    _
  // Predicated region
  $region18: #{hesitator_forward.1} parent=0 // pred_check
    _
  $region19: #{hesitator_forward.1} parent=0 // pred_check_branch
    %39 = sbr.rel (0) target = $region21
  $region20: #{hesitator_forward.1} parent=0 // pred_region
    _
  $region21: #{hesitator_forward.1} parent=0 // pred_fallthru
    _
  // Predicated region
  $region22: #{hesitator_forward.1} parent=0 // pred_check
    _
  $region23: #{hesitator_forward.1} parent=0 // pred_check_branch
    %41 = sbr.rel (0) target = $region25
  $region24: #{hesitator_forward.1} parent=0 // pred_region
    _
  $region25: #{hesitator_forward.1} parent=0 // pred_fallthru
    _
  // Predicated region
  $region26: #{hesitator_forward.1} parent=0 // pred_check
    _
  $region27: #{hesitator_forward.1} parent=0 // pred_check_branch
    %43 = sbr.rel (0) target = $region29
  $region28: #{hesitator_forward.1} parent=0 // pred_region
    _
  $region29: #{hesitator_forward.1} parent=0 // pred_fallthru
    _
  // Predicated region
  $region30: #{hesitator_forward.1} parent=0 // pred_check
    _
  $region31: #{hesitator_forward.1} parent=0 // pred_check_branch
    %45 = sbr.rel (0) target = $region33
  $region32: #{hesitator_forward.1} parent=0 // pred_region
    _
  $region33: #{hesitator_forward.1} parent=0 // pred_fallthru
    _
  // Predicated region
  $region34: #{hesitator_forward.1} parent=0 // pred_check
    _
  $region35: #{hesitator_forward.1} parent=0 // pred_check_branch
    %47 = sbr.rel (0) target = $region37
  $region36: #{hesitator_forward.1} parent=0 // pred_region
    _
  $region37: #{hesitator_forward.1} parent=0 // pred_fallthru
    _
  // Predicated region
  $region38: #{hesitator_forward.1} parent=0 // pred_check
    _
  $region39: #{hesitator_forward.1} parent=0 // pred_check_branch
    %49 = sbr.rel (0) target = $region41
  $region40: #{hesitator_forward.1} parent=0 // pred_region
    _
  $region41: #{hesitator_forward.1} parent=0 // pred_fallthru
    _
  // Predicated region
  $region42: #{hesitator_forward.1} parent=0 // pred_check
    _
  $region43: #{hesitator_forward.1} parent=0 // pred_check_branch
    %51 = sbr.rel (0) target = $region45
  $region44: #{hesitator_forward.1} parent=0 // pred_region
    _
  $region45: #{hesitator_forward.1} parent=0 // pred_fallthru
    _
  // Predicated region
  $region46: #{hesitator_forward.1} parent=0 // pred_check
    _
  $region47: #{hesitator_forward.1} parent=0 // pred_check_branch
    %53 = sbr.rel (0) target = $region49
  $region48: #{hesitator_forward.1} parent=0 // pred_region
    _
  $region49: #{hesitator_forward.1} parent=0 // pred_fallthru
    _
  // Predicated region
  $region50: #{hesitator_forward.1} parent=0 // pred_check
    _
  $region51: #{hesitator_forward.1} parent=0 // pred_check_branch
    %55 = sbr.rel (0) target = $region53
  $region52: #{hesitator_forward.1} parent=0 // pred_region
    _
  $region53: #{hesitator_forward.1} parent=0 // pred_fallthru
    _
  // Predicated region
  $region54: #{hesitator_forward.1} parent=0 // pred_check
    _
  $region55: #{hesitator_forward.1} parent=0 // pred_check_branch
    %57 = sbr.rel (0) target = $region57
  $region56: #{hesitator_forward.1} parent=0 // pred_region
    _
  $region57: #{hesitator_forward.1} parent=0 // pred_fallthru
    _
  // Predicated region
  $region58: #{hesitator_forward.1} parent=0 // pred_check
    _
  $region59: #{hesitator_forward.1} parent=0 // pred_check_branch
    %59 = sbr.rel (0) target = $region61
  $region60: #{hesitator_forward.1} parent=0 // pred_region
    _
  $region61: #{hesitator_forward.1} parent=0 // pred_fallthru
    _
  // Predicated region
  $region62: #{hesitator_forward.1} parent=0 // pred_check
    _
  $region63: #{hesitator_forward.1} parent=0 // pred_check_branch
    %61 = sbr.rel (0) target = $region65
  $region64: #{hesitator_forward.1} parent=0 // pred_region
    _
  $region65: #{hesitator_forward.1} parent=0 // pred_fallthru
    _
  // Predicated region
  $region66: #{hesitator_forward.1} parent=0 // pred_check
    _
  $region67: #{hesitator_forward.1} parent=0 // pred_check_branch
    %63 = sbr.rel (0) target = $region69
  $region68: #{hesitator_forward.1} parent=0 // pred_region
    _
  $region69: #{hesitator_forward.1} parent=0 // pred_fallthru
    _
  // Predicated region
  $region70: #{hesitator_forward.1} parent=0 // pred_check
    _
  $region71: #{hesitator_forward.1} parent=0 // pred_check_branch
    %65 = sbr.rel (0) target = $region73
  $region72: #{hesitator_forward.1} parent=0 // pred_region
    _
  $region73: #{hesitator_forward.1} parent=0 // pred_fallthru
    _
  // Predicated region
  $region74: #{hesitator_forward.1} parent=0 // pred_check
    _
  $region75: #{hesitator_forward.1} parent=0 // pred_check_branch
    %67 = sbr.rel (0) target = $region77
  $region76: #{hesitator_forward.1} parent=0 // pred_region
    _
  $region77: #{hesitator_forward.1} parent=0 // pred_fallthru
    _
  // Predicated region
  $region78: #{hesitator_forward.1} parent=0 // pred_check
    _
  $region79: #{hesitator_forward.1} parent=0 // pred_check_branch
    %69 = sbr.rel (0) target = $region81
  $region80: #{hesitator_forward.1} parent=0 // pred_region
    _
  $region81: #{hesitator_forward.1} parent=0 // pred_fallthru
    _
  // Predicated region
  $region82: #{hesitator_forward.1} parent=0 // pred_check
    _
  $region83: #{hesitator_forward.1} parent=0 // pred_check_branch
    %71 = sbr.rel (0) target = $region85
  $region84: #{hesitator_forward.1} parent=0 // pred_region
    _
  $region85: #{hesitator_forward.1} parent=0 // pred_fallthru
    _
  // Predicated region
  $region86: #{hesitator_forward.1} parent=0 // pred_check
    _
  $region87: #{hesitator_forward.1} parent=0 // pred_check_branch
    %73 = sbr.rel (0) target = $region89
  $region88: #{hesitator_forward.1} parent=0 // pred_region
    _
  $region89: #{hesitator_forward.1} parent=0 // pred_fallthru
    _
  // Predicated region
  $region90: #{hesitator_forward.1} parent=0 // pred_check
    _
  $region91: #{hesitator_forward.1} parent=0 // pred_check_branch
    %75 = sbr.rel (0) target = $region93
  $region92: #{hesitator_forward.1} parent=0 // pred_region
    _
  $region93: #{hesitator_forward.1} parent=0 // pred_fallthru
    _
  // Predicated region
  $region94: #{hesitator_forward.1} parent=0 // pred_check
    _
  $region95: #{hesitator_forward.1} parent=0 // pred_check_branch
    %77 = sbr.rel (0) target = $region97
  $region96: #{hesitator_forward.1} parent=0 // pred_region
    _
  $region97: #{hesitator_forward.1} parent=0 // pred_fallthru
    _
  // Predicated region
  $region98: #{hesitator_forward.1} parent=0 // pred_check
    _
  $region99: #{hesitator_forward.1} parent=0 // pred_check_branch
    %79 = sbr.rel (0) target = $region101
  $region100: #{hesitator_forward.1} parent=0 // pred_region
    _
  $region101: #{hesitator_forward.1} parent=0 // pred_fallthru
    _
  %v80 = vld [vmem:[%s0] sm:$0xff]
  %v81 = vld [vmem:[%s0 + $0x8] sm:$0xff]
  %v82 = vld [vmem:[%s2] sm:$0x1]
  %v83 = vld [vmem:[%s3] sm:$0x1]
  %vm84 = vcmask 261120
  %v85 = vsel %vm84, %v80, 0.0
  %86 = vadd.xlane.f32.xlu0 %v85
  %v87 = vpop.xlane.xlu0 %86
  %v88 = vsel %vm84, %v81, 0.0
  %89 = vadd.xlane.f32.xlu0 %v88
  %v90 = vpop.xlane.xlu0 %89
  %v91 = vrcp.pop 32.0
  %v92 = vmul.f32 %v87, %v91
  %v93 = vmul.f32 %v90, %v91
  %v94 = vsub.f32 %v80, %v92
  %v95 = vsub.f32 %v81, %v93
  %v96 = vmul.f32 %v94, %v94
  %v97 = vmul.f32 %v95, %v95
  %v98 = vsel %vm84, %v96, 0.0
  %99 = vadd.xlane.f32.xlu0 %v98
  %v100 = vpop.xlane.xlu0 %99
  %v101 = vsel %vm84, %v97, 0.0
  %102 = vadd.xlane.f32.xlu0 %v101
  %v103 = vpop.xlane.xlu0 %102
  %v104 = vmul.f32 %v100, %v91
  %v105 = vmul.f32 %v103, %v91
  %v106 = vadd.f32 %v104, 1e-12
  %v107 = vadd.f32 %v105, 1e-12
  %v108 = vrsqrt.pop %v106
  %v109 = vrsqrt.pop %v107
  %v110 = vmul.f32 %v94, %v108
  %v111 = vmul.f32 %v95, %v109
  %v113 = vlaneseq
  %v114 = vshrl.u32 %v113, 7
  %v115 = vsub.s32 0, %v114
  %v116 = vrot.slane %v82, %v115
  %v118 = vmul.f32 %v110, %v116
  %v119 = vmul.f32 %v111, %v116
  %v121 = vlaneseq
  %v122 = vshrl.u32 %v121, 7
  %v123 = vsub.s32 0, %v122
  %v124 = vrot.slane %v83, %v123
  %v126 = vadd.f32 %v118, %v124
  %v127 = vadd.f32 %v119, %v124
  %v128 = vld [vmem:[%s1] sm:$0x3]
  %v129 = vsub.f32 1.0, %v128
  %v130 = vmul.f32 %v129, -1e+09
  %v131 = vld [vmem:[%s4] sm:$0xff]
  %v132 = vld [vmem:[%s4 + $0x8] sm:$0xff]
  %v133 = vld [vmem:[%s4 + $0x10] sm:$0xff]
  %v134 = vld [vmem:[%s4 + $0x18] sm:$0xff]
  %v135 = vld [vmem:[%s5] sm:$0x1]
  %v137 = vlaneseq
  %v138 = vshrl.u32 %v137, 7
  %v139 = vsub.s32 0, %v138
  %v140 = vrot.slane %v135, %v139
  %v143 = vsel %vm84, %v126, 0
  %v146 = vsel %vm84, %v127, 0
  %148 = vmatprep.subr.mxu0 0.0
  %149 = vmatpush1.msra.mxu0 %v131
  %150 = vmatprep.subr.mxu0 0.0
  %151 = vmatpush1.msra.mxu0 %v132
  %152 = vmatprep.subr.mxu0 0.0
  %153 = vmatpush1.msra.mxu0 %v133
  %154 = vmatprep.subr.mxu0 0.0
  %155 = vmatpush1.msra.mxu0 %v134
  %156 = vmatprep.subr.mxu0 0.0
  %157 = vmatpush1.msra.mxu0 0.0
  %158 = vmatprep.subr.mxu0 0.0
  %159 = vmatpush1.msra.mxu0 0.0
  %160 = vmatprep.subr.mxu0 0.0
  %161 = vmatpush1.msra.mxu0 0.0
  %162 = vmatprep.subr.mxu0 0.0
  %163 = vmatpush1.msra.mxu0 0.0
  %164 = vmatprep.subr.mxu0 0.0
  %165 = vmatpush1.msra.mxu0 0.0
  %166 = vmatprep.subr.mxu0 0.0
  %167 = vmatpush1.msra.mxu0 0.0
  %168 = vmatprep.subr.mxu0 0.0
  %169 = vmatpush1.msra.mxu0 0.0
  %170 = vmatprep.subr.mxu0 0.0
  %171 = vmatpush1.msra.mxu0 0.0
  %172 = vmatprep.subr.mxu0 0.0
  %173 = vmatpush1.msra.mxu0 0.0
  %174 = vmatprep.subr.mxu0 0.0
  %175 = vmatpush1.msra.mxu0 0.0
  %176 = vmatprep.subr.mxu0 0.0
  %177 = vmatpush1.msra.mxu0 0.0
  %178 = vmatprep.subr.mxu0 0.0
  %179 = vmatpush1.msra.mxu0 0.0
  %180 = vmatprep.subr.mxu0 0.0
  %181 = vmatpush1.msra.mxu0 0.0
  %182 = vmatprep.subr.mxu0 0.0
  %183 = vmatpush1.msra.mxu0 0.0
  %184 = vmatprep.subr.mxu0 0.0
  %185 = vmatpush1.msra.mxu0 0.0
  %186 = vmatprep.subr.mxu0 0.0
  %187 = vmatpush1.msra.mxu0 0.0
  %188 = vmatprep.subr.mxu0 0.0
  %189 = vmatpush1.msra.mxu0 0.0
  %190 = vmatprep.subr.mxu0 0.0
  %191 = vmatpush1.msra.mxu0 0.0
  %192 = vmatprep.subr.mxu0 0.0
  %193 = vmatpush1.msra.mxu0 0.0
  %194 = vmatprep.subr.mxu0 0.0
  %195 = vmatpush1.msra.mxu0 0.0
  %196 = vmatprep.subr.mxu0 0.0
  %197 = vmatpush1.msra.mxu0 0.0
  %198 = vmatprep.subr.mxu0 0.0
  %199 = vmatpush1.msra.mxu0 0.0
  %200 = vmatprep.subr.mxu0 0.0
  %201 = vmatpush1.msra.mxu0 0.0
  %202 = vmatprep.subr.mxu0 0.0
  %203 = vmatpush1.msra.mxu0 0.0
  %204 = vmatprep.subr.mxu0 0.0
  %205 = vmatpush1.msra.mxu0 0.0
  %206 = vmatprep.subr.mxu0 0.0
  %207 = vmatpush1.msra.mxu0 0.0
  %208 = vmatprep.subr.mxu0 0.0
  %209 = vmatpush1.msra.mxu0 0.0
  %210 = vmatprep.subr.mxu0 0.0
  %211 = vmatpush1.msra.mxu0 0.0
  %212 = vmatprep.mubr.f32.mxu0 0.0
  %213 = vmatmul.mubr.f32.gmra.mrb[0].mxu0 %v143
  %v214 = vpop.f32.mrb[0].mxu0
  %v215 = vadd.f32 %v140, %v214
  %v216 = vpop.f32.mrb[0].mxu0
  %217 = vmatprep.mubr.f32.mxu0 0.0
  %218 = vmatmul.mubr.f32.gmra.mrb[0].mxu0 %v146
  %v219 = vpop.f32.mrb[0].mxu0
  %v220 = vadd.f32 %v140, %v219
  %v221 = vpop.f32.mrb[0].mxu0
  %222 = vdwg.mxu0
  %v223 = vlaneseq
  %v224 = vshrl.u32 %v223, 7
  %v225 = vsub.s32 0, %v224
  %v226 = vrot.slane %v130, %v225
  %228 = vrot.lane.b32.xlu0 %v215, 96
  %v229 = vpop.permute.xlu0 %228
  %vm230 = vcmask 130048
  %v231 = vsel %vm230, %v215, 0
  %v233 = vsel %vm230, %v229, 0
  %235 = vmatprep.subr.mxu0 0.0
  %236 = vmatpush1.xpose.msra.mxu0 %v233
  %237 = vmatprep.subr.mxu0 0.0
  %238 = vmatpush1.xpose.msra.mxu0 0.0
  %239 = vmatprep.subr.mxu0 0.0
  %240 = vmatpush1.xpose.msra.mxu0 0.0
  %241 = vmatprep.subr.mxu0 0.0
  %242 = vmatpush1.xpose.msra.mxu0 0.0
  %243 = vmatprep.subr.mxu0 0.0
  %244 = vmatpush1.xpose.msra.mxu0 0.0
  %245 = vmatprep.subr.mxu0 0.0
  %246 = vmatpush1.xpose.msra.mxu0 0.0
  %247 = vmatprep.subr.mxu0 0.0
  %248 = vmatpush1.xpose.msra.mxu0 0.0
  %249 = vmatprep.subr.mxu0 0.0
  %250 = vmatpush1.xpose.msra.mxu0 0.0
  %251 = vmatprep.subr.mxu0 0.0
  %252 = vmatpush1.xpose.msra.mxu0 0.0
  %253 = vmatprep.subr.mxu0 0.0
  %254 = vmatpush1.xpose.msra.mxu0 0.0
  %255 = vmatprep.subr.mxu0 0.0
  %256 = vmatpush1.xpose.msra.mxu0 0.0
  %257 = vmatprep.subr.mxu0 0.0
  %258 = vmatpush1.xpose.msra.mxu0 0.0
  %259 = vmatprep.subr.mxu0 0.0
  %260 = vmatpush1.xpose.msra.mxu0 0.0
  %261 = vmatprep.subr.mxu0 0.0
  %262 = vmatpush1.xpose.msra.mxu0 0.0
  %263 = vmatprep.subr.mxu0 0.0
  %264 = vmatpush1.xpose.msra.mxu0 0.0
  %265 = vmatprep.subr.mxu0 0.0
  %266 = vmatpush1.xpose.msra.mxu0 0.0
  %267 = vmatprep.subr.mxu0 0.0
  %268 = vmatpush1.xpose.msra.mxu0 0.0
  %269 = vmatprep.subr.mxu0 0.0
  %270 = vmatpush1.xpose.msra.mxu0 0.0
  %271 = vmatprep.subr.mxu0 0.0
  %272 = vmatpush1.xpose.msra.mxu0 0.0
  %273 = vmatprep.subr.mxu0 0.0
  %274 = vmatpush1.xpose.msra.mxu0 0.0
  %275 = vmatprep.subr.mxu0 0.0
  %276 = vmatpush1.xpose.msra.mxu0 0.0
  %277 = vmatprep.subr.mxu0 0.0
  %278 = vmatpush1.xpose.msra.mxu0 0.0
  %279 = vmatprep.subr.mxu0 0.0
  %280 = vmatpush1.xpose.msra.mxu0 0.0
  %281 = vmatprep.subr.mxu0 0.0
  %282 = vmatpush1.xpose.msra.mxu0 0.0
  %283 = vmatprep.subr.mxu0 0.0
  %284 = vmatpush1.xpose.msra.mxu0 0.0
  %285 = vmatprep.subr.mxu0 0.0
  %286 = vmatpush1.xpose.msra.mxu0 0.0
  %287 = vmatprep.subr.mxu0 0.0
  %288 = vmatpush1.xpose.msra.mxu0 0.0
  %289 = vmatprep.subr.mxu0 0.0
  %290 = vmatpush1.xpose.msra.mxu0 0.0
  %291 = vmatprep.subr.mxu0 0.0
  %292 = vmatpush1.xpose.msra.mxu0 0.0
  %293 = vmatprep.subr.mxu0 0.0
  %294 = vmatpush1.xpose.msra.mxu0 0.0
  %295 = vmatprep.subr.mxu0 0.0
  %296 = vmatpush1.xpose.msra.mxu0 0.0
  %297 = vmatprep.subr.mxu0 0.0
  %298 = vmatpush1.xpose.msra.mxu0 0.0
  %299 = vmatprep.mubr.f32.mxu0 0.0
  %300 = vmatmul.mubr.f32.gmra.mrb[0].mxu0 %v231
  %v301 = vpop.f32.mrb[0].mxu0
  %v302 = vadd.f32 %v226, %v301
  %v303 = vpop.f32.mrb[0].mxu0
  %304 = vdwg.mxu0
  %vm305 = vcmask 64512
  %v306 = vsel %vm305, %v302, -inf
  %307 = vmax.xlane.f32.xlu0 %v306
  %v308 = vpop.xlane.xlu0 %307
  %v309 = vsub.f32 %v302, %v308
  %v310 = vmul.f32 %v309, 1.442695
  %v311 = vpow.pop %v310
  %v312 = vsel %vm305, %v311, 0.0
  %313 = vadd.xlane.f32.xlu0 %v312
  %v314 = vpop.xlane.xlu0 %313
  %v315 = vrcp.pop %v314
  %v316 = vmul.f32 %v311, %v315
  %317 = vrot.lane.b32.xlu0 %v215, 64
  %v318 = vpop.permute.xlu0 %317
  %v321 = vsel %vm305, %v316, 0
  %323 = vmatprep.subr.mxu0 0.0
  %324 = vmatpush1.msra.mxu0 %v318
  %325 = vmatprep.subr.mxu0 0.0
  %326 = vmatpush1.msra.mxu0 0.0
  %327 = vmatprep.subr.mxu0 0.0
  %328 = vmatpush1.msra.mxu0 0.0
  %329 = vmatprep.subr.mxu0 0.0
  %330 = vmatpush1.msra.mxu0 0.0
  %331 = vmatprep.subr.mxu0 0.0
  %332 = vmatpush1.msra.mxu0 0.0
  %333 = vmatprep.subr.mxu0 0.0
  %334 = vmatpush1.msra.mxu0 0.0
  %335 = vmatprep.subr.mxu0 0.0
  %336 = vmatpush1.msra.mxu0 0.0
  %337 = vmatprep.subr.mxu0 0.0
  %338 = vmatpush1.msra.mxu0 0.0
  %339 = vmatprep.subr.mxu0 0.0
  %340 = vmatpush1.msra.mxu0 0.0
  %341 = vmatprep.subr.mxu0 0.0
  %342 = vmatpush1.msra.mxu0 0.0
  %343 = vmatprep.subr.mxu0 0.0
  %344 = vmatpush1.msra.mxu0 0.0
  %345 = vmatprep.subr.mxu0 0.0
  %346 = vmatpush1.msra.mxu0 0.0
  %347 = vmatprep.subr.mxu0 0.0
  %348 = vmatpush1.msra.mxu0 0.0
  %349 = vmatprep.subr.mxu0 0.0
  %350 = vmatpush1.msra.mxu0 0.0
  %351 = vmatprep.subr.mxu0 0.0
  %352 = vmatpush1.msra.mxu0 0.0
  %353 = vmatprep.subr.mxu0 0.0
  %354 = vmatpush1.msra.mxu0 0.0
  %355 = vmatprep.subr.mxu0 0.0
  %356 = vmatpush1.msra.mxu0 0.0
  %357 = vmatprep.subr.mxu0 0.0
  %358 = vmatpush1.msra.mxu0 0.0
  %359 = vmatprep.subr.mxu0 0.0
  %360 = vmatpush1.msra.mxu0 0.0
  %361 = vmatprep.subr.mxu0 0.0
  %362 = vmatpush1.msra.mxu0 0.0
  %363 = vmatprep.subr.mxu0 0.0
  %364 = vmatpush1.msra.mxu0 0.0
  %365 = vmatprep.subr.mxu0 0.0
  %366 = vmatpush1.msra.mxu0 0.0
  %367 = vmatprep.subr.mxu0 0.0
  %368 = vmatpush1.msra.mxu0 0.0
  %369 = vmatprep.subr.mxu0 0.0
  %370 = vmatpush1.msra.mxu0 0.0
  %371 = vmatprep.subr.mxu0 0.0
  %372 = vmatpush1.msra.mxu0 0.0
  %373 = vmatprep.subr.mxu0 0.0
  %374 = vmatpush1.msra.mxu0 0.0
  %375 = vmatprep.subr.mxu0 0.0
  %376 = vmatpush1.msra.mxu0 0.0
  %377 = vmatprep.subr.mxu0 0.0
  %378 = vmatpush1.msra.mxu0 0.0
  %379 = vmatprep.subr.mxu0 0.0
  %380 = vmatpush1.msra.mxu0 0.0
  %381 = vmatprep.subr.mxu0 0.0
  %382 = vmatpush1.msra.mxu0 0.0
  %383 = vmatprep.subr.mxu0 0.0
  %384 = vmatpush1.msra.mxu0 0.0
  %385 = vmatprep.subr.mxu0 0.0
  %386 = vmatpush1.msra.mxu0 0.0
  %387 = vmatprep.mubr.f32.mxu0 0.0
  %388 = vmatmul.mubr.f32.gmra.mrb[0].mxu0 %v321
  %v389 = vpop.f32.mrb[0].mxu0
  %v390 = vadd.f32 0.0, %v389
  %v391 = vpop.f32.mrb[0].mxu0
  %392 = vdwg.mxu0
  %393 = vrot.lane.b32.xlu0 %v215, 112
  %v394 = vpop.permute.xlu0 %393
  %395 = vrot.lane.b32.xlu0 %v215, 80
  %v396 = vpop.permute.xlu0 %395
  %v397 = vsel %vm230, %v394, 0
  %v399 = vsel %vm230, %v396, 0
  %401 = vmatprep.subr.mxu0 0.0
  %402 = vmatpush1.xpose.msra.mxu0 %v399
  %403 = vmatprep.subr.mxu0 0.0
  %404 = vmatpush1.xpose.msra.mxu0 0.0
  %405 = vmatprep.subr.mxu0 0.0
  %406 = vmatpush1.xpose.msra.mxu0 0.0
  %407 = vmatprep.subr.mxu0 0.0
  %408 = vmatpush1.xpose.msra.mxu0 0.0
  %409 = vmatprep.subr.mxu0 0.0
  %410 = vmatpush1.xpose.msra.mxu0 0.0
  %411 = vmatprep.subr.mxu0 0.0
  %412 = vmatpush1.xpose.msra.mxu0 0.0
  %413 = vmatprep.subr.mxu0 0.0
  %414 = vmatpush1.xpose.msra.mxu0 0.0
  %415 = vmatprep.subr.mxu0 0.0
  %416 = vmatpush1.xpose.msra.mxu0 0.0
  %417 = vmatprep.subr.mxu0 0.0
  %418 = vmatpush1.xpose.msra.mxu0 0.0
  %419 = vmatprep.subr.mxu0 0.0
  %420 = vmatpush1.xpose.msra.mxu0 0.0
  %421 = vmatprep.subr.mxu0 0.0
  %422 = vmatpush1.xpose.msra.mxu0 0.0
  %423 = vmatprep.subr.mxu0 0.0
  %424 = vmatpush1.xpose.msra.mxu0 0.0
  %425 = vmatprep.subr.mxu0 0.0
  %426 = vmatpush1.xpose.msra.mxu0 0.0
  %427 = vmatprep.subr.mxu0 0.0
  %428 = vmatpush1.xpose.msra.mxu0 0.0
  %429 = vmatprep.subr.mxu0 0.0
  %430 = vmatpush1.xpose.msra.mxu0 0.0
  %431 = vmatprep.subr.mxu0 0.0
  %432 = vmatpush1.xpose.msra.mxu0 0.0
  %433 = vmatprep.subr.mxu0 0.0
  %434 = vmatpush1.xpose.msra.mxu0 0.0
  %435 = vmatprep.subr.mxu0 0.0
  %436 = vmatpush1.xpose.msra.mxu0 0.0
  %437 = vmatprep.subr.mxu0 0.0
  %438 = vmatpush1.xpose.msra.mxu0 0.0
  %439 = vmatprep.subr.mxu0 0.0
  %440 = vmatpush1.xpose.msra.mxu0 0.0
  %441 = vmatprep.subr.mxu0 0.0
  %442 = vmatpush1.xpose.msra.mxu0 0.0
  %443 = vmatprep.subr.mxu0 0.0
  %444 = vmatpush1.xpose.msra.mxu0 0.0
  %445 = vmatprep.subr.mxu0 0.0
  %446 = vmatpush1.xpose.msra.mxu0 0.0
  %447 = vmatprep.subr.mxu0 0.0
  %448 = vmatpush1.xpose.msra.mxu0 0.0
  %449 = vmatprep.subr.mxu0 0.0
  %450 = vmatpush1.xpose.msra.mxu0 0.0
  %451 = vmatprep.subr.mxu0 0.0
  %452 = vmatpush1.xpose.msra.mxu0 0.0
  %453 = vmatprep.subr.mxu0 0.0
  %454 = vmatpush1.xpose.msra.mxu0 0.0
  %455 = vmatprep.subr.mxu0 0.0
  %456 = vmatpush1.xpose.msra.mxu0 0.0
  %457 = vmatprep.subr.mxu0 0.0
  %458 = vmatpush1.xpose.msra.mxu0 0.0
  %459 = vmatprep.subr.mxu0 0.0
  %460 = vmatpush1.xpose.msra.mxu0 0.0
  %461 = vmatprep.subr.mxu0 0.0
  %462 = vmatpush1.xpose.msra.mxu0 0.0
  %463 = vmatprep.subr.mxu0 0.0
  %464 = vmatpush1.xpose.msra.mxu0 0.0
  %465 = vmatprep.mubr.f32.mxu0 0.0
  %466 = vmatmul.mubr.f32.gmra.mrb[0].mxu0 %v397
  %v467 = vpop.f32.mrb[0].mxu0
  %v468 = vadd.f32 %v226, %v467
  %v469 = vpop.f32.mrb[0].mxu0
  %470 = vdwg.mxu0
  %v471 = vsel %vm305, %v468, -inf
  %472 = vmax.xlane.f32.xlu0 %v471
  %v473 = vpop.xlane.xlu0 %472
  %v474 = vsub.f32 %v468, %v473
  %v475 = vmul.f32 %v474, 1.442695
  %v476 = vpow.pop %v475
  %v477 = vsel %vm305, %v476, 0.0
  %478 = vadd.xlane.f32.xlu0 %v477
  %v479 = vpop.xlane.xlu0 %478
  %v480 = vrcp.pop %v479
  %v481 = vmul.f32 %v476, %v480
  %482 = vrot.lane.b32.xlu0 %v215, 48
  %v483 = vpop.permute.xlu0 %482
  %v486 = vsel %vm305, %v481, 0
  %488 = vmatprep.subr.mxu0 0.0
  %489 = vmatpush1.msra.mxu0 %v483
  %490 = vmatprep.subr.mxu0 0.0
  %491 = vmatpush1.msra.mxu0 0.0
  %492 = vmatprep.subr.mxu0 0.0
  %493 = vmatpush1.msra.mxu0 0.0
  %494 = vmatprep.subr.mxu0 0.0
  %495 = vmatpush1.msra.mxu0 0.0
  %496 = vmatprep.subr.mxu0 0.0
  %497 = vmatpush1.msra.mxu0 0.0
  %498 = vmatprep.subr.mxu0 0.0
  %499 = vmatpush1.msra.mxu0 0.0
  %500 = vmatprep.subr.mxu0 0.0
  %501 = vmatpush1.msra.mxu0 0.0
  %502 = vmatprep.subr.mxu0 0.0
  %503 = vmatpush1.msra.mxu0 0.0
  %504 = vmatprep.subr.mxu0 0.0
  %505 = vmatpush1.msra.mxu0 0.0
  %506 = vmatprep.subr.mxu0 0.0
  %507 = vmatpush1.msra.mxu0 0.0
  %508 = vmatprep.subr.mxu0 0.0
  %509 = vmatpush1.msra.mxu0 0.0
  %510 = vmatprep.subr.mxu0 0.0
  %511 = vmatpush1.msra.mxu0 0.0
  %512 = vmatprep.subr.mxu0 0.0
  %513 = vmatpush1.msra.mxu0 0.0
  %514 = vmatprep.subr.mxu0 0.0
  %515 = vmatpush1.msra.mxu0 0.0
  %516 = vmatprep.subr.mxu0 0.0
  %517 = vmatpush1.msra.mxu0 0.0
  %518 = vmatprep.subr.mxu0 0.0
  %519 = vmatpush1.msra.mxu0 0.0
  %520 = vmatprep.subr.mxu0 0.0
  %521 = vmatpush1.msra.mxu0 0.0
  %522 = vmatprep.subr.mxu0 0.0
  %523 = vmatpush1.msra.mxu0 0.0
  %524 = vmatprep.subr.mxu0 0.0
  %525 = vmatpush1.msra.mxu0 0.0
  %526 = vmatprep.subr.mxu0 0.0
  %527 = vmatpush1.msra.mxu0 0.0
  %528 = vmatprep.subr.mxu0 0.0
  %529 = vmatpush1.msra.mxu0 0.0
  %530 = vmatprep.subr.mxu0 0.0
  %531 = vmatpush1.msra.mxu0 0.0
  %532 = vmatprep.subr.mxu0 0.0
  %533 = vmatpush1.msra.mxu0 0.0
  %534 = vmatprep.subr.mxu0 0.0
  %535 = vmatpush1.msra.mxu0 0.0
  %536 = vmatprep.subr.mxu0 0.0
  %537 = vmatpush1.msra.mxu0 0.0
  %538 = vmatprep.subr.mxu0 0.0
  %539 = vmatpush1.msra.mxu0 0.0
  %540 = vmatprep.subr.mxu0 0.0
  %541 = vmatpush1.msra.mxu0 0.0
  %542 = vmatprep.subr.mxu0 0.0
  %543 = vmatpush1.msra.mxu0 0.0
  %544 = vmatprep.subr.mxu0 0.0
  %545 = vmatpush1.msra.mxu0 0.0
  %546 = vmatprep.subr.mxu0 0.0
  %547 = vmatpush1.msra.mxu0 0.0
  %548 = vmatprep.subr.mxu0 0.0
  %549 = vmatpush1.msra.mxu0 0.0
  %550 = vmatprep.subr.mxu0 0.0
  %551 = vmatpush1.msra.mxu0 0.0
  %552 = vmatprep.mubr.f32.mxu0 0.0
  %553 = vmatmul.mubr.f32.gmra.mrb[0].mxu0 %v486
  %v554 = vpop.f32.mrb[0].mxu0
  %v555 = vadd.f32 0.0, %v554
  %v556 = vpop.f32.mrb[0].mxu0
  %557 = vdwg.mxu0
  %559 = vrot.lane.b32.xlu0 %v555, 16
  %v560 = vpop.permute.xlu0 %559
  %v562 = vsel %vm230, %v390, %v560
  %v563 = vlaneseq
  %v564 = vshrl.u32 %v563, 7
  %v565 = vsub.s32 1, %v564
  %v566 = vrot.slane %v130, %v565
  %568 = vrot.lane.b32.xlu0 %v220, 96
  %v569 = vpop.permute.xlu0 %568
  %v570 = vsel %vm230, %v220, 0
  %v572 = vsel %vm230, %v569, 0
  %574 = vmatprep.subr.mxu0 0.0
  %575 = vmatpush1.xpose.msra.mxu0 %v572
  %576 = vmatprep.subr.mxu0 0.0
  %577 = vmatpush1.xpose.msra.mxu0 0.0
  %578 = vmatprep.subr.mxu0 0.0
  %579 = vmatpush1.xpose.msra.mxu0 0.0
  %580 = vmatprep.subr.mxu0 0.0
  %581 = vmatpush1.xpose.msra.mxu0 0.0
  %582 = vmatprep.subr.mxu0 0.0
  %583 = vmatpush1.xpose.msra.mxu0 0.0
  %584 = vmatprep.subr.mxu0 0.0
  %585 = vmatpush1.xpose.msra.mxu0 0.0
  %586 = vmatprep.subr.mxu0 0.0
  %587 = vmatpush1.xpose.msra.mxu0 0.0
  %588 = vmatprep.subr.mxu0 0.0
  %589 = vmatpush1.xpose.msra.mxu0 0.0
  %590 = vmatprep.subr.mxu0 0.0
  %591 = vmatpush1.xpose.msra.mxu0 0.0
  %592 = vmatprep.subr.mxu0 0.0
  %593 = vmatpush1.xpose.msra.mxu0 0.0
  %594 = vmatprep.subr.mxu0 0.0
  %595 = vmatpush1.xpose.msra.mxu0 0.0
  %596 = vmatprep.subr.mxu0 0.0
  %597 = vmatpush1.xpose.msra.mxu0 0.0
  %598 = vmatprep.subr.mxu0 0.0
  %599 = vmatpush1.xpose.msra.mxu0 0.0
  %600 = vmatprep.subr.mxu0 0.0
  %601 = vmatpush1.xpose.msra.mxu0 0.0
  %602 = vmatprep.subr.mxu0 0.0
  %603 = vmatpush1.xpose.msra.mxu0 0.0
  %604 = vmatprep.subr.mxu0 0.0
  %605 = vmatpush1.xpose.msra.mxu0 0.0
  %606 = vmatprep.subr.mxu0 0.0
  %607 = vmatpush1.xpose.msra.mxu0 0.0
  %608 = vmatprep.subr.mxu0 0.0
  %609 = vmatpush1.xpose.msra.mxu0 0.0
  %610 = vmatprep.subr.mxu0 0.0
  %611 = vmatpush1.xpose.msra.mxu0 0.0
  %612 = vmatprep.subr.mxu0 0.0
  %613 = vmatpush1.xpose.msra.mxu0 0.0
  %614 = vmatprep.subr.mxu0 0.0
  %615 = vmatpush1.xpose.msra.mxu0 0.0
  %616 = vmatprep.subr.mxu0 0.0
  %617 = vmatpush1.xpose.msra.mxu0 0.0
  %618 = vmatprep.subr.mxu0 0.0
  %619 = vmatpush1.xpose.msra.mxu0 0.0
  %620 = vmatprep.subr.mxu0 0.0
  %621 = vmatpush1.xpose.msra.mxu0 0.0
  %622 = vmatprep.subr.mxu0 0.0
  %623 = vmatpush1.xpose.msra.mxu0 0.0
  %624 = vmatprep.subr.mxu0 0.0
  %625 = vmatpush1.xpose.msra.mxu0 0.0
  %626 = vmatprep.subr.mxu0 0.0
  %627 = vmatpush1.xpose.msra.mxu0 0.0
  %628 = vmatprep.subr.mxu0 0.0
  %629 = vmatpush1.xpose.msra.mxu0 0.0
  %630 = vmatprep.subr.mxu0 0.0
  %631 = vmatpush1.xpose.msra.mxu0 0.0
  %632 = vmatprep.subr.mxu0 0.0
  %633 = vmatpush1.xpose.msra.mxu0 0.0
  %634 = vmatprep.subr.mxu0 0.0
  %635 = vmatpush1.xpose.msra.mxu0 0.0
  %636 = vmatprep.subr.mxu0 0.0
  %637 = vmatpush1.xpose.msra.mxu0 0.0
  %638 = vmatprep.mubr.f32.mxu0 0.0
  %639 = vmatmul.mubr.f32.gmra.mrb[0].mxu0 %v570
  %v640 = vpop.f32.mrb[0].mxu0
  %v641 = vadd.f32 %v566, %v640
  %v642 = vpop.f32.mrb[0].mxu0
  %643 = vdwg.mxu0
  %v644 = vsel %vm305, %v641, -inf
  %645 = vmax.xlane.f32.xlu0 %v644
  %v646 = vpop.xlane.xlu0 %645
  %v647 = vsub.f32 %v641, %v646
  %v648 = vmul.f32 %v647, 1.442695
  %v649 = vpow.pop %v648
  %v650 = vsel %vm305, %v649, 0.0
  %651 = vadd.xlane.f32.xlu0 %v650
  %v652 = vpop.xlane.xlu0 %651
  %v653 = vrcp.pop %v652
  %v654 = vmul.f32 %v649, %v653
  %655 = vrot.lane.b32.xlu0 %v220, 64
  %v656 = vpop.permute.xlu0 %655
  %v659 = vsel %vm305, %v654, 0
  %661 = vmatprep.subr.mxu0 0.0
  %662 = vmatpush1.msra.mxu0 %v656
  %663 = vmatprep.subr.mxu0 0.0
  %664 = vmatpush1.msra.mxu0 0.0
  %665 = vmatprep.subr.mxu0 0.0
  %666 = vmatpush1.msra.mxu0 0.0
  %667 = vmatprep.subr.mxu0 0.0
  %668 = vmatpush1.msra.mxu0 0.0
  %669 = vmatprep.subr.mxu0 0.0
  %670 = vmatpush1.msra.mxu0 0.0
  %671 = vmatprep.subr.mxu0 0.0
  %672 = vmatpush1.msra.mxu0 0.0
  %673 = vmatprep.subr.mxu0 0.0
  %674 = vmatpush1.msra.mxu0 0.0
  %675 = vmatprep.subr.mxu0 0.0
  %676 = vmatpush1.msra.mxu0 0.0
  %677 = vmatprep.subr.mxu0 0.0
  %678 = vmatpush1.msra.mxu0 0.0
  %679 = vmatprep.subr.mxu0 0.0
  %680 = vmatpush1.msra.mxu0 0.0
  %681 = vmatprep.subr.mxu0 0.0
  %682 = vmatpush1.msra.mxu0 0.0
  %683 = vmatprep.subr.mxu0 0.0
  %684 = vmatpush1.msra.mxu0 0.0
  %685 = vmatprep.subr.mxu0 0.0
  %686 = vmatpush1.msra.mxu0 0.0
  %687 = vmatprep.subr.mxu0 0.0
  %688 = vmatpush1.msra.mxu0 0.0
  %689 = vmatprep.subr.mxu0 0.0
  %690 = vmatpush1.msra.mxu0 0.0
  %691 = vmatprep.subr.mxu0 0.0
  %692 = vmatpush1.msra.mxu0 0.0
  %693 = vmatprep.subr.mxu0 0.0
  %694 = vmatpush1.msra.mxu0 0.0
  %695 = vmatprep.subr.mxu0 0.0
  %696 = vmatpush1.msra.mxu0 0.0
  %697 = vmatprep.subr.mxu0 0.0
  %698 = vmatpush1.msra.mxu0 0.0
  %699 = vmatprep.subr.mxu0 0.0
  %700 = vmatpush1.msra.mxu0 0.0
  %701 = vmatprep.subr.mxu0 0.0
  %702 = vmatpush1.msra.mxu0 0.0
  %703 = vmatprep.subr.mxu0 0.0
  %704 = vmatpush1.msra.mxu0 0.0
  %705 = vmatprep.subr.mxu0 0.0
  %706 = vmatpush1.msra.mxu0 0.0
  %707 = vmatprep.subr.mxu0 0.0
  %708 = vmatpush1.msra.mxu0 0.0
  %709 = vmatprep.subr.mxu0 0.0
  %710 = vmatpush1.msra.mxu0 0.0
  %711 = vmatprep.subr.mxu0 0.0
  %712 = vmatpush1.msra.mxu0 0.0
  %713 = vmatprep.subr.mxu0 0.0
  %714 = vmatpush1.msra.mxu0 0.0
  %715 = vmatprep.subr.mxu0 0.0
  %716 = vmatpush1.msra.mxu0 0.0
  %717 = vmatprep.subr.mxu0 0.0
  %718 = vmatpush1.msra.mxu0 0.0
  %719 = vmatprep.subr.mxu0 0.0
  %720 = vmatpush1.msra.mxu0 0.0
  %721 = vmatprep.subr.mxu0 0.0
  %722 = vmatpush1.msra.mxu0 0.0
  %723 = vmatprep.subr.mxu0 0.0
  %724 = vmatpush1.msra.mxu0 0.0
  %725 = vmatprep.mubr.f32.mxu0 0.0
  %726 = vmatmul.mubr.f32.gmra.mrb[0].mxu0 %v659
  %v727 = vpop.f32.mrb[0].mxu0
  %v728 = vadd.f32 0.0, %v727
  %v729 = vpop.f32.mrb[0].mxu0
  %730 = vdwg.mxu0
  %731 = vrot.lane.b32.xlu0 %v220, 112
  %v732 = vpop.permute.xlu0 %731
  %733 = vrot.lane.b32.xlu0 %v220, 80
  %v734 = vpop.permute.xlu0 %733
  %v735 = vsel %vm230, %v732, 0
  %v737 = vsel %vm230, %v734, 0
  %739 = vmatprep.subr.mxu0 0.0
  %740 = vmatpush1.xpose.msra.mxu0 %v737
  %741 = vmatprep.subr.mxu0 0.0
  %742 = vmatpush1.xpose.msra.mxu0 0.0
  %743 = vmatprep.subr.mxu0 0.0
  %744 = vmatpush1.xpose.msra.mxu0 0.0
  %745 = vmatprep.subr.mxu0 0.0
  %746 = vmatpush1.xpose.msra.mxu0 0.0
  %747 = vmatprep.subr.mxu0 0.0
  %748 = vmatpush1.xpose.msra.mxu0 0.0
  %749 = vmatprep.subr.mxu0 0.0
  %750 = vmatpush1.xpose.msra.mxu0 0.0
  %751 = vmatprep.subr.mxu0 0.0
  %752 = vmatpush1.xpose.msra.mxu0 0.0
  %753 = vmatprep.subr.mxu0 0.0
  %754 = vmatpush1.xpose.msra.mxu0 0.0
  %755 = vmatprep.subr.mxu0 0.0
  %756 = vmatpush1.xpose.msra.mxu0 0.0
  %757 = vmatprep.subr.mxu0 0.0
  %758 = vmatpush1.xpose.msra.mxu0 0.0
  %759 = vmatprep.subr.mxu0 0.0
  %760 = vmatpush1.xpose.msra.mxu0 0.0
  %761 = vmatprep.subr.mxu0 0.0
  %762 = vmatpush1.xpose.msra.mxu0 0.0
  %763 = vmatprep.subr.mxu0 0.0
  %764 = vmatpush1.xpose.msra.mxu0 0.0
  %765 = vmatprep.subr.mxu0 0.0
  %766 = vmatpush1.xpose.msra.mxu0 0.0
  %767 = vmatprep.subr.mxu0 0.0
  %768 = vmatpush1.xpose.msra.mxu0 0.0
  %769 = vmatprep.subr.mxu0 0.0
  %770 = vmatpush1.xpose.msra.mxu0 0.0
  %771 = vmatprep.subr.mxu0 0.0
  %772 = vmatpush1.xpose.msra.mxu0 0.0
  %773 = vmatprep.subr.mxu0 0.0
  %774 = vmatpush1.xpose.msra.mxu0 0.0
  %775 = vmatprep.subr.mxu0 0.0
  %776 = vmatpush1.xpose.msra.mxu0 0.0
  %777 = vmatprep.subr.mxu0 0.0
  %778 = vmatpush1.xpose.msra.mxu0 0.0
  %779 = vmatprep.subr.mxu0 0.0
  %780 = vmatpush1.xpose.msra.mxu0 0.0
  %781 = vmatprep.subr.mxu0 0.0
  %782 = vmatpush1.xpose.msra.mxu0 0.0
  %783 = vmatprep.subr.mxu0 0.0
  %784 = vmatpush1.xpose.msra.mxu0 0.0
  %785 = vmatprep.subr.mxu0 0.0
  %786 = vmatpush1.xpose.msra.mxu0 0.0
  %787 = vmatprep.subr.mxu0 0.0
  %788 = vmatpush1.xpose.msra.mxu0 0.0
  %789 = vmatprep.subr.mxu0 0.0
  %790 = vmatpush1.xpose.msra.mxu0 0.0
  %791 = vmatprep.subr.mxu0 0.0
  %792 = vmatpush1.xpose.msra.mxu0 0.0
  %793 = vmatprep.subr.mxu0 0.0
  %794 = vmatpush1.xpose.msra.mxu0 0.0
  %795 = vmatprep.subr.mxu0 0.0
  %796 = vmatpush1.xpose.msra.mxu0 0.0
  %797 = vmatprep.subr.mxu0 0.0
  %798 = vmatpush1.xpose.msra.mxu0 0.0
  %799 = vmatprep.subr.mxu0 0.0
  %800 = vmatpush1.xpose.msra.mxu0 0.0
  %801 = vmatprep.subr.mxu0 0.0
  %802 = vmatpush1.xpose.msra.mxu0 0.0
  %803 = vmatprep.mubr.f32.mxu0 0.0
  %804 = vmatmul.mubr.f32.gmra.mrb[0].mxu0 %v735
  %v805 = vpop.f32.mrb[0].mxu0
  %v806 = vadd.f32 %v566, %v805
  %v807 = vpop.f32.mrb[0].mxu0
  %808 = vdwg.mxu0
  %v809 = vsel %vm305, %v806, -inf
  %810 = vmax.xlane.f32.xlu0 %v809
  %v811 = vpop.xlane.xlu0 %810
  %v812 = vsub.f32 %v806, %v811
  %v813 = vmul.f32 %v812, 1.442695
  %v814 = vpow.pop %v813
  %v815 = vsel %vm305, %v814, 0.0
  %816 = vadd.xlane.f32.xlu0 %v815
  %v817 = vpop.xlane.xlu0 %816
  %v818 = vrcp.pop %v817
  %v819 = vmul.f32 %v814, %v818
  %820 = vrot.lane.b32.xlu0 %v220, 48
  %v821 = vpop.permute.xlu0 %820
  %v824 = vsel %vm305, %v819, 0
  %826 = vmatprep.subr.mxu0 0.0
  %827 = vmatpush1.msra.mxu0 %v821
  %828 = vmatprep.subr.mxu0 0.0
  %829 = vmatpush1.msra.mxu0 0.0
  %830 = vmatprep.subr.mxu0 0.0
  %831 = vmatpush1.msra.mxu0 0.0
  %832 = vmatprep.subr.mxu0 0.0
  %833 = vmatpush1.msra.mxu0 0.0
  %834 = vmatprep.subr.mxu0 0.0
  %835 = vmatpush1.msra.mxu0 0.0
  %836 = vmatprep.subr.mxu0 0.0
  %837 = vmatpush1.msra.mxu0 0.0
  %838 = vmatprep.subr.mxu0 0.0
  %839 = vmatpush1.msra.mxu0 0.0
  %840 = vmatprep.subr.mxu0 0.0
  %841 = vmatpush1.msra.mxu0 0.0
  %842 = vmatprep.subr.mxu0 0.0
  %843 = vmatpush1.msra.mxu0 0.0
  %844 = vmatprep.subr.mxu0 0.0
  %845 = vmatpush1.msra.mxu0 0.0
  %846 = vmatprep.subr.mxu0 0.0
  %847 = vmatpush1.msra.mxu0 0.0
  %848 = vmatprep.subr.mxu0 0.0
  %849 = vmatpush1.msra.mxu0 0.0
  %850 = vmatprep.subr.mxu0 0.0
  %851 = vmatpush1.msra.mxu0 0.0
  %852 = vmatprep.subr.mxu0 0.0
  %853 = vmatpush1.msra.mxu0 0.0
  %854 = vmatprep.subr.mxu0 0.0
  %855 = vmatpush1.msra.mxu0 0.0
  %856 = vmatprep.subr.mxu0 0.0
  %857 = vmatpush1.msra.mxu0 0.0
  %858 = vmatprep.subr.mxu0 0.0
  %859 = vmatpush1.msra.mxu0 0.0
  %860 = vmatprep.subr.mxu0 0.0
  %861 = vmatpush1.msra.mxu0 0.0
  %862 = vmatprep.subr.mxu0 0.0
  %863 = vmatpush1.msra.mxu0 0.0
  %864 = vmatprep.subr.mxu0 0.0
  %865 = vmatpush1.msra.mxu0 0.0
  %866 = vmatprep.subr.mxu0 0.0
  %867 = vmatpush1.msra.mxu0 0.0
  %868 = vmatprep.subr.mxu0 0.0
  %869 = vmatpush1.msra.mxu0 0.0
  %870 = vmatprep.subr.mxu0 0.0
  %871 = vmatpush1.msra.mxu0 0.0
  %872 = vmatprep.subr.mxu0 0.0
  %873 = vmatpush1.msra.mxu0 0.0
  %874 = vmatprep.subr.mxu0 0.0
  %875 = vmatpush1.msra.mxu0 0.0
  %876 = vmatprep.subr.mxu0 0.0
  %877 = vmatpush1.msra.mxu0 0.0
  %878 = vmatprep.subr.mxu0 0.0
  %879 = vmatpush1.msra.mxu0 0.0
  %880 = vmatprep.subr.mxu0 0.0
  %881 = vmatpush1.msra.mxu0 0.0
  %882 = vmatprep.subr.mxu0 0.0
  %883 = vmatpush1.msra.mxu0 0.0
  %884 = vmatprep.subr.mxu0 0.0
  %885 = vmatpush1.msra.mxu0 0.0
  %886 = vmatprep.subr.mxu0 0.0
  %887 = vmatpush1.msra.mxu0 0.0
  %888 = vmatprep.subr.mxu0 0.0
  %889 = vmatpush1.msra.mxu0 0.0
  %890 = vmatprep.mubr.f32.mxu0 0.0
  %891 = vmatmul.mubr.f32.gmra.mrb[0].mxu0 %v824
  %v892 = vpop.f32.mrb[0].mxu0
  %v893 = vadd.f32 0.0, %v892
  %v894 = vpop.f32.mrb[0].mxu0
  %895 = vdwg.mxu0
  %897 = vrot.lane.b32.xlu0 %v893, 16
  %v898 = vpop.permute.xlu0 %897
  %v900 = vsel %vm230, %v728, %v898
  %v901 = vld [vmem:[%s6] sm:$0xff]
  %v902 = vld [vmem:[%s6 + $0x8] sm:$0xff]
  %v903 = vld [vmem:[%s6 + $0x10] sm:$0xff]
  %v904 = vld [vmem:[%s6 + $0x18] sm:$0xff]
  %v905 = vld [vmem:[%s7] sm:$0x1]
  %v907 = vlaneseq
  %v908 = vshrl.u32 %v907, 7
  %v909 = vsub.s32 0, %v908
  %v910 = vrot.slane %v905, %v909
  %v913 = vsel %vm84, %v562, 0
  %v916 = vsel %vm84, %v900, 0
  %918 = vmatprep.subr.mxu0 0.0
  %919 = vmatpush1.msra.mxu0 %v901
  %920 = vmatprep.subr.mxu0 0.0
  %921 = vmatpush1.msra.mxu0 %v902
  %922 = vmatprep.subr.mxu0 0.0
  %923 = vmatpush1.msra.mxu0 %v903
  %924 = vmatprep.subr.mxu0 0.0
  %925 = vmatpush1.msra.mxu0 %v904
  %926 = vmatprep.subr.mxu0 0.0
  %927 = vmatpush1.msra.mxu0 0.0
  %928 = vmatprep.subr.mxu0 0.0
  %929 = vmatpush1.msra.mxu0 0.0
  %930 = vmatprep.subr.mxu0 0.0
  %931 = vmatpush1.msra.mxu0 0.0
  %932 = vmatprep.subr.mxu0 0.0
  %933 = vmatpush1.msra.mxu0 0.0
  %934 = vmatprep.subr.mxu0 0.0
  %935 = vmatpush1.msra.mxu0 0.0
  %936 = vmatprep.subr.mxu0 0.0
  %937 = vmatpush1.msra.mxu0 0.0
  %938 = vmatprep.subr.mxu0 0.0
  %939 = vmatpush1.msra.mxu0 0.0
  %940 = vmatprep.subr.mxu0 0.0
  %941 = vmatpush1.msra.mxu0 0.0
  %942 = vmatprep.subr.mxu0 0.0
  %943 = vmatpush1.msra.mxu0 0.0
  %944 = vmatprep.subr.mxu0 0.0
  %945 = vmatpush1.msra.mxu0 0.0
  %946 = vmatprep.subr.mxu0 0.0
  %947 = vmatpush1.msra.mxu0 0.0
  %948 = vmatprep.subr.mxu0 0.0
  %949 = vmatpush1.msra.mxu0 0.0
  %950 = vmatprep.subr.mxu0 0.0
  %951 = vmatpush1.msra.mxu0 0.0
  %952 = vmatprep.subr.mxu0 0.0
  %953 = vmatpush1.msra.mxu0 0.0
  %954 = vmatprep.subr.mxu0 0.0
  %955 = vmatpush1.msra.mxu0 0.0
  %956 = vmatprep.subr.mxu0 0.0
  %957 = vmatpush1.msra.mxu0 0.0
  %958 = vmatprep.subr.mxu0 0.0
  %959 = vmatpush1.msra.mxu0 0.0
  %960 = vmatprep.subr.mxu0 0.0
  %961 = vmatpush1.msra.mxu0 0.0
  %962 = vmatprep.subr.mxu0 0.0
  %963 = vmatpush1.msra.mxu0 0.0
  %964 = vmatprep.subr.mxu0 0.0
  %965 = vmatpush1.msra.mxu0 0.0
  %966 = vmatprep.subr.mxu0 0.0
  %967 = vmatpush1.msra.mxu0 0.0
  %968 = vmatprep.subr.mxu0 0.0
  %969 = vmatpush1.msra.mxu0 0.0
  %970 = vmatprep.subr.mxu0 0.0
  %971 = vmatpush1.msra.mxu0 0.0
  %972 = vmatprep.subr.mxu0 0.0
  %973 = vmatpush1.msra.mxu0 0.0
  %974 = vmatprep.subr.mxu0 0.0
  %975 = vmatpush1.msra.mxu0 0.0
  %976 = vmatprep.subr.mxu0 0.0
  %977 = vmatpush1.msra.mxu0 0.0
  %978 = vmatprep.subr.mxu0 0.0
  %979 = vmatpush1.msra.mxu0 0.0
  %980 = vmatprep.subr.mxu0 0.0
  %981 = vmatpush1.msra.mxu0 0.0
  %982 = vmatprep.mubr.f32.mxu0 0.0
  %983 = vmatmul.mubr.f32.gmra.mrb[0].mxu0 %v913
  %v984 = vpop.f32.mrb[0].mxu0
  %v985 = vadd.f32 %v910, %v984
  %v986 = vpop.f32.mrb[0].mxu0
  %987 = vmatprep.mubr.f32.mxu0 0.0
  %988 = vmatmul.mubr.f32.gmra.mrb[0].mxu0 %v916
  %v989 = vpop.f32.mrb[0].mxu0
  %v990 = vadd.f32 %v910, %v989
  %v991 = vpop.f32.mrb[0].mxu0
  %992 = vdwg.mxu0
  %v993 = vadd.f32 %v126, %v985
  %v994 = vadd.f32 %v127, %v990
  %v995 = vld [vmem:[%s8] sm:$0x1]
  %v996 = vld [vmem:[%s9] sm:$0x1]
  %v997 = vsel %vm84, %v993, 0.0
  %998 = vadd.xlane.f32.xlu0 %v997
  %v999 = vpop.xlane.xlu0 %998
  %v1000 = vsel %vm84, %v994, 0.0
  %1001 = vadd.xlane.f32.xlu0 %v1000
  %v1002 = vpop.xlane.xlu0 %1001
  %v1003 = vmul.f32 %v999, %v91
  %v1004 = vmul.f32 %v1002, %v91
  %v1005 = vsub.f32 %v993, %v1003
  %v1006 = vsub.f32 %v994, %v1004
  %v1007 = vmul.f32 %v1005, %v1005
  %v1008 = vmul.f32 %v1006, %v1006
  %v1009 = vsel %vm84, %v1007, 0.0
  %1010 = vadd.xlane.f32.xlu0 %v1009
  %v1011 = vpop.xlane.xlu0 %1010
  %v1012 = vsel %vm84, %v1008, 0.0
  %1013 = vadd.xlane.f32.xlu0 %v1012
  %v1014 = vpop.xlane.xlu0 %1013
  %v1015 = vmul.f32 %v1011, %v91
  %v1016 = vmul.f32 %v1014, %v91
  %v1017 = vadd.f32 %v1015, 1e-12
  %v1018 = vadd.f32 %v1016, 1e-12
  %v1019 = vrsqrt.pop %v1017
  %v1020 = vrsqrt.pop %v1018
  %v1021 = vmul.f32 %v1005, %v1019
  %v1022 = vmul.f32 %v1006, %v1020
  %v1024 = vlaneseq
  %v1025 = vshrl.u32 %v1024, 7
  %v1026 = vsub.s32 0, %v1025
  %v1027 = vrot.slane %v995, %v1026
  %v1029 = vmul.f32 %v1021, %v1027
  %v1030 = vmul.f32 %v1022, %v1027
  %v1032 = vlaneseq
  %v1033 = vshrl.u32 %v1032, 7
  %v1034 = vsub.s32 0, %v1033
  %v1035 = vrot.slane %v996, %v1034
  %v1037 = vadd.f32 %v1029, %v1035
  %v1038 = vadd.f32 %v1030, %v1035
  %v1039 = vld [vmem:[%s10] sm:$0xff]
  %v1040 = vld [vmem:[%s10 + $0x8] sm:$0xff]
  %v1041 = vld [vmem:[%s10 + $0x10] sm:$0xff]
  %v1042 = vld [vmem:[%s10 + $0x18] sm:$0xff]
  %v1043 = vld [vmem:[%s11] sm:$0x1]
  %v1045 = vlaneseq
  %v1046 = vshrl.u32 %v1045, 7
  %v1047 = vsub.s32 0, %v1046
  %v1048 = vrot.slane %v1043, %v1047
  %v1051 = vsel %vm84, %v1037, 0
  %v1054 = vsel %vm84, %v1038, 0
  %1056 = vmatprep.subr.mxu0 0.0
  %1057 = vmatpush1.msra.mxu0 %v1039
  %1058 = vmatprep.subr.mxu0 0.0
  %1059 = vmatpush1.msra.mxu0 %v1040
  %1060 = vmatprep.subr.mxu0 0.0
  %1061 = vmatpush1.msra.mxu0 %v1041
  %1062 = vmatprep.subr.mxu0 0.0
  %1063 = vmatpush1.msra.mxu0 %v1042
  %1064 = vmatprep.subr.mxu0 0.0
  %1065 = vmatpush1.msra.mxu0 0.0
  %1066 = vmatprep.subr.mxu0 0.0
  %1067 = vmatpush1.msra.mxu0 0.0
  %1068 = vmatprep.subr.mxu0 0.0
  %1069 = vmatpush1.msra.mxu0 0.0
  %1070 = vmatprep.subr.mxu0 0.0
  %1071 = vmatpush1.msra.mxu0 0.0
  %1072 = vmatprep.subr.mxu0 0.0
  %1073 = vmatpush1.msra.mxu0 0.0
  %1074 = vmatprep.subr.mxu0 0.0
  %1075 = vmatpush1.msra.mxu0 0.0
  %1076 = vmatprep.subr.mxu0 0.0
  %1077 = vmatpush1.msra.mxu0 0.0
  %1078 = vmatprep.subr.mxu0 0.0
  %1079 = vmatpush1.msra.mxu0 0.0
  %1080 = vmatprep.subr.mxu0 0.0
  %1081 = vmatpush1.msra.mxu0 0.0
  %1082 = vmatprep.subr.mxu0 0.0
  %1083 = vmatpush1.msra.mxu0 0.0
  %1084 = vmatprep.subr.mxu0 0.0
  %1085 = vmatpush1.msra.mxu0 0.0
  %1086 = vmatprep.subr.mxu0 0.0
  %1087 = vmatpush1.msra.mxu0 0.0
  %1088 = vmatprep.subr.mxu0 0.0
  %1089 = vmatpush1.msra.mxu0 0.0
  %1090 = vmatprep.subr.mxu0 0.0
  %1091 = vmatpush1.msra.mxu0 0.0
  %1092 = vmatprep.subr.mxu0 0.0
  %1093 = vmatpush1.msra.mxu0 0.0
  %1094 = vmatprep.subr.mxu0 0.0
  %1095 = vmatpush1.msra.mxu0 0.0
  %1096 = vmatprep.subr.mxu0 0.0
  %1097 = vmatpush1.msra.mxu0 0.0
  %1098 = vmatprep.subr.mxu0 0.0
  %1099 = vmatpush1.msra.mxu0 0.0
  %1100 = vmatprep.subr.mxu0 0.0
  %1101 = vmatpush1.msra.mxu0 0.0
  %1102 = vmatprep.subr.mxu0 0.0
  %1103 = vmatpush1.msra.mxu0 0.0
  %1104 = vmatprep.subr.mxu0 0.0
  %1105 = vmatpush1.msra.mxu0 0.0
  %1106 = vmatprep.subr.mxu0 0.0
  %1107 = vmatpush1.msra.mxu0 0.0
  %1108 = vmatprep.subr.mxu0 0.0
  %1109 = vmatpush1.msra.mxu0 0.0
  %1110 = vmatprep.subr.mxu0 0.0
  %1111 = vmatpush1.msra.mxu0 0.0
  %1112 = vmatprep.subr.mxu0 0.0
  %1113 = vmatpush1.msra.mxu0 0.0
  %1114 = vmatprep.subr.mxu0 0.0
  %1115 = vmatpush1.msra.mxu0 0.0
  %1116 = vmatprep.subr.mxu0 0.0
  %1117 = vmatpush1.msra.mxu0 0.0
  %1118 = vmatprep.subr.mxu0 0.0
  %1119 = vmatpush1.msra.mxu0 0.0
  %1120 = vmatprep.mubr.f32.mxu0 0.0
  %1121 = vmatmul.mubr.f32.gmra.mrb[0].mxu0 %v1051
  %v1122 = vpop.f32.mrb[0].mxu0
  %v1123 = vadd.f32 %v1048, %v1122
  %v1124 = vpop.f32.mrb[0].mxu0
  %1125 = vmatprep.mubr.f32.mxu0 0.0
  %1126 = vmatmul.mubr.f32.gmra.mrb[0].mxu0 %v1054
  %v1127 = vpop.f32.mrb[0].mxu0
  %v1128 = vadd.f32 %v1048, %v1127
  %v1129 = vpop.f32.mrb[0].mxu0
  %1130 = vdwg.mxu0
  %v1131 = vmul.f32 %v1123, %v1123
  %v1132 = vmul.f32 %v1128, %v1128
  %v1133 = vmul.f32 %v1123, %v1131
  %v1134 = vmul.f32 %v1128, %v1132
  %v1135 = vmul.f32 %v1133, 0.044715
  %v1136 = vmul.f32 %v1134, 0.044715
  %v1137 = vadd.f32 %v1123, %v1135
  %v1138 = vadd.f32 %v1128, %v1136
  %v1139 = vmul.f32 %v1137, 0.7978846
  %v1140 = vmul.f32 %v1138, 0.7978846
  %v1141 = vtanh.pop %v1139
  %v1142 = vtanh.pop %v1140
  %v1143 = vadd.f32 %v1141, 1.0
  %v1144 = vadd.f32 %v1142, 1.0
  %v1145 = vmul.f32 %v1143, 0.5
  %v1146 = vmul.f32 %v1144, 0.5
  %v1147 = vmul.f32 %v1123, %v1145
  %v1148 = vmul.f32 %v1128, %v1146
  %v1149 = vld [vmem:[%s12] sm:$0xff]
  %v1150 = vld [vmem:[%s12 + $0x8] sm:$0xff]
  %v1151 = vld [vmem:[%s12 + $0x10] sm:$0xff]
  %v1152 = vld [vmem:[%s12 + $0x18] sm:$0xff]
  %v1153 = vld [vmem:[%s12 + $0x20] sm:$0xff]
  %v1154 = vld [vmem:[%s12 + $0x28] sm:$0xff]
  %v1155 = vld [vmem:[%s12 + $0x30] sm:$0xff]
  %v1156 = vld [vmem:[%s12 + $0x38] sm:$0xff]
  %v1157 = vld [vmem:[%s13] sm:$0x1]
  %v1159 = vlaneseq
  %v1160 = vshrl.u32 %v1159, 7
  %v1161 = vsub.s32 0, %v1160
  %v1162 = vrot.slane %v1157, %v1161
  %vm1164 = vcmask 523264
  %v1166 = vsel %vm1164, %v1147, 0
  %v1169 = vsel %vm1164, %v1148, 0
  %1171 = vmatprep.subr.mxu0 0.0
  %1172 = vmatpush1.msra.mxu0 %v1149
  %1173 = vmatprep.subr.mxu0 0.0
  %1174 = vmatpush1.msra.mxu0 %v1150
  %1175 = vmatprep.subr.mxu0 0.0
  %1176 = vmatpush1.msra.mxu0 %v1151
  %1177 = vmatprep.subr.mxu0 0.0
  %1178 = vmatpush1.msra.mxu0 %v1152
  %1179 = vmatprep.subr.mxu0 0.0
  %1180 = vmatpush1.msra.mxu0 %v1153
  %1181 = vmatprep.subr.mxu0 0.0
  %1182 = vmatpush1.msra.mxu0 %v1154
  %1183 = vmatprep.subr.mxu0 0.0
  %1184 = vmatpush1.msra.mxu0 %v1155
  %1185 = vmatprep.subr.mxu0 0.0
  %1186 = vmatpush1.msra.mxu0 %v1156
  %1187 = vmatprep.subr.mxu0 0.0
  %1188 = vmatpush1.msra.mxu0 0.0
  %1189 = vmatprep.subr.mxu0 0.0
  %1190 = vmatpush1.msra.mxu0 0.0
  %1191 = vmatprep.subr.mxu0 0.0
  %1192 = vmatpush1.msra.mxu0 0.0
  %1193 = vmatprep.subr.mxu0 0.0
  %1194 = vmatpush1.msra.mxu0 0.0
  %1195 = vmatprep.subr.mxu0 0.0
  %1196 = vmatpush1.msra.mxu0 0.0
  %1197 = vmatprep.subr.mxu0 0.0
  %1198 = vmatpush1.msra.mxu0 0.0
  %1199 = vmatprep.subr.mxu0 0.0
  %1200 = vmatpush1.msra.mxu0 0.0
  %1201 = vmatprep.subr.mxu0 0.0
  %1202 = vmatpush1.msra.mxu0 0.0
  %1203 = vmatprep.subr.mxu0 0.0
  %1204 = vmatpush1.msra.mxu0 0.0
  %1205 = vmatprep.subr.mxu0 0.0
  %1206 = vmatpush1.msra.mxu0 0.0
  %1207 = vmatprep.subr.mxu0 0.0
  %1208 = vmatpush1.msra.mxu0 0.0
  %1209 = vmatprep.subr.mxu0 0.0
  %1210 = vmatpush1.msra.mxu0 0.0
  %1211 = vmatprep.subr.mxu0 0.0
  %1212 = vmatpush1.msra.mxu0 0.0
  %1213 = vmatprep.subr.mxu0 0.0
  %1214 = vmatpush1.msra.mxu0 0.0
  %1215 = vmatprep.subr.mxu0 0.0
  %1216 = vmatpush1.msra.mxu0 0.0
  %1217 = vmatprep.subr.mxu0 0.0
  %1218 = vmatpush1.msra.mxu0 0.0
  %1219 = vmatprep.subr.mxu0 0.0
  %1220 = vmatpush1.msra.mxu0 0.0
  %1221 = vmatprep.subr.mxu0 0.0
  %1222 = vmatpush1.msra.mxu0 0.0
  %1223 = vmatprep.subr.mxu0 0.0
  %1224 = vmatpush1.msra.mxu0 0.0
  %1225 = vmatprep.subr.mxu0 0.0
  %1226 = vmatpush1.msra.mxu0 0.0
  %1227 = vmatprep.subr.mxu0 0.0
  %1228 = vmatpush1.msra.mxu0 0.0
  %1229 = vmatprep.subr.mxu0 0.0
  %1230 = vmatpush1.msra.mxu0 0.0
  %1231 = vmatprep.subr.mxu0 0.0
  %1232 = vmatpush1.msra.mxu0 0.0
  %1233 = vmatprep.subr.mxu0 0.0
  %1234 = vmatpush1.msra.mxu0 0.0
  %1235 = vmatprep.mubr.f32.mxu0 0.0
  %1236 = vmatmul.mubr.f32.gmra.mrb[0].mxu0 %v1166
  %v1237 = vpop.f32.mrb[0].mxu0
  %v1238 = vadd.f32 %v1162, %v1237
  %v1239 = vpop.f32.mrb[0].mxu0
  %1240 = vmatprep.mubr.f32.mxu0 0.0
  %1241 = vmatmul.mubr.f32.gmra.mrb[0].mxu0 %v1169
  %v1242 = vpop.f32.mrb[0].mxu0
  %v1243 = vadd.f32 %v1162, %v1242
  %v1244 = vpop.f32.mrb[0].mxu0
  %1245 = vdwg.mxu0
  %v1246 = vadd.f32 %v1037, %v1238
  %v1247 = vadd.f32 %v1038, %v1243
  %v1248 = vld [vmem:[%s14] sm:$0x1]
  %v1249 = vld [vmem:[%s15] sm:$0x1]
  %v1250 = vsel %vm84, %v1246, 0.0
  %1251 = vadd.xlane.f32.xlu0 %v1250
  %v1252 = vpop.xlane.xlu0 %1251
  %v1253 = vsel %vm84, %v1247, 0.0
  %1254 = vadd.xlane.f32.xlu0 %v1253
  %v1255 = vpop.xlane.xlu0 %1254
  %v1256 = vmul.f32 %v1252, %v91
  %v1257 = vmul.f32 %v1255, %v91
  %v1258 = vsub.f32 %v1246, %v1256
  %v1259 = vsub.f32 %v1247, %v1257
  %v1260 = vmul.f32 %v1258, %v1258
  %v1261 = vmul.f32 %v1259, %v1259
  %v1262 = vsel %vm84, %v1260, 0.0
  %1263 = vadd.xlane.f32.xlu0 %v1262
  %v1264 = vpop.xlane.xlu0 %1263
  %v1265 = vsel %vm84, %v1261, 0.0
  %1266 = vadd.xlane.f32.xlu0 %v1265
  %v1267 = vpop.xlane.xlu0 %1266
  %v1268 = vmul.f32 %v1264, %v91
  %v1269 = vmul.f32 %v1267, %v91
  %v1270 = vadd.f32 %v1268, 1e-12
  %v1271 = vadd.f32 %v1269, 1e-12
  %v1272 = vrsqrt.pop %v1270
  %v1273 = vrsqrt.pop %v1271
  %v1274 = vmul.f32 %v1258, %v1272
  %v1275 = vmul.f32 %v1259, %v1273
  %v1277 = vlaneseq
  %v1278 = vshrl.u32 %v1277, 7
  %v1279 = vsub.s32 0, %v1278
  %v1280 = vrot.slane %v1248, %v1279
  %v1282 = vmul.f32 %v1274, %v1280
  %v1283 = vmul.f32 %v1275, %v1280
  %v1285 = vlaneseq
  %v1286 = vshrl.u32 %v1285, 7
  %v1287 = vsub.s32 0, %v1286
  %v1288 = vrot.slane %v1249, %v1287
  %v1290 = vadd.f32 %v1282, %v1288
  %v1291 = vadd.f32 %v1283, %v1288
  %s1292 = scalar_lea.vmem %s4, 32
  %v1293 = vld [vmem:[%s1292] sm:$0xff]
  %v1294 = vld [vmem:[%s1292 + $0x8] sm:$0xff]
  %v1295 = vld [vmem:[%s1292 + $0x10] sm:$0xff]
  %v1296 = vld [vmem:[%s1292 + $0x18] sm:$0xff]
  %s1297 = scalar_lea.vmem %s5, 1
  %v1298 = vld [vmem:[%s1297] sm:$0x1]
  %v1300 = vlaneseq
  %v1301 = vshrl.u32 %v1300, 7
  %v1302 = vsub.s32 0, %v1301
  %v1303 = vrot.slane %v1298, %v1302
  %v1306 = vsel %vm84, %v1290, 0
  %v1309 = vsel %vm84, %v1291, 0
  %1311 = vmatprep.subr.mxu0 0.0
  %1312 = vmatpush1.msra.mxu0 %v1293
  %1313 = vmatprep.subr.mxu0 0.0
  %1314 = vmatpush1.msra.mxu0 %v1294
  %1315 = vmatprep.subr.mxu0 0.0
  %1316 = vmatpush1.msra.mxu0 %v1295
  %1317 = vmatprep.subr.mxu0 0.0
  %1318 = vmatpush1.msra.mxu0 %v1296
  %1319 = vmatprep.subr.mxu0 0.0
  %1320 = vmatpush1.msra.mxu0 0.0
  %1321 = vmatprep.subr.mxu0 0.0
  %1322 = vmatpush1.msra.mxu0 0.0
  %1323 = vmatprep.subr.mxu0 0.0
  %1324 = vmatpush1.msra.mxu0 0.0
  %1325 = vmatprep.subr.mxu0 0.0
  %1326 = vmatpush1.msra.mxu0 0.0
  %1327 = vmatprep.subr.mxu0 0.0
  %1328 = vmatpush1.msra.mxu0 0.0
  %1329 = vmatprep.subr.mxu0 0.0
  %1330 = vmatpush1.msra.mxu0 0.0
  %1331 = vmatprep.subr.mxu0 0.0
  %1332 = vmatpush1.msra.mxu0 0.0
  %1333 = vmatprep.subr.mxu0 0.0
  %1334 = vmatpush1.msra.mxu0 0.0
  %1335 = vmatprep.subr.mxu0 0.0
  %1336 = vmatpush1.msra.mxu0 0.0
  %1337 = vmatprep.subr.mxu0 0.0
  %1338 = vmatpush1.msra.mxu0 0.0
  %1339 = vmatprep.subr.mxu0 0.0
  %1340 = vmatpush1.msra.mxu0 0.0
  %1341 = vmatprep.subr.mxu0 0.0
  %1342 = vmatpush1.msra.mxu0 0.0
  %1343 = vmatprep.subr.mxu0 0.0
  %1344 = vmatpush1.msra.mxu0 0.0
  %1345 = vmatprep.subr.mxu0 0.0
  %1346 = vmatpush1.msra.mxu0 0.0
  %1347 = vmatprep.subr.mxu0 0.0
  %1348 = vmatpush1.msra.mxu0 0.0
  %1349 = vmatprep.subr.mxu0 0.0
  %1350 = vmatpush1.msra.mxu0 0.0
  %1351 = vmatprep.subr.mxu0 0.0
  %1352 = vmatpush1.msra.mxu0 0.0
  %1353 = vmatprep.subr.mxu0 0.0
  %1354 = vmatpush1.msra.mxu0 0.0
  %1355 = vmatprep.subr.mxu0 0.0
  %1356 = vmatpush1.msra.mxu0 0.0
  %1357 = vmatprep.subr.mxu0 0.0
  %1358 = vmatpush1.msra.mxu0 0.0
  %1359 = vmatprep.subr.mxu0 0.0
  %1360 = vmatpush1.msra.mxu0 0.0
  %1361 = vmatprep.subr.mxu0 0.0
  %1362 = vmatpush1.msra.mxu0 0.0
  %1363 = vmatprep.subr.mxu0 0.0
  %1364 = vmatpush1.msra.mxu0 0.0
  %1365 = vmatprep.subr.mxu0 0.0
  %1366 = vmatpush1.msra.mxu0 0.0
  %1367 = vmatprep.subr.mxu0 0.0
  %1368 = vmatpush1.msra.mxu0 0.0
  %1369 = vmatprep.subr.mxu0 0.0
  %1370 = vmatpush1.msra.mxu0 0.0
  %1371 = vmatprep.subr.mxu0 0.0
  %1372 = vmatpush1.msra.mxu0 0.0
  %1373 = vmatprep.subr.mxu0 0.0
  %1374 = vmatpush1.msra.mxu0 0.0
  %1375 = vmatprep.mubr.f32.mxu0 0.0
  %1376 = vmatmul.mubr.f32.gmra.mrb[0].mxu0 %v1306
  %v1377 = vpop.f32.mrb[0].mxu0
  %v1378 = vadd.f32 %v1303, %v1377
  %v1379 = vpop.f32.mrb[0].mxu0
  %1380 = vmatprep.mubr.f32.mxu0 0.0
  %1381 = vmatmul.mubr.f32.gmra.mrb[0].mxu0 %v1309
  %v1382 = vpop.f32.mrb[0].mxu0
  %v1383 = vadd.f32 %v1303, %v1382
  %v1384 = vpop.f32.mrb[0].mxu0
  %1385 = vdwg.mxu0
  %1387 = vrot.lane.b32.xlu0 %v1378, 96
  %v1388 = vpop.permute.xlu0 %1387
  %v1389 = vsel %vm230, %v1378, 0
  %v1391 = vsel %vm230, %v1388, 0
  %1393 = vmatprep.subr.mxu0 0.0
  %1394 = vmatpush1.xpose.msra.mxu0 %v1391
  %1395 = vmatprep.subr.mxu0 0.0
  %1396 = vmatpush1.xpose.msra.mxu0 0.0
  %1397 = vmatprep.subr.mxu0 0.0
  %1398 = vmatpush1.xpose.msra.mxu0 0.0
  %1399 = vmatprep.subr.mxu0 0.0
  %1400 = vmatpush1.xpose.msra.mxu0 0.0
  %1401 = vmatprep.subr.mxu0 0.0
  %1402 = vmatpush1.xpose.msra.mxu0 0.0
  %1403 = vmatprep.subr.mxu0 0.0
  %1404 = vmatpush1.xpose.msra.mxu0 0.0
  %1405 = vmatprep.subr.mxu0 0.0
  %1406 = vmatpush1.xpose.msra.mxu0 0.0
  %1407 = vmatprep.subr.mxu0 0.0
  %1408 = vmatpush1.xpose.msra.mxu0 0.0
  %1409 = vmatprep.subr.mxu0 0.0
  %1410 = vmatpush1.xpose.msra.mxu0 0.0
  %1411 = vmatprep.subr.mxu0 0.0
  %1412 = vmatpush1.xpose.msra.mxu0 0.0
  %1413 = vmatprep.subr.mxu0 0.0
  %1414 = vmatpush1.xpose.msra.mxu0 0.0
  %1415 = vmatprep.subr.mxu0 0.0
  %1416 = vmatpush1.xpose.msra.mxu0 0.0
  %1417 = vmatprep.subr.mxu0 0.0
  %1418 = vmatpush1.xpose.msra.mxu0 0.0
  %1419 = vmatprep.subr.mxu0 0.0
  %1420 = vmatpush1.xpose.msra.mxu0 0.0
  %1421 = vmatprep.subr.mxu0 0.0
  %1422 = vmatpush1.xpose.msra.mxu0 0.0
  %1423 = vmatprep.subr.mxu0 0.0
  %1424 = vmatpush1.xpose.msra.mxu0 0.0
  %1425 = vmatprep.subr.mxu0 0.0
  %1426 = vmatpush1.xpose.msra.mxu0 0.0
  %1427 = vmatprep.subr.mxu0 0.0
  %1428 = vmatpush1.xpose.msra.mxu0 0.0
  %1429 = vmatprep.subr.mxu0 0.0
  %1430 = vmatpush1.xpose.msra.mxu0 0.0
  %1431 = vmatprep.subr.mxu0 0.0
  %1432 = vmatpush1.xpose.msra.mxu0 0.0
  %1433 = vmatprep.subr.mxu0 0.0
  %1434 = vmatpush1.xpose.msra.mxu0 0.0
  %1435 = vmatprep.subr.mxu0 0.0
  %1436 = vmatpush1.xpose.msra.mxu0 0.0
  %1437 = vmatprep.subr.mxu0 0.0
  %1438 = vmatpush1.xpose.msra.mxu0 0.0
  %1439 = vmatprep.subr.mxu0 0.0
  %1440 = vmatpush1.xpose.msra.mxu0 0.0
  %1441 = vmatprep.subr.mxu0 0.0
  %1442 = vmatpush1.xpose.msra.mxu0 0.0
  %1443 = vmatprep.subr.mxu0 0.0
  %1444 = vmatpush1.xpose.msra.mxu0 0.0
  %1445 = vmatprep.subr.mxu0 0.0
  %1446 = vmatpush1.xpose.msra.mxu0 0.0
  %1447 = vmatprep.subr.mxu0 0.0
  %1448 = vmatpush1.xpose.msra.mxu0 0.0
  %1449 = vmatprep.subr.mxu0 0.0
  %1450 = vmatpush1.xpose.msra.mxu0 0.0
  %1451 = vmatprep.subr.mxu0 0.0
  %1452 = vmatpush1.xpose.msra.mxu0 0.0
  %1453 = vmatprep.subr.mxu0 0.0
  %1454 = vmatpush1.xpose.msra.mxu0 0.0
  %1455 = vmatprep.subr.mxu0 0.0
  %1456 = vmatpush1.xpose.msra.mxu0 0.0
  %1457 = vmatprep.mubr.f32.mxu0 0.0
  %1458 = vmatmul.mubr.f32.gmra.mrb[0].mxu0 %v1389
  %v1459 = vpop.f32.mrb[0].mxu0
  %v1460 = vadd.f32 %v226, %v1459
  %v1461 = vpop.f32.mrb[0].mxu0
  %1462 = vdwg.mxu0
  %v1463 = vsel %vm305, %v1460, -inf
  %1464 = vmax.xlane.f32.xlu0 %v1463
  %v1465 = vpop.xlane.xlu0 %1464
  %v1466 = vsub.f32 %v1460, %v1465
  %v1467 = vmul.f32 %v1466, 1.442695
  %v1468 = vpow.pop %v1467
  %v1469 = vsel %vm305, %v1468, 0.0
  %1470 = vadd.xlane.f32.xlu0 %v1469
  %v1471 = vpop.xlane.xlu0 %1470
  %v1472 = vrcp.pop %v1471
  %v1473 = vmul.f32 %v1468, %v1472
  %1474 = vrot.lane.b32.xlu0 %v1378, 64
  %v1475 = vpop.permute.xlu0 %1474
  %v1478 = vsel %vm305, %v1473, 0
  %1480 = vmatprep.subr.mxu0 0.0
  %1481 = vmatpush1.msra.mxu0 %v1475
  %1482 = vmatprep.subr.mxu0 0.0
  %1483 = vmatpush1.msra.mxu0 0.0
  %1484 = vmatprep.subr.mxu0 0.0
  %1485 = vmatpush1.msra.mxu0 0.0
  %1486 = vmatprep.subr.mxu0 0.0
  %1487 = vmatpush1.msra.mxu0 0.0
  %1488 = vmatprep.subr.mxu0 0.0
  %1489 = vmatpush1.msra.mxu0 0.0
  %1490 = vmatprep.subr.mxu0 0.0
  %1491 = vmatpush1.msra.mxu0 0.0
  %1492 = vmatprep.subr.mxu0 0.0
  %1493 = vmatpush1.msra.mxu0 0.0
  %1494 = vmatprep.subr.mxu0 0.0
  %1495 = vmatpush1.msra.mxu0 0.0
  %1496 = vmatprep.subr.mxu0 0.0
  %1497 = vmatpush1.msra.mxu0 0.0
  %1498 = vmatprep.subr.mxu0 0.0
  %1499 = vmatpush1.msra.mxu0 0.0
  %1500 = vmatprep.subr.mxu0 0.0
  %1501 = vmatpush1.msra.mxu0 0.0
  %1502 = vmatprep.subr.mxu0 0.0
  %1503 = vmatpush1.msra.mxu0 0.0
  %1504 = vmatprep.subr.mxu0 0.0
  %1505 = vmatpush1.msra.mxu0 0.0
  %1506 = vmatprep.subr.mxu0 0.0
  %1507 = vmatpush1.msra.mxu0 0.0
  %1508 = vmatprep.subr.mxu0 0.0
  %1509 = vmatpush1.msra.mxu0 0.0
  %1510 = vmatprep.subr.mxu0 0.0
  %1511 = vmatpush1.msra.mxu0 0.0
  %1512 = vmatprep.subr.mxu0 0.0
  %1513 = vmatpush1.msra.mxu0 0.0
  %1514 = vmatprep.subr.mxu0 0.0
  %1515 = vmatpush1.msra.mxu0 0.0
  %1516 = vmatprep.subr.mxu0 0.0
  %1517 = vmatpush1.msra.mxu0 0.0
  %1518 = vmatprep.subr.mxu0 0.0
  %1519 = vmatpush1.msra.mxu0 0.0
  %1520 = vmatprep.subr.mxu0 0.0
  %1521 = vmatpush1.msra.mxu0 0.0
  %1522 = vmatprep.subr.mxu0 0.0
  %1523 = vmatpush1.msra.mxu0 0.0
  %1524 = vmatprep.subr.mxu0 0.0
  %1525 = vmatpush1.msra.mxu0 0.0
  %1526 = vmatprep.subr.mxu0 0.0
  %1527 = vmatpush1.msra.mxu0 0.0
  %1528 = vmatprep.subr.mxu0 0.0
  %1529 = vmatpush1.msra.mxu0 0.0
  %1530 = vmatprep.subr.mxu0 0.0
  %1531 = vmatpush1.msra.mxu0 0.0
  %1532 = vmatprep.subr.mxu0 0.0
  %1533 = vmatpush1.msra.mxu0 0.0
  %1534 = vmatprep.subr.mxu0 0.0
  %1535 = vmatpush1.msra.mxu0 0.0
  %1536 = vmatprep.subr.mxu0 0.0
  %1537 = vmatpush1.msra.mxu0 0.0
  %1538 = vmatprep.subr.mxu0 0.0
  %1539 = vmatpush1.msra.mxu0 0.0
  %1540 = vmatprep.subr.mxu0 0.0
  %1541 = vmatpush1.msra.mxu0 0.0
  %1542 = vmatprep.subr.mxu0 0.0
  %1543 = vmatpush1.msra.mxu0 0.0
  %1544 = vmatprep.mubr.f32.mxu0 0.0
  %1545 = vmatmul.mubr.f32.gmra.mrb[0].mxu0 %v1478
  %v1546 = vpop.f32.mrb[0].mxu0
  %v1547 = vadd.f32 0.0, %v1546
  %v1548 = vpop.f32.mrb[0].mxu0
  %1549 = vdwg.mxu0
  %1550 = vrot.lane.b32.xlu0 %v1378, 112
  %v1551 = vpop.permute.xlu0 %1550
  %1552 = vrot.lane.b32.xlu0 %v1378, 80
  %v1553 = vpop.permute.xlu0 %1552
  %v1554 = vsel %vm230, %v1551, 0
  %v1556 = vsel %vm230, %v1553, 0
  %1558 = vmatprep.subr.mxu0 0.0
  %1559 = vmatpush1.xpose.msra.mxu0 %v1556
  %1560 = vmatprep.subr.mxu0 0.0
  %1561 = vmatpush1.xpose.msra.mxu0 0.0
  %1562 = vmatprep.subr.mxu0 0.0
  %1563 = vmatpush1.xpose.msra.mxu0 0.0
  %1564 = vmatprep.subr.mxu0 0.0
  %1565 = vmatpush1.xpose.msra.mxu0 0.0
  %1566 = vmatprep.subr.mxu0 0.0
  %1567 = vmatpush1.xpose.msra.mxu0 0.0
  %1568 = vmatprep.subr.mxu0 0.0
  %1569 = vmatpush1.xpose.msra.mxu0 0.0
  %1570 = vmatprep.subr.mxu0 0.0
  %1571 = vmatpush1.xpose.msra.mxu0 0.0
  %1572 = vmatprep.subr.mxu0 0.0
  %1573 = vmatpush1.xpose.msra.mxu0 0.0
  %1574 = vmatprep.subr.mxu0 0.0
  %1575 = vmatpush1.xpose.msra.mxu0 0.0
  %1576 = vmatprep.subr.mxu0 0.0
  %1577 = vmatpush1.xpose.msra.mxu0 0.0
  %1578 = vmatprep.subr.mxu0 0.0
  %1579 = vmatpush1.xpose.msra.mxu0 0.0
  %1580 = vmatprep.subr.mxu0 0.0
  %1581 = vmatpush1.xpose.msra.mxu0 0.0
  %1582 = vmatprep.subr.mxu0 0.0
  %1583 = vmatpush1.xpose.msra.mxu0 0.0
  %1584 = vmatprep.subr.mxu0 0.0
  %1585 = vmatpush1.xpose.msra.mxu0 0.0
  %1586 = vmatprep.subr.mxu0 0.0
  %1587 = vmatpush1.xpose.msra.mxu0 0.0
  %1588 = vmatprep.subr.mxu0 0.0
  %1589 = vmatpush1.xpose.msra.mxu0 0.0
  %1590 = vmatprep.subr.mxu0 0.0
  %1591 = vmatpush1.xpose.msra.mxu0 0.0
  %1592 = vmatprep.subr.mxu0 0.0
  %1593 = vmatpush1.xpose.msra.mxu0 0.0
  %1594 = vmatprep.subr.mxu0 0.0
  %1595 = vmatpush1.xpose.msra.mxu0 0.0
  %1596 = vmatprep.subr.mxu0 0.0
  %1597 = vmatpush1.xpose.msra.mxu0 0.0
  %1598 = vmatprep.subr.mxu0 0.0
  %1599 = vmatpush1.xpose.msra.mxu0 0.0
  %1600 = vmatprep.subr.mxu0 0.0
  %1601 = vmatpush1.xpose.msra.mxu0 0.0
  %1602 = vmatprep.subr.mxu0 0.0
  %1603 = vmatpush1.xpose.msra.mxu0 0.0
  %1604 = vmatprep.subr.mxu0 0.0
  %1605 = vmatpush1.xpose.msra.mxu0 0.0
  %1606 = vmatprep.subr.mxu0 0.0
  %1607 = vmatpush1.xpose.msra.mxu0 0.0
  %1608 = vmatprep.subr.mxu0 0.0
  %1609 = vmatpush1.xpose.msra.mxu0 0.0
  %1610 = vmatprep.subr.mxu0 0.0
  %1611 = vmatpush1.xpose.msra.mxu0 0.0
  %1612 = vmatprep.subr.mxu0 0.0
  %1613 = vmatpush1.xpose.msra.mxu0 0.0
  %1614 = vmatprep.subr.mxu0 0.0
  %1615 = vmatpush1.xpose.msra.mxu0 0.0
  %1616 = vmatprep.subr.mxu0 0.0
  %1617 = vmatpush1.xpose.msra.mxu0 0.0
  %1618 = vmatprep.subr.mxu0 0.0
  %1619 = vmatpush1.xpose.msra.mxu0 0.0
  %1620 = vmatprep.subr.mxu0 0.0
  %1621 = vmatpush1.xpose.msra.mxu0 0.0
  %1622 = vmatprep.mubr.f32.mxu0 0.0
  %1623 = vmatmul.mubr.f32.gmra.mrb[0].mxu0 %v1554
  %v1624 = vpop.f32.mrb[0].mxu0
  %v1625 = vadd.f32 %v226, %v1624
  %v1626 = vpop.f32.mrb[0].mxu0
  %1627 = vdwg.mxu0
  %v1628 = vsel %vm305, %v1625, -inf
  %1629 = vmax.xlane.f32.xlu0 %v1628
  %v1630 = vpop.xlane.xlu0 %1629
  %v1631 = vsub.f32 %v1625, %v1630
  %v1632 = vmul.f32 %v1631, 1.442695
  %v1633 = vpow.pop %v1632
  %v1634 = vsel %vm305, %v1633, 0.0
  %1635 = vadd.xlane.f32.xlu0 %v1634
  %v1636 = vpop.xlane.xlu0 %1635
  %v1637 = vrcp.pop %v1636
  %v1638 = vmul.f32 %v1633, %v1637
  %1639 = vrot.lane.b32.xlu0 %v1378, 48
  %v1640 = vpop.permute.xlu0 %1639
  %v1643 = vsel %vm305, %v1638, 0
  %1645 = vmatprep.subr.mxu0 0.0
  %1646 = vmatpush1.msra.mxu0 %v1640
  %1647 = vmatprep.subr.mxu0 0.0
  %1648 = vmatpush1.msra.mxu0 0.0
  %1649 = vmatprep.subr.mxu0 0.0
  %1650 = vmatpush1.msra.mxu0 0.0
  %1651 = vmatprep.subr.mxu0 0.0
  %1652 = vmatpush1.msra.mxu0 0.0
  %1653 = vmatprep.subr.mxu0 0.0
  %1654 = vmatpush1.msra.mxu0 0.0
  %1655 = vmatprep.subr.mxu0 0.0
  %1656 = vmatpush1.msra.mxu0 0.0
  %1657 = vmatprep.subr.mxu0 0.0
  %1658 = vmatpush1.msra.mxu0 0.0
  %1659 = vmatprep.subr.mxu0 0.0
  %1660 = vmatpush1.msra.mxu0 0.0
  %1661 = vmatprep.subr.mxu0 0.0
  %1662 = vmatpush1.msra.mxu0 0.0
  %1663 = vmatprep.subr.mxu0 0.0
  %1664 = vmatpush1.msra.mxu0 0.0
  %1665 = vmatprep.subr.mxu0 0.0
  %1666 = vmatpush1.msra.mxu0 0.0
  %1667 = vmatprep.subr.mxu0 0.0
  %1668 = vmatpush1.msra.mxu0 0.0
  %1669 = vmatprep.subr.mxu0 0.0
  %1670 = vmatpush1.msra.mxu0 0.0
  %1671 = vmatprep.subr.mxu0 0.0
  %1672 = vmatpush1.msra.mxu0 0.0
  %1673 = vmatprep.subr.mxu0 0.0
  %1674 = vmatpush1.msra.mxu0 0.0
  %1675 = vmatprep.subr.mxu0 0.0
  %1676 = vmatpush1.msra.mxu0 0.0
  %1677 = vmatprep.subr.mxu0 0.0
  %1678 = vmatpush1.msra.mxu0 0.0
  %1679 = vmatprep.subr.mxu0 0.0
  %1680 = vmatpush1.msra.mxu0 0.0
  %1681 = vmatprep.subr.mxu0 0.0
  %1682 = vmatpush1.msra.mxu0 0.0
  %1683 = vmatprep.subr.mxu0 0.0
  %1684 = vmatpush1.msra.mxu0 0.0
  %1685 = vmatprep.subr.mxu0 0.0
  %1686 = vmatpush1.msra.mxu0 0.0
  %1687 = vmatprep.subr.mxu0 0.0
  %1688 = vmatpush1.msra.mxu0 0.0
  %1689 = vmatprep.subr.mxu0 0.0
  %1690 = vmatpush1.msra.mxu0 0.0
  %1691 = vmatprep.subr.mxu0 0.0
  %1692 = vmatpush1.msra.mxu0 0.0
  %1693 = vmatprep.subr.mxu0 0.0
  %1694 = vmatpush1.msra.mxu0 0.0
  %1695 = vmatprep.subr.mxu0 0.0
  %1696 = vmatpush1.msra.mxu0 0.0
  %1697 = vmatprep.subr.mxu0 0.0
  %1698 = vmatpush1.msra.mxu0 0.0
  %1699 = vmatprep.subr.mxu0 0.0
  %1700 = vmatpush1.msra.mxu0 0.0
  %1701 = vmatprep.subr.mxu0 0.0
  %1702 = vmatpush1.msra.mxu0 0.0
  %1703 = vmatprep.subr.mxu0 0.0
  %1704 = vmatpush1.msra.mxu0 0.0
  %1705 = vmatprep.subr.mxu0 0.0
  %1706 = vmatpush1.msra.mxu0 0.0
  %1707 = vmatprep.subr.mxu0 0.0
  %1708 = vmatpush1.msra.mxu0 0.0
  %1709 = vmatprep.mubr.f32.mxu0 0.0
  %1710 = vmatmul.mubr.f32.gmra.mrb[0].mxu0 %v1643
  %v1711 = vpop.f32.mrb[0].mxu0
  %v1712 = vadd.f32 0.0, %v1711
  %v1713 = vpop.f32.mrb[0].mxu0
  %1714 = vdwg.mxu0
  %1716 = vrot.lane.b32.xlu0 %v1712, 16
  %v1717 = vpop.permute.xlu0 %1716
  %v1719 = vsel %vm230, %v1547, %v1717
  %1721 = vrot.lane.b32.xlu0 %v1383, 96
  %v1722 = vpop.permute.xlu0 %1721
  %v1723 = vsel %vm230, %v1383, 0
  %v1725 = vsel %vm230, %v1722, 0
  %1727 = vmatprep.subr.mxu0 0.0
  %1728 = vmatpush1.xpose.msra.mxu0 %v1725
  %1729 = vmatprep.subr.mxu0 0.0
  %1730 = vmatpush1.xpose.msra.mxu0 0.0
  %1731 = vmatprep.subr.mxu0 0.0
  %1732 = vmatpush1.xpose.msra.mxu0 0.0
  %1733 = vmatprep.subr.mxu0 0.0
  %1734 = vmatpush1.xpose.msra.mxu0 0.0
  %1735 = vmatprep.subr.mxu0 0.0
  %1736 = vmatpush1.xpose.msra.mxu0 0.0
  %1737 = vmatprep.subr.mxu0 0.0
  %1738 = vmatpush1.xpose.msra.mxu0 0.0
  %1739 = vmatprep.subr.mxu0 0.0
  %1740 = vmatpush1.xpose.msra.mxu0 0.0
  %1741 = vmatprep.subr.mxu0 0.0
  %1742 = vmatpush1.xpose.msra.mxu0 0.0
  %1743 = vmatprep.subr.mxu0 0.0
  %1744 = vmatpush1.xpose.msra.mxu0 0.0
  %1745 = vmatprep.subr.mxu0 0.0
  %1746 = vmatpush1.xpose.msra.mxu0 0.0
  %1747 = vmatprep.subr.mxu0 0.0
  %1748 = vmatpush1.xpose.msra.mxu0 0.0
  %1749 = vmatprep.subr.mxu0 0.0
  %1750 = vmatpush1.xpose.msra.mxu0 0.0
  %1751 = vmatprep.subr.mxu0 0.0
  %1752 = vmatpush1.xpose.msra.mxu0 0.0
  %1753 = vmatprep.subr.mxu0 0.0
  %1754 = vmatpush1.xpose.msra.mxu0 0.0
  %1755 = vmatprep.subr.mxu0 0.0
  %1756 = vmatpush1.xpose.msra.mxu0 0.0
  %1757 = vmatprep.subr.mxu0 0.0
  %1758 = vmatpush1.xpose.msra.mxu0 0.0
  %1759 = vmatprep.subr.mxu0 0.0
  %1760 = vmatpush1.xpose.msra.mxu0 0.0
  %1761 = vmatprep.subr.mxu0 0.0
  %1762 = vmatpush1.xpose.msra.mxu0 0.0
  %1763 = vmatprep.subr.mxu0 0.0
  %1764 = vmatpush1.xpose.msra.mxu0 0.0
  %1765 = vmatprep.subr.mxu0 0.0
  %1766 = vmatpush1.xpose.msra.mxu0 0.0
  %1767 = vmatprep.subr.mxu0 0.0
  %1768 = vmatpush1.xpose.msra.mxu0 0.0
  %1769 = vmatprep.subr.mxu0 0.0
  %1770 = vmatpush1.xpose.msra.mxu0 0.0
  %1771 = vmatprep.subr.mxu0 0.0
  %1772 = vmatpush1.xpose.msra.mxu0 0.0
  %1773 = vmatprep.subr.mxu0 0.0
  %1774 = vmatpush1.xpose.msra.mxu0 0.0
  %1775 = vmatprep.subr.mxu0 0.0
  %1776 = vmatpush1.xpose.msra.mxu0 0.0
  %1777 = vmatprep.subr.mxu0 0.0
  %1778 = vmatpush1.xpose.msra.mxu0 0.0
  %1779 = vmatprep.subr.mxu0 0.0
  %1780 = vmatpush1.xpose.msra.mxu0 0.0
  %1781 = vmatprep.subr.mxu0 0.0
  %1782 = vmatpush1.xpose.msra.mxu0 0.0
  %1783 = vmatprep.subr.mxu0 0.0
  %1784 = vmatpush1.xpose.msra.mxu0 0.0
  %1785 = vmatprep.subr.mxu0 0.0
  %1786 = vmatpush1.xpose.msra.mxu0 0.0
  %1787 = vmatprep.subr.mxu0 0.0
  %1788 = vmatpush1.xpose.msra.mxu0 0.0
  %1789 = vmatprep.subr.mxu0 0.0
  %1790 = vmatpush1.xpose.msra.mxu0 0.0
  %1791 = vmatprep.mubr.f32.mxu0 0.0
  %1792 = vmatmul.mubr.f32.gmra.mrb[0].mxu0 %v1723
  %v1793 = vpop.f32.mrb[0].mxu0
  %v1794 = vadd.f32 %v566, %v1793
  %v1795 = vpop.f32.mrb[0].mxu0
  %1796 = vdwg.mxu0
  %v1797 = vsel %vm305, %v1794, -inf
  %1798 = vmax.xlane.f32.xlu0 %v1797
  %v1799 = vpop.xlane.xlu0 %1798
  %v1800 = vsub.f32 %v1794, %v1799
  %v1801 = vmul.f32 %v1800, 1.442695
  %v1802 = vpow.pop %v1801
  %v1803 = vsel %vm305, %v1802, 0.0
  %1804 = vadd.xlane.f32.xlu0 %v1803
  %v1805 = vpop.xlane.xlu0 %1804
  %v1806 = vrcp.pop %v1805
  %v1807 = vmul.f32 %v1802, %v1806
  %1808 = vrot.lane.b32.xlu0 %v1383, 64
  %v1809 = vpop.permute.xlu0 %1808
  %v1812 = vsel %vm305, %v1807, 0
  %1814 = vmatprep.subr.mxu0 0.0
  %1815 = vmatpush1.msra.mxu0 %v1809
  %1816 = vmatprep.subr.mxu0 0.0
  %1817 = vmatpush1.msra.mxu0 0.0
  %1818 = vmatprep.subr.mxu0 0.0
  %1819 = vmatpush1.msra.mxu0 0.0
  %1820 = vmatprep.subr.mxu0 0.0
  %1821 = vmatpush1.msra.mxu0 0.0
  %1822 = vmatprep.subr.mxu0 0.0
  %1823 = vmatpush1.msra.mxu0 0.0
  %1824 = vmatprep.subr.mxu0 0.0
  %1825 = vmatpush1.msra.mxu0 0.0
  %1826 = vmatprep.subr.mxu0 0.0
  %1827 = vmatpush1.msra.mxu0 0.0
  %1828 = vmatprep.subr.mxu0 0.0
  %1829 = vmatpush1.msra.mxu0 0.0
  %1830 = vmatprep.subr.mxu0 0.0
  %1831 = vmatpush1.msra.mxu0 0.0
  %1832 = vmatprep.subr.mxu0 0.0
  %1833 = vmatpush1.msra.mxu0 0.0
  %1834 = vmatprep.subr.mxu0 0.0
  %1835 = vmatpush1.msra.mxu0 0.0
  %1836 = vmatprep.subr.mxu0 0.0
  %1837 = vmatpush1.msra.mxu0 0.0
  %1838 = vmatprep.subr.mxu0 0.0
  %1839 = vmatpush1.msra.mxu0 0.0
  %1840 = vmatprep.subr.mxu0 0.0
  %1841 = vmatpush1.msra.mxu0 0.0
  %1842 = vmatprep.subr.mxu0 0.0
  %1843 = vmatpush1.msra.mxu0 0.0
  %1844 = vmatprep.subr.mxu0 0.0
  %1845 = vmatpush1.msra.mxu0 0.0
  %1846 = vmatprep.subr.mxu0 0.0
  %1847 = vmatpush1.msra.mxu0 0.0
  %1848 = vmatprep.subr.mxu0 0.0
  %1849 = vmatpush1.msra.mxu0 0.0
  %1850 = vmatprep.subr.mxu0 0.0
  %1851 = vmatpush1.msra.mxu0 0.0
  %1852 = vmatprep.subr.mxu0 0.0
  %1853 = vmatpush1.msra.mxu0 0.0
  %1854 = vmatprep.subr.mxu0 0.0
  %1855 = vmatpush1.msra.mxu0 0.0
  %1856 = vmatprep.subr.mxu0 0.0
  %1857 = vmatpush1.msra.mxu0 0.0
  %1858 = vmatprep.subr.mxu0 0.0
  %1859 = vmatpush1.msra.mxu0 0.0
  %1860 = vmatprep.subr.mxu0 0.0
  %1861 = vmatpush1.msra.mxu0 0.0
  %1862 = vmatprep.subr.mxu0 0.0
  %1863 = vmatpush1.msra.mxu0 0.0
  %1864 = vmatprep.subr.mxu0 0.0
  %1865 = vmatpush1.msra.mxu0 0.0
  %1866 = vmatprep.subr.mxu0 0.0
  %1867 = vmatpush1.msra.mxu0 0.0
  %1868 = vmatprep.subr.mxu0 0.0
  %1869 = vmatpush1.msra.mxu0 0.0
  %1870 = vmatprep.subr.mxu0 0.0
  %1871 = vmatpush1.msra.mxu0 0.0
  %1872 = vmatprep.subr.mxu0 0.0
  %1873 = vmatpush1.msra.mxu0 0.0
  %1874 = vmatprep.subr.mxu0 0.0
  %1875 = vmatpush1.msra.mxu0 0.0
  %1876 = vmatprep.subr.mxu0 0.0
  %1877 = vmatpush1.msra.mxu0 0.0
  %1878 = vmatprep.mubr.f32.mxu0 0.0
  %1879 = vmatmul.mubr.f32.gmra.mrb[0].mxu0 %v1812
  %v1880 = vpop.f32.mrb[0].mxu0
  %v1881 = vadd.f32 0.0, %v1880
  %v1882 = vpop.f32.mrb[0].mxu0
  %1883 = vdwg.mxu0
  %1884 = vrot.lane.b32.xlu0 %v1383, 112
  %v1885 = vpop.permute.xlu0 %1884
  %1886 = vrot.lane.b32.xlu0 %v1383, 80
  %v1887 = vpop.permute.xlu0 %1886
  %v1888 = vsel %vm230, %v1885, 0
  %v1890 = vsel %vm230, %v1887, 0
  %1892 = vmatprep.subr.mxu0 0.0
  %1893 = vmatpush1.xpose.msra.mxu0 %v1890
  %1894 = vmatprep.subr.mxu0 0.0
  %1895 = vmatpush1.xpose.msra.mxu0 0.0
  %1896 = vmatprep.subr.mxu0 0.0
  %1897 = vmatpush1.xpose.msra.mxu0 0.0
  %1898 = vmatprep.subr.mxu0 0.0
  %1899 = vmatpush1.xpose.msra.mxu0 0.0
  %1900 = vmatprep.subr.mxu0 0.0
  %1901 = vmatpush1.xpose.msra.mxu0 0.0
  %1902 = vmatprep.subr.mxu0 0.0
  %1903 = vmatpush1.xpose.msra.mxu0 0.0
  %1904 = vmatprep.subr.mxu0 0.0
  %1905 = vmatpush1.xpose.msra.mxu0 0.0
  %1906 = vmatprep.subr.mxu0 0.0
  %1907 = vmatpush1.xpose.msra.mxu0 0.0
  %1908 = vmatprep.subr.mxu0 0.0
  %1909 = vmatpush1.xpose.msra.mxu0 0.0
  %1910 = vmatprep.subr.mxu0 0.0
  %1911 = vmatpush1.xpose.msra.mxu0 0.0
  %1912 = vmatprep.subr.mxu0 0.0
  %1913 = vmatpush1.xpose.msra.mxu0 0.0
  %1914 = vmatprep.subr.mxu0 0.0
  %1915 = vmatpush1.xpose.msra.mxu0 0.0
  %1916 = vmatprep.subr.mxu0 0.0
  %1917 = vmatpush1.xpose.msra.mxu0 0.0
  %1918 = vmatprep.subr.mxu0 0.0
  %1919 = vmatpush1.xpose.msra.mxu0 0.0
  %1920 = vmatprep.subr.mxu0 0.0
  %1921 = vmatpush1.xpose.msra.mxu0 0.0
  %1922 = vmatprep.subr.mxu0 0.0
  %1923 = vmatpush1.xpose.msra.mxu0 0.0
  %1924 = vmatprep.subr.mxu0 0.0
  %1925 = vmatpush1.xpose.msra.mxu0 0.0
  %1926 = vmatprep.subr.mxu0 0.0
  %1927 = vmatpush1.xpose.msra.mxu0 0.0
  %1928 = vmatprep.subr.mxu0 0.0
  %1929 = vmatpush1.xpose.msra.mxu0 0.0
  %1930 = vmatprep.subr.mxu0 0.0
  %1931 = vmatpush1.xpose.msra.mxu0 0.0
  %1932 = vmatprep.subr.mxu0 0.0
  %1933 = vmatpush1.xpose.msra.mxu0 0.0
  %1934 = vmatprep.subr.mxu0 0.0
  %1935 = vmatpush1.xpose.msra.mxu0 0.0
  %1936 = vmatprep.subr.mxu0 0.0
  %1937 = vmatpush1.xpose.msra.mxu0 0.0
  %1938 = vmatprep.subr.mxu0 0.0
  %1939 = vmatpush1.xpose.msra.mxu0 0.0
  %1940 = vmatprep.subr.mxu0 0.0
  %1941 = vmatpush1.xpose.msra.mxu0 0.0
  %1942 = vmatprep.subr.mxu0 0.0
  %1943 = vmatpush1.xpose.msra.mxu0 0.0
  %1944 = vmatprep.subr.mxu0 0.0
  %1945 = vmatpush1.xpose.msra.mxu0 0.0
  %1946 = vmatprep.subr.mxu0 0.0
  %1947 = vmatpush1.xpose.msra.mxu0 0.0
  %1948 = vmatprep.subr.mxu0 0.0
  %1949 = vmatpush1.xpose.msra.mxu0 0.0
  %1950 = vmatprep.subr.mxu0 0.0
  %1951 = vmatpush1.xpose.msra.mxu0 0.0
  %1952 = vmatprep.subr.mxu0 0.0
  %1953 = vmatpush1.xpose.msra.mxu0 0.0
  %1954 = vmatprep.subr.mxu0 0.0
  %1955 = vmatpush1.xpose.msra.mxu0 0.0
  %1956 = vmatprep.mubr.f32.mxu0 0.0
  %1957 = vmatmul.mubr.f32.gmra.mrb[0].mxu0 %v1888
  %v1958 = vpop.f32.mrb[0].mxu0
  %v1959 = vadd.f32 %v566, %v1958
  %v1960 = vpop.f32.mrb[0].mxu0
  %1961 = vdwg.mxu0
  %v1962 = vsel %vm305, %v1959, -inf
  %1963 = vmax.xlane.f32.xlu0 %v1962
  %v1964 = vpop.xlane.xlu0 %1963
  %v1965 = vsub.f32 %v1959, %v1964
  %v1966 = vmul.f32 %v1965, 1.442695
  %v1967 = vpow.pop %v1966
  %v1968 = vsel %vm305, %v1967, 0.0
  %1969 = vadd.xlane.f32.xlu0 %v1968
  %v1970 = vpop.xlane.xlu0 %1969
  %v1971 = vrcp.pop %v1970
  %v1972 = vmul.f32 %v1967, %v1971
  %1973 = vrot.lane.b32.xlu0 %v1383, 48
  %v1974 = vpop.permute.xlu0 %1973
  %v1977 = vsel %vm305, %v1972, 0
  %1979 = vmatprep.subr.mxu0 0.0
  %1980 = vmatpush1.msra.mxu0 %v1974
  %1981 = vmatprep.subr.mxu0 0.0
  %1982 = vmatpush1.msra.mxu0 0.0
  %1983 = vmatprep.subr.mxu0 0.0
  %1984 = vmatpush1.msra.mxu0 0.0
  %1985 = vmatprep.subr.mxu0 0.0
  %1986 = vmatpush1.msra.mxu0 0.0
  %1987 = vmatprep.subr.mxu0 0.0
  %1988 = vmatpush1.msra.mxu0 0.0
  %1989 = vmatprep.subr.mxu0 0.0
  %1990 = vmatpush1.msra.mxu0 0.0
  %1991 = vmatprep.subr.mxu0 0.0
  %1992 = vmatpush1.msra.mxu0 0.0
  %1993 = vmatprep.subr.mxu0 0.0
  %1994 = vmatpush1.msra.mxu0 0.0
  %1995 = vmatprep.subr.mxu0 0.0
  %1996 = vmatpush1.msra.mxu0 0.0
  %1997 = vmatprep.subr.mxu0 0.0
  %1998 = vmatpush1.msra.mxu0 0.0
  %1999 = vmatprep.subr.mxu0 0.0
  %2000 = vmatpush1.msra.mxu0 0.0
  %2001 = vmatprep.subr.mxu0 0.0
  %2002 = vmatpush1.msra.mxu0 0.0
  %2003 = vmatprep.subr.mxu0 0.0
  %2004 = vmatpush1.msra.mxu0 0.0
  %2005 = vmatprep.subr.mxu0 0.0
  %2006 = vmatpush1.msra.mxu0 0.0
  %2007 = vmatprep.subr.mxu0 0.0
  %2008 = vmatpush1.msra.mxu0 0.0
  %2009 = vmatprep.subr.mxu0 0.0
  %2010 = vmatpush1.msra.mxu0 0.0
  %2011 = vmatprep.subr.mxu0 0.0
  %2012 = vmatpush1.msra.mxu0 0.0
  %2013 = vmatprep.subr.mxu0 0.0
  %2014 = vmatpush1.msra.mxu0 0.0
  %2015 = vmatprep.subr.mxu0 0.0
  %2016 = vmatpush1.msra.mxu0 0.0
  %2017 = vmatprep.subr.mxu0 0.0
  %2018 = vmatpush1.msra.mxu0 0.0
  %2019 = vmatprep.subr.mxu0 0.0
  %2020 = vmatpush1.msra.mxu0 0.0
  %2021 = vmatprep.subr.mxu0 0.0
  %2022 = vmatpush1.msra.mxu0 0.0
  %2023 = vmatprep.subr.mxu0 0.0
  %2024 = vmatpush1.msra.mxu0 0.0
  %2025 = vmatprep.subr.mxu0 0.0
  %2026 = vmatpush1.msra.mxu0 0.0
  %2027 = vmatprep.subr.mxu0 0.0
  %2028 = vmatpush1.msra.mxu0 0.0
  %2029 = vmatprep.subr.mxu0 0.0
  %2030 = vmatpush1.msra.mxu0 0.0
  %2031 = vmatprep.subr.mxu0 0.0
  %2032 = vmatpush1.msra.mxu0 0.0
  %2033 = vmatprep.subr.mxu0 0.0
  %2034 = vmatpush1.msra.mxu0 0.0
  %2035 = vmatprep.subr.mxu0 0.0
  %2036 = vmatpush1.msra.mxu0 0.0
  %2037 = vmatprep.subr.mxu0 0.0
  %2038 = vmatpush1.msra.mxu0 0.0
  %2039 = vmatprep.subr.mxu0 0.0
  %2040 = vmatpush1.msra.mxu0 0.0
  %2041 = vmatprep.subr.mxu0 0.0
  %2042 = vmatpush1.msra.mxu0 0.0
  %2043 = vmatprep.mubr.f32.mxu0 0.0
  %2044 = vmatmul.mubr.f32.gmra.mrb[0].mxu0 %v1977
  %v2045 = vpop.f32.mrb[0].mxu0
  %v2046 = vadd.f32 0.0, %v2045
  %v2047 = vpop.f32.mrb[0].mxu0
  %2048 = vdwg.mxu0
  %2050 = vrot.lane.b32.xlu0 %v2046, 16
  %v2051 = vpop.permute.xlu0 %2050
  %v2053 = vsel %vm230, %v1881, %v2051
  %s2054 = scalar_lea.vmem %s6, 32
  %v2055 = vld [vmem:[%s2054] sm:$0xff]
  %v2056 = vld [vmem:[%s2054 + $0x8] sm:$0xff]
  %v2057 = vld [vmem:[%s2054 + $0x10] sm:$0xff]
  %v2058 = vld [vmem:[%s2054 + $0x18] sm:$0xff]
  %s2059 = scalar_lea.vmem %s7, 1
  %v2060 = vld [vmem:[%s2059] sm:$0x1]
  %v2062 = vlaneseq
  %v2063 = vshrl.u32 %v2062, 7
  %v2064 = vsub.s32 0, %v2063
  %v2065 = vrot.slane %v2060, %v2064
  %v2068 = vsel %vm84, %v1719, 0
  %v2071 = vsel %vm84, %v2053, 0
  %2073 = vmatprep.subr.mxu0 0.0
  %2074 = vmatpush1.msra.mxu0 %v2055
  %2075 = vmatprep.subr.mxu0 0.0
  %2076 = vmatpush1.msra.mxu0 %v2056
  %2077 = vmatprep.subr.mxu0 0.0
  %2078 = vmatpush1.msra.mxu0 %v2057
  %2079 = vmatprep.subr.mxu0 0.0
  %2080 = vmatpush1.msra.mxu0 %v2058
  %2081 = vmatprep.subr.mxu0 0.0
  %2082 = vmatpush1.msra.mxu0 0.0
  %2083 = vmatprep.subr.mxu0 0.0
  %2084 = vmatpush1.msra.mxu0 0.0
  %2085 = vmatprep.subr.mxu0 0.0
  %2086 = vmatpush1.msra.mxu0 0.0
  %2087 = vmatprep.subr.mxu0 0.0
  %2088 = vmatpush1.msra.mxu0 0.0
  %2089 = vmatprep.subr.mxu0 0.0
  %2090 = vmatpush1.msra.mxu0 0.0
  %2091 = vmatprep.subr.mxu0 0.0
  %2092 = vmatpush1.msra.mxu0 0.0
  %2093 = vmatprep.subr.mxu0 0.0
  %2094 = vmatpush1.msra.mxu0 0.0
  %2095 = vmatprep.subr.mxu0 0.0
  %2096 = vmatpush1.msra.mxu0 0.0
  %2097 = vmatprep.subr.mxu0 0.0
  %2098 = vmatpush1.msra.mxu0 0.0
  %2099 = vmatprep.subr.mxu0 0.0
  %2100 = vmatpush1.msra.mxu0 0.0
  %2101 = vmatprep.subr.mxu0 0.0
  %2102 = vmatpush1.msra.mxu0 0.0
  %2103 = vmatprep.subr.mxu0 0.0
  %2104 = vmatpush1.msra.mxu0 0.0
  %2105 = vmatprep.subr.mxu0 0.0
  %2106 = vmatpush1.msra.mxu0 0.0
  %2107 = vmatprep.subr.mxu0 0.0
  %2108 = vmatpush1.msra.mxu0 0.0
  %2109 = vmatprep.subr.mxu0 0.0
  %2110 = vmatpush1.msra.mxu0 0.0
  %2111 = vmatprep.subr.mxu0 0.0
  %2112 = vmatpush1.msra.mxu0 0.0
  %2113 = vmatprep.subr.mxu0 0.0
  %2114 = vmatpush1.msra.mxu0 0.0
  %2115 = vmatprep.subr.mxu0 0.0
  %2116 = vmatpush1.msra.mxu0 0.0
  %2117 = vmatprep.subr.mxu0 0.0
  %2118 = vmatpush1.msra.mxu0 0.0
  %2119 = vmatprep.subr.mxu0 0.0
  %2120 = vmatpush1.msra.mxu0 0.0
  %2121 = vmatprep.subr.mxu0 0.0
  %2122 = vmatpush1.msra.mxu0 0.0
  %2123 = vmatprep.subr.mxu0 0.0
  %2124 = vmatpush1.msra.mxu0 0.0
  %2125 = vmatprep.subr.mxu0 0.0
  %2126 = vmatpush1.msra.mxu0 0.0
  %2127 = vmatprep.subr.mxu0 0.0
  %2128 = vmatpush1.msra.mxu0 0.0
  %2129 = vmatprep.subr.mxu0 0.0
  %2130 = vmatpush1.msra.mxu0 0.0
  %2131 = vmatprep.subr.mxu0 0.0
  %2132 = vmatpush1.msra.mxu0 0.0
  %2133 = vmatprep.subr.mxu0 0.0
  %2134 = vmatpush1.msra.mxu0 0.0
  %2135 = vmatprep.subr.mxu0 0.0
  %2136 = vmatpush1.msra.mxu0 0.0
  %2137 = vmatprep.mubr.f32.mxu0 0.0
  %2138 = vmatmul.mubr.f32.gmra.mrb[0].mxu0 %v2068
  %v2139 = vpop.f32.mrb[0].mxu0
  %v2140 = vadd.f32 %v2065, %v2139
  %v2141 = vpop.f32.mrb[0].mxu0
  %2142 = vmatprep.mubr.f32.mxu0 0.0
  %2143 = vmatmul.mubr.f32.gmra.mrb[0].mxu0 %v2071
  %v2144 = vpop.f32.mrb[0].mxu0
  %v2145 = vadd.f32 %v2065, %v2144
  %v2146 = vpop.f32.mrb[0].mxu0
  %2147 = vdwg.mxu0
  %v2148 = vadd.f32 %v1290, %v2140
  %v2149 = vadd.f32 %v1291, %v2145
  %s2150 = scalar_lea.vmem %s8, 1
  %v2151 = vld [vmem:[%s2150] sm:$0x1]
  %s2152 = scalar_lea.vmem %s9, 1
  %v2153 = vld [vmem:[%s2152] sm:$0x1]
  %v2154 = vsel %vm84, %v2148, 0.0
  %2155 = vadd.xlane.f32.xlu0 %v2154
  %v2156 = vpop.xlane.xlu0 %2155
  %v2157 = vsel %vm84, %v2149, 0.0
  %2158 = vadd.xlane.f32.xlu0 %v2157
  %v2159 = vpop.xlane.xlu0 %2158
  %v2160 = vmul.f32 %v2156, %v91
  %v2161 = vmul.f32 %v2159, %v91
  %v2162 = vsub.f32 %v2148, %v2160
  %v2163 = vsub.f32 %v2149, %v2161
  %v2164 = vmul.f32 %v2162, %v2162
  %v2165 = vmul.f32 %v2163, %v2163
  %v2166 = vsel %vm84, %v2164, 0.0
  %2167 = vadd.xlane.f32.xlu0 %v2166
  %v2168 = vpop.xlane.xlu0 %2167
  %v2169 = vsel %vm84, %v2165, 0.0
  %2170 = vadd.xlane.f32.xlu0 %v2169
  %v2171 = vpop.xlane.xlu0 %2170
  %v2172 = vmul.f32 %v2168, %v91
  %v2173 = vmul.f32 %v2171, %v91
  %v2174 = vadd.f32 %v2172, 1e-12
  %v2175 = vadd.f32 %v2173, 1e-12
  %v2176 = vrsqrt.pop %v2174
  %v2177 = vrsqrt.pop %v2175
  %v2178 = vmul.f32 %v2162, %v2176
  %v2179 = vmul.f32 %v2163, %v2177
  %v2181 = vlaneseq
  %v2182 = vshrl.u32 %v2181, 7
  %v2183 = vsub.s32 0, %v2182
  %v2184 = vrot.slane %v2151, %v2183
  %v2186 = vmul.f32 %v2178, %v2184
  %v2187 = vmul.f32 %v2179, %v2184
  %v2189 = vlaneseq
  %v2190 = vshrl.u32 %v2189, 7
  %v2191 = vsub.s32 0, %v2190
  %v2192 = vrot.slane %v2153, %v2191
  %v2194 = vadd.f32 %v2186, %v2192
  %v2195 = vadd.f32 %v2187, %v2192
  %s2196 = scalar_lea.vmem %s10, 32
  %v2197 = vld [vmem:[%s2196] sm:$0xff]
  %v2198 = vld [vmem:[%s2196 + $0x8] sm:$0xff]
  %v2199 = vld [vmem:[%s2196 + $0x10] sm:$0xff]
  %v2200 = vld [vmem:[%s2196 + $0x18] sm:$0xff]
  %s2201 = scalar_lea.vmem %s11, 1
  %v2202 = vld [vmem:[%s2201] sm:$0x1]
  %v2204 = vlaneseq
  %v2205 = vshrl.u32 %v2204, 7
  %v2206 = vsub.s32 0, %v2205
  %v2207 = vrot.slane %v2202, %v2206
  %v2210 = vsel %vm84, %v2194, 0
  %v2213 = vsel %vm84, %v2195, 0
  %2215 = vmatprep.subr.mxu0 0.0
  %2216 = vmatpush1.msra.mxu0 %v2197
  %2217 = vmatprep.subr.mxu0 0.0
  %2218 = vmatpush1.msra.mxu0 %v2198
  %2219 = vmatprep.subr.mxu0 0.0
  %2220 = vmatpush1.msra.mxu0 %v2199
  %2221 = vmatprep.subr.mxu0 0.0
  %2222 = vmatpush1.msra.mxu0 %v2200
  %2223 = vmatprep.subr.mxu0 0.0
  %2224 = vmatpush1.msra.mxu0 0.0
  %2225 = vmatprep.subr.mxu0 0.0
  %2226 = vmatpush1.msra.mxu0 0.0
  %2227 = vmatprep.subr.mxu0 0.0
  %2228 = vmatpush1.msra.mxu0 0.0
  %2229 = vmatprep.subr.mxu0 0.0
  %2230 = vmatpush1.msra.mxu0 0.0
  %2231 = vmatprep.subr.mxu0 0.0
  %2232 = vmatpush1.msra.mxu0 0.0
  %2233 = vmatprep.subr.mxu0 0.0
  %2234 = vmatpush1.msra.mxu0 0.0
  %2235 = vmatprep.subr.mxu0 0.0
  %2236 = vmatpush1.msra.mxu0 0.0
  %2237 = vmatprep.subr.mxu0 0.0
  %2238 = vmatpush1.msra.mxu0 0.0
  %2239 = vmatprep.subr.mxu0 0.0
  %2240 = vmatpush1.msra.mxu0 0.0
  %2241 = vmatprep.subr.mxu0 0.0
  %2242 = vmatpush1.msra.mxu0 0.0
  %2243 = vmatprep.subr.mxu0 0.0
  %2244 = vmatpush1.msra.mxu0 0.0
  %2245 = vmatprep.subr.mxu0 0.0
  %2246 = vmatpush1.msra.mxu0 0.0
  %2247 = vmatprep.subr.mxu0 0.0
  %2248 = vmatpush1.msra.mxu0 0.0
  %2249 = vmatprep.subr.mxu0 0.0
  %2250 = vmatpush1.msra.mxu0 0.0
  %2251 = vmatprep.subr.mxu0 0.0
  %2252 = vmatpush1.msra.mxu0 0.0
  %2253 = vmatprep.subr.mxu0 0.0
  %2254 = vmatpush1.msra.mxu0 0.0
  %2255 = vmatprep.subr.mxu0 0.0
  %2256 = vmatpush1.msra.mxu0 0.0
  %2257 = vmatprep.subr.mxu0 0.0
  %2258 = vmatpush1.msra.mxu0 0.0
  %2259 = vmatprep.subr.mxu0 0.0
  %2260 = vmatpush1.msra.mxu0 0.0
  %2261 = vmatprep.subr.mxu0 0.0
  %2262 = vmatpush1.msra.mxu0 0.0
  %2263 = vmatprep.subr.mxu0 0.0
  %2264 = vmatpush1.msra.mxu0 0.0
  %2265 = vmatprep.subr.mxu0 0.0
  %2266 = vmatpush1.msra.mxu0 0.0
  %2267 = vmatprep.subr.mxu0 0.0
  %2268 = vmatpush1.msra.mxu0 0.0
  %2269 = vmatprep.subr.mxu0 0.0
  %2270 = vmatpush1.msra.mxu0 0.0
  %2271 = vmatprep.subr.mxu0 0.0
  %2272 = vmatpush1.msra.mxu0 0.0
  %2273 = vmatprep.subr.mxu0 0.0
  %2274 = vmatpush1.msra.mxu0 0.0
  %2275 = vmatprep.subr.mxu0 0.0
  %2276 = vmatpush1.msra.mxu0 0.0
  %2277 = vmatprep.subr.mxu0 0.0
  %2278 = vmatpush1.msra.mxu0 0.0
  %2279 = vmatprep.mubr.f32.mxu0 0.0
  %2280 = vmatmul.mubr.f32.gmra.mrb[0].mxu0 %v2210
  %v2281 = vpop.f32.mrb[0].mxu0
  %v2282 = vadd.f32 %v2207, %v2281
  %v2283 = vpop.f32.mrb[0].mxu0
  %2284 = vmatprep.mubr.f32.mxu0 0.0
  %2285 = vmatmul.mubr.f32.gmra.mrb[0].mxu0 %v2213
  %v2286 = vpop.f32.mrb[0].mxu0
  %v2287 = vadd.f32 %v2207, %v2286
  %v2288 = vpop.f32.mrb[0].mxu0
  %2289 = vdwg.mxu0
  %v2290 = vmul.f32 %v2282, %v2282
  %v2291 = vmul.f32 %v2287, %v2287
  %v2292 = vmul.f32 %v2282, %v2290
  %v2293 = vmul.f32 %v2287, %v2291
  %v2294 = vmul.f32 %v2292, 0.044715
  %v2295 = vmul.f32 %v2293, 0.044715
  %v2296 = vadd.f32 %v2282, %v2294
  %v2297 = vadd.f32 %v2287, %v2295
  %v2298 = vmul.f32 %v2296, 0.7978846
  %v2299 = vmul.f32 %v2297, 0.7978846
  %v2300 = vtanh.pop %v2298
  %v2301 = vtanh.pop %v2299
  %v2302 = vadd.f32 %v2300, 1.0
  %v2303 = vadd.f32 %v2301, 1.0
  %v2304 = vmul.f32 %v2302, 0.5
  %v2305 = vmul.f32 %v2303, 0.5
  %v2306 = vmul.f32 %v2282, %v2304
  %v2307 = vmul.f32 %v2287, %v2305
  %s2308 = scalar_lea.vmem %s12, 64
  %v2309 = vld [vmem:[%s2308] sm:$0xff]
  %v2310 = vld [vmem:[%s2308 + $0x8] sm:$0xff]
  %v2311 = vld [vmem:[%s2308 + $0x10] sm:$0xff]
  %v2312 = vld [vmem:[%s2308 + $0x18] sm:$0xff]
  %v2313 = vld [vmem:[%s2308 + $0x20] sm:$0xff]
  %v2314 = vld [vmem:[%s2308 + $0x28] sm:$0xff]
  %v2315 = vld [vmem:[%s2308 + $0x30] sm:$0xff]
  %v2316 = vld [vmem:[%s2308 + $0x38] sm:$0xff]
  %s2317 = scalar_lea.vmem %s13, 1
  %v2318 = vld [vmem:[%s2317] sm:$0x1]
  %v2320 = vlaneseq
  %v2321 = vshrl.u32 %v2320, 7
  %v2322 = vsub.s32 0, %v2321
  %v2323 = vrot.slane %v2318, %v2322
  %v2326 = vsel %vm1164, %v2306, 0
  %v2329 = vsel %vm1164, %v2307, 0
  %2331 = vmatprep.subr.mxu0 0.0
  %2332 = vmatpush1.msra.mxu0 %v2309
  %2333 = vmatprep.subr.mxu0 0.0
  %2334 = vmatpush1.msra.mxu0 %v2310
  %2335 = vmatprep.subr.mxu0 0.0
  %2336 = vmatpush1.msra.mxu0 %v2311
  %2337 = vmatprep.subr.mxu0 0.0
  %2338 = vmatpush1.msra.mxu0 %v2312
  %2339 = vmatprep.subr.mxu0 0.0
  %2340 = vmatpush1.msra.mxu0 %v2313
  %2341 = vmatprep.subr.mxu0 0.0
  %2342 = vmatpush1.msra.mxu0 %v2314
  %2343 = vmatprep.subr.mxu0 0.0
  %2344 = vmatpush1.msra.mxu0 %v2315
  %2345 = vmatprep.subr.mxu0 0.0
  %2346 = vmatpush1.msra.mxu0 %v2316
  %2347 = vmatprep.subr.mxu0 0.0
  %2348 = vmatpush1.msra.mxu0 0.0
  %2349 = vmatprep.subr.mxu0 0.0
  %2350 = vmatpush1.msra.mxu0 0.0
  %2351 = vmatprep.subr.mxu0 0.0
  %2352 = vmatpush1.msra.mxu0 0.0
  %2353 = vmatprep.subr.mxu0 0.0
  %2354 = vmatpush1.msra.mxu0 0.0
  %2355 = vmatprep.subr.mxu0 0.0
  %2356 = vmatpush1.msra.mxu0 0.0
  %2357 = vmatprep.subr.mxu0 0.0
  %2358 = vmatpush1.msra.mxu0 0.0
  %2359 = vmatprep.subr.mxu0 0.0
  %2360 = vmatpush1.msra.mxu0 0.0
  %2361 = vmatprep.subr.mxu0 0.0
  %2362 = vmatpush1.msra.mxu0 0.0
  %2363 = vmatprep.subr.mxu0 0.0
  %2364 = vmatpush1.msra.mxu0 0.0
  %2365 = vmatprep.subr.mxu0 0.0
  %2366 = vmatpush1.msra.mxu0 0.0
  %2367 = vmatprep.subr.mxu0 0.0
  %2368 = vmatpush1.msra.mxu0 0.0
  %2369 = vmatprep.subr.mxu0 0.0
  %2370 = vmatpush1.msra.mxu0 0.0
  %2371 = vmatprep.subr.mxu0 0.0
  %2372 = vmatpush1.msra.mxu0 0.0
  %2373 = vmatprep.subr.mxu0 0.0
  %2374 = vmatpush1.msra.mxu0 0.0
  %2375 = vmatprep.subr.mxu0 0.0
  %2376 = vmatpush1.msra.mxu0 0.0
  %2377 = vmatprep.subr.mxu0 0.0
  %2378 = vmatpush1.msra.mxu0 0.0
  %2379 = vmatprep.subr.mxu0 0.0
  %2380 = vmatpush1.msra.mxu0 0.0
  %2381 = vmatprep.subr.mxu0 0.0
  %2382 = vmatpush1.msra.mxu0 0.0
  %2383 = vmatprep.subr.mxu0 0.0
  %2384 = vmatpush1.msra.mxu0 0.0
  %2385 = vmatprep.subr.mxu0 0.0
  %2386 = vmatpush1.msra.mxu0 0.0
  %2387 = vmatprep.subr.mxu0 0.0
  %2388 = vmatpush1.msra.mxu0 0.0
  %2389 = vmatprep.subr.mxu0 0.0
  %2390 = vmatpush1.msra.mxu0 0.0
  %2391 = vmatprep.subr.mxu0 0.0
  %2392 = vmatpush1.msra.mxu0 0.0
  %2393 = vmatprep.subr.mxu0 0.0
  %2394 = vmatpush1.msra.mxu0 0.0
  %2395 = vmatprep.mubr.f32.mxu0 0.0
  %2396 = vmatmul.mubr.f32.gmra.mrb[0].mxu0 %v2326
  %v2397 = vpop.f32.mrb[0].mxu0
  %v2398 = vadd.f32 %v2323, %v2397
  %v2399 = vpop.f32.mrb[0].mxu0
  %2400 = vmatprep.mubr.f32.mxu0 0.0
  %2401 = vmatmul.mubr.f32.gmra.mrb[0].mxu0 %v2329
  %v2402 = vpop.f32.mrb[0].mxu0
  %v2403 = vadd.f32 %v2323, %v2402
  %v2404 = vpop.f32.mrb[0].mxu0
  %2405 = vdwg.mxu0
  %v2406 = vadd.f32 %v2194, %v2398
  %v2407 = vadd.f32 %v2195, %v2403
  %s2408 = scalar_lea.vmem %s14, 1
  %v2409 = vld [vmem:[%s2408] sm:$0x1]
  %s2410 = scalar_lea.vmem %s15, 1
  %v2411 = vld [vmem:[%s2410] sm:$0x1]
  %v2412 = vsel %vm84, %v2406, 0.0
  %2413 = vadd.xlane.f32.xlu0 %v2412
  %v2414 = vpop.xlane.xlu0 %2413
  %v2415 = vsel %vm84, %v2407, 0.0
  %2416 = vadd.xlane.f32.xlu0 %v2415
  %v2417 = vpop.xlane.xlu0 %2416
  %v2418 = vmul.f32 %v2414, %v91
  %v2419 = vmul.f32 %v2417, %v91
  %v2420 = vsub.f32 %v2406, %v2418
  %v2421 = vsub.f32 %v2407, %v2419
  %v2422 = vmul.f32 %v2420, %v2420
  %v2423 = vmul.f32 %v2421, %v2421
  %v2424 = vsel %vm84, %v2422, 0.0
  %2425 = vadd.xlane.f32.xlu0 %v2424
  %v2426 = vpop.xlane.xlu0 %2425
  %v2427 = vsel %vm84, %v2423, 0.0
  %2428 = vadd.xlane.f32.xlu0 %v2427
  %v2429 = vpop.xlane.xlu0 %2428
  %v2430 = vmul.f32 %v2426, %v91
  %v2431 = vmul.f32 %v2429, %v91
  %v2432 = vadd.f32 %v2430, 1e-12
  %v2433 = vadd.f32 %v2431, 1e-12
  %v2434 = vrsqrt.pop %v2432
  %v2435 = vrsqrt.pop %v2433
  %v2436 = vmul.f32 %v2420, %v2434
  %v2437 = vmul.f32 %v2421, %v2435
  %v2439 = vlaneseq
  %v2440 = vshrl.u32 %v2439, 7
  %v2441 = vsub.s32 0, %v2440
  %v2442 = vrot.slane %v2409, %v2441
  %v2444 = vmul.f32 %v2436, %v2442
  %v2445 = vmul.f32 %v2437, %v2442
  %v2447 = vlaneseq
  %v2448 = vshrl.u32 %v2447, 7
  %v2449 = vsub.s32 0, %v2448
  %v2450 = vrot.slane %v2411, %v2449
  %v2452 = vadd.f32 %v2444, %v2450
  %v2453 = vadd.f32 %v2445, %v2450
  %v2454 = vld [vmem:[%s16] sm:$0xff]
  %v2455 = vld [vmem:[%s16 + $0x8] sm:$0xff]
  %v2456 = vld [vmem:[%s16 + $0x10] sm:$0xff]
  %v2457 = vld [vmem:[%s16 + $0x18] sm:$0xff]
  %v2458 = vld [vmem:[%s18] sm:$0x1]
  %v2460 = vlaneseq
  %v2461 = vshrl.u32 %v2460, 7
  %v2462 = vsub.s32 0, %v2461
  %v2463 = vrot.slane %v2458, %v2462
  %v2466 = vsel %vm84, %v2452, 0
  %v2469 = vsel %vm84, %v2453, 0
  %2471 = vmatprep.subr.mxu0 0.0
  %2472 = vmatpush1.msra.mxu0 %v2454
  %2473 = vmatprep.subr.mxu0 0.0
  %2474 = vmatpush1.msra.mxu0 %v2455
  %2475 = vmatprep.subr.mxu0 0.0
  %2476 = vmatpush1.msra.mxu0 %v2456
  %2477 = vmatprep.subr.mxu0 0.0
  %2478 = vmatpush1.msra.mxu0 %v2457
  %2479 = vmatprep.subr.mxu0 0.0
  %2480 = vmatpush1.msra.mxu0 0.0
  %2481 = vmatprep.subr.mxu0 0.0
  %2482 = vmatpush1.msra.mxu0 0.0
  %2483 = vmatprep.subr.mxu0 0.0
  %2484 = vmatpush1.msra.mxu0 0.0
  %2485 = vmatprep.subr.mxu0 0.0
  %2486 = vmatpush1.msra.mxu0 0.0
  %2487 = vmatprep.subr.mxu0 0.0
  %2488 = vmatpush1.msra.mxu0 0.0
  %2489 = vmatprep.subr.mxu0 0.0
  %2490 = vmatpush1.msra.mxu0 0.0
  %2491 = vmatprep.subr.mxu0 0.0
  %2492 = vmatpush1.msra.mxu0 0.0
  %2493 = vmatprep.subr.mxu0 0.0
  %2494 = vmatpush1.msra.mxu0 0.0
  %2495 = vmatprep.subr.mxu0 0.0
  %2496 = vmatpush1.msra.mxu0 0.0
  %2497 = vmatprep.subr.mxu0 0.0
  %2498 = vmatpush1.msra.mxu0 0.0
  %2499 = vmatprep.subr.mxu0 0.0
  %2500 = vmatpush1.msra.mxu0 0.0
  %2501 = vmatprep.subr.mxu0 0.0
  %2502 = vmatpush1.msra.mxu0 0.0
  %2503 = vmatprep.subr.mxu0 0.0
  %2504 = vmatpush1.msra.mxu0 0.0
  %2505 = vmatprep.subr.mxu0 0.0
  %2506 = vmatpush1.msra.mxu0 0.0
  %2507 = vmatprep.subr.mxu0 0.0
  %2508 = vmatpush1.msra.mxu0 0.0
  %2509 = vmatprep.subr.mxu0 0.0
  %2510 = vmatpush1.msra.mxu0 0.0
  %2511 = vmatprep.subr.mxu0 0.0
  %2512 = vmatpush1.msra.mxu0 0.0
  %2513 = vmatprep.subr.mxu0 0.0
  %2514 = vmatpush1.msra.mxu0 0.0
  %2515 = vmatprep.subr.mxu0 0.0
  %2516 = vmatpush1.msra.mxu0 0.0
  %2517 = vmatprep.subr.mxu0 0.0
  %2518 = vmatpush1.msra.mxu0 0.0
  %2519 = vmatprep.subr.mxu0 0.0
  %2520 = vmatpush1.msra.mxu0 0.0
  %2521 = vmatprep.subr.mxu0 0.0
  %2522 = vmatpush1.msra.mxu0 0.0
  %2523 = vmatprep.subr.mxu0 0.0
  %2524 = vmatpush1.msra.mxu0 0.0
  %2525 = vmatprep.subr.mxu0 0.0
  %2526 = vmatpush1.msra.mxu0 0.0
  %2527 = vmatprep.subr.mxu0 0.0
  %2528 = vmatpush1.msra.mxu0 0.0
  %2529 = vmatprep.subr.mxu0 0.0
  %2530 = vmatpush1.msra.mxu0 0.0
  %2531 = vmatprep.subr.mxu0 0.0
  %2532 = vmatpush1.msra.mxu0 0.0
  %2533 = vmatprep.subr.mxu0 0.0
  %2534 = vmatpush1.msra.mxu0 0.0
  %2535 = vmatprep.mubr.f32.mxu0 0.0
  %2536 = vmatmul.mubr.f32.gmra.mrb[0].mxu0 %v2466
  %v2537 = vpop.f32.mrb[0].mxu0
  %v2538 = vadd.f32 %v2463, %v2537
  %v2539 = vpop.f32.mrb[0].mxu0
  %2540 = vmatprep.mubr.f32.mxu0 0.0
  %2541 = vmatmul.mubr.f32.gmra.mrb[0].mxu0 %v2469
  %v2542 = vpop.f32.mrb[0].mxu0
  %v2543 = vadd.f32 %v2463, %v2542
  %v2544 = vpop.f32.mrb[0].mxu0
  %2545 = vdwg.mxu0
  %v2546 = vld [vmem:[%s19] sm:$0xff]
  %v2547 = vld [vmem:[%s19 + $0x8] sm:$0xff]
  %v2548 = vld [vmem:[%s19 + $0x10] sm:$0xff]
  %v2549 = vld [vmem:[%s19 + $0x18] sm:$0xff]
  %v2550 = vld [vmem:[%s21] sm:$0x1]
  %v2552 = vlaneseq
  %v2553 = vshrl.u32 %v2552, 7
  %v2554 = vsub.s32 0, %v2553
  %v2555 = vrot.slane %v2550, %v2554
  %2557 = vmatprep.subr.mxu0 0.0
  %2558 = vmatpush1.msra.mxu0 %v2546
  %2559 = vmatprep.subr.mxu0 0.0
  %2560 = vmatpush1.msra.mxu0 %v2547
  %2561 = vmatprep.subr.mxu0 0.0
  %2562 = vmatpush1.msra.mxu0 %v2548
  %2563 = vmatprep.subr.mxu0 0.0
  %2564 = vmatpush1.msra.mxu0 %v2549
  %2565 = vmatprep.subr.mxu0 0.0
  %2566 = vmatpush1.msra.mxu0 0.0
  %2567 = vmatprep.subr.mxu0 0.0
  %2568 = vmatpush1.msra.mxu0 0.0
  %2569 = vmatprep.subr.mxu0 0.0
  %2570 = vmatpush1.msra.mxu0 0.0
  %2571 = vmatprep.subr.mxu0 0.0
  %2572 = vmatpush1.msra.mxu0 0.0
  %2573 = vmatprep.subr.mxu0 0.0
  %2574 = vmatpush1.msra.mxu0 0.0
  %2575 = vmatprep.subr.mxu0 0.0
  %2576 = vmatpush1.msra.mxu0 0.0
  %2577 = vmatprep.subr.mxu0 0.0
  %2578 = vmatpush1.msra.mxu0 0.0
  %2579 = vmatprep.subr.mxu0 0.0
  %2580 = vmatpush1.msra.mxu0 0.0
  %2581 = vmatprep.subr.mxu0 0.0
  %2582 = vmatpush1.msra.mxu0 0.0
  %2583 = vmatprep.subr.mxu0 0.0
  %2584 = vmatpush1.msra.mxu0 0.0
  %2585 = vmatprep.subr.mxu0 0.0
  %2586 = vmatpush1.msra.mxu0 0.0
  %2587 = vmatprep.subr.mxu0 0.0
  %2588 = vmatpush1.msra.mxu0 0.0
  %2589 = vmatprep.subr.mxu0 0.0
  %2590 = vmatpush1.msra.mxu0 0.0
  %2591 = vmatprep.subr.mxu0 0.0
  %2592 = vmatpush1.msra.mxu0 0.0
  %2593 = vmatprep.subr.mxu0 0.0
  %2594 = vmatpush1.msra.mxu0 0.0
  %2595 = vmatprep.subr.mxu0 0.0
  %2596 = vmatpush1.msra.mxu0 0.0
  %2597 = vmatprep.subr.mxu0 0.0
  %2598 = vmatpush1.msra.mxu0 0.0
  %2599 = vmatprep.subr.mxu0 0.0
  %2600 = vmatpush1.msra.mxu0 0.0
  %2601 = vmatprep.subr.mxu0 0.0
  %2602 = vmatpush1.msra.mxu0 0.0
  %2603 = vmatprep.subr.mxu0 0.0
  %2604 = vmatpush1.msra.mxu0 0.0
  %2605 = vmatprep.subr.mxu0 0.0
  %2606 = vmatpush1.msra.mxu0 0.0
  %2607 = vmatprep.subr.mxu0 0.0
  %2608 = vmatpush1.msra.mxu0 0.0
  %2609 = vmatprep.subr.mxu0 0.0
  %2610 = vmatpush1.msra.mxu0 0.0
  %2611 = vmatprep.subr.mxu0 0.0
  %2612 = vmatpush1.msra.mxu0 0.0
  %2613 = vmatprep.subr.mxu0 0.0
  %2614 = vmatpush1.msra.mxu0 0.0
  %2615 = vmatprep.subr.mxu0 0.0
  %2616 = vmatpush1.msra.mxu0 0.0
  %2617 = vmatprep.subr.mxu0 0.0
  %2618 = vmatpush1.msra.mxu0 0.0
  %2619 = vmatprep.subr.mxu0 0.0
  %2620 = vmatpush1.msra.mxu0 0.0
  %2621 = vmatprep.mubr.f32.mxu0 0.0
  %2622 = vmatmul.mubr.f32.gmra.mrb[0].mxu0 %v2466
  %v2623 = vpop.f32.mrb[0].mxu0
  %v2624 = vadd.f32 %v2555, %v2623
  %v2625 = vpop.f32.mrb[0].mxu0
  %2626 = vmatprep.mubr.f32.mxu0 0.0
  %2627 = vmatmul.mubr.f32.gmra.mrb[0].mxu0 %v2469
  %v2628 = vpop.f32.mrb[0].mxu0
  %v2629 = vadd.f32 %v2555, %v2628
  %v2630 = vpop.f32.mrb[0].mxu0
  %2631 = vdwg.mxu0
  %v2632 = vld [vmem:[%s17] sm:$0xff]
  %v2633 = vld [vmem:[%s17 + $0x8] sm:$0xff]
  %v2634 = vld [vmem:[%s17 + $0x10] sm:$0xff]
  %v2635 = vld [vmem:[%s17 + $0x18] sm:$0xff]
  %v2636 = vld [vmem:[%s20] sm:$0xff]
  %v2637 = vld [vmem:[%s20 + $0x8] sm:$0xff]
  %v2638 = vld [vmem:[%s20 + $0x10] sm:$0xff]
  %v2639 = vld [vmem:[%s20 + $0x18] sm:$0xff]
  %v2641 = vsel %vm84, 0.0, 0
  %2643 = vmatprep.subr.mxu0 0.0
  %2644 = vmatpush1.msra.mxu0 %v2632
  %2645 = vmatprep.subr.mxu0 0.0
  %2646 = vmatpush1.msra.mxu0 %v2633
  %2647 = vmatprep.subr.mxu0 0.0
  %2648 = vmatpush1.msra.mxu0 %v2634
  %2649 = vmatprep.subr.mxu0 0.0
  %2650 = vmatpush1.msra.mxu0 %v2635
  %2651 = vmatprep.subr.mxu0 0.0
  %2652 = vmatpush1.msra.mxu0 0.0
  %2653 = vmatprep.subr.mxu0 0.0
  %2654 = vmatpush1.msra.mxu0 0.0
  %2655 = vmatprep.subr.mxu0 0.0
  %2656 = vmatpush1.msra.mxu0 0.0
  %2657 = vmatprep.subr.mxu0 0.0
  %2658 = vmatpush1.msra.mxu0 0.0
  %2659 = vmatprep.subr.mxu0 0.0
  %2660 = vmatpush1.msra.mxu0 0.0
  %2661 = vmatprep.subr.mxu0 0.0
  %2662 = vmatpush1.msra.mxu0 0.0
  %2663 = vmatprep.subr.mxu0 0.0
  %2664 = vmatpush1.msra.mxu0 0.0
  %2665 = vmatprep.subr.mxu0 0.0
  %2666 = vmatpush1.msra.mxu0 0.0
  %2667 = vmatprep.subr.mxu0 0.0
  %2668 = vmatpush1.msra.mxu0 0.0
  %2669 = vmatprep.subr.mxu0 0.0
  %2670 = vmatpush1.msra.mxu0 0.0
  %2671 = vmatprep.subr.mxu0 0.0
  %2672 = vmatpush1.msra.mxu0 0.0
  %2673 = vmatprep.subr.mxu0 0.0
  %2674 = vmatpush1.msra.mxu0 0.0
  %2675 = vmatprep.subr.mxu0 0.0
  %2676 = vmatpush1.msra.mxu0 0.0
  %2677 = vmatprep.subr.mxu0 0.0
  %2678 = vmatpush1.msra.mxu0 0.0
  %2679 = vmatprep.subr.mxu0 0.0
  %2680 = vmatpush1.msra.mxu0 0.0
  %2681 = vmatprep.subr.mxu0 0.0
  %2682 = vmatpush1.msra.mxu0 0.0
  %2683 = vmatprep.subr.mxu0 0.0
  %2684 = vmatpush1.msra.mxu0 0.0
  %2685 = vmatprep.subr.mxu0 0.0
  %2686 = vmatpush1.msra.mxu0 0.0
  %2687 = vmatprep.subr.mxu0 0.0
  %2688 = vmatpush1.msra.mxu0 0.0
  %2689 = vmatprep.subr.mxu0 0.0
  %2690 = vmatpush1.msra.mxu0 0.0
  %2691 = vmatprep.subr.mxu0 0.0
  %2692 = vmatpush1.msra.mxu0 0.0
  %2693 = vmatprep.subr.mxu0 0.0
  %2694 = vmatpush1.msra.mxu0 0.0
  %2695 = vmatprep.subr.mxu0 0.0
  %2696 = vmatpush1.msra.mxu0 0.0
  %2697 = vmatprep.subr.mxu0 0.0
  %2698 = vmatpush1.msra.mxu0 0.0
  %2699 = vmatprep.subr.mxu0 0.0
  %2700 = vmatpush1.msra.mxu0 0.0
  %2701 = vmatprep.subr.mxu0 0.0
  %2702 = vmatpush1.msra.mxu0 0.0
  %2703 = vmatprep.subr.mxu0 0.0
  %2704 = vmatpush1.msra.mxu0 0.0
  %2705 = vmatprep.subr.mxu0 0.0
  %2706 = vmatpush1.msra.mxu0 0.0
  %2707 = vmatprep.mubr.f32.mxu0 0.0
  %2708 = vmatmul.mubr.f32.gmra.mrb[0].mxu0 %v2641
  %v2709 = vpop.f32.mrb[0].mxu0
  %v2710 = vadd.f32 0.0, %v2709
  %v2711 = vpop.f32.mrb[0].mxu0
  %2712 = vdwg.mxu0
  %v2714 = vrot.slane %v2710, 1
  %v2717 = vadd.f32 %v2538, %v2710
  %v2718 = vadd.f32 %v2543, %v2714
  %v2719 = vxor.u32 %v2717, 2147483648
  %v2720 = vxor.u32 %v2718, 2147483648
  %v2721 = vmul.f32 %v2719, 1.442695
  %v2722 = vpow.pop %v2721
  %v2723 = vmul.f32 %v2720, 1.442695
  %v2724 = vpow.pop %v2723
  %v2725 = vadd.f32 %v2722, 1.0
  %v2726 = vadd.f32 %v2724, 1.0
  %v2727 = vrcp.pop %v2725
  %v2728 = vmul.f32 1.0, %v2727
  %v2729 = vrcp.pop %v2726
  %v2730 = vmul.f32 1.0, %v2729
  %2735 = vrot.lane.b32.xlu0 %v2632, 96
  %v2736 = vpop.permute.xlu0 %2735
  %2737 = vrot.lane.b32.xlu0 %v2633, 96
  %v2738 = vpop.permute.xlu0 %2737
  %2739 = vrot.lane.b32.xlu0 %v2634, 96
  %v2740 = vpop.permute.xlu0 %2739
  %2741 = vrot.lane.b32.xlu0 %v2635, 96
  %v2742 = vpop.permute.xlu0 %2741
  %2747 = vmatprep.subr.mxu0 0.0
  %2748 = vmatpush1.msra.mxu0 %v2736
  %2749 = vmatprep.subr.mxu0 0.0
  %2750 = vmatpush1.msra.mxu0 %v2738
  %2751 = vmatprep.subr.mxu0 0.0
  %2752 = vmatpush1.msra.mxu0 %v2740
  %2753 = vmatprep.subr.mxu0 0.0
  %2754 = vmatpush1.msra.mxu0 %v2742
  %2755 = vmatprep.subr.mxu0 0.0
  %2756 = vmatpush1.msra.mxu0 0.0
  %2757 = vmatprep.subr.mxu0 0.0
  %2758 = vmatpush1.msra.mxu0 0.0
  %2759 = vmatprep.subr.mxu0 0.0
  %2760 = vmatpush1.msra.mxu0 0.0
  %2761 = vmatprep.subr.mxu0 0.0
  %2762 = vmatpush1.msra.mxu0 0.0
  %2763 = vmatprep.subr.mxu0 0.0
  %2764 = vmatpush1.msra.mxu0 0.0
  %2765 = vmatprep.subr.mxu0 0.0
  %2766 = vmatpush1.msra.mxu0 0.0
  %2767 = vmatprep.subr.mxu0 0.0
  %2768 = vmatpush1.msra.mxu0 0.0
  %2769 = vmatprep.subr.mxu0 0.0
  %2770 = vmatpush1.msra.mxu0 0.0
  %2771 = vmatprep.subr.mxu0 0.0
  %2772 = vmatpush1.msra.mxu0 0.0
  %2773 = vmatprep.subr.mxu0 0.0
  %2774 = vmatpush1.msra.mxu0 0.0
  %2775 = vmatprep.subr.mxu0 0.0
  %2776 = vmatpush1.msra.mxu0 0.0
  %2777 = vmatprep.subr.mxu0 0.0
  %2778 = vmatpush1.msra.mxu0 0.0
  %2779 = vmatprep.subr.mxu0 0.0
  %2780 = vmatpush1.msra.mxu0 0.0
  %2781 = vmatprep.subr.mxu0 0.0
  %2782 = vmatpush1.msra.mxu0 0.0
  %2783 = vmatprep.subr.mxu0 0.0
  %2784 = vmatpush1.msra.mxu0 0.0
  %2785 = vmatprep.subr.mxu0 0.0
  %2786 = vmatpush1.msra.mxu0 0.0
  %2787 = vmatprep.subr.mxu0 0.0
  %2788 = vmatpush1.msra.mxu0 0.0
  %2789 = vmatprep.subr.mxu0 0.0
  %2790 = vmatpush1.msra.mxu0 0.0
  %2791 = vmatprep.subr.mxu0 0.0
  %2792 = vmatpush1.msra.mxu0 0.0
  %2793 = vmatprep.subr.mxu0 0.0
  %2794 = vmatpush1.msra.mxu0 0.0
  %2795 = vmatprep.subr.mxu0 0.0
  %2796 = vmatpush1.msra.mxu0 0.0
  %2797 = vmatprep.subr.mxu0 0.0
  %2798 = vmatpush1.msra.mxu0 0.0
  %2799 = vmatprep.subr.mxu0 0.0
  %2800 = vmatpush1.msra.mxu0 0.0
  %2801 = vmatprep.subr.mxu0 0.0
  %2802 = vmatpush1.msra.mxu0 0.0
  %2803 = vmatprep.subr.mxu0 0.0
  %2804 = vmatpush1.msra.mxu0 0.0
  %2805 = vmatprep.subr.mxu0 0.0
  %2806 = vmatpush1.msra.mxu0 0.0
  %2807 = vmatprep.subr.mxu0 0.0
  %2808 = vmatpush1.msra.mxu0 0.0
  %2809 = vmatprep.subr.mxu0 0.0
  %2810 = vmatpush1.msra.mxu0 0.0
  %2811 = vmatprep.mubr.f32.mxu0 0.0
  %2812 = vmatmul.mubr.f32.gmra.mrb[0].mxu0 %v2641
  %v2813 = vpop.f32.mrb[0].mxu0
  %v2814 = vadd.f32 0.0, %v2813
  %v2815 = vpop.f32.mrb[0].mxu0
  %2816 = vdwg.mxu0
  %v2818 = vrot.slane %v2814, 1
  %2819 = vrot.lane.b32.xlu0 %v2814, 32
  %v2820 = vpop.permute.xlu0 %2819
  %2821 = vrot.lane.b32.xlu0 %v2818, 32
  %v2822 = vpop.permute.xlu0 %2821
  %v2825 = vadd.f32 %v2538, %v2820
  %v2826 = vadd.f32 %v2543, %v2822
  %v2827 = vxor.u32 %v2825, 2147483648
  %v2828 = vxor.u32 %v2826, 2147483648
  %v2829 = vmul.f32 %v2827, 1.442695
  %v2830 = vpow.pop %v2829
  %v2831 = vmul.f32 %v2828, 1.442695
  %v2832 = vpow.pop %v2831
  %v2833 = vadd.f32 %v2830, 1.0
  %v2834 = vadd.f32 %v2832, 1.0
  %v2835 = vrcp.pop %v2833
  %v2836 = vmul.f32 1.0, %v2835
  %v2837 = vrcp.pop %v2834
  %v2838 = vmul.f32 1.0, %v2837
  %2839 = vrot.lane.b32.xlu0 %v2632, 64
  %v2840 = vpop.permute.xlu0 %2839
  %2841 = vrot.lane.b32.xlu0 %v2633, 64
  %v2842 = vpop.permute.xlu0 %2841
  %2843 = vrot.lane.b32.xlu0 %v2634, 64
  %v2844 = vpop.permute.xlu0 %2843
  %2845 = vrot.lane.b32.xlu0 %v2635, 64
  %v2846 = vpop.permute.xlu0 %2845
  %2851 = vmatprep.subr.mxu0 0.0
  %2852 = vmatpush1.msra.mxu0 %v2840
  %2853 = vmatprep.subr.mxu0 0.0
  %2854 = vmatpush1.msra.mxu0 %v2842
  %2855 = vmatprep.subr.mxu0 0.0
  %2856 = vmatpush1.msra.mxu0 %v2844
  %2857 = vmatprep.subr.mxu0 0.0
  %2858 = vmatpush1.msra.mxu0 %v2846
  %2859 = vmatprep.subr.mxu0 0.0
  %2860 = vmatpush1.msra.mxu0 0.0
  %2861 = vmatprep.subr.mxu0 0.0
  %2862 = vmatpush1.msra.mxu0 0.0
  %2863 = vmatprep.subr.mxu0 0.0
  %2864 = vmatpush1.msra.mxu0 0.0
  %2865 = vmatprep.subr.mxu0 0.0
  %2866 = vmatpush1.msra.mxu0 0.0
  %2867 = vmatprep.subr.mxu0 0.0
  %2868 = vmatpush1.msra.mxu0 0.0
  %2869 = vmatprep.subr.mxu0 0.0
  %2870 = vmatpush1.msra.mxu0 0.0
  %2871 = vmatprep.subr.mxu0 0.0
  %2872 = vmatpush1.msra.mxu0 0.0
  %2873 = vmatprep.subr.mxu0 0.0
  %2874 = vmatpush1.msra.mxu0 0.0
  %2875 = vmatprep.subr.mxu0 0.0
  %2876 = vmatpush1.msra.mxu0 0.0
  %2877 = vmatprep.subr.mxu0 0.0
  %2878 = vmatpush1.msra.mxu0 0.0
  %2879 = vmatprep.subr.mxu0 0.0
  %2880 = vmatpush1.msra.mxu0 0.0
  %2881 = vmatprep.subr.mxu0 0.0
  %2882 = vmatpush1.msra.mxu0 0.0
  %2883 = vmatprep.subr.mxu0 0.0
  %2884 = vmatpush1.msra.mxu0 0.0
  %2885 = vmatprep.subr.mxu0 0.0
  %2886 = vmatpush1.msra.mxu0 0.0
  %2887 = vmatprep.subr.mxu0 0.0
  %2888 = vmatpush1.msra.mxu0 0.0
  %2889 = vmatprep.subr.mxu0 0.0
  %2890 = vmatpush1.msra.mxu0 0.0
  %2891 = vmatprep.subr.mxu0 0.0
  %2892 = vmatpush1.msra.mxu0 0.0
  %2893 = vmatprep.subr.mxu0 0.0
  %2894 = vmatpush1.msra.mxu0 0.0
  %2895 = vmatprep.subr.mxu0 0.0
  %2896 = vmatpush1.msra.mxu0 0.0
  %2897 = vmatprep.subr.mxu0 0.0
  %2898 = vmatpush1.msra.mxu0 0.0
  %2899 = vmatprep.subr.mxu0 0.0
  %2900 = vmatpush1.msra.mxu0 0.0
  %2901 = vmatprep.subr.mxu0 0.0
  %2902 = vmatpush1.msra.mxu0 0.0
  %2903 = vmatprep.subr.mxu0 0.0
  %2904 = vmatpush1.msra.mxu0 0.0
  %2905 = vmatprep.subr.mxu0 0.0
  %2906 = vmatpush1.msra.mxu0 0.0
  %2907 = vmatprep.subr.mxu0 0.0
  %2908 = vmatpush1.msra.mxu0 0.0
  %2909 = vmatprep.subr.mxu0 0.0
  %2910 = vmatpush1.msra.mxu0 0.0
  %2911 = vmatprep.subr.mxu0 0.0
  %2912 = vmatpush1.msra.mxu0 0.0
  %2913 = vmatprep.subr.mxu0 0.0
  %2914 = vmatpush1.msra.mxu0 0.0
  %2915 = vmatprep.mubr.f32.mxu0 0.0
  %2916 = vmatmul.mubr.f32.gmra.mrb[0].mxu0 %v2641
  %v2917 = vpop.f32.mrb[0].mxu0
  %v2918 = vadd.f32 0.0, %v2917
  %v2919 = vpop.f32.mrb[0].mxu0
  %2920 = vdwg.mxu0
  %v2922 = vrot.slane %v2918, 1
  %2923 = vrot.lane.b32.xlu0 %v2918, 64
  %v2924 = vpop.permute.xlu0 %2923
  %2925 = vrot.lane.b32.xlu0 %v2922, 64
  %v2926 = vpop.permute.xlu0 %2925
  %v2929 = vadd.f32 %v2538, %v2924
  %v2930 = vadd.f32 %v2543, %v2926
  %v2931 = vtanh.pop %v2929
  %v2932 = vtanh.pop %v2930
  %2933 = vrot.lane.b32.xlu0 %v2632, 32
  %v2934 = vpop.permute.xlu0 %2933
  %2935 = vrot.lane.b32.xlu0 %v2633, 32
  %v2936 = vpop.permute.xlu0 %2935
  %2937 = vrot.lane.b32.xlu0 %v2634, 32
  %v2938 = vpop.permute.xlu0 %2937
  %2939 = vrot.lane.b32.xlu0 %v2635, 32
  %v2940 = vpop.permute.xlu0 %2939
  %2945 = vmatprep.subr.mxu0 0.0
  %2946 = vmatpush1.msra.mxu0 %v2934
  %2947 = vmatprep.subr.mxu0 0.0
  %2948 = vmatpush1.msra.mxu0 %v2936
  %2949 = vmatprep.subr.mxu0 0.0
  %2950 = vmatpush1.msra.mxu0 %v2938
  %2951 = vmatprep.subr.mxu0 0.0
  %2952 = vmatpush1.msra.mxu0 %v2940
  %2953 = vmatprep.subr.mxu0 0.0
  %2954 = vmatpush1.msra.mxu0 0.0
  %2955 = vmatprep.subr.mxu0 0.0
  %2956 = vmatpush1.msra.mxu0 0.0
  %2957 = vmatprep.subr.mxu0 0.0
  %2958 = vmatpush1.msra.mxu0 0.0
  %2959 = vmatprep.subr.mxu0 0.0
  %2960 = vmatpush1.msra.mxu0 0.0
  %2961 = vmatprep.subr.mxu0 0.0
  %2962 = vmatpush1.msra.mxu0 0.0
  %2963 = vmatprep.subr.mxu0 0.0
  %2964 = vmatpush1.msra.mxu0 0.0
  %2965 = vmatprep.subr.mxu0 0.0
  %2966 = vmatpush1.msra.mxu0 0.0
  %2967 = vmatprep.subr.mxu0 0.0
  %2968 = vmatpush1.msra.mxu0 0.0
  %2969 = vmatprep.subr.mxu0 0.0
  %2970 = vmatpush1.msra.mxu0 0.0
  %2971 = vmatprep.subr.mxu0 0.0
  %2972 = vmatpush1.msra.mxu0 0.0
  %2973 = vmatprep.subr.mxu0 0.0
  %2974 = vmatpush1.msra.mxu0 0.0
  %2975 = vmatprep.subr.mxu0 0.0
  %2976 = vmatpush1.msra.mxu0 0.0
  %2977 = vmatprep.subr.mxu0 0.0
  %2978 = vmatpush1.msra.mxu0 0.0
  %2979 = vmatprep.subr.mxu0 0.0
  %2980 = vmatpush1.msra.mxu0 0.0
  %2981 = vmatprep.subr.mxu0 0.0
  %2982 = vmatpush1.msra.mxu0 0.0
  %2983 = vmatprep.subr.mxu0 0.0
  %2984 = vmatpush1.msra.mxu0 0.0
  %2985 = vmatprep.subr.mxu0 0.0
  %2986 = vmatpush1.msra.mxu0 0.0
  %2987 = vmatprep.subr.mxu0 0.0
  %2988 = vmatpush1.msra.mxu0 0.0
  %2989 = vmatprep.subr.mxu0 0.0
  %2990 = vmatpush1.msra.mxu0 0.0
  %2991 = vmatprep.subr.mxu0 0.0
  %2992 = vmatpush1.msra.mxu0 0.0
  %2993 = vmatprep.subr.mxu0 0.0
  %2994 = vmatpush1.msra.mxu0 0.0
  %2995 = vmatprep.subr.mxu0 0.0
  %2996 = vmatpush1.msra.mxu0 0.0
  %2997 = vmatprep.subr.mxu0 0.0
  %2998 = vmatpush1.msra.mxu0 0.0
  %2999 = vmatprep.subr.mxu0 0.0
  %3000 = vmatpush1.msra.mxu0 0.0
  %3001 = vmatprep.subr.mxu0 0.0
  %3002 = vmatpush1.msra.mxu0 0.0
  %3003 = vmatprep.subr.mxu0 0.0
  %3004 = vmatpush1.msra.mxu0 0.0
  %3005 = vmatprep.subr.mxu0 0.0
  %3006 = vmatpush1.msra.mxu0 0.0
  %3007 = vmatprep.subr.mxu0 0.0
  %3008 = vmatpush1.msra.mxu0 0.0
  %3009 = vmatprep.mubr.f32.mxu0 0.0
  %3010 = vmatmul.mubr.f32.gmra.mrb[0].mxu0 %v2641
  %v3011 = vpop.f32.mrb[0].mxu0
  %v3012 = vadd.f32 0.0, %v3011
  %v3013 = vpop.f32.mrb[0].mxu0
  %3014 = vdwg.mxu0
  %v3016 = vrot.slane %v3012, 1
  %3017 = vrot.lane.b32.xlu0 %v3012, 96
  %v3018 = vpop.permute.xlu0 %3017
  %3019 = vrot.lane.b32.xlu0 %v3016, 96
  %v3020 = vpop.permute.xlu0 %3019
  %v3023 = vadd.f32 %v2538, %v3018
  %v3024 = vadd.f32 %v2543, %v3020
  %v3025 = vxor.u32 %v3023, 2147483648
  %v3026 = vxor.u32 %v3024, 2147483648
  %v3027 = vmul.f32 %v3025, 1.442695
  %v3028 = vpow.pop %v3027
  %v3029 = vmul.f32 %v3026, 1.442695
  %v3030 = vpow.pop %v3029
  %v3031 = vadd.f32 %v3028, 1.0
  %v3032 = vadd.f32 %v3030, 1.0
  %v3033 = vrcp.pop %v3031
  %v3034 = vmul.f32 1.0, %v3033
  %v3035 = vrcp.pop %v3032
  %v3036 = vmul.f32 1.0, %v3035
  %v3037 = vmul.f32 %v2836, 0.0
  %v3038 = vmul.f32 %v2838, 0.0
  %3041 = vrot.lane.b32.xlu0 %v2931, 64
  %v3042 = vpop.permute.xlu0 %3041
  %3043 = vrot.lane.b32.xlu0 %v2932, 64
  %v3044 = vpop.permute.xlu0 %3043
  %v3047 = vmul.f32 %v2728, %v3042
  %v3048 = vmul.f32 %v2730, %v3044
  %3051 = vrot.lane.b32.xlu0 %v3047, 32
  %v3052 = vpop.permute.xlu0 %3051
  %3053 = vrot.lane.b32.xlu0 %v3048, 32
  %v3054 = vpop.permute.xlu0 %3053
  %v3057 = vadd.f32 %v3037, %v3052
  %v3058 = vadd.f32 %v3038, %v3054
  %v3059 = vtanh.pop %v3057
  %v3060 = vtanh.pop %v3058
  %3063 = vrot.lane.b32.xlu0 %v3059, 64
  %v3064 = vpop.permute.xlu0 %3063
  %3065 = vrot.lane.b32.xlu0 %v3060, 64
  %v3066 = vpop.permute.xlu0 %3065
  %v3069 = vmul.f32 %v3034, %v3064
  %v3070 = vmul.f32 %v3036, %v3066
  %3071 = vmatprep.subr.mxu0 0.0
  %3072 = vmatpush1.msra.mxu0 %v2636
  %3073 = vmatprep.subr.mxu0 0.0
  %3074 = vmatpush1.msra.mxu0 %v2637
  %3075 = vmatprep.subr.mxu0 0.0
  %3076 = vmatpush1.msra.mxu0 %v2638
  %3077 = vmatprep.subr.mxu0 0.0
  %3078 = vmatpush1.msra.mxu0 %v2639
  %3079 = vmatprep.subr.mxu0 0.0
  %3080 = vmatpush1.msra.mxu0 0.0
  %3081 = vmatprep.subr.mxu0 0.0
  %3082 = vmatpush1.msra.mxu0 0.0
  %3083 = vmatprep.subr.mxu0 0.0
  %3084 = vmatpush1.msra.mxu0 0.0
  %3085 = vmatprep.subr.mxu0 0.0
  %3086 = vmatpush1.msra.mxu0 0.0
  %3087 = vmatprep.subr.mxu0 0.0
  %3088 = vmatpush1.msra.mxu0 0.0
  %3089 = vmatprep.subr.mxu0 0.0
  %3090 = vmatpush1.msra.mxu0 0.0
  %3091 = vmatprep.subr.mxu0 0.0
  %3092 = vmatpush1.msra.mxu0 0.0
  %3093 = vmatprep.subr.mxu0 0.0
  %3094 = vmatpush1.msra.mxu0 0.0
  %3095 = vmatprep.subr.mxu0 0.0
  %3096 = vmatpush1.msra.mxu0 0.0
  %3097 = vmatprep.subr.mxu0 0.0
  %3098 = vmatpush1.msra.mxu0 0.0
  %3099 = vmatprep.subr.mxu0 0.0
  %3100 = vmatpush1.msra.mxu0 0.0
  %3101 = vmatprep.subr.mxu0 0.0
  %3102 = vmatpush1.msra.mxu0 0.0
  %3103 = vmatprep.subr.mxu0 0.0
  %3104 = vmatpush1.msra.mxu0 0.0
  %3105 = vmatprep.subr.mxu0 0.0
  %3106 = vmatpush1.msra.mxu0 0.0
  %3107 = vmatprep.subr.mxu0 0.0
  %3108 = vmatpush1.msra.mxu0 0.0
  %3109 = vmatprep.subr.mxu0 0.0
  %3110 = vmatpush1.msra.mxu0 0.0
  %3111 = vmatprep.subr.mxu0 0.0
  %3112 = vmatpush1.msra.mxu0 0.0
  %3113 = vmatprep.subr.mxu0 0.0
  %3114 = vmatpush1.msra.mxu0 0.0
  %3115 = vmatprep.subr.mxu0 0.0
  %3116 = vmatpush1.msra.mxu0 0.0
  %3117 = vmatprep.subr.mxu0 0.0
  %3118 = vmatpush1.msra.mxu0 0.0
  %3119 = vmatprep.subr.mxu0 0.0
  %3120 = vmatpush1.msra.mxu0 0.0
  %3121 = vmatprep.subr.mxu0 0.0
  %3122 = vmatpush1.msra.mxu0 0.0
  %3123 = vmatprep.subr.mxu0 0.0
  %3124 = vmatpush1.msra.mxu0 0.0
  %3125 = vmatprep.subr.mxu0 0.0
  %3126 = vmatpush1.msra.mxu0 0.0
  %3127 = vmatprep.subr.mxu0 0.0
  %3128 = vmatpush1.msra.mxu0 0.0
  %3129 = vmatprep.subr.mxu0 0.0
  %3130 = vmatpush1.msra.mxu0 0.0
  %3131 = vmatprep.subr.mxu0 0.0
  %3132 = vmatpush1.msra.mxu0 0.0
  %3133 = vmatprep.subr.mxu0 0.0
  %3134 = vmatpush1.msra.mxu0 0.0
  %3135 = vmatprep.mubr.f32.mxu0 0.0
  %3136 = vmatmul.mubr.f32.gmra.mrb[0].mxu0 %v2641
  %v3137 = vpop.f32.mrb[0].mxu0
  %v3138 = vadd.f32 0.0, %v3137
  %v3139 = vpop.f32.mrb[0].mxu0
  %3140 = vdwg.mxu0
  %v3142 = vrot.slane %v3138, 1
  %v3143 = vrot.slane %v3138, 2
  %v3146 = vadd.f32 %v2624, %v3142
  %v3147 = vadd.f32 %v2629, %v3143
  %v3148 = vxor.u32 %v3146, 2147483648
  %v3149 = vxor.u32 %v3147, 2147483648
  %v3150 = vmul.f32 %v3148, 1.442695
  %v3151 = vpow.pop %v3150
  %v3152 = vmul.f32 %v3149, 1.442695
  %v3153 = vpow.pop %v3152
  %v3154 = vadd.f32 %v3151, 1.0
  %v3155 = vadd.f32 %v3153, 1.0
  %v3156 = vrcp.pop %v3154
  %v3157 = vmul.f32 1.0, %v3156
  %v3158 = vrcp.pop %v3155
  %v3159 = vmul.f32 1.0, %v3158
  %3164 = vrot.lane.b32.xlu0 %v2636, 96
  %v3165 = vpop.permute.xlu0 %3164
  %3166 = vrot.lane.b32.xlu0 %v2637, 96
  %v3167 = vpop.permute.xlu0 %3166
  %3168 = vrot.lane.b32.xlu0 %v2638, 96
  %v3169 = vpop.permute.xlu0 %3168
  %3170 = vrot.lane.b32.xlu0 %v2639, 96
  %v3171 = vpop.permute.xlu0 %3170
  %3176 = vmatprep.subr.mxu0 0.0
  %3177 = vmatpush1.msra.mxu0 %v3165
  %3178 = vmatprep.subr.mxu0 0.0
  %3179 = vmatpush1.msra.mxu0 %v3167
  %3180 = vmatprep.subr.mxu0 0.0
  %3181 = vmatpush1.msra.mxu0 %v3169
  %3182 = vmatprep.subr.mxu0 0.0
  %3183 = vmatpush1.msra.mxu0 %v3171
  %3184 = vmatprep.subr.mxu0 0.0
  %3185 = vmatpush1.msra.mxu0 0.0
  %3186 = vmatprep.subr.mxu0 0.0
  %3187 = vmatpush1.msra.mxu0 0.0
  %3188 = vmatprep.subr.mxu0 0.0
  %3189 = vmatpush1.msra.mxu0 0.0
  %3190 = vmatprep.subr.mxu0 0.0
  %3191 = vmatpush1.msra.mxu0 0.0
  %3192 = vmatprep.subr.mxu0 0.0
  %3193 = vmatpush1.msra.mxu0 0.0
  %3194 = vmatprep.subr.mxu0 0.0
  %3195 = vmatpush1.msra.mxu0 0.0
  %3196 = vmatprep.subr.mxu0 0.0
  %3197 = vmatpush1.msra.mxu0 0.0
  %3198 = vmatprep.subr.mxu0 0.0
  %3199 = vmatpush1.msra.mxu0 0.0
  %3200 = vmatprep.subr.mxu0 0.0
  %3201 = vmatpush1.msra.mxu0 0.0
  %3202 = vmatprep.subr.mxu0 0.0
  %3203 = vmatpush1.msra.mxu0 0.0
  %3204 = vmatprep.subr.mxu0 0.0
  %3205 = vmatpush1.msra.mxu0 0.0
  %3206 = vmatprep.subr.mxu0 0.0
  %3207 = vmatpush1.msra.mxu0 0.0
  %3208 = vmatprep.subr.mxu0 0.0
  %3209 = vmatpush1.msra.mxu0 0.0
  %3210 = vmatprep.subr.mxu0 0.0
  %3211 = vmatpush1.msra.mxu0 0.0
  %3212 = vmatprep.subr.mxu0 0.0
  %3213 = vmatpush1.msra.mxu0 0.0
  %3214 = vmatprep.subr.mxu0 0.0
  %3215 = vmatpush1.msra.mxu0 0.0
  %3216 = vmatprep.subr.mxu0 0.0
  %3217 = vmatpush1.msra.mxu0 0.0
  %3218 = vmatprep.subr.mxu0 0.0
  %3219 = vmatpush1.msra.mxu0 0.0
  %3220 = vmatprep.subr.mxu0 0.0
  %3221 = vmatpush1.msra.mxu0 0.0
  %3222 = vmatprep.subr.mxu0 0.0
  %3223 = vmatpush1.msra.mxu0 0.0
  %3224 = vmatprep.subr.mxu0 0.0
  %3225 = vmatpush1.msra.mxu0 0.0
  %3226 = vmatprep.subr.mxu0 0.0
  %3227 = vmatpush1.msra.mxu0 0.0
  %3228 = vmatprep.subr.mxu0 0.0
  %3229 = vmatpush1.msra.mxu0 0.0
  %3230 = vmatprep.subr.mxu0 0.0
  %3231 = vmatpush1.msra.mxu0 0.0
  %3232 = vmatprep.subr.mxu0 0.0
  %3233 = vmatpush1.msra.mxu0 0.0
  %3234 = vmatprep.subr.mxu0 0.0
  %3235 = vmatpush1.msra.mxu0 0.0
  %3236 = vmatprep.subr.mxu0 0.0
  %3237 = vmatpush1.msra.mxu0 0.0
  %3238 = vmatprep.subr.mxu0 0.0
  %3239 = vmatpush1.msra.mxu0 0.0
  %3240 = vmatprep.mubr.f32.mxu0 0.0
  %3241 = vmatmul.mubr.f32.gmra.mrb[0].mxu0 %v2641
  %v3242 = vpop.f32.mrb[0].mxu0
  %v3243 = vadd.f32 0.0, %v3242
  %v3244 = vpop.f32.mrb[0].mxu0
  %3245 = vdwg.mxu0
  %v3247 = vrot.slane %v3243, 1
  %v3248 = vrot.slane %v3243, 2
  %3249 = vrot.lane.b32.xlu0 %v3247, 32
  %v3250 = vpop.permute.xlu0 %3249
  %3251 = vrot.lane.b32.xlu0 %v3248, 32
  %v3252 = vpop.permute.xlu0 %3251
  %v3255 = vadd.f32 %v2624, %v3250
  %v3256 = vadd.f32 %v2629, %v3252
  %v3257 = vxor.u32 %v3255, 2147483648
  %v3258 = vxor.u32 %v3256, 2147483648
  %v3259 = vmul.f32 %v3257, 1.442695
  %v3260 = vpow.pop %v3259
  %v3261 = vmul.f32 %v3258, 1.442695
  %v3262 = vpow.pop %v3261
  %v3263 = vadd.f32 %v3260, 1.0
  %v3264 = vadd.f32 %v3262, 1.0
  %v3265 = vrcp.pop %v3263
  %v3266 = vmul.f32 1.0, %v3265
  %v3267 = vrcp.pop %v3264
  %v3268 = vmul.f32 1.0, %v3267
  %3269 = vrot.lane.b32.xlu0 %v2636, 64
  %v3270 = vpop.permute.xlu0 %3269
  %3271 = vrot.lane.b32.xlu0 %v2637, 64
  %v3272 = vpop.permute.xlu0 %3271
  %3273 = vrot.lane.b32.xlu0 %v2638, 64
  %v3274 = vpop.permute.xlu0 %3273
  %3275 = vrot.lane.b32.xlu0 %v2639, 64
  %v3276 = vpop.permute.xlu0 %3275
  %3281 = vmatprep.subr.mxu0 0.0
  %3282 = vmatpush1.msra.mxu0 %v3270
  %3283 = vmatprep.subr.mxu0 0.0
  %3284 = vmatpush1.msra.mxu0 %v3272
  %3285 = vmatprep.subr.mxu0 0.0
  %3286 = vmatpush1.msra.mxu0 %v3274
  %3287 = vmatprep.subr.mxu0 0.0
  %3288 = vmatpush1.msra.mxu0 %v3276
  %3289 = vmatprep.subr.mxu0 0.0
  %3290 = vmatpush1.msra.mxu0 0.0
  %3291 = vmatprep.subr.mxu0 0.0
  %3292 = vmatpush1.msra.mxu0 0.0
  %3293 = vmatprep.subr.mxu0 0.0
  %3294 = vmatpush1.msra.mxu0 0.0
  %3295 = vmatprep.subr.mxu0 0.0
  %3296 = vmatpush1.msra.mxu0 0.0
  %3297 = vmatprep.subr.mxu0 0.0
  %3298 = vmatpush1.msra.mxu0 0.0
  %3299 = vmatprep.subr.mxu0 0.0
  %3300 = vmatpush1.msra.mxu0 0.0
  %3301 = vmatprep.subr.mxu0 0.0
  %3302 = vmatpush1.msra.mxu0 0.0
  %3303 = vmatprep.subr.mxu0 0.0
  %3304 = vmatpush1.msra.mxu0 0.0
  %3305 = vmatprep.subr.mxu0 0.0
  %3306 = vmatpush1.msra.mxu0 0.0
  %3307 = vmatprep.subr.mxu0 0.0
  %3308 = vmatpush1.msra.mxu0 0.0
  %3309 = vmatprep.subr.mxu0 0.0
  %3310 = vmatpush1.msra.mxu0 0.0
  %3311 = vmatprep.subr.mxu0 0.0
  %3312 = vmatpush1.msra.mxu0 0.0
  %3313 = vmatprep.subr.mxu0 0.0
  %3314 = vmatpush1.msra.mxu0 0.0
  %3315 = vmatprep.subr.mxu0 0.0
  %3316 = vmatpush1.msra.mxu0 0.0
  %3317 = vmatprep.subr.mxu0 0.0
  %3318 = vmatpush1.msra.mxu0 0.0
  %3319 = vmatprep.subr.mxu0 0.0
  %3320 = vmatpush1.msra.mxu0 0.0
  %3321 = vmatprep.subr.mxu0 0.0
  %3322 = vmatpush1.msra.mxu0 0.0
  %3323 = vmatprep.subr.mxu0 0.0
  %3324 = vmatpush1.msra.mxu0 0.0
  %3325 = vmatprep.subr.mxu0 0.0
  %3326 = vmatpush1.msra.mxu0 0.0
  %3327 = vmatprep.subr.mxu0 0.0
  %3328 = vmatpush1.msra.mxu0 0.0
  %3329 = vmatprep.subr.mxu0 0.0
  %3330 = vmatpush1.msra.mxu0 0.0
  %3331 = vmatprep.subr.mxu0 0.0
  %3332 = vmatpush1.msra.mxu0 0.0
  %3333 = vmatprep.subr.mxu0 0.0
  %3334 = vmatpush1.msra.mxu0 0.0
  %3335 = vmatprep.subr.mxu0 0.0
  %3336 = vmatpush1.msra.mxu0 0.0
  %3337 = vmatprep.subr.mxu0 0.0
  %3338 = vmatpush1.msra.mxu0 0.0
  %3339 = vmatprep.subr.mxu0 0.0
  %3340 = vmatpush1.msra.mxu0 0.0
  %3341 = vmatprep.subr.mxu0 0.0
  %3342 = vmatpush1.msra.mxu0 0.0
  %3343 = vmatprep.subr.mxu0 0.0
  %3344 = vmatpush1.msra.mxu0 0.0
  %3345 = vmatprep.mubr.f32.mxu0 0.0
  %3346 = vmatmul.mubr.f32.gmra.mrb[0].mxu0 %v2641
  %v3347 = vpop.f32.mrb[0].mxu0
  %v3348 = vadd.f32 0.0, %v3347
  %v3349 = vpop.f32.mrb[0].mxu0
  %3350 = vdwg.mxu0
  %v3352 = vrot.slane %v3348, 1
  %v3353 = vrot.slane %v3348, 2
  %3354 = vrot.lane.b32.xlu0 %v3352, 64
  %v3355 = vpop.permute.xlu0 %3354
  %3356 = vrot.lane.b32.xlu0 %v3353, 64
  %v3357 = vpop.permute.xlu0 %3356
  %v3360 = vadd.f32 %v2624, %v3355
  %v3361 = vadd.f32 %v2629, %v3357
  %v3362 = vtanh.pop %v3360
  %v3363 = vtanh.pop %v3361
  %3364 = vrot.lane.b32.xlu0 %v2636, 32
  %v3365 = vpop.permute.xlu0 %3364
  %3366 = vrot.lane.b32.xlu0 %v2637, 32
  %v3367 = vpop.permute.xlu0 %3366
  %3368 = vrot.lane.b32.xlu0 %v2638, 32
  %v3369 = vpop.permute.xlu0 %3368
  %3370 = vrot.lane.b32.xlu0 %v2639, 32
  %v3371 = vpop.permute.xlu0 %3370
  %3376 = vmatprep.subr.mxu0 0.0
  %3377 = vmatpush1.msra.mxu0 %v3365
  %3378 = vmatprep.subr.mxu0 0.0
  %3379 = vmatpush1.msra.mxu0 %v3367
  %3380 = vmatprep.subr.mxu0 0.0
  %3381 = vmatpush1.msra.mxu0 %v3369
  %3382 = vmatprep.subr.mxu0 0.0
  %3383 = vmatpush1.msra.mxu0 %v3371
  %3384 = vmatprep.subr.mxu0 0.0
  %3385 = vmatpush1.msra.mxu0 0.0
  %3386 = vmatprep.subr.mxu0 0.0
  %3387 = vmatpush1.msra.mxu0 0.0
  %3388 = vmatprep.subr.mxu0 0.0
  %3389 = vmatpush1.msra.mxu0 0.0
  %3390 = vmatprep.subr.mxu0 0.0
  %3391 = vmatpush1.msra.mxu0 0.0
  %3392 = vmatprep.subr.mxu0 0.0
  %3393 = vmatpush1.msra.mxu0 0.0
  %3394 = vmatprep.subr.mxu0 0.0
  %3395 = vmatpush1.msra.mxu0 0.0
  %3396 = vmatprep.subr.mxu0 0.0
  %3397 = vmatpush1.msra.mxu0 0.0
  %3398 = vmatprep.subr.mxu0 0.0
  %3399 = vmatpush1.msra.mxu0 0.0
  %3400 = vmatprep.subr.mxu0 0.0
  %3401 = vmatpush1.msra.mxu0 0.0
  %3402 = vmatprep.subr.mxu0 0.0
  %3403 = vmatpush1.msra.mxu0 0.0
  %3404 = vmatprep.subr.mxu0 0.0
  %3405 = vmatpush1.msra.mxu0 0.0
  %3406 = vmatprep.subr.mxu0 0.0
  %3407 = vmatpush1.msra.mxu0 0.0
  %3408 = vmatprep.subr.mxu0 0.0
  %3409 = vmatpush1.msra.mxu0 0.0
  %3410 = vmatprep.subr.mxu0 0.0
  %3411 = vmatpush1.msra.mxu0 0.0
  %3412 = vmatprep.subr.mxu0 0.0
  %3413 = vmatpush1.msra.mxu0 0.0
  %3414 = vmatprep.subr.mxu0 0.0
  %3415 = vmatpush1.msra.mxu0 0.0
  %3416 = vmatprep.subr.mxu0 0.0
  %3417 = vmatpush1.msra.mxu0 0.0
  %3418 = vmatprep.subr.mxu0 0.0
  %3419 = vmatpush1.msra.mxu0 0.0
  %3420 = vmatprep.subr.mxu0 0.0
  %3421 = vmatpush1.msra.mxu0 0.0
  %3422 = vmatprep.subr.mxu0 0.0
  %3423 = vmatpush1.msra.mxu0 0.0
  %3424 = vmatprep.subr.mxu0 0.0
  %3425 = vmatpush1.msra.mxu0 0.0
  %3426 = vmatprep.subr.mxu0 0.0
  %3427 = vmatpush1.msra.mxu0 0.0
  %3428 = vmatprep.subr.mxu0 0.0
  %3429 = vmatpush1.msra.mxu0 0.0
  %3430 = vmatprep.subr.mxu0 0.0
  %3431 = vmatpush1.msra.mxu0 0.0
  %3432 = vmatprep.subr.mxu0 0.0
  %3433 = vmatpush1.msra.mxu0 0.0
  %3434 = vmatprep.subr.mxu0 0.0
  %3435 = vmatpush1.msra.mxu0 0.0
  %3436 = vmatprep.subr.mxu0 0.0
  %3437 = vmatpush1.msra.mxu0 0.0
  %3438 = vmatprep.subr.mxu0 0.0
  %3439 = vmatpush1.msra.mxu0 0.0
  %3440 = vmatprep.mubr.f32.mxu0 0.0
  %3441 = vmatmul.mubr.f32.gmra.mrb[0].mxu0 %v2641
  %v3442 = vpop.f32.mrb[0].mxu0
  %v3443 = vadd.f32 0.0, %v3442
  %v3444 = vpop.f32.mrb[0].mxu0
  %3445 = vdwg.mxu0
  %v3447 = vrot.slane %v3443, 1
  %v3448 = vrot.slane %v3443, 2
  %3449 = vrot.lane.b32.xlu0 %v3447, 96
  %v3450 = vpop.permute.xlu0 %3449
  %3451 = vrot.lane.b32.xlu0 %v3448, 96
  %v3452 = vpop.permute.xlu0 %3451
  %v3455 = vadd.f32 %v2624, %v3450
  %v3456 = vadd.f32 %v2629, %v3452
  %v3457 = vxor.u32 %v3455, 2147483648
  %v3458 = vxor.u32 %v3456, 2147483648
  %v3459 = vmul.f32 %v3457, 1.442695
  %v3460 = vpow.pop %v3459
  %v3461 = vmul.f32 %v3458, 1.442695
  %v3462 = vpow.pop %v3461
  %v3463 = vadd.f32 %v3460, 1.0
  %v3464 = vadd.f32 %v3462, 1.0
  %v3465 = vrcp.pop %v3463
  %v3466 = vmul.f32 1.0, %v3465
  %v3467 = vrcp.pop %v3464
  %v3468 = vmul.f32 1.0, %v3467
  %v3469 = vmul.f32 %v3266, 0.0
  %v3470 = vmul.f32 %v3268, 0.0
  %3473 = vrot.lane.b32.xlu0 %v3362, 64
  %v3474 = vpop.permute.xlu0 %3473
  %3475 = vrot.lane.b32.xlu0 %v3363, 64
  %v3476 = vpop.permute.xlu0 %3475
  %v3479 = vmul.f32 %v3157, %v3474
  %v3480 = vmul.f32 %v3159, %v3476
  %3483 = vrot.lane.b32.xlu0 %v3479, 32
  %v3484 = vpop.permute.xlu0 %3483
  %3485 = vrot.lane.b32.xlu0 %v3480, 32
  %v3486 = vpop.permute.xlu0 %3485
  %v3489 = vadd.f32 %v3469, %v3484
  %v3490 = vadd.f32 %v3470, %v3486
  %v3491 = vtanh.pop %v3489
  %v3492 = vtanh.pop %v3490
  %3495 = vrot.lane.b32.xlu0 %v3491, 64
  %v3496 = vpop.permute.xlu0 %3495
  %3497 = vrot.lane.b32.xlu0 %v3492, 64
  %v3498 = vpop.permute.xlu0 %3497
  %v3501 = vmul.f32 %v3466, %v3496
  %v3502 = vmul.f32 %v3468, %v3498
  %v3505 = vrot.slane %v3070, 7
  %vm3506 = vcmask 1041409
  %v3507 = vsel %vm3506, %v3505, %v3069
  %3508 = vrot.lane.b32.xlu0 %v3507, 32
  %v3509 = vpop.permute.xlu0 %3508
  %v3510 = vsel %vm84, %v3509, 0
  %3512 = vmatprep.subr.mxu0 0.0
  %3513 = vmatpush1.msra.mxu0 %v2632
  %3514 = vmatprep.subr.mxu0 0.0
  %3515 = vmatpush1.msra.mxu0 %v2633
  %3516 = vmatprep.subr.mxu0 0.0
  %3517 = vmatpush1.msra.mxu0 %v2634
  %3518 = vmatprep.subr.mxu0 0.0
  %3519 = vmatpush1.msra.mxu0 %v2635
  %3520 = vmatprep.subr.mxu0 0.0
  %3521 = vmatpush1.msra.mxu0 0.0
  %3522 = vmatprep.subr.mxu0 0.0
  %3523 = vmatpush1.msra.mxu0 0.0
  %3524 = vmatprep.subr.mxu0 0.0
  %3525 = vmatpush1.msra.mxu0 0.0
  %3526 = vmatprep.subr.mxu0 0.0
  %3527 = vmatpush1.msra.mxu0 0.0
  %3528 = vmatprep.subr.mxu0 0.0
  %3529 = vmatpush1.msra.mxu0 0.0
  %3530 = vmatprep.subr.mxu0 0.0
  %3531 = vmatpush1.msra.mxu0 0.0
  %3532 = vmatprep.subr.mxu0 0.0
  %3533 = vmatpush1.msra.mxu0 0.0
  %3534 = vmatprep.subr.mxu0 0.0
  %3535 = vmatpush1.msra.mxu0 0.0
  %3536 = vmatprep.subr.mxu0 0.0
  %3537 = vmatpush1.msra.mxu0 0.0
  %3538 = vmatprep.subr.mxu0 0.0
  %3539 = vmatpush1.msra.mxu0 0.0
  %3540 = vmatprep.subr.mxu0 0.0
  %3541 = vmatpush1.msra.mxu0 0.0
  %3542 = vmatprep.subr.mxu0 0.0
  %3543 = vmatpush1.msra.mxu0 0.0
  %3544 = vmatprep.subr.mxu0 0.0
  %3545 = vmatpush1.msra.mxu0 0.0
  %3546 = vmatprep.subr.mxu0 0.0
  %3547 = vmatpush1.msra.mxu0 0.0
  %3548 = vmatprep.subr.mxu0 0.0
  %3549 = vmatpush1.msra.mxu0 0.0
  %3550 = vmatprep.subr.mxu0 0.0
  %3551 = vmatpush1.msra.mxu0 0.0
  %3552 = vmatprep.subr.mxu0 0.0
  %3553 = vmatpush1.msra.mxu0 0.0
  %3554 = vmatprep.subr.mxu0 0.0
  %3555 = vmatpush1.msra.mxu0 0.0
  %3556 = vmatprep.subr.mxu0 0.0
  %3557 = vmatpush1.msra.mxu0 0.0
  %3558 = vmatprep.subr.mxu0 0.0
  %3559 = vmatpush1.msra.mxu0 0.0
  %3560 = vmatprep.subr.mxu0 0.0
  %3561 = vmatpush1.msra.mxu0 0.0
  %3562 = vmatprep.subr.mxu0 0.0
  %3563 = vmatpush1.msra.mxu0 0.0
  %3564 = vmatprep.subr.mxu0 0.0
  %3565 = vmatpush1.msra.mxu0 0.0
  %3566 = vmatprep.subr.mxu0 0.0
  %3567 = vmatpush1.msra.mxu0 0.0
  %3568 = vmatprep.subr.mxu0 0.0
  %3569 = vmatpush1.msra.mxu0 0.0
  %3570 = vmatprep.subr.mxu0 0.0
  %3571 = vmatpush1.msra.mxu0 0.0
  %3572 = vmatprep.subr.mxu0 0.0
  %3573 = vmatpush1.msra.mxu0 0.0
  %3574 = vmatprep.subr.mxu0 0.0
  %3575 = vmatpush1.msra.mxu0 0.0
  %3576 = vmatprep.mubr.f32.mxu0 0.0
  %3577 = vmatmul.mubr.f32.gmra.mrb[0].mxu0 %v3510
  %v3578 = vpop.f32.mrb[0].mxu0
  %v3579 = vadd.f32 0.0, %v3578
  %v3580 = vpop.f32.mrb[0].mxu0
  %3581 = vdwg.mxu0
  %v3583 = vrot.slane %v3579, 7
  %v3586 = vadd.f32 %v2538, %v3583
  %v3587 = vadd.f32 %v2543, %v3579
  %v3588 = vxor.u32 %v3586, 2147483648
  %v3589 = vxor.u32 %v3587, 2147483648
  %v3590 = vmul.f32 %v3588, 1.442695
  %v3591 = vpow.pop %v3590
  %v3592 = vmul.f32 %v3589, 1.442695
  %v3593 = vpow.pop %v3592
  %v3594 = vadd.f32 %v3591, 1.0
  %v3595 = vadd.f32 %v3593, 1.0
  %v3596 = vrcp.pop %v3594
  %v3597 = vmul.f32 1.0, %v3596
  %v3598 = vrcp.pop %v3595
  %v3599 = vmul.f32 1.0, %v3598
  %3600 = vmatprep.subr.mxu0 0.0
  %3601 = vmatpush1.msra.mxu0 %v2736
  %3602 = vmatprep.subr.mxu0 0.0
  %3603 = vmatpush1.msra.mxu0 %v2738
  %3604 = vmatprep.subr.mxu0 0.0
  %3605 = vmatpush1.msra.mxu0 %v2740
  %3606 = vmatprep.subr.mxu0 0.0
  %3607 = vmatpush1.msra.mxu0 %v2742
  %3608 = vmatprep.subr.mxu0 0.0
  %3609 = vmatpush1.msra.mxu0 0.0
  %3610 = vmatprep.subr.mxu0 0.0
  %3611 = vmatpush1.msra.mxu0 0.0
  %3612 = vmatprep.subr.mxu0 0.0
  %3613 = vmatpush1.msra.mxu0 0.0
  %3614 = vmatprep.subr.mxu0 0.0
  %3615 = vmatpush1.msra.mxu0 0.0
  %3616 = vmatprep.subr.mxu0 0.0
  %3617 = vmatpush1.msra.mxu0 0.0
  %3618 = vmatprep.subr.mxu0 0.0
  %3619 = vmatpush1.msra.mxu0 0.0
  %3620 = vmatprep.subr.mxu0 0.0
  %3621 = vmatpush1.msra.mxu0 0.0
  %3622 = vmatprep.subr.mxu0 0.0
  %3623 = vmatpush1.msra.mxu0 0.0
  %3624 = vmatprep.subr.mxu0 0.0
  %3625 = vmatpush1.msra.mxu0 0.0
  %3626 = vmatprep.subr.mxu0 0.0
  %3627 = vmatpush1.msra.mxu0 0.0
  %3628 = vmatprep.subr.mxu0 0.0
  %3629 = vmatpush1.msra.mxu0 0.0
  %3630 = vmatprep.subr.mxu0 0.0
  %3631 = vmatpush1.msra.mxu0 0.0
  %3632 = vmatprep.subr.mxu0 0.0
  %3633 = vmatpush1.msra.mxu0 0.0
  %3634 = vmatprep.subr.mxu0 0.0
  %3635 = vmatpush1.msra.mxu0 0.0
  %3636 = vmatprep.subr.mxu0 0.0
  %3637 = vmatpush1.msra.mxu0 0.0
  %3638 = vmatprep.subr.mxu0 0.0
  %3639 = vmatpush1.msra.mxu0 0.0
  %3640 = vmatprep.subr.mxu0 0.0
  %3641 = vmatpush1.msra.mxu0 0.0
  %3642 = vmatprep.subr.mxu0 0.0
  %3643 = vmatpush1.msra.mxu0 0.0
  %3644 = vmatprep.subr.mxu0 0.0
  %3645 = vmatpush1.msra.mxu0 0.0
  %3646 = vmatprep.subr.mxu0 0.0
  %3647 = vmatpush1.msra.mxu0 0.0
  %3648 = vmatprep.subr.mxu0 0.0
  %3649 = vmatpush1.msra.mxu0 0.0
  %3650 = vmatprep.subr.mxu0 0.0
  %3651 = vmatpush1.msra.mxu0 0.0
  %3652 = vmatprep.subr.mxu0 0.0
  %3653 = vmatpush1.msra.mxu0 0.0
  %3654 = vmatprep.subr.mxu0 0.0
  %3655 = vmatpush1.msra.mxu0 0.0
  %3656 = vmatprep.subr.mxu0 0.0
  %3657 = vmatpush1.msra.mxu0 0.0
  %3658 = vmatprep.subr.mxu0 0.0
  %3659 = vmatpush1.msra.mxu0 0.0
  %3660 = vmatprep.subr.mxu0 0.0
  %3661 = vmatpush1.msra.mxu0 0.0
  %3662 = vmatprep.subr.mxu0 0.0
  %3663 = vmatpush1.msra.mxu0 0.0
  %3664 = vmatprep.mubr.f32.mxu0 0.0
  %3665 = vmatmul.mubr.f32.gmra.mrb[0].mxu0 %v3510
  %v3666 = vpop.f32.mrb[0].mxu0
  %v3667 = vadd.f32 0.0, %v3666
  %v3668 = vpop.f32.mrb[0].mxu0
  %3669 = vdwg.mxu0
  %v3671 = vrot.slane %v3667, 7
  %3672 = vrot.lane.b32.xlu0 %v3671, 32
  %v3673 = vpop.permute.xlu0 %3672
  %3674 = vrot.lane.b32.xlu0 %v3667, 32
  %v3675 = vpop.permute.xlu0 %3674
  %v3678 = vadd.f32 %v2538, %v3673
  %v3679 = vadd.f32 %v2543, %v3675
  %v3680 = vxor.u32 %v3678, 2147483648
  %v3681 = vxor.u32 %v3679, 2147483648
  %v3682 = vmul.f32 %v3680, 1.442695
  %v3683 = vpow.pop %v3682
  %v3684 = vmul.f32 %v3681, 1.442695
  %v3685 = vpow.pop %v3684
  %v3686 = vadd.f32 %v3683, 1.0
  %v3687 = vadd.f32 %v3685, 1.0
  %v3688 = vrcp.pop %v3686
  %v3689 = vmul.f32 1.0, %v3688
  %v3690 = vrcp.pop %v3687
  %v3691 = vmul.f32 1.0, %v3690
  %3692 = vmatprep.subr.mxu0 0.0
  %3693 = vmatpush1.msra.mxu0 %v2840
  %3694 = vmatprep.subr.mxu0 0.0
  %3695 = vmatpush1.msra.mxu0 %v2842
  %3696 = vmatprep.subr.mxu0 0.0
  %3697 = vmatpush1.msra.mxu0 %v2844
  %3698 = vmatprep.subr.mxu0 0.0
  %3699 = vmatpush1.msra.mxu0 %v2846
  %3700 = vmatprep.subr.mxu0 0.0
  %3701 = vmatpush1.msra.mxu0 0.0
  %3702 = vmatprep.subr.mxu0 0.0
  %3703 = vmatpush1.msra.mxu0 0.0
  %3704 = vmatprep.subr.mxu0 0.0
  %3705 = vmatpush1.msra.mxu0 0.0
  %3706 = vmatprep.subr.mxu0 0.0
  %3707 = vmatpush1.msra.mxu0 0.0
  %3708 = vmatprep.subr.mxu0 0.0
  %3709 = vmatpush1.msra.mxu0 0.0
  %3710 = vmatprep.subr.mxu0 0.0
  %3711 = vmatpush1.msra.mxu0 0.0
  %3712 = vmatprep.subr.mxu0 0.0
  %3713 = vmatpush1.msra.mxu0 0.0
  %3714 = vmatprep.subr.mxu0 0.0
  %3715 = vmatpush1.msra.mxu0 0.0
  %3716 = vmatprep.subr.mxu0 0.0
  %3717 = vmatpush1.msra.mxu0 0.0
  %3718 = vmatprep.subr.mxu0 0.0
  %3719 = vmatpush1.msra.mxu0 0.0
  %3720 = vmatprep.subr.mxu0 0.0
  %3721 = vmatpush1.msra.mxu0 0.0
  %3722 = vmatprep.subr.mxu0 0.0
  %3723 = vmatpush1.msra.mxu0 0.0
  %3724 = vmatprep.subr.mxu0 0.0
  %3725 = vmatpush1.msra.mxu0 0.0
  %3726 = vmatprep.subr.mxu0 0.0
  %3727 = vmatpush1.msra.mxu0 0.0
  %3728 = vmatprep.subr.mxu0 0.0
  %3729 = vmatpush1.msra.mxu0 0.0
  %3730 = vmatprep.subr.mxu0 0.0
  %3731 = vmatpush1.msra.mxu0 0.0
  %3732 = vmatprep.subr.mxu0 0.0
  %3733 = vmatpush1.msra.mxu0 0.0
  %3734 = vmatprep.subr.mxu0 0.0
  %3735 = vmatpush1.msra.mxu0 0.0
  %3736 = vmatprep.subr.mxu0 0.0
  %3737 = vmatpush1.msra.mxu0 0.0
  %3738 = vmatprep.subr.mxu0 0.0
  %3739 = vmatpush1.msra.mxu0 0.0
  %3740 = vmatprep.subr.mxu0 0.0
  %3741 = vmatpush1.msra.mxu0 0.0
  %3742 = vmatprep.subr.mxu0 0.0
  %3743 = vmatpush1.msra.mxu0 0.0
  %3744 = vmatprep.subr.mxu0 0.0
  %3745 = vmatpush1.msra.mxu0 0.0
  %3746 = vmatprep.subr.mxu0 0.0
  %3747 = vmatpush1.msra.mxu0 0.0
  %3748 = vmatprep.subr.mxu0 0.0
  %3749 = vmatpush1.msra.mxu0 0.0
  %3750 = vmatprep.subr.mxu0 0.0
  %3751 = vmatpush1.msra.mxu0 0.0
  %3752 = vmatprep.subr.mxu0 0.0
  %3753 = vmatpush1.msra.mxu0 0.0
  %3754 = vmatprep.subr.mxu0 0.0
  %3755 = vmatpush1.msra.mxu0 0.0
  %3756 = vmatprep.mubr.f32.mxu0 0.0
  %3757 = vmatmul.mubr.f32.gmra.mrb[0].mxu0 %v3510
  %v3758 = vpop.f32.mrb[0].mxu0
  %v3759 = vadd.f32 0.0, %v3758
  %v3760 = vpop.f32.mrb[0].mxu0
  %3761 = vdwg.mxu0
  %v3763 = vrot.slane %v3759, 7
  %3764 = vrot.lane.b32.xlu0 %v3763, 64
  %v3765 = vpop.permute.xlu0 %3764
  %3766 = vrot.lane.b32.xlu0 %v3759, 64
  %v3767 = vpop.permute.xlu0 %3766
  %v3770 = vadd.f32 %v2538, %v3765
  %v3771 = vadd.f32 %v2543, %v3767
  %v3772 = vtanh.pop %v3770
  %v3773 = vtanh.pop %v3771
  %3774 = vmatprep.subr.mxu0 0.0
  %3775 = vmatpush1.msra.mxu0 %v2934
  %3776 = vmatprep.subr.mxu0 0.0
  %3777 = vmatpush1.msra.mxu0 %v2936
  %3778 = vmatprep.subr.mxu0 0.0
  %3779 = vmatpush1.msra.mxu0 %v2938
  %3780 = vmatprep.subr.mxu0 0.0
  %3781 = vmatpush1.msra.mxu0 %v2940
  %3782 = vmatprep.subr.mxu0 0.0
  %3783 = vmatpush1.msra.mxu0 0.0
  %3784 = vmatprep.subr.mxu0 0.0
  %3785 = vmatpush1.msra.mxu0 0.0
  %3786 = vmatprep.subr.mxu0 0.0
  %3787 = vmatpush1.msra.mxu0 0.0
  %3788 = vmatprep.subr.mxu0 0.0
  %3789 = vmatpush1.msra.mxu0 0.0
  %3790 = vmatprep.subr.mxu0 0.0
  %3791 = vmatpush1.msra.mxu0 0.0
  %3792 = vmatprep.subr.mxu0 0.0
  %3793 = vmatpush1.msra.mxu0 0.0
  %3794 = vmatprep.subr.mxu0 0.0
  %3795 = vmatpush1.msra.mxu0 0.0
  %3796 = vmatprep.subr.mxu0 0.0
  %3797 = vmatpush1.msra.mxu0 0.0
  %3798 = vmatprep.subr.mxu0 0.0
  %3799 = vmatpush1.msra.mxu0 0.0
  %3800 = vmatprep.subr.mxu0 0.0
  %3801 = vmatpush1.msra.mxu0 0.0
  %3802 = vmatprep.subr.mxu0 0.0
  %3803 = vmatpush1.msra.mxu0 0.0
  %3804 = vmatprep.subr.mxu0 0.0
  %3805 = vmatpush1.msra.mxu0 0.0
  %3806 = vmatprep.subr.mxu0 0.0
  %3807 = vmatpush1.msra.mxu0 0.0
  %3808 = vmatprep.subr.mxu0 0.0
  %3809 = vmatpush1.msra.mxu0 0.0
  %3810 = vmatprep.subr.mxu0 0.0
  %3811 = vmatpush1.msra.mxu0 0.0
  %3812 = vmatprep.subr.mxu0 0.0
  %3813 = vmatpush1.msra.mxu0 0.0
  %3814 = vmatprep.subr.mxu0 0.0
  %3815 = vmatpush1.msra.mxu0 0.0
  %3816 = vmatprep.subr.mxu0 0.0
  %3817 = vmatpush1.msra.mxu0 0.0
  %3818 = vmatprep.subr.mxu0 0.0
  %3819 = vmatpush1.msra.mxu0 0.0
  %3820 = vmatprep.subr.mxu0 0.0
  %3821 = vmatpush1.msra.mxu0 0.0
  %3822 = vmatprep.subr.mxu0 0.0
  %3823 = vmatpush1.msra.mxu0 0.0
  %3824 = vmatprep.subr.mxu0 0.0
  %3825 = vmatpush1.msra.mxu0 0.0
  %3826 = vmatprep.subr.mxu0 0.0
  %3827 = vmatpush1.msra.mxu0 0.0
  %3828 = vmatprep.subr.mxu0 0.0
  %3829 = vmatpush1.msra.mxu0 0.0
  %3830 = vmatprep.subr.mxu0 0.0
  %3831 = vmatpush1.msra.mxu0 0.0
  %3832 = vmatprep.subr.mxu0 0.0
  %3833 = vmatpush1.msra.mxu0 0.0
  %3834 = vmatprep.subr.mxu0 0.0
  %3835 = vmatpush1.msra.mxu0 0.0
  %3836 = vmatprep.subr.mxu0 0.0
  %3837 = vmatpush1.msra.mxu0 0.0
  %3838 = vmatprep.mubr.f32.mxu0 0.0
  %3839 = vmatmul.mubr.f32.gmra.mrb[0].mxu0 %v3510
  %v3840 = vpop.f32.mrb[0].mxu0
  %v3841 = vadd.f32 0.0, %v3840
  %v3842 = vpop.f32.mrb[0].mxu0
  %3843 = vdwg.mxu0
  %v3845 = vrot.slane %v3841, 7
  %3846 = vrot.lane.b32.xlu0 %v3845, 96
  %v3847 = vpop.permute.xlu0 %3846
  %3848 = vrot.lane.b32.xlu0 %v3841, 96
  %v3849 = vpop.permute.xlu0 %3848
  %v3852 = vadd.f32 %v2538, %v3847
  %v3853 = vadd.f32 %v2543, %v3849
  %v3854 = vxor.u32 %v3852, 2147483648
  %v3855 = vxor.u32 %v3853, 2147483648
  %v3856 = vmul.f32 %v3854, 1.442695
  %v3857 = vpow.pop %v3856
  %v3858 = vmul.f32 %v3855, 1.442695
  %v3859 = vpow.pop %v3858
  %v3860 = vadd.f32 %v3857, 1.0
  %v3861 = vadd.f32 %v3859, 1.0
  %v3862 = vrcp.pop %v3860
  %v3863 = vmul.f32 1.0, %v3862
  %v3864 = vrcp.pop %v3861
  %v3865 = vmul.f32 1.0, %v3864
  %v3868 = vrot.slane %v3057, 7
  %v3869 = vrot.slane %v3058, 7
  %v3872 = vmul.f32 %v3689, %v3868
  %v3873 = vmul.f32 %v3691, %v3869
  %3876 = vrot.lane.b32.xlu0 %v3772, 64
  %v3877 = vpop.permute.xlu0 %3876
  %3878 = vrot.lane.b32.xlu0 %v3773, 64
  %v3879 = vpop.permute.xlu0 %3878
  %v3882 = vmul.f32 %v3597, %v3877
  %v3883 = vmul.f32 %v3599, %v3879
  %3886 = vrot.lane.b32.xlu0 %v3882, 32
  %v3887 = vpop.permute.xlu0 %3886
  %3888 = vrot.lane.b32.xlu0 %v3883, 32
  %v3889 = vpop.permute.xlu0 %3888
  %v3892 = vadd.f32 %v3872, %v3887
  %v3893 = vadd.f32 %v3873, %v3889
  %v3894 = vtanh.pop %v3892
  %v3895 = vtanh.pop %v3893
  %3898 = vrot.lane.b32.xlu0 %v3894, 64
  %v3899 = vpop.permute.xlu0 %3898
  %3900 = vrot.lane.b32.xlu0 %v3895, 64
  %v3901 = vpop.permute.xlu0 %3900
  %v3904 = vmul.f32 %v3863, %v3899
  %v3905 = vmul.f32 %v3865, %v3901
  %v3908 = vrot.slane %v3501, 7
  %v3909 = vrot.slane %v3502, 6
  %v3910 = vsel %vm3506, %v3909, %v3908
  %3911 = vrot.lane.b32.xlu0 %v3910, 32
  %v3912 = vpop.permute.xlu0 %3911
  %v3913 = vsel %vm84, %v3912, 0
  %3915 = vmatprep.subr.mxu0 0.0
  %3916 = vmatpush1.msra.mxu0 %v2636
  %3917 = vmatprep.subr.mxu0 0.0
  %3918 = vmatpush1.msra.mxu0 %v2637
  %3919 = vmatprep.subr.mxu0 0.0
  %3920 = vmatpush1.msra.mxu0 %v2638
  %3921 = vmatprep.subr.mxu0 0.0
  %3922 = vmatpush1.msra.mxu0 %v2639
  %3923 = vmatprep.subr.mxu0 0.0
  %3924 = vmatpush1.msra.mxu0 0.0
  %3925 = vmatprep.subr.mxu0 0.0
  %3926 = vmatpush1.msra.mxu0 0.0
  %3927 = vmatprep.subr.mxu0 0.0
  %3928 = vmatpush1.msra.mxu0 0.0
  %3929 = vmatprep.subr.mxu0 0.0
  %3930 = vmatpush1.msra.mxu0 0.0
  %3931 = vmatprep.subr.mxu0 0.0
  %3932 = vmatpush1.msra.mxu0 0.0
  %3933 = vmatprep.subr.mxu0 0.0
  %3934 = vmatpush1.msra.mxu0 0.0
  %3935 = vmatprep.subr.mxu0 0.0
  %3936 = vmatpush1.msra.mxu0 0.0
  %3937 = vmatprep.subr.mxu0 0.0
  %3938 = vmatpush1.msra.mxu0 0.0
  %3939 = vmatprep.subr.mxu0 0.0
  %3940 = vmatpush1.msra.mxu0 0.0
  %3941 = vmatprep.subr.mxu0 0.0
  %3942 = vmatpush1.msra.mxu0 0.0
  %3943 = vmatprep.subr.mxu0 0.0
  %3944 = vmatpush1.msra.mxu0 0.0
  %3945 = vmatprep.subr.mxu0 0.0
  %3946 = vmatpush1.msra.mxu0 0.0
  %3947 = vmatprep.subr.mxu0 0.0
  %3948 = vmatpush1.msra.mxu0 0.0
  %3949 = vmatprep.subr.mxu0 0.0
  %3950 = vmatpush1.msra.mxu0 0.0
  %3951 = vmatprep.subr.mxu0 0.0
  %3952 = vmatpush1.msra.mxu0 0.0
  %3953 = vmatprep.subr.mxu0 0.0
  %3954 = vmatpush1.msra.mxu0 0.0
  %3955 = vmatprep.subr.mxu0 0.0
  %3956 = vmatpush1.msra.mxu0 0.0
  %3957 = vmatprep.subr.mxu0 0.0
  %3958 = vmatpush1.msra.mxu0 0.0
  %3959 = vmatprep.subr.mxu0 0.0
  %3960 = vmatpush1.msra.mxu0 0.0
  %3961 = vmatprep.subr.mxu0 0.0
  %3962 = vmatpush1.msra.mxu0 0.0
  %3963 = vmatprep.subr.mxu0 0.0
  %3964 = vmatpush1.msra.mxu0 0.0
  %3965 = vmatprep.subr.mxu0 0.0
  %3966 = vmatpush1.msra.mxu0 0.0
  %3967 = vmatprep.subr.mxu0 0.0
  %3968 = vmatpush1.msra.mxu0 0.0
  %3969 = vmatprep.subr.mxu0 0.0
  %3970 = vmatpush1.msra.mxu0 0.0
  %3971 = vmatprep.subr.mxu0 0.0
  %3972 = vmatpush1.msra.mxu0 0.0
  %3973 = vmatprep.subr.mxu0 0.0
  %3974 = vmatpush1.msra.mxu0 0.0
  %3975 = vmatprep.subr.mxu0 0.0
  %3976 = vmatpush1.msra.mxu0 0.0
  %3977 = vmatprep.subr.mxu0 0.0
  %3978 = vmatpush1.msra.mxu0 0.0
  %3979 = vmatprep.mubr.f32.mxu0 0.0
  %3980 = vmatmul.mubr.f32.gmra.mrb[0].mxu0 %v3913
  %v3981 = vpop.f32.mrb[0].mxu0
  %v3982 = vadd.f32 0.0, %v3981
  %v3983 = vpop.f32.mrb[0].mxu0
  %3984 = vdwg.mxu0
  %v3986 = vrot.slane %v3982, 2
  %v3987 = vrot.slane %v3982, 3
  %v3990 = vadd.f32 %v2624, %v3986
  %v3991 = vadd.f32 %v2629, %v3987
  %v3992 = vxor.u32 %v3990, 2147483648
  %v3993 = vxor.u32 %v3991, 2147483648
  %v3994 = vmul.f32 %v3992, 1.442695
  %v3995 = vpow.pop %v3994
  %v3996 = vmul.f32 %v3993, 1.442695
  %v3997 = vpow.pop %v3996
  %v3998 = vadd.f32 %v3995, 1.0
  %v3999 = vadd.f32 %v3997, 1.0
  %v4000 = vrcp.pop %v3998
  %v4001 = vmul.f32 1.0, %v4000
  %v4002 = vrcp.pop %v3999
  %v4003 = vmul.f32 1.0, %v4002
  %4004 = vmatprep.subr.mxu0 0.0
  %4005 = vmatpush1.msra.mxu0 %v3165
  %4006 = vmatprep.subr.mxu0 0.0
  %4007 = vmatpush1.msra.mxu0 %v3167
  %4008 = vmatprep.subr.mxu0 0.0
  %4009 = vmatpush1.msra.mxu0 %v3169
  %4010 = vmatprep.subr.mxu0 0.0
  %4011 = vmatpush1.msra.mxu0 %v3171
  %4012 = vmatprep.subr.mxu0 0.0
  %4013 = vmatpush1.msra.mxu0 0.0
  %4014 = vmatprep.subr.mxu0 0.0
  %4015 = vmatpush1.msra.mxu0 0.0
  %4016 = vmatprep.subr.mxu0 0.0
  %4017 = vmatpush1.msra.mxu0 0.0
  %4018 = vmatprep.subr.mxu0 0.0
  %4019 = vmatpush1.msra.mxu0 0.0
  %4020 = vmatprep.subr.mxu0 0.0
  %4021 = vmatpush1.msra.mxu0 0.0
  %4022 = vmatprep.subr.mxu0 0.0
  %4023 = vmatpush1.msra.mxu0 0.0
  %4024 = vmatprep.subr.mxu0 0.0
  %4025 = vmatpush1.msra.mxu0 0.0
  %4026 = vmatprep.subr.mxu0 0.0
  %4027 = vmatpush1.msra.mxu0 0.0
  %4028 = vmatprep.subr.mxu0 0.0
  %4029 = vmatpush1.msra.mxu0 0.0
  %4030 = vmatprep.subr.mxu0 0.0
  %4031 = vmatpush1.msra.mxu0 0.0
  %4032 = vmatprep.subr.mxu0 0.0
  %4033 = vmatpush1.msra.mxu0 0.0
  %4034 = vmatprep.subr.mxu0 0.0
  %4035 = vmatpush1.msra.mxu0 0.0
  %4036 = vmatprep.subr.mxu0 0.0
  %4037 = vmatpush1.msra.mxu0 0.0
  %4038 = vmatprep.subr.mxu0 0.0
  %4039 = vmatpush1.msra.mxu0 0.0
  %4040 = vmatprep.subr.mxu0 0.0
  %4041 = vmatpush1.msra.mxu0 0.0
  %4042 = vmatprep.subr.mxu0 0.0
  %4043 = vmatpush1.msra.mxu0 0.0
  %4044 = vmatprep.subr.mxu0 0.0
  %4045 = vmatpush1.msra.mxu0 0.0
  %4046 = vmatprep.subr.mxu0 0.0
  %4047 = vmatpush1.msra.mxu0 0.0
  %4048 = vmatprep.subr.mxu0 0.0
  %4049 = vmatpush1.msra.mxu0 0.0
  %4050 = vmatprep.subr.mxu0 0.0
  %4051 = vmatpush1.msra.mxu0 0.0
  %4052 = vmatprep.subr.mxu0 0.0
  %4053 = vmatpush1.msra.mxu0 0.0
  %4054 = vmatprep.subr.mxu0 0.0
  %4055 = vmatpush1.msra.mxu0 0.0
  %4056 = vmatprep.subr.mxu0 0.0
  %4057 = vmatpush1.msra.mxu0 0.0
  %4058 = vmatprep.subr.mxu0 0.0
  %4059 = vmatpush1.msra.mxu0 0.0
  %4060 = vmatprep.subr.mxu0 0.0
  %4061 = vmatpush1.msra.mxu0 0.0
  %4062 = vmatprep.subr.mxu0 0.0
  %4063 = vmatpush1.msra.mxu0 0.0
  %4064 = vmatprep.subr.mxu0 0.0
  %4065 = vmatpush1.msra.mxu0 0.0
  %4066 = vmatprep.subr.mxu0 0.0
  %4067 = vmatpush1.msra.mxu0 0.0
  %4068 = vmatprep.mubr.f32.mxu0 0.0
  %4069 = vmatmul.mubr.f32.gmra.mrb[0].mxu0 %v3913
  %v4070 = vpop.f32.mrb[0].mxu0
  %v4071 = vadd.f32 0.0, %v4070
  %v4072 = vpop.f32.mrb[0].mxu0
  %4073 = vdwg.mxu0
  %v4075 = vrot.slane %v4071, 2
  %v4076 = vrot.slane %v4071, 3
  %4077 = vrot.lane.b32.xlu0 %v4075, 32
  %v4078 = vpop.permute.xlu0 %4077
  %4079 = vrot.lane.b32.xlu0 %v4076, 32
  %v4080 = vpop.permute.xlu0 %4079
  %v4083 = vadd.f32 %v2624, %v4078
  %v4084 = vadd.f32 %v2629, %v4080
  %v4085 = vxor.u32 %v4083, 2147483648
  %v4086 = vxor.u32 %v4084, 2147483648
  %v4087 = vmul.f32 %v4085, 1.442695
  %v4088 = vpow.pop %v4087
  %v4089 = vmul.f32 %v4086, 1.442695
  %v4090 = vpow.pop %v4089
  %v4091 = vadd.f32 %v4088, 1.0
  %v4092 = vadd.f32 %v4090, 1.0
  %v4093 = vrcp.pop %v4091
  %v4094 = vmul.f32 1.0, %v4093
  %v4095 = vrcp.pop %v4092
  %v4096 = vmul.f32 1.0, %v4095
  %4097 = vmatprep.subr.mxu0 0.0
  %4098 = vmatpush1.msra.mxu0 %v3270
  %4099 = vmatprep.subr.mxu0 0.0
  %4100 = vmatpush1.msra.mxu0 %v3272
  %4101 = vmatprep.subr.mxu0 0.0
  %4102 = vmatpush1.msra.mxu0 %v3274
  %4103 = vmatprep.subr.mxu0 0.0
  %4104 = vmatpush1.msra.mxu0 %v3276
  %4105 = vmatprep.subr.mxu0 0.0
  %4106 = vmatpush1.msra.mxu0 0.0
  %4107 = vmatprep.subr.mxu0 0.0
  %4108 = vmatpush1.msra.mxu0 0.0
  %4109 = vmatprep.subr.mxu0 0.0
  %4110 = vmatpush1.msra.mxu0 0.0
  %4111 = vmatprep.subr.mxu0 0.0
  %4112 = vmatpush1.msra.mxu0 0.0
  %4113 = vmatprep.subr.mxu0 0.0
  %4114 = vmatpush1.msra.mxu0 0.0
  %4115 = vmatprep.subr.mxu0 0.0
  %4116 = vmatpush1.msra.mxu0 0.0
  %4117 = vmatprep.subr.mxu0 0.0
  %4118 = vmatpush1.msra.mxu0 0.0
  %4119 = vmatprep.subr.mxu0 0.0
  %4120 = vmatpush1.msra.mxu0 0.0
  %4121 = vmatprep.subr.mxu0 0.0
  %4122 = vmatpush1.msra.mxu0 0.0
  %4123 = vmatprep.subr.mxu0 0.0
  %4124 = vmatpush1.msra.mxu0 0.0
  %4125 = vmatprep.subr.mxu0 0.0
  %4126 = vmatpush1.msra.mxu0 0.0
  %4127 = vmatprep.subr.mxu0 0.0
  %4128 = vmatpush1.msra.mxu0 0.0
  %4129 = vmatprep.subr.mxu0 0.0
  %4130 = vmatpush1.msra.mxu0 0.0
  %4131 = vmatprep.subr.mxu0 0.0
  %4132 = vmatpush1.msra.mxu0 0.0
  %4133 = vmatprep.subr.mxu0 0.0
  %4134 = vmatpush1.msra.mxu0 0.0
  %4135 = vmatprep.subr.mxu0 0.0
  %4136 = vmatpush1.msra.mxu0 0.0
  %4137 = vmatprep.subr.mxu0 0.0
  %4138 = vmatpush1.msra.mxu0 0.0
  %4139 = vmatprep.subr.mxu0 0.0
  %4140 = vmatpush1.msra.mxu0 0.0
  %4141 = vmatprep.subr.mxu0 0.0
  %4142 = vmatpush1.msra.mxu0 0.0
  %4143 = vmatprep.subr.mxu0 0.0
  %4144 = vmatpush1.msra.mxu0 0.0
  %4145 = vmatprep.subr.mxu0 0.0
  %4146 = vmatpush1.msra.mxu0 0.0
  %4147 = vmatprep.subr.mxu0 0.0
  %4148 = vmatpush1.msra.mxu0 0.0
  %4149 = vmatprep.subr.mxu0 0.0
  %4150 = vmatpush1.msra.mxu0 0.0
  %4151 = vmatprep.subr.mxu0 0.0
  %4152 = vmatpush1.msra.mxu0 0.0
  %4153 = vmatprep.subr.mxu0 0.0
  %4154 = vmatpush1.msra.mxu0 0.0
  %4155 = vmatprep.subr.mxu0 0.0
  %4156 = vmatpush1.msra.mxu0 0.0
  %4157 = vmatprep.subr.mxu0 0.0
  %4158 = vmatpush1.msra.mxu0 0.0
  %4159 = vmatprep.subr.mxu0 0.0
  %4160 = vmatpush1.msra.mxu0 0.0
  %4161 = vmatprep.mubr.f32.mxu0 0.0
  %4162 = vmatmul.mubr.f32.gmra.mrb[0].mxu0 %v3913
  %v4163 = vpop.f32.mrb[0].mxu0
  %v4164 = vadd.f32 0.0, %v4163
  %v4165 = vpop.f32.mrb[0].mxu0
  %4166 = vdwg.mxu0
  %v4168 = vrot.slane %v4164, 2
  %v4169 = vrot.slane %v4164, 3
  %4170 = vrot.lane.b32.xlu0 %v4168, 64
  %v4171 = vpop.permute.xlu0 %4170
  %4172 = vrot.lane.b32.xlu0 %v4169, 64
  %v4173 = vpop.permute.xlu0 %4172
  %v4176 = vadd.f32 %v2624, %v4171
  %v4177 = vadd.f32 %v2629, %v4173
  %v4178 = vtanh.pop %v4176
  %v4179 = vtanh.pop %v4177
  %4180 = vmatprep.subr.mxu0 0.0
  %4181 = vmatpush1.msra.mxu0 %v3365
  %4182 = vmatprep.subr.mxu0 0.0
  %4183 = vmatpush1.msra.mxu0 %v3367
  %4184 = vmatprep.subr.mxu0 0.0
  %4185 = vmatpush1.msra.mxu0 %v3369
  %4186 = vmatprep.subr.mxu0 0.0
  %4187 = vmatpush1.msra.mxu0 %v3371
  %4188 = vmatprep.subr.mxu0 0.0
  %4189 = vmatpush1.msra.mxu0 0.0
  %4190 = vmatprep.subr.mxu0 0.0
  %4191 = vmatpush1.msra.mxu0 0.0
  %4192 = vmatprep.subr.mxu0 0.0
  %4193 = vmatpush1.msra.mxu0 0.0
  %4194 = vmatprep.subr.mxu0 0.0
  %4195 = vmatpush1.msra.mxu0 0.0
  %4196 = vmatprep.subr.mxu0 0.0
  %4197 = vmatpush1.msra.mxu0 0.0
  %4198 = vmatprep.subr.mxu0 0.0
  %4199 = vmatpush1.msra.mxu0 0.0
  %4200 = vmatprep.subr.mxu0 0.0
  %4201 = vmatpush1.msra.mxu0 0.0
  %4202 = vmatprep.subr.mxu0 0.0
  %4203 = vmatpush1.msra.mxu0 0.0
  %4204 = vmatprep.subr.mxu0 0.0
  %4205 = vmatpush1.msra.mxu0 0.0
  %4206 = vmatprep.subr.mxu0 0.0
  %4207 = vmatpush1.msra.mxu0 0.0
  %4208 = vmatprep.subr.mxu0 0.0
  %4209 = vmatpush1.msra.mxu0 0.0
  %4210 = vmatprep.subr.mxu0 0.0
  %4211 = vmatpush1.msra.mxu0 0.0
  %4212 = vmatprep.subr.mxu0 0.0
  %4213 = vmatpush1.msra.mxu0 0.0
  %4214 = vmatprep.subr.mxu0 0.0
  %4215 = vmatpush1.msra.mxu0 0.0
  %4216 = vmatprep.subr.mxu0 0.0
  %4217 = vmatpush1.msra.mxu0 0.0
  %4218 = vmatprep.subr.mxu0 0.0
  %4219 = vmatpush1.msra.mxu0 0.0
  %4220 = vmatprep.subr.mxu0 0.0
  %4221 = vmatpush1.msra.mxu0 0.0
  %4222 = vmatprep.subr.mxu0 0.0
  %4223 = vmatpush1.msra.mxu0 0.0
  %4224 = vmatprep.subr.mxu0 0.0
  %4225 = vmatpush1.msra.mxu0 0.0
  %4226 = vmatprep.subr.mxu0 0.0
  %4227 = vmatpush1.msra.mxu0 0.0
  %4228 = vmatprep.subr.mxu0 0.0
  %4229 = vmatpush1.msra.mxu0 0.0
  %4230 = vmatprep.subr.mxu0 0.0
  %4231 = vmatpush1.msra.mxu0 0.0
  %4232 = vmatprep.subr.mxu0 0.0
  %4233 = vmatpush1.msra.mxu0 0.0
  %4234 = vmatprep.subr.mxu0 0.0
  %4235 = vmatpush1.msra.mxu0 0.0
  %4236 = vmatprep.subr.mxu0 0.0
  %4237 = vmatpush1.msra.mxu0 0.0
  %4238 = vmatprep.subr.mxu0 0.0
  %4239 = vmatpush1.msra.mxu0 0.0
  %4240 = vmatprep.subr.mxu0 0.0
  %4241 = vmatpush1.msra.mxu0 0.0
  %4242 = vmatprep.subr.mxu0 0.0
  %4243 = vmatpush1.msra.mxu0 0.0
  %4244 = vmatprep.mubr.f32.mxu0 0.0
  %4245 = vmatmul.mubr.f32.gmra.mrb[0].mxu0 %v3913
  %v4246 = vpop.f32.mrb[0].mxu0
  %v4247 = vadd.f32 0.0, %v4246
  %v4248 = vpop.f32.mrb[0].mxu0
  %4249 = vdwg.mxu0
  %v4251 = vrot.slane %v4247, 2
  %v4252 = vrot.slane %v4247, 3
  %4253 = vrot.lane.b32.xlu0 %v4251, 96
  %v4254 = vpop.permute.xlu0 %4253
  %4255 = vrot.lane.b32.xlu0 %v4252, 96
  %v4256 = vpop.permute.xlu0 %4255
  %v4259 = vadd.f32 %v2624, %v4254
  %v4260 = vadd.f32 %v2629, %v4256
  %v4261 = vxor.u32 %v4259, 2147483648
  %v4262 = vxor.u32 %v4260, 2147483648
  %v4263 = vmul.f32 %v4261, 1.442695
  %v4264 = vpow.pop %v4263
  %v4265 = vmul.f32 %v4262, 1.442695
  %v4266 = vpow.pop %v4265
  %v4267 = vadd.f32 %v4264, 1.0
  %v4268 = vadd.f32 %v4266, 1.0
  %v4269 = vrcp.pop %v4267
  %v4270 = vmul.f32 1.0, %v4269
  %v4271 = vrcp.pop %v4268
  %v4272 = vmul.f32 1.0, %v4271
  %v4275 = vrot.slane %v3489, 1
  %v4276 = vrot.slane %v3490, 1
  %v4279 = vmul.f32 %v4094, %v4275
  %v4280 = vmul.f32 %v4096, %v4276
  %4283 = vrot.lane.b32.xlu0 %v4178, 64
  %v4284 = vpop.permute.xlu0 %4283
  %4285 = vrot.lane.b32.xlu0 %v4179, 64
  %v4286 = vpop.permute.xlu0 %4285
  %v4289 = vmul.f32 %v4001, %v4284
  %v4290 = vmul.f32 %v4003, %v4286
  %4293 = vrot.lane.b32.xlu0 %v4289, 32
  %v4294 = vpop.permute.xlu0 %4293
  %4295 = vrot.lane.b32.xlu0 %v4290, 32
  %v4296 = vpop.permute.xlu0 %4295
  %v4299 = vadd.f32 %v4279, %v4294
  %v4300 = vadd.f32 %v4280, %v4296
  %v4301 = vtanh.pop %v4299
  %v4302 = vtanh.pop %v4300
  %4305 = vrot.lane.b32.xlu0 %v4301, 64
  %v4306 = vpop.permute.xlu0 %4305
  %4307 = vrot.lane.b32.xlu0 %v4302, 64
  %v4308 = vpop.permute.xlu0 %4307
  %v4311 = vmul.f32 %v4270, %v4306
  %v4312 = vmul.f32 %v4272, %v4308
  %v4315 = vrot.slane %v3904, 1
  %v4316 = vsel %vm3506, %v3905, %v4315
  %4317 = vrot.lane.b32.xlu0 %v4316, 32
  %v4318 = vpop.permute.xlu0 %4317
  %v4319 = vsel %vm84, %v4318, 0
  %4321 = vmatprep.subr.mxu0 0.0
  %4322 = vmatpush1.msra.mxu0 %v2632
  %4323 = vmatprep.subr.mxu0 0.0
  %4324 = vmatpush1.msra.mxu0 %v2633
  %4325 = vmatprep.subr.mxu0 0.0
  %4326 = vmatpush1.msra.mxu0 %v2634
  %4327 = vmatprep.subr.mxu0 0.0
  %4328 = vmatpush1.msra.mxu0 %v2635
  %4329 = vmatprep.subr.mxu0 0.0
  %4330 = vmatpush1.msra.mxu0 0.0
  %4331 = vmatprep.subr.mxu0 0.0
  %4332 = vmatpush1.msra.mxu0 0.0
  %4333 = vmatprep.subr.mxu0 0.0
  %4334 = vmatpush1.msra.mxu0 0.0
  %4335 = vmatprep.subr.mxu0 0.0
  %4336 = vmatpush1.msra.mxu0 0.0
  %4337 = vmatprep.subr.mxu0 0.0
  %4338 = vmatpush1.msra.mxu0 0.0
  %4339 = vmatprep.subr.mxu0 0.0
  %4340 = vmatpush1.msra.mxu0 0.0
  %4341 = vmatprep.subr.mxu0 0.0
  %4342 = vmatpush1.msra.mxu0 0.0
  %4343 = vmatprep.subr.mxu0 0.0
  %4344 = vmatpush1.msra.mxu0 0.0
  %4345 = vmatprep.subr.mxu0 0.0
  %4346 = vmatpush1.msra.mxu0 0.0
  %4347 = vmatprep.subr.mxu0 0.0
  %4348 = vmatpush1.msra.mxu0 0.0
  %4349 = vmatprep.subr.mxu0 0.0
  %4350 = vmatpush1.msra.mxu0 0.0
  %4351 = vmatprep.subr.mxu0 0.0
  %4352 = vmatpush1.msra.mxu0 0.0
  %4353 = vmatprep.subr.mxu0 0.0
  %4354 = vmatpush1.msra.mxu0 0.0
  %4355 = vmatprep.subr.mxu0 0.0
  %4356 = vmatpush1.msra.mxu0 0.0
  %4357 = vmatprep.subr.mxu0 0.0
  %4358 = vmatpush1.msra.mxu0 0.0
  %4359 = vmatprep.subr.mxu0 0.0
  %4360 = vmatpush1.msra.mxu0 0.0
  %4361 = vmatprep.subr.mxu0 0.0
  %4362 = vmatpush1.msra.mxu0 0.0
  %4363 = vmatprep.subr.mxu0 0.0
  %4364 = vmatpush1.msra.mxu0 0.0
  %4365 = vmatprep.subr.mxu0 0.0
  %4366 = vmatpush1.msra.mxu0 0.0
  %4367 = vmatprep.subr.mxu0 0.0
  %4368 = vmatpush1.msra.mxu0 0.0
  %4369 = vmatprep.subr.mxu0 0.0
  %4370 = vmatpush1.msra.mxu0 0.0
  %4371 = vmatprep.subr.mxu0 0.0
  %4372 = vmatpush1.msra.mxu0 0.0
  %4373 = vmatprep.subr.mxu0 0.0
  %4374 = vmatpush1.msra.mxu0 0.0
  %4375 = vmatprep.subr.mxu0 0.0
  %4376 = vmatpush1.msra.mxu0 0.0
  %4377 = vmatprep.subr.mxu0 0.0
  %4378 = vmatpush1.msra.mxu0 0.0
  %4379 = vmatprep.subr.mxu0 0.0
  %4380 = vmatpush1.msra.mxu0 0.0
  %4381 = vmatprep.subr.mxu0 0.0
  %4382 = vmatpush1.msra.mxu0 0.0
  %4383 = vmatprep.subr.mxu0 0.0
  %4384 = vmatpush1.msra.mxu0 0.0
  %4385 = vmatprep.mubr.f32.mxu0 0.0
  %4386 = vmatmul.mubr.f32.gmra.mrb[0].mxu0 %v4319
  %v4387 = vpop.f32.mrb[0].mxu0
  %v4388 = vadd.f32 0.0, %v4387
  %v4389 = vpop.f32.mrb[0].mxu0
  %4390 = vdwg.mxu0
  %v4392 = vrot.slane %v4388, 6
  %v4393 = vrot.slane %v4388, 7
  %v4396 = vadd.f32 %v2538, %v4392
  %v4397 = vadd.f32 %v2543, %v4393
  %v4398 = vxor.u32 %v4396, 2147483648
  %v4399 = vxor.u32 %v4397, 2147483648
  %v4400 = vmul.f32 %v4398, 1.442695
  %v4401 = vpow.pop %v4400
  %v4402 = vmul.f32 %v4399, 1.442695
  %v4403 = vpow.pop %v4402
  %v4404 = vadd.f32 %v4401, 1.0
  %v4405 = vadd.f32 %v4403, 1.0
  %v4406 = vrcp.pop %v4404
  %v4407 = vmul.f32 1.0, %v4406
  %v4408 = vrcp.pop %v4405
  %v4409 = vmul.f32 1.0, %v4408
  %4410 = vmatprep.subr.mxu0 0.0
  %4411 = vmatpush1.msra.mxu0 %v2736
  %4412 = vmatprep.subr.mxu0 0.0
  %4413 = vmatpush1.msra.mxu0 %v2738
  %4414 = vmatprep.subr.mxu0 0.0
  %4415 = vmatpush1.msra.mxu0 %v2740
  %4416 = vmatprep.subr.mxu0 0.0
  %4417 = vmatpush1.msra.mxu0 %v2742
  %4418 = vmatprep.subr.mxu0 0.0
  %4419 = vmatpush1.msra.mxu0 0.0
  %4420 = vmatprep.subr.mxu0 0.0
  %4421 = vmatpush1.msra.mxu0 0.0
  %4422 = vmatprep.subr.mxu0 0.0
  %4423 = vmatpush1.msra.mxu0 0.0
  %4424 = vmatprep.subr.mxu0 0.0
  %4425 = vmatpush1.msra.mxu0 0.0
  %4426 = vmatprep.subr.mxu0 0.0
  %4427 = vmatpush1.msra.mxu0 0.0
  %4428 = vmatprep.subr.mxu0 0.0
  %4429 = vmatpush1.msra.mxu0 0.0
  %4430 = vmatprep.subr.mxu0 0.0
  %4431 = vmatpush1.msra.mxu0 0.0
  %4432 = vmatprep.subr.mxu0 0.0
  %4433 = vmatpush1.msra.mxu0 0.0
  %4434 = vmatprep.subr.mxu0 0.0
  %4435 = vmatpush1.msra.mxu0 0.0
  %4436 = vmatprep.subr.mxu0 0.0
  %4437 = vmatpush1.msra.mxu0 0.0
  %4438 = vmatprep.subr.mxu0 0.0
  %4439 = vmatpush1.msra.mxu0 0.0
  %4440 = vmatprep.subr.mxu0 0.0
  %4441 = vmatpush1.msra.mxu0 0.0
  %4442 = vmatprep.subr.mxu0 0.0
  %4443 = vmatpush1.msra.mxu0 0.0
  %4444 = vmatprep.subr.mxu0 0.0
  %4445 = vmatpush1.msra.mxu0 0.0
  %4446 = vmatprep.subr.mxu0 0.0
  %4447 = vmatpush1.msra.mxu0 0.0
  %4448 = vmatprep.subr.mxu0 0.0
  %4449 = vmatpush1.msra.mxu0 0.0
  %4450 = vmatprep.subr.mxu0 0.0
  %4451 = vmatpush1.msra.mxu0 0.0
  %4452 = vmatprep.subr.mxu0 0.0
  %4453 = vmatpush1.msra.mxu0 0.0
  %4454 = vmatprep.subr.mxu0 0.0
  %4455 = vmatpush1.msra.mxu0 0.0
  %4456 = vmatprep.subr.mxu0 0.0
  %4457 = vmatpush1.msra.mxu0 0.0
  %4458 = vmatprep.subr.mxu0 0.0
  %4459 = vmatpush1.msra.mxu0 0.0
  %4460 = vmatprep.subr.mxu0 0.0
  %4461 = vmatpush1.msra.mxu0 0.0
  %4462 = vmatprep.subr.mxu0 0.0
  %4463 = vmatpush1.msra.mxu0 0.0
  %4464 = vmatprep.subr.mxu0 0.0
  %4465 = vmatpush1.msra.mxu0 0.0
  %4466 = vmatprep.subr.mxu0 0.0
  %4467 = vmatpush1.msra.mxu0 0.0
  %4468 = vmatprep.subr.mxu0 0.0
  %4469 = vmatpush1.msra.mxu0 0.0
  %4470 = vmatprep.subr.mxu0 0.0
  %4471 = vmatpush1.msra.mxu0 0.0
  %4472 = vmatprep.subr.mxu0 0.0
  %4473 = vmatpush1.msra.mxu0 0.0
  %4474 = vmatprep.mubr.f32.mxu0 0.0
  %4475 = vmatmul.mubr.f32.gmra.mrb[0].mxu0 %v4319
  %v4476 = vpop.f32.mrb[0].mxu0
  %v4477 = vadd.f32 0.0, %v4476
  %v4478 = vpop.f32.mrb[0].mxu0
  %4479 = vdwg.mxu0
  %v4481 = vrot.slane %v4477, 6
  %v4482 = vrot.slane %v4477, 7
  %4483 = vrot.lane.b32.xlu0 %v4481, 32
  %v4484 = vpop.permute.xlu0 %4483
  %4485 = vrot.lane.b32.xlu0 %v4482, 32
  %v4486 = vpop.permute.xlu0 %4485
  %v4489 = vadd.f32 %v2538, %v4484
  %v4490 = vadd.f32 %v2543, %v4486
  %v4491 = vxor.u32 %v4489, 2147483648
  %v4492 = vxor.u32 %v4490, 2147483648
  %v4493 = vmul.f32 %v4491, 1.442695
  %v4494 = vpow.pop %v4493
  %v4495 = vmul.f32 %v4492, 1.442695
  %v4496 = vpow.pop %v4495
  %v4497 = vadd.f32 %v4494, 1.0
  %v4498 = vadd.f32 %v4496, 1.0
  %v4499 = vrcp.pop %v4497
  %v4500 = vmul.f32 1.0, %v4499
  %v4501 = vrcp.pop %v4498
  %v4502 = vmul.f32 1.0, %v4501
  %4503 = vmatprep.subr.mxu0 0.0
  %4504 = vmatpush1.msra.mxu0 %v2840
  %4505 = vmatprep.subr.mxu0 0.0
  %4506 = vmatpush1.msra.mxu0 %v2842
  %4507 = vmatprep.subr.mxu0 0.0
  %4508 = vmatpush1.msra.mxu0 %v2844
  %4509 = vmatprep.subr.mxu0 0.0
  %4510 = vmatpush1.msra.mxu0 %v2846
  %4511 = vmatprep.subr.mxu0 0.0
  %4512 = vmatpush1.msra.mxu0 0.0
  %4513 = vmatprep.subr.mxu0 0.0
  %4514 = vmatpush1.msra.mxu0 0.0
  %4515 = vmatprep.subr.mxu0 0.0
  %4516 = vmatpush1.msra.mxu0 0.0
  %4517 = vmatprep.subr.mxu0 0.0
  %4518 = vmatpush1.msra.mxu0 0.0
  %4519 = vmatprep.subr.mxu0 0.0
  %4520 = vmatpush1.msra.mxu0 0.0
  %4521 = vmatprep.subr.mxu0 0.0
  %4522 = vmatpush1.msra.mxu0 0.0
  %4523 = vmatprep.subr.mxu0 0.0
  %4524 = vmatpush1.msra.mxu0 0.0
  %4525 = vmatprep.subr.mxu0 0.0
  %4526 = vmatpush1.msra.mxu0 0.0
  %4527 = vmatprep.subr.mxu0 0.0
  %4528 = vmatpush1.msra.mxu0 0.0
  %4529 = vmatprep.subr.mxu0 0.0
  %4530 = vmatpush1.msra.mxu0 0.0
  %4531 = vmatprep.subr.mxu0 0.0
  %4532 = vmatpush1.msra.mxu0 0.0
  %4533 = vmatprep.subr.mxu0 0.0
  %4534 = vmatpush1.msra.mxu0 0.0
  %4535 = vmatprep.subr.mxu0 0.0
  %4536 = vmatpush1.msra.mxu0 0.0
  %4537 = vmatprep.subr.mxu0 0.0
  %4538 = vmatpush1.msra.mxu0 0.0
  %4539 = vmatprep.subr.mxu0 0.0
  %4540 = vmatpush1.msra.mxu0 0.0
  %4541 = vmatprep.subr.mxu0 0.0
  %4542 = vmatpush1.msra.mxu0 0.0
  %4543 = vmatprep.subr.mxu0 0.0
  %4544 = vmatpush1.msra.mxu0 0.0
  %4545 = vmatprep.subr.mxu0 0.0
  %4546 = vmatpush1.msra.mxu0 0.0
  %4547 = vmatprep.subr.mxu0 0.0
  %4548 = vmatpush1.msra.mxu0 0.0
  %4549 = vmatprep.subr.mxu0 0.0
  %4550 = vmatpush1.msra.mxu0 0.0
  %4551 = vmatprep.subr.mxu0 0.0
  %4552 = vmatpush1.msra.mxu0 0.0
  %4553 = vmatprep.subr.mxu0 0.0
  %4554 = vmatpush1.msra.mxu0 0.0
  %4555 = vmatprep.subr.mxu0 0.0
  %4556 = vmatpush1.msra.mxu0 0.0
  %4557 = vmatprep.subr.mxu0 0.0
  %4558 = vmatpush1.msra.mxu0 0.0
  %4559 = vmatprep.subr.mxu0 0.0
  %4560 = vmatpush1.msra.mxu0 0.0
  %4561 = vmatprep.subr.mxu0 0.0
  %4562 = vmatpush1.msra.mxu0 0.0
  %4563 = vmatprep.subr.mxu0 0.0
  %4564 = vmatpush1.msra.mxu0 0.0
  %4565 = vmatprep.subr.mxu0 0.0
  %4566 = vmatpush1.msra.mxu0 0.0
  %4567 = vmatprep.mubr.f32.mxu0 0.0
  %4568 = vmatmul.mubr.f32.gmra.mrb[0].mxu0 %v4319
  %v4569 = vpop.f32.mrb[0].mxu0
  %v4570 = vadd.f32 0.0, %v4569
  %v4571 = vpop.f32.mrb[0].mxu0
  %4572 = vdwg.mxu0
  %v4574 = vrot.slane %v4570, 6
  %v4575 = vrot.slane %v4570, 7
  %4576 = vrot.lane.b32.xlu0 %v4574, 64
  %v4577 = vpop.permute.xlu0 %4576
  %4578 = vrot.lane.b32.xlu0 %v4575, 64
  %v4579 = vpop.permute.xlu0 %4578
  %v4582 = vadd.f32 %v2538, %v4577
  %v4583 = vadd.f32 %v2543, %v4579
  %v4584 = vtanh.pop %v4582
  %v4585 = vtanh.pop %v4583
  %4586 = vmatprep.subr.mxu0 0.0
  %4587 = vmatpush1.msra.mxu0 %v2934
  %4588 = vmatprep.subr.mxu0 0.0
  %4589 = vmatpush1.msra.mxu0 %v2936
  %4590 = vmatprep.subr.mxu0 0.0
  %4591 = vmatpush1.msra.mxu0 %v2938
  %4592 = vmatprep.subr.mxu0 0.0
  %4593 = vmatpush1.msra.mxu0 %v2940
  %4594 = vmatprep.subr.mxu0 0.0
  %4595 = vmatpush1.msra.mxu0 0.0
  %4596 = vmatprep.subr.mxu0 0.0
  %4597 = vmatpush1.msra.mxu0 0.0
  %4598 = vmatprep.subr.mxu0 0.0
  %4599 = vmatpush1.msra.mxu0 0.0
  %4600 = vmatprep.subr.mxu0 0.0
  %4601 = vmatpush1.msra.mxu0 0.0
  %4602 = vmatprep.subr.mxu0 0.0
  %4603 = vmatpush1.msra.mxu0 0.0
  %4604 = vmatprep.subr.mxu0 0.0
  %4605 = vmatpush1.msra.mxu0 0.0
  %4606 = vmatprep.subr.mxu0 0.0
  %4607 = vmatpush1.msra.mxu0 0.0
  %4608 = vmatprep.subr.mxu0 0.0
  %4609 = vmatpush1.msra.mxu0 0.0
  %4610 = vmatprep.subr.mxu0 0.0
  %4611 = vmatpush1.msra.mxu0 0.0
  %4612 = vmatprep.subr.mxu0 0.0
  %4613 = vmatpush1.msra.mxu0 0.0
  %4614 = vmatprep.subr.mxu0 0.0
  %4615 = vmatpush1.msra.mxu0 0.0
  %4616 = vmatprep.subr.mxu0 0.0
  %4617 = vmatpush1.msra.mxu0 0.0
  %4618 = vmatprep.subr.mxu0 0.0
  %4619 = vmatpush1.msra.mxu0 0.0
  %4620 = vmatprep.subr.mxu0 0.0
  %4621 = vmatpush1.msra.mxu0 0.0
  %4622 = vmatprep.subr.mxu0 0.0
  %4623 = vmatpush1.msra.mxu0 0.0
  %4624 = vmatprep.subr.mxu0 0.0
  %4625 = vmatpush1.msra.mxu0 0.0
  %4626 = vmatprep.subr.mxu0 0.0
  %4627 = vmatpush1.msra.mxu0 0.0
  %4628 = vmatprep.subr.mxu0 0.0
  %4629 = vmatpush1.msra.mxu0 0.0
  %4630 = vmatprep.subr.mxu0 0.0
  %4631 = vmatpush1.msra.mxu0 0.0
  %4632 = vmatprep.subr.mxu0 0.0
  %4633 = vmatpush1.msra.mxu0 0.0
  %4634 = vmatprep.subr.mxu0 0.0
  %4635 = vmatpush1.msra.mxu0 0.0
  %4636 = vmatprep.subr.mxu0 0.0
  %4637 = vmatpush1.msra.mxu0 0.0
  %4638 = vmatprep.subr.mxu0 0.0
  %4639 = vmatpush1.msra.mxu0 0.0
  %4640 = vmatprep.subr.mxu0 0.0
  %4641 = vmatpush1.msra.mxu0 0.0
  %4642 = vmatprep.subr.mxu0 0.0
  %4643 = vmatpush1.msra.mxu0 0.0
  %4644 = vmatprep.subr.mxu0 0.0
  %4645 = vmatpush1.msra.mxu0 0.0
  %4646 = vmatprep.subr.mxu0 0.0
  %4647 = vmatpush1.msra.mxu0 0.0
  %4648 = vmatprep.subr.mxu0 0.0
  %4649 = vmatpush1.msra.mxu0 0.0
  %4650 = vmatprep.mubr.f32.mxu0 0.0
  %4651 = vmatmul.mubr.f32.gmra.mrb[0].mxu0 %v4319
  %v4652 = vpop.f32.mrb[0].mxu0
  %v4653 = vadd.f32 0.0, %v4652
  %v4654 = vpop.f32.mrb[0].mxu0
  %4655 = vdwg.mxu0
  %v4657 = vrot.slane %v4653, 6
  %v4658 = vrot.slane %v4653, 7
  %4659 = vrot.lane.b32.xlu0 %v4657, 96
  %v4660 = vpop.permute.xlu0 %4659
  %4661 = vrot.lane.b32.xlu0 %v4658, 96
  %v4662 = vpop.permute.xlu0 %4661
  %v4665 = vadd.f32 %v2538, %v4660
  %v4666 = vadd.f32 %v2543, %v4662
  %v4667 = vxor.u32 %v4665, 2147483648
  %v4668 = vxor.u32 %v4666, 2147483648
  %v4669 = vmul.f32 %v4667, 1.442695
  %v4670 = vpow.pop %v4669
  %v4671 = vmul.f32 %v4668, 1.442695
  %v4672 = vpow.pop %v4671
  %v4673 = vadd.f32 %v4670, 1.0
  %v4674 = vadd.f32 %v4672, 1.0
  %v4675 = vrcp.pop %v4673
  %v4676 = vmul.f32 1.0, %v4675
  %v4677 = vrcp.pop %v4674
  %v4678 = vmul.f32 1.0, %v4677
  %v4681 = vrot.slane %v3892, 7
  %v4682 = vrot.slane %v3893, 7
  %v4685 = vmul.f32 %v4500, %v4681
  %v4686 = vmul.f32 %v4502, %v4682
  %4689 = vrot.lane.b32.xlu0 %v4584, 64
  %v4690 = vpop.permute.xlu0 %4689
  %4691 = vrot.lane.b32.xlu0 %v4585, 64
  %v4692 = vpop.permute.xlu0 %4691
  %v4695 = vmul.f32 %v4407, %v4690
  %v4696 = vmul.f32 %v4409, %v4692
  %4699 = vrot.lane.b32.xlu0 %v4695, 32
  %v4700 = vpop.permute.xlu0 %4699
  %4701 = vrot.lane.b32.xlu0 %v4696, 32
  %v4702 = vpop.permute.xlu0 %4701
  %v4705 = vadd.f32 %v4685, %v4700
  %v4706 = vadd.f32 %v4686, %v4702
  %v4707 = vtanh.pop %v4705
  %v4708 = vtanh.pop %v4706
  %4711 = vrot.lane.b32.xlu0 %v4707, 64
  %v4712 = vpop.permute.xlu0 %4711
  %4713 = vrot.lane.b32.xlu0 %v4708, 64
  %v4714 = vpop.permute.xlu0 %4713
  %v4717 = vmul.f32 %v4676, %v4712
  %v4718 = vmul.f32 %v4678, %v4714
  %v4721 = vrot.slane %v4311, 6
  %v4722 = vrot.slane %v4312, 5
  %v4723 = vsel %vm3506, %v4722, %v4721
  %4724 = vrot.lane.b32.xlu0 %v4723, 32
  %v4725 = vpop.permute.xlu0 %4724
  %v4726 = vsel %vm84, %v4725, 0
  %4728 = vmatprep.subr.mxu0 0.0
  %4729 = vmatpush1.msra.mxu0 %v2636
  %4730 = vmatprep.subr.mxu0 0.0
  %4731 = vmatpush1.msra.mxu0 %v2637
  %4732 = vmatprep.subr.mxu0 0.0
  %4733 = vmatpush1.msra.mxu0 %v2638
  %4734 = vmatprep.subr.mxu0 0.0
  %4735 = vmatpush1.msra.mxu0 %v2639
  %4736 = vmatprep.subr.mxu0 0.0
  %4737 = vmatpush1.msra.mxu0 0.0
  %4738 = vmatprep.subr.mxu0 0.0
  %4739 = vmatpush1.msra.mxu0 0.0
  %4740 = vmatprep.subr.mxu0 0.0
  %4741 = vmatpush1.msra.mxu0 0.0
  %4742 = vmatprep.subr.mxu0 0.0
  %4743 = vmatpush1.msra.mxu0 0.0
  %4744 = vmatprep.subr.mxu0 0.0
  %4745 = vmatpush1.msra.mxu0 0.0
  %4746 = vmatprep.subr.mxu0 0.0
  %4747 = vmatpush1.msra.mxu0 0.0
  %4748 = vmatprep.subr.mxu0 0.0
  %4749 = vmatpush1.msra.mxu0 0.0
  %4750 = vmatprep.subr.mxu0 0.0
  %4751 = vmatpush1.msra.mxu0 0.0
  %4752 = vmatprep.subr.mxu0 0.0
  %4753 = vmatpush1.msra.mxu0 0.0
  %4754 = vmatprep.subr.mxu0 0.0
  %4755 = vmatpush1.msra.mxu0 0.0
  %4756 = vmatprep.subr.mxu0 0.0
  %4757 = vmatpush1.msra.mxu0 0.0
  %4758 = vmatprep.subr.mxu0 0.0
  %4759 = vmatpush1.msra.mxu0 0.0
  %4760 = vmatprep.subr.mxu0 0.0
  %4761 = vmatpush1.msra.mxu0 0.0
  %4762 = vmatprep.subr.mxu0 0.0
  %4763 = vmatpush1.msra.mxu0 0.0
  %4764 = vmatprep.subr.mxu0 0.0
  %4765 = vmatpush1.msra.mxu0 0.0
  %4766 = vmatprep.subr.mxu0 0.0
  %4767 = vmatpush1.msra.mxu0 0.0
  %4768 = vmatprep.subr.mxu0 0.0
  %4769 = vmatpush1.msra.mxu0 0.0
  %4770 = vmatprep.subr.mxu0 0.0
  %4771 = vmatpush1.msra.mxu0 0.0
  %4772 = vmatprep.subr.mxu0 0.0
  %4773 = vmatpush1.msra.mxu0 0.0
  %4774 = vmatprep.subr.mxu0 0.0
  %4775 = vmatpush1.msra.mxu0 0.0
  %4776 = vmatprep.subr.mxu0 0.0
  %4777 = vmatpush1.msra.mxu0 0.0
  %4778 = vmatprep.subr.mxu0 0.0
  %4779 = vmatpush1.msra.mxu0 0.0
  %4780 = vmatprep.subr.mxu0 0.0
  %4781 = vmatpush1.msra.mxu0 0.0
  %4782 = vmatprep.subr.mxu0 0.0
  %4783 = vmatpush1.msra.mxu0 0.0
  %4784 = vmatprep.subr.mxu0 0.0
  %4785 = vmatpush1.msra.mxu0 0.0
  %4786 = vmatprep.subr.mxu0 0.0
  %4787 = vmatpush1.msra.mxu0 0.0
  %4788 = vmatprep.subr.mxu0 0.0
  %4789 = vmatpush1.msra.mxu0 0.0
  %4790 = vmatprep.subr.mxu0 0.0
  %4791 = vmatpush1.msra.mxu0 0.0
  %4792 = vmatprep.mubr.f32.mxu0 0.0
  %4793 = vmatmul.mubr.f32.gmra.mrb[0].mxu0 %v4726
  %v4794 = vpop.f32.mrb[0].mxu0
  %v4795 = vadd.f32 0.0, %v4794
  %v4796 = vpop.f32.mrb[0].mxu0
  %4797 = vdwg.mxu0
  %v4799 = vrot.slane %v4795, 3
  %v4800 = vrot.slane %v4795, 4
  %v4803 = vadd.f32 %v2624, %v4799
  %v4804 = vadd.f32 %v2629, %v4800
  %v4805 = vxor.u32 %v4803, 2147483648
  %v4806 = vxor.u32 %v4804, 2147483648
  %v4807 = vmul.f32 %v4805, 1.442695
  %v4808 = vpow.pop %v4807
  %v4809 = vmul.f32 %v4806, 1.442695
  %v4810 = vpow.pop %v4809
  %v4811 = vadd.f32 %v4808, 1.0
  %v4812 = vadd.f32 %v4810, 1.0
  %v4813 = vrcp.pop %v4811
  %v4814 = vmul.f32 1.0, %v4813
  %v4815 = vrcp.pop %v4812
  %v4816 = vmul.f32 1.0, %v4815
  %4817 = vmatprep.subr.mxu0 0.0
  %4818 = vmatpush1.msra.mxu0 %v3165
  %4819 = vmatprep.subr.mxu0 0.0
  %4820 = vmatpush1.msra.mxu0 %v3167
  %4821 = vmatprep.subr.mxu0 0.0
  %4822 = vmatpush1.msra.mxu0 %v3169
  %4823 = vmatprep.subr.mxu0 0.0
  %4824 = vmatpush1.msra.mxu0 %v3171
  %4825 = vmatprep.subr.mxu0 0.0
  %4826 = vmatpush1.msra.mxu0 0.0
  %4827 = vmatprep.subr.mxu0 0.0
  %4828 = vmatpush1.msra.mxu0 0.0
  %4829 = vmatprep.subr.mxu0 0.0
  %4830 = vmatpush1.msra.mxu0 0.0
  %4831 = vmatprep.subr.mxu0 0.0
  %4832 = vmatpush1.msra.mxu0 0.0
  %4833 = vmatprep.subr.mxu0 0.0
  %4834 = vmatpush1.msra.mxu0 0.0
  %4835 = vmatprep.subr.mxu0 0.0
  %4836 = vmatpush1.msra.mxu0 0.0
  %4837 = vmatprep.subr.mxu0 0.0
  %4838 = vmatpush1.msra.mxu0 0.0
  %4839 = vmatprep.subr.mxu0 0.0
  %4840 = vmatpush1.msra.mxu0 0.0
  %4841 = vmatprep.subr.mxu0 0.0
  %4842 = vmatpush1.msra.mxu0 0.0
  %4843 = vmatprep.subr.mxu0 0.0
  %4844 = vmatpush1.msra.mxu0 0.0
  %4845 = vmatprep.subr.mxu0 0.0
  %4846 = vmatpush1.msra.mxu0 0.0
  %4847 = vmatprep.subr.mxu0 0.0
  %4848 = vmatpush1.msra.mxu0 0.0
  %4849 = vmatprep.subr.mxu0 0.0
  %4850 = vmatpush1.msra.mxu0 0.0
  %4851 = vmatprep.subr.mxu0 0.0
  %4852 = vmatpush1.msra.mxu0 0.0
  %4853 = vmatprep.subr.mxu0 0.0
  %4854 = vmatpush1.msra.mxu0 0.0
  %4855 = vmatprep.subr.mxu0 0.0
  %4856 = vmatpush1.msra.mxu0 0.0
  %4857 = vmatprep.subr.mxu0 0.0
  %4858 = vmatpush1.msra.mxu0 0.0
  %4859 = vmatprep.subr.mxu0 0.0
  %4860 = vmatpush1.msra.mxu0 0.0
  %4861 = vmatprep.subr.mxu0 0.0
  %4862 = vmatpush1.msra.mxu0 0.0
  %4863 = vmatprep.subr.mxu0 0.0
  %4864 = vmatpush1.msra.mxu0 0.0
  %4865 = vmatprep.subr.mxu0 0.0
  %4866 = vmatpush1.msra.mxu0 0.0
  %4867 = vmatprep.subr.mxu0 0.0
  %4868 = vmatpush1.msra.mxu0 0.0
  %4869 = vmatprep.subr.mxu0 0.0
  %4870 = vmatpush1.msra.mxu0 0.0
  %4871 = vmatprep.subr.mxu0 0.0
  %4872 = vmatpush1.msra.mxu0 0.0
  %4873 = vmatprep.subr.mxu0 0.0
  %4874 = vmatpush1.msra.mxu0 0.0
  %4875 = vmatprep.subr.mxu0 0.0
  %4876 = vmatpush1.msra.mxu0 0.0
  %4877 = vmatprep.subr.mxu0 0.0
  %4878 = vmatpush1.msra.mxu0 0.0
  %4879 = vmatprep.subr.mxu0 0.0
  %4880 = vmatpush1.msra.mxu0 0.0
  %4881 = vmatprep.mubr.f32.mxu0 0.0
  %4882 = vmatmul.mubr.f32.gmra.mrb[0].mxu0 %v4726
  %v4883 = vpop.f32.mrb[0].mxu0
  %v4884 = vadd.f32 0.0, %v4883
  %v4885 = vpop.f32.mrb[0].mxu0
  %4886 = vdwg.mxu0
  %v4888 = vrot.slane %v4884, 3
  %v4889 = vrot.slane %v4884, 4
  %4890 = vrot.lane.b32.xlu0 %v4888, 32
  %v4891 = vpop.permute.xlu0 %4890
  %4892 = vrot.lane.b32.xlu0 %v4889, 32
  %v4893 = vpop.permute.xlu0 %4892
  %v4896 = vadd.f32 %v2624, %v4891
  %v4897 = vadd.f32 %v2629, %v4893
  %v4898 = vxor.u32 %v4896, 2147483648
  %v4899 = vxor.u32 %v4897, 2147483648
  %v4900 = vmul.f32 %v4898, 1.442695
  %v4901 = vpow.pop %v4900
  %v4902 = vmul.f32 %v4899, 1.442695
  %v4903 = vpow.pop %v4902
  %v4904 = vadd.f32 %v4901, 1.0
  %v4905 = vadd.f32 %v4903, 1.0
  %v4906 = vrcp.pop %v4904
  %v4907 = vmul.f32 1.0, %v4906
  %v4908 = vrcp.pop %v4905
  %v4909 = vmul.f32 1.0, %v4908
  %4910 = vmatprep.subr.mxu0 0.0
  %4911 = vmatpush1.msra.mxu0 %v3270
  %4912 = vmatprep.subr.mxu0 0.0
  %4913 = vmatpush1.msra.mxu0 %v3272
  %4914 = vmatprep.subr.mxu0 0.0
  %4915 = vmatpush1.msra.mxu0 %v3274
  %4916 = vmatprep.subr.mxu0 0.0
  %4917 = vmatpush1.msra.mxu0 %v3276
  %4918 = vmatprep.subr.mxu0 0.0
  %4919 = vmatpush1.msra.mxu0 0.0
  %4920 = vmatprep.subr.mxu0 0.0
  %4921 = vmatpush1.msra.mxu0 0.0
  %4922 = vmatprep.subr.mxu0 0.0
  %4923 = vmatpush1.msra.mxu0 0.0
  %4924 = vmatprep.subr.mxu0 0.0
  %4925 = vmatpush1.msra.mxu0 0.0
  %4926 = vmatprep.subr.mxu0 0.0
  %4927 = vmatpush1.msra.mxu0 0.0
  %4928 = vmatprep.subr.mxu0 0.0
  %4929 = vmatpush1.msra.mxu0 0.0
  %4930 = vmatprep.subr.mxu0 0.0
  %4931 = vmatpush1.msra.mxu0 0.0
  %4932 = vmatprep.subr.mxu0 0.0
  %4933 = vmatpush1.msra.mxu0 0.0
  %4934 = vmatprep.subr.mxu0 0.0
  %4935 = vmatpush1.msra.mxu0 0.0
  %4936 = vmatprep.subr.mxu0 0.0
  %4937 = vmatpush1.msra.mxu0 0.0
  %4938 = vmatprep.subr.mxu0 0.0
  %4939 = vmatpush1.msra.mxu0 0.0
  %4940 = vmatprep.subr.mxu0 0.0
  %4941 = vmatpush1.msra.mxu0 0.0
  %4942 = vmatprep.subr.mxu0 0.0
  %4943 = vmatpush1.msra.mxu0 0.0
  %4944 = vmatprep.subr.mxu0 0.0
  %4945 = vmatpush1.msra.mxu0 0.0
  %4946 = vmatprep.subr.mxu0 0.0
  %4947 = vmatpush1.msra.mxu0 0.0
  %4948 = vmatprep.subr.mxu0 0.0
  %4949 = vmatpush1.msra.mxu0 0.0
  %4950 = vmatprep.subr.mxu0 0.0
  %4951 = vmatpush1.msra.mxu0 0.0
  %4952 = vmatprep.subr.mxu0 0.0
  %4953 = vmatpush1.msra.mxu0 0.0
  %4954 = vmatprep.subr.mxu0 0.0
  %4955 = vmatpush1.msra.mxu0 0.0
  %4956 = vmatprep.subr.mxu0 0.0
  %4957 = vmatpush1.msra.mxu0 0.0
  %4958 = vmatprep.subr.mxu0 0.0
  %4959 = vmatpush1.msra.mxu0 0.0
  %4960 = vmatprep.subr.mxu0 0.0
  %4961 = vmatpush1.msra.mxu0 0.0
  %4962 = vmatprep.subr.mxu0 0.0
  %4963 = vmatpush1.msra.mxu0 0.0
  %4964 = vmatprep.subr.mxu0 0.0
  %4965 = vmatpush1.msra.mxu0 0.0
  %4966 = vmatprep.subr.mxu0 0.0
  %4967 = vmatpush1.msra.mxu0 0.0
  %4968 = vmatprep.subr.mxu0 0.0
  %4969 = vmatpush1.msra.mxu0 0.0
  %4970 = vmatprep.subr.mxu0 0.0
  %4971 = vmatpush1.msra.mxu0 0.0
  %4972 = vmatprep.subr.mxu0 0.0
  %4973 = vmatpush1.msra.mxu0 0.0
  %4974 = vmatprep.mubr.f32.mxu0 0.0
  %4975 = vmatmul.mubr.f32.gmra.mrb[0].mxu0 %v4726
  %v4976 = vpop.f32.mrb[0].mxu0
  %v4977 = vadd.f32 0.0, %v4976
  %v4978 = vpop.f32.mrb[0].mxu0
  %4979 = vdwg.mxu0
  %v4981 = vrot.slane %v4977, 3
  %v4982 = vrot.slane %v4977, 4
  %4983 = vrot.lane.b32.xlu0 %v4981, 64
  %v4984 = vpop.permute.xlu0 %4983
  %4985 = vrot.lane.b32.xlu0 %v4982, 64
  %v4986 = vpop.permute.xlu0 %4985
  %v4989 = vadd.f32 %v2624, %v4984
  %v4990 = vadd.f32 %v2629, %v4986
  %v4991 = vtanh.pop %v4989
  %v4992 = vtanh.pop %v4990
  %4993 = vmatprep.subr.mxu0 0.0
  %4994 = vmatpush1.msra.mxu0 %v3365
  %4995 = vmatprep.subr.mxu0 0.0
  %4996 = vmatpush1.msra.mxu0 %v3367
  %4997 = vmatprep.subr.mxu0 0.0
  %4998 = vmatpush1.msra.mxu0 %v3369
  %4999 = vmatprep.subr.mxu0 0.0
  %5000 = vmatpush1.msra.mxu0 %v3371
  %5001 = vmatprep.subr.mxu0 0.0
  %5002 = vmatpush1.msra.mxu0 0.0
  %5003 = vmatprep.subr.mxu0 0.0
  %5004 = vmatpush1.msra.mxu0 0.0
  %5005 = vmatprep.subr.mxu0 0.0
  %5006 = vmatpush1.msra.mxu0 0.0
  %5007 = vmatprep.subr.mxu0 0.0
  %5008 = vmatpush1.msra.mxu0 0.0
  %5009 = vmatprep.subr.mxu0 0.0
  %5010 = vmatpush1.msra.mxu0 0.0
  %5011 = vmatprep.subr.mxu0 0.0
  %5012 = vmatpush1.msra.mxu0 0.0
  %5013 = vmatprep.subr.mxu0 0.0
  %5014 = vmatpush1.msra.mxu0 0.0
  %5015 = vmatprep.subr.mxu0 0.0
  %5016 = vmatpush1.msra.mxu0 0.0
  %5017 = vmatprep.subr.mxu0 0.0
  %5018 = vmatpush1.msra.mxu0 0.0
  %5019 = vmatprep.subr.mxu0 0.0
  %5020 = vmatpush1.msra.mxu0 0.0
  %5021 = vmatprep.subr.mxu0 0.0
  %5022 = vmatpush1.msra.mxu0 0.0
  %5023 = vmatprep.subr.mxu0 0.0
  %5024 = vmatpush1.msra.mxu0 0.0
  %5025 = vmatprep.subr.mxu0 0.0
  %5026 = vmatpush1.msra.mxu0 0.0
  %5027 = vmatprep.subr.mxu0 0.0
  %5028 = vmatpush1.msra.mxu0 0.0
  %5029 = vmatprep.subr.mxu0 0.0
  %5030 = vmatpush1.msra.mxu0 0.0
  %5031 = vmatprep.subr.mxu0 0.0
  %5032 = vmatpush1.msra.mxu0 0.0
  %5033 = vmatprep.subr.mxu0 0.0
  %5034 = vmatpush1.msra.mxu0 0.0
  %5035 = vmatprep.subr.mxu0 0.0
  %5036 = vmatpush1.msra.mxu0 0.0
  %5037 = vmatprep.subr.mxu0 0.0
  %5038 = vmatpush1.msra.mxu0 0.0
  %5039 = vmatprep.subr.mxu0 0.0
  %5040 = vmatpush1.msra.mxu0 0.0
  %5041 = vmatprep.subr.mxu0 0.0
  %5042 = vmatpush1.msra.mxu0 0.0
  %5043 = vmatprep.subr.mxu0 0.0
  %5044 = vmatpush1.msra.mxu0 0.0
  %5045 = vmatprep.subr.mxu0 0.0
  %5046 = vmatpush1.msra.mxu0 0.0
  %5047 = vmatprep.subr.mxu0 0.0
  %5048 = vmatpush1.msra.mxu0 0.0
  %5049 = vmatprep.subr.mxu0 0.0
  %5050 = vmatpush1.msra.mxu0 0.0
  %5051 = vmatprep.subr.mxu0 0.0
  %5052 = vmatpush1.msra.mxu0 0.0
  %5053 = vmatprep.subr.mxu0 0.0
  %5054 = vmatpush1.msra.mxu0 0.0
  %5055 = vmatprep.subr.mxu0 0.0
  %5056 = vmatpush1.msra.mxu0 0.0
  %5057 = vmatprep.mubr.f32.mxu0 0.0
  %5058 = vmatmul.mubr.f32.gmra.mrb[0].mxu0 %v4726
  %v5059 = vpop.f32.mrb[0].mxu0
  %v5060 = vadd.f32 0.0, %v5059
  %v5061 = vpop.f32.mrb[0].mxu0
  %5062 = vdwg.mxu0
  %v5064 = vrot.slane %v5060, 3
  %v5065 = vrot.slane %v5060, 4
  %5066 = vrot.lane.b32.xlu0 %v5064, 96
  %v5067 = vpop.permute.xlu0 %5066
  %5068 = vrot.lane.b32.xlu0 %v5065, 96
  %v5069 = vpop.permute.xlu0 %5068
  %v5072 = vadd.f32 %v2624, %v5067
  %v5073 = vadd.f32 %v2629, %v5069
  %v5074 = vxor.u32 %v5072, 2147483648
  %v5075 = vxor.u32 %v5073, 2147483648
  %v5076 = vmul.f32 %v5074, 1.442695
  %v5077 = vpow.pop %v5076
  %v5078 = vmul.f32 %v5075, 1.442695
  %v5079 = vpow.pop %v5078
  %v5080 = vadd.f32 %v5077, 1.0
  %v5081 = vadd.f32 %v5079, 1.0
  %v5082 = vrcp.pop %v5080
  %v5083 = vmul.f32 1.0, %v5082
  %v5084 = vrcp.pop %v5081
  %v5085 = vmul.f32 1.0, %v5084
  %v5088 = vrot.slane %v4299, 1
  %v5089 = vrot.slane %v4300, 1
  %v5092 = vmul.f32 %v4907, %v5088
  %v5093 = vmul.f32 %v4909, %v5089
  %5096 = vrot.lane.b32.xlu0 %v4991, 64
  %v5097 = vpop.permute.xlu0 %5096
  %5098 = vrot.lane.b32.xlu0 %v4992, 64
  %v5099 = vpop.permute.xlu0 %5098
  %v5102 = vmul.f32 %v4814, %v5097
  %v5103 = vmul.f32 %v4816, %v5099
  %5106 = vrot.lane.b32.xlu0 %v5102, 32
  %v5107 = vpop.permute.xlu0 %5106
  %5108 = vrot.lane.b32.xlu0 %v5103, 32
  %v5109 = vpop.permute.xlu0 %5108
  %v5112 = vadd.f32 %v5092, %v5107
  %v5113 = vadd.f32 %v5093, %v5109
  %v5114 = vtanh.pop %v5112
  %v5115 = vtanh.pop %v5113
  %5118 = vrot.lane.b32.xlu0 %v5114, 64
  %v5119 = vpop.permute.xlu0 %5118
  %5120 = vrot.lane.b32.xlu0 %v5115, 64
  %v5121 = vpop.permute.xlu0 %5120
  %v5124 = vmul.f32 %v5083, %v5119
  %v5125 = vmul.f32 %v5085, %v5121
  %v5128 = vrot.slane %v4717, 2
  %v5129 = vrot.slane %v4718, 1
  %v5130 = vsel %vm3506, %v5129, %v5128
  %5131 = vrot.lane.b32.xlu0 %v5130, 32
  %v5132 = vpop.permute.xlu0 %5131
  %v5133 = vsel %vm84, %v5132, 0
  %5135 = vmatprep.subr.mxu0 0.0
  %5136 = vmatpush1.msra.mxu0 %v2632
  %5137 = vmatprep.subr.mxu0 0.0
  %5138 = vmatpush1.msra.mxu0 %v2633
  %5139 = vmatprep.subr.mxu0 0.0
  %5140 = vmatpush1.msra.mxu0 %v2634
  %5141 = vmatprep.subr.mxu0 0.0
  %5142 = vmatpush1.msra.mxu0 %v2635
  %5143 = vmatprep.subr.mxu0 0.0
  %5144 = vmatpush1.msra.mxu0 0.0
  %5145 = vmatprep.subr.mxu0 0.0
  %5146 = vmatpush1.msra.mxu0 0.0
  %5147 = vmatprep.subr.mxu0 0.0
  %5148 = vmatpush1.msra.mxu0 0.0
  %5149 = vmatprep.subr.mxu0 0.0
  %5150 = vmatpush1.msra.mxu0 0.0
  %5151 = vmatprep.subr.mxu0 0.0
  %5152 = vmatpush1.msra.mxu0 0.0
  %5153 = vmatprep.subr.mxu0 0.0
  %5154 = vmatpush1.msra.mxu0 0.0
  %5155 = vmatprep.subr.mxu0 0.0
  %5156 = vmatpush1.msra.mxu0 0.0
  %5157 = vmatprep.subr.mxu0 0.0
  %5158 = vmatpush1.msra.mxu0 0.0
  %5159 = vmatprep.subr.mxu0 0.0
  %5160 = vmatpush1.msra.mxu0 0.0
  %5161 = vmatprep.subr.mxu0 0.0
  %5162 = vmatpush1.msra.mxu0 0.0
  %5163 = vmatprep.subr.mxu0 0.0
  %5164 = vmatpush1.msra.mxu0 0.0
  %5165 = vmatprep.subr.mxu0 0.0
  %5166 = vmatpush1.msra.mxu0 0.0
  %5167 = vmatprep.subr.mxu0 0.0
  %5168 = vmatpush1.msra.mxu0 0.0
  %5169 = vmatprep.subr.mxu0 0.0
  %5170 = vmatpush1.msra.mxu0 0.0
  %5171 = vmatprep.subr.mxu0 0.0
  %5172 = vmatpush1.msra.mxu0 0.0
  %5173 = vmatprep.subr.mxu0 0.0
  %5174 = vmatpush1.msra.mxu0 0.0
  %5175 = vmatprep.subr.mxu0 0.0
  %5176 = vmatpush1.msra.mxu0 0.0
  %5177 = vmatprep.subr.mxu0 0.0
  %5178 = vmatpush1.msra.mxu0 0.0
  %5179 = vmatprep.subr.mxu0 0.0
  %5180 = vmatpush1.msra.mxu0 0.0
  %5181 = vmatprep.subr.mxu0 0.0
  %5182 = vmatpush1.msra.mxu0 0.0
  %5183 = vmatprep.subr.mxu0 0.0
  %5184 = vmatpush1.msra.mxu0 0.0
  %5185 = vmatprep.subr.mxu0 0.0
  %5186 = vmatpush1.msra.mxu0 0.0
  %5187 = vmatprep.subr.mxu0 0.0
  %5188 = vmatpush1.msra.mxu0 0.0
  %5189 = vmatprep.subr.mxu0 0.0
  %5190 = vmatpush1.msra.mxu0 0.0
  %5191 = vmatprep.subr.mxu0 0.0
  %5192 = vmatpush1.msra.mxu0 0.0
  %5193 = vmatprep.subr.mxu0 0.0
  %5194 = vmatpush1.msra.mxu0 0.0
  %5195 = vmatprep.subr.mxu0 0.0
  %5196 = vmatpush1.msra.mxu0 0.0
  %5197 = vmatprep.subr.mxu0 0.0
  %5198 = vmatpush1.msra.mxu0 0.0
  %5199 = vmatprep.mubr.f32.mxu0 0.0
  %5200 = vmatmul.mubr.f32.gmra.mrb[0].mxu0 %v5133
  %v5201 = vpop.f32.mrb[0].mxu0
  %v5202 = vadd.f32 0.0, %v5201
  %v5203 = vpop.f32.mrb[0].mxu0
  %5204 = vdwg.mxu0
  %v5206 = vrot.slane %v5202, 5
  %v5207 = vrot.slane %v5202, 6
  %v5210 = vadd.f32 %v2538, %v5206
  %v5211 = vadd.f32 %v2543, %v5207
  %v5212 = vxor.u32 %v5210, 2147483648
  %v5213 = vxor.u32 %v5211, 2147483648
  %v5214 = vmul.f32 %v5212, 1.442695
  %v5215 = vpow.pop %v5214
  %v5216 = vmul.f32 %v5213, 1.442695
  %v5217 = vpow.pop %v5216
  %v5218 = vadd.f32 %v5215, 1.0
  %v5219 = vadd.f32 %v5217, 1.0
  %v5220 = vrcp.pop %v5218
  %v5221 = vmul.f32 1.0, %v5220
  %v5222 = vrcp.pop %v5219
  %v5223 = vmul.f32 1.0, %v5222
  %5224 = vmatprep.subr.mxu0 0.0
  %5225 = vmatpush1.msra.mxu0 %v2736
  %5226 = vmatprep.subr.mxu0 0.0
  %5227 = vmatpush1.msra.mxu0 %v2738
  %5228 = vmatprep.subr.mxu0 0.0
  %5229 = vmatpush1.msra.mxu0 %v2740
  %5230 = vmatprep.subr.mxu0 0.0
  %5231 = vmatpush1.msra.mxu0 %v2742
  %5232 = vmatprep.subr.mxu0 0.0
  %5233 = vmatpush1.msra.mxu0 0.0
  %5234 = vmatprep.subr.mxu0 0.0
  %5235 = vmatpush1.msra.mxu0 0.0
  %5236 = vmatprep.subr.mxu0 0.0
  %5237 = vmatpush1.msra.mxu0 0.0
  %5238 = vmatprep.subr.mxu0 0.0
  %5239 = vmatpush1.msra.mxu0 0.0
  %5240 = vmatprep.subr.mxu0 0.0
  %5241 = vmatpush1.msra.mxu0 0.0
  %5242 = vmatprep.subr.mxu0 0.0
  %5243 = vmatpush1.msra.mxu0 0.0
  %5244 = vmatprep.subr.mxu0 0.0
  %5245 = vmatpush1.msra.mxu0 0.0
  %5246 = vmatprep.subr.mxu0 0.0
  %5247 = vmatpush1.msra.mxu0 0.0
  %5248 = vmatprep.subr.mxu0 0.0
  %5249 = vmatpush1.msra.mxu0 0.0
  %5250 = vmatprep.subr.mxu0 0.0
  %5251 = vmatpush1.msra.mxu0 0.0
  %5252 = vmatprep.subr.mxu0 0.0
  %5253 = vmatpush1.msra.mxu0 0.0
  %5254 = vmatprep.subr.mxu0 0.0
  %5255 = vmatpush1.msra.mxu0 0.0
  %5256 = vmatprep.subr.mxu0 0.0
  %5257 = vmatpush1.msra.mxu0 0.0
  %5258 = vmatprep.subr.mxu0 0.0
  %5259 = vmatpush1.msra.mxu0 0.0
  %5260 = vmatprep.subr.mxu0 0.0
  %5261 = vmatpush1.msra.mxu0 0.0
  %5262 = vmatprep.subr.mxu0 0.0
  %5263 = vmatpush1.msra.mxu0 0.0
  %5264 = vmatprep.subr.mxu0 0.0
  %5265 = vmatpush1.msra.mxu0 0.0
  %5266 = vmatprep.subr.mxu0 0.0
  %5267 = vmatpush1.msra.mxu0 0.0
  %5268 = vmatprep.subr.mxu0 0.0
  %5269 = vmatpush1.msra.mxu0 0.0
  %5270 = vmatprep.subr.mxu0 0.0
  %5271 = vmatpush1.msra.mxu0 0.0
  %5272 = vmatprep.subr.mxu0 0.0
  %5273 = vmatpush1.msra.mxu0 0.0
  %5274 = vmatprep.subr.mxu0 0.0
  %5275 = vmatpush1.msra.mxu0 0.0
  %5276 = vmatprep.subr.mxu0 0.0
  %5277 = vmatpush1.msra.mxu0 0.0
  %5278 = vmatprep.subr.mxu0 0.0
  %5279 = vmatpush1.msra.mxu0 0.0
  %5280 = vmatprep.subr.mxu0 0.0
  %5281 = vmatpush1.msra.mxu0 0.0
  %5282 = vmatprep.subr.mxu0 0.0
  %5283 = vmatpush1.msra.mxu0 0.0
  %5284 = vmatprep.subr.mxu0 0.0
  %5285 = vmatpush1.msra.mxu0 0.0
  %5286 = vmatprep.subr.mxu0 0.0
  %5287 = vmatpush1.msra.mxu0 0.0
  %5288 = vmatprep.mubr.f32.mxu0 0.0
  %5289 = vmatmul.mubr.f32.gmra.mrb[0].mxu0 %v5133
  %v5290 = vpop.f32.mrb[0].mxu0
  %v5291 = vadd.f32 0.0, %v5290
  %v5292 = vpop.f32.mrb[0].mxu0
  %5293 = vdwg.mxu0
  %v5295 = vrot.slane %v5291, 5
  %v5296 = vrot.slane %v5291, 6
  %5297 = vrot.lane.b32.xlu0 %v5295, 32
  %v5298 = vpop.permute.xlu0 %5297
  %5299 = vrot.lane.b32.xlu0 %v5296, 32
  %v5300 = vpop.permute.xlu0 %5299
  %v5303 = vadd.f32 %v2538, %v5298
  %v5304 = vadd.f32 %v2543, %v5300
  %v5305 = vxor.u32 %v5303, 2147483648
  %v5306 = vxor.u32 %v5304, 2147483648
  %v5307 = vmul.f32 %v5305, 1.442695
  %v5308 = vpow.pop %v5307
  %v5309 = vmul.f32 %v5306, 1.442695
  %v5310 = vpow.pop %v5309
  %v5311 = vadd.f32 %v5308, 1.0
  %v5312 = vadd.f32 %v5310, 1.0
  %v5313 = vrcp.pop %v5311
  %v5314 = vmul.f32 1.0, %v5313
  %v5315 = vrcp.pop %v5312
  %v5316 = vmul.f32 1.0, %v5315
  %5317 = vmatprep.subr.mxu0 0.0
  %5318 = vmatpush1.msra.mxu0 %v2840
  %5319 = vmatprep.subr.mxu0 0.0
  %5320 = vmatpush1.msra.mxu0 %v2842
  %5321 = vmatprep.subr.mxu0 0.0
  %5322 = vmatpush1.msra.mxu0 %v2844
  %5323 = vmatprep.subr.mxu0 0.0
  %5324 = vmatpush1.msra.mxu0 %v2846
  %5325 = vmatprep.subr.mxu0 0.0
  %5326 = vmatpush1.msra.mxu0 0.0
  %5327 = vmatprep.subr.mxu0 0.0
  %5328 = vmatpush1.msra.mxu0 0.0
  %5329 = vmatprep.subr.mxu0 0.0
  %5330 = vmatpush1.msra.mxu0 0.0
  %5331 = vmatprep.subr.mxu0 0.0
  %5332 = vmatpush1.msra.mxu0 0.0
  %5333 = vmatprep.subr.mxu0 0.0
  %5334 = vmatpush1.msra.mxu0 0.0
  %5335 = vmatprep.subr.mxu0 0.0
  %5336 = vmatpush1.msra.mxu0 0.0
  %5337 = vmatprep.subr.mxu0 0.0
  %5338 = vmatpush1.msra.mxu0 0.0
  %5339 = vmatprep.subr.mxu0 0.0
  %5340 = vmatpush1.msra.mxu0 0.0
  %5341 = vmatprep.subr.mxu0 0.0
  %5342 = vmatpush1.msra.mxu0 0.0
  %5343 = vmatprep.subr.mxu0 0.0
  %5344 = vmatpush1.msra.mxu0 0.0
  %5345 = vmatprep.subr.mxu0 0.0
  %5346 = vmatpush1.msra.mxu0 0.0
  %5347 = vmatprep.subr.mxu0 0.0
  %5348 = vmatpush1.msra.mxu0 0.0
  %5349 = vmatprep.subr.mxu0 0.0
  %5350 = vmatpush1.msra.mxu0 0.0
  %5351 = vmatprep.subr.mxu0 0.0
  %5352 = vmatpush1.msra.mxu0 0.0
  %5353 = vmatprep.subr.mxu0 0.0
  %5354 = vmatpush1.msra.mxu0 0.0
  %5355 = vmatprep.subr.mxu0 0.0
  %5356 = vmatpush1.msra.mxu0 0.0
  %5357 = vmatprep.subr.mxu0 0.0
  %5358 = vmatpush1.msra.mxu0 0.0
  %5359 = vmatprep.subr.mxu0 0.0
  %5360 = vmatpush1.msra.mxu0 0.0
  %5361 = vmatprep.subr.mxu0 0.0
  %5362 = vmatpush1.msra.mxu0 0.0
  %5363 = vmatprep.subr.mxu0 0.0
  %5364 = vmatpush1.msra.mxu0 0.0
  %5365 = vmatprep.subr.mxu0 0.0
  %5366 = vmatpush1.msra.mxu0 0.0
  %5367 = vmatprep.subr.mxu0 0.0
  %5368 = vmatpush1.msra.mxu0 0.0
  %5369 = vmatprep.subr.mxu0 0.0
  %5370 = vmatpush1.msra.mxu0 0.0
  %5371 = vmatprep.subr.mxu0 0.0
  %5372 = vmatpush1.msra.mxu0 0.0
  %5373 = vmatprep.subr.mxu0 0.0
  %5374 = vmatpush1.msra.mxu0 0.0
  %5375 = vmatprep.subr.mxu0 0.0
  %5376 = vmatpush1.msra.mxu0 0.0
  %5377 = vmatprep.subr.mxu0 0.0
  %5378 = vmatpush1.msra.mxu0 0.0
  %5379 = vmatprep.subr.mxu0 0.0
  %5380 = vmatpush1.msra.mxu0 0.0
  %5381 = vmatprep.mubr.f32.mxu0 0.0
  %5382 = vmatmul.mubr.f32.gmra.mrb[0].mxu0 %v5133
  %v5383 = vpop.f32.mrb[0].mxu0
  %v5384 = vadd.f32 0.0, %v5383
  %v5385 = vpop.f32.mrb[0].mxu0
  %5386 = vdwg.mxu0
  %v5388 = vrot.slane %v5384, 5
  %v5389 = vrot.slane %v5384, 6
  %5390 = vrot.lane.b32.xlu0 %v5388, 64
  %v5391 = vpop.permute.xlu0 %5390
  %5392 = vrot.lane.b32.xlu0 %v5389, 64
  %v5393 = vpop.permute.xlu0 %5392
  %v5396 = vadd.f32 %v2538, %v5391
  %v5397 = vadd.f32 %v2543, %v5393
  %v5398 = vtanh.pop %v5396
  %v5399 = vtanh.pop %v5397
  %5400 = vmatprep.subr.mxu0 0.0
  %5401 = vmatpush1.msra.mxu0 %v2934
  %5402 = vmatprep.subr.mxu0 0.0
  %5403 = vmatpush1.msra.mxu0 %v2936
  %5404 = vmatprep.subr.mxu0 0.0
  %5405 = vmatpush1.msra.mxu0 %v2938
  %5406 = vmatprep.subr.mxu0 0.0
  %5407 = vmatpush1.msra.mxu0 %v2940
  %5408 = vmatprep.subr.mxu0 0.0
  %5409 = vmatpush1.msra.mxu0 0.0
  %5410 = vmatprep.subr.mxu0 0.0
  %5411 = vmatpush1.msra.mxu0 0.0
  %5412 = vmatprep.subr.mxu0 0.0
  %5413 = vmatpush1.msra.mxu0 0.0
  %5414 = vmatprep.subr.mxu0 0.0
  %5415 = vmatpush1.msra.mxu0 0.0
  %5416 = vmatprep.subr.mxu0 0.0
  %5417 = vmatpush1.msra.mxu0 0.0
  %5418 = vmatprep.subr.mxu0 0.0
  %5419 = vmatpush1.msra.mxu0 0.0
  %5420 = vmatprep.subr.mxu0 0.0
  %5421 = vmatpush1.msra.mxu0 0.0
  %5422 = vmatprep.subr.mxu0 0.0
  %5423 = vmatpush1.msra.mxu0 0.0
  %5424 = vmatprep.subr.mxu0 0.0
  %5425 = vmatpush1.msra.mxu0 0.0
  %5426 = vmatprep.subr.mxu0 0.0
  %5427 = vmatpush1.msra.mxu0 0.0
  %5428 = vmatprep.subr.mxu0 0.0
  %5429 = vmatpush1.msra.mxu0 0.0
  %5430 = vmatprep.subr.mxu0 0.0
  %5431 = vmatpush1.msra.mxu0 0.0
  %5432 = vmatprep.subr.mxu0 0.0
  %5433 = vmatpush1.msra.mxu0 0.0
  %5434 = vmatprep.subr.mxu0 0.0
  %5435 = vmatpush1.msra.mxu0 0.0
  %5436 = vmatprep.subr.mxu0 0.0
  %5437 = vmatpush1.msra.mxu0 0.0
  %5438 = vmatprep.subr.mxu0 0.0
  %5439 = vmatpush1.msra.mxu0 0.0
  %5440 = vmatprep.subr.mxu0 0.0
  %5441 = vmatpush1.msra.mxu0 0.0
  %5442 = vmatprep.subr.mxu0 0.0
  %5443 = vmatpush1.msra.mxu0 0.0
  %5444 = vmatprep.subr.mxu0 0.0
  %5445 = vmatpush1.msra.mxu0 0.0
  %5446 = vmatprep.subr.mxu0 0.0
  %5447 = vmatpush1.msra.mxu0 0.0
  %5448 = vmatprep.subr.mxu0 0.0
  %5449 = vmatpush1.msra.mxu0 0.0
  %5450 = vmatprep.subr.mxu0 0.0
  %5451 = vmatpush1.msra.mxu0 0.0
  %5452 = vmatprep.subr.mxu0 0.0
  %5453 = vmatpush1.msra.mxu0 0.0
  %5454 = vmatprep.subr.mxu0 0.0
  %5455 = vmatpush1.msra.mxu0 0.0
  %5456 = vmatprep.subr.mxu0 0.0
  %5457 = vmatpush1.msra.mxu0 0.0
  %5458 = vmatprep.subr.mxu0 0.0
  %5459 = vmatpush1.msra.mxu0 0.0
  %5460 = vmatprep.subr.mxu0 0.0
  %5461 = vmatpush1.msra.mxu0 0.0
  %5462 = vmatprep.subr.mxu0 0.0
  %5463 = vmatpush1.msra.mxu0 0.0
  %5464 = vmatprep.mubr.f32.mxu0 0.0
  %5465 = vmatmul.mubr.f32.gmra.mrb[0].mxu0 %v5133
  %v5466 = vpop.f32.mrb[0].mxu0
  %v5467 = vadd.f32 0.0, %v5466
  %v5468 = vpop.f32.mrb[0].mxu0
  %5469 = vdwg.mxu0
  %v5471 = vrot.slane %v5467, 5
  %v5472 = vrot.slane %v5467, 6
  %5473 = vrot.lane.b32.xlu0 %v5471, 96
  %v5474 = vpop.permute.xlu0 %5473
  %5475 = vrot.lane.b32.xlu0 %v5472, 96
  %v5476 = vpop.permute.xlu0 %5475
  %v5479 = vadd.f32 %v2538, %v5474
  %v5480 = vadd.f32 %v2543, %v5476
  %v5481 = vxor.u32 %v5479, 2147483648
  %v5482 = vxor.u32 %v5480, 2147483648
  %v5483 = vmul.f32 %v5481, 1.442695
  %v5484 = vpow.pop %v5483
  %v5485 = vmul.f32 %v5482, 1.442695
  %v5486 = vpow.pop %v5485
  %v5487 = vadd.f32 %v5484, 1.0
  %v5488 = vadd.f32 %v5486, 1.0
  %v5489 = vrcp.pop %v5487
  %v5490 = vmul.f32 1.0, %v5489
  %v5491 = vrcp.pop %v5488
  %v5492 = vmul.f32 1.0, %v5491
  %v5495 = vrot.slane %v4705, 7
  %v5496 = vrot.slane %v4706, 7
  %v5499 = vmul.f32 %v5314, %v5495
  %v5500 = vmul.f32 %v5316, %v5496
  %5503 = vrot.lane.b32.xlu0 %v5398, 64
  %v5504 = vpop.permute.xlu0 %5503
  %5505 = vrot.lane.b32.xlu0 %v5399, 64
  %v5506 = vpop.permute.xlu0 %5505
  %v5509 = vmul.f32 %v5221, %v5504
  %v5510 = vmul.f32 %v5223, %v5506
  %5513 = vrot.lane.b32.xlu0 %v5509, 32
  %v5514 = vpop.permute.xlu0 %5513
  %5515 = vrot.lane.b32.xlu0 %v5510, 32
  %v5516 = vpop.permute.xlu0 %5515
  %v5519 = vadd.f32 %v5499, %v5514
  %v5520 = vadd.f32 %v5500, %v5516
  %v5521 = vtanh.pop %v5519
  %v5522 = vtanh.pop %v5520
  %5525 = vrot.lane.b32.xlu0 %v5521, 64
  %v5526 = vpop.permute.xlu0 %5525
  %5527 = vrot.lane.b32.xlu0 %v5522, 64
  %v5528 = vpop.permute.xlu0 %5527
  %v5531 = vmul.f32 %v5490, %v5526
  %v5532 = vmul.f32 %v5492, %v5528
  %v5535 = vrot.slane %v5124, 5
  %v5536 = vrot.slane %v5125, 4
  %v5537 = vsel %vm3506, %v5536, %v5535
  %5538 = vrot.lane.b32.xlu0 %v5537, 32
  %v5539 = vpop.permute.xlu0 %5538
  %v5540 = vsel %vm84, %v5539, 0
  %5542 = vmatprep.subr.mxu0 0.0
  %5543 = vmatpush1.msra.mxu0 %v2636
  %5544 = vmatprep.subr.mxu0 0.0
  %5545 = vmatpush1.msra.mxu0 %v2637
  %5546 = vmatprep.subr.mxu0 0.0
  %5547 = vmatpush1.msra.mxu0 %v2638
  %5548 = vmatprep.subr.mxu0 0.0
  %5549 = vmatpush1.msra.mxu0 %v2639
  %5550 = vmatprep.subr.mxu0 0.0
  %5551 = vmatpush1.msra.mxu0 0.0
  %5552 = vmatprep.subr.mxu0 0.0
  %5553 = vmatpush1.msra.mxu0 0.0
  %5554 = vmatprep.subr.mxu0 0.0
  %5555 = vmatpush1.msra.mxu0 0.0
  %5556 = vmatprep.subr.mxu0 0.0
  %5557 = vmatpush1.msra.mxu0 0.0
  %5558 = vmatprep.subr.mxu0 0.0
  %5559 = vmatpush1.msra.mxu0 0.0
  %5560 = vmatprep.subr.mxu0 0.0
  %5561 = vmatpush1.msra.mxu0 0.0
  %5562 = vmatprep.subr.mxu0 0.0
  %5563 = vmatpush1.msra.mxu0 0.0
  %5564 = vmatprep.subr.mxu0 0.0
  %5565 = vmatpush1.msra.mxu0 0.0
  %5566 = vmatprep.subr.mxu0 0.0
  %5567 = vmatpush1.msra.mxu0 0.0
  %5568 = vmatprep.subr.mxu0 0.0
  %5569 = vmatpush1.msra.mxu0 0.0
  %5570 = vmatprep.subr.mxu0 0.0
  %5571 = vmatpush1.msra.mxu0 0.0
  %5572 = vmatprep.subr.mxu0 0.0
  %5573 = vmatpush1.msra.mxu0 0.0
  %5574 = vmatprep.subr.mxu0 0.0
  %5575 = vmatpush1.msra.mxu0 0.0
  %5576 = vmatprep.subr.mxu0 0.0
  %5577 = vmatpush1.msra.mxu0 0.0
  %5578 = vmatprep.subr.mxu0 0.0
  %5579 = vmatpush1.msra.mxu0 0.0
  %5580 = vmatprep.subr.mxu0 0.0
  %5581 = vmatpush1.msra.mxu0 0.0
  %5582 = vmatprep.subr.mxu0 0.0
  %5583 = vmatpush1.msra.mxu0 0.0
  %5584 = vmatprep.subr.mxu0 0.0
  %5585 = vmatpush1.msra.mxu0 0.0
  %5586 = vmatprep.subr.mxu0 0.0
  %5587 = vmatpush1.msra.mxu0 0.0
  %5588 = vmatprep.subr.mxu0 0.0
  %5589 = vmatpush1.msra.mxu0 0.0
  %5590 = vmatprep.subr.mxu0 0.0
  %5591 = vmatpush1.msra.mxu0 0.0
  %5592 = vmatprep.subr.mxu0 0.0
  %5593 = vmatpush1.msra.mxu0 0.0
  %5594 = vmatprep.subr.mxu0 0.0
  %5595 = vmatpush1.msra.mxu0 0.0
  %5596 = vmatprep.subr.mxu0 0.0
  %5597 = vmatpush1.msra.mxu0 0.0
  %5598 = vmatprep.subr.mxu0 0.0
  %5599 = vmatpush1.msra.mxu0 0.0
  %5600 = vmatprep.subr.mxu0 0.0
  %5601 = vmatpush1.msra.mxu0 0.0
  %5602 = vmatprep.subr.mxu0 0.0
  %5603 = vmatpush1.msra.mxu0 0.0
  %5604 = vmatprep.subr.mxu0 0.0
  %5605 = vmatpush1.msra.mxu0 0.0
  %5606 = vmatprep.mubr.f32.mxu0 0.0
  %5607 = vmatmul.mubr.f32.gmra.mrb[0].mxu0 %v5540
  %v5608 = vpop.f32.mrb[0].mxu0
  %v5609 = vadd.f32 0.0, %v5608
  %v5610 = vpop.f32.mrb[0].mxu0
  %5611 = vdwg.mxu0
  %v5613 = vrot.slane %v5609, 4
  %v5614 = vrot.slane %v5609, 5
  %v5617 = vadd.f32 %v2624, %v5613
  %v5618 = vadd.f32 %v2629, %v5614
  %v5619 = vxor.u32 %v5617, 2147483648
  %v5620 = vxor.u32 %v5618, 2147483648
  %v5621 = vmul.f32 %v5619, 1.442695
  %v5622 = vpow.pop %v5621
  %v5623 = vmul.f32 %v5620, 1.442695
  %v5624 = vpow.pop %v5623
  %v5625 = vadd.f32 %v5622, 1.0
  %v5626 = vadd.f32 %v5624, 1.0
  %v5627 = vrcp.pop %v5625
  %v5628 = vmul.f32 1.0, %v5627
  %v5629 = vrcp.pop %v5626
  %v5630 = vmul.f32 1.0, %v5629
  %5631 = vmatprep.subr.mxu0 0.0
  %5632 = vmatpush1.msra.mxu0 %v3165
  %5633 = vmatprep.subr.mxu0 0.0
  %5634 = vmatpush1.msra.mxu0 %v3167
  %5635 = vmatprep.subr.mxu0 0.0
  %5636 = vmatpush1.msra.mxu0 %v3169
  %5637 = vmatprep.subr.mxu0 0.0
  %5638 = vmatpush1.msra.mxu0 %v3171
  %5639 = vmatprep.subr.mxu0 0.0
  %5640 = vmatpush1.msra.mxu0 0.0
  %5641 = vmatprep.subr.mxu0 0.0
  %5642 = vmatpush1.msra.mxu0 0.0
  %5643 = vmatprep.subr.mxu0 0.0
  %5644 = vmatpush1.msra.mxu0 0.0
  %5645 = vmatprep.subr.mxu0 0.0
  %5646 = vmatpush1.msra.mxu0 0.0
  %5647 = vmatprep.subr.mxu0 0.0
  %5648 = vmatpush1.msra.mxu0 0.0
  %5649 = vmatprep.subr.mxu0 0.0
  %5650 = vmatpush1.msra.mxu0 0.0
  %5651 = vmatprep.subr.mxu0 0.0
  %5652 = vmatpush1.msra.mxu0 0.0
  %5653 = vmatprep.subr.mxu0 0.0
  %5654 = vmatpush1.msra.mxu0 0.0
  %5655 = vmatprep.subr.mxu0 0.0
  %5656 = vmatpush1.msra.mxu0 0.0
  %5657 = vmatprep.subr.mxu0 0.0
  %5658 = vmatpush1.msra.mxu0 0.0
  %5659 = vmatprep.subr.mxu0 0.0
  %5660 = vmatpush1.msra.mxu0 0.0
  %5661 = vmatprep.subr.mxu0 0.0
  %5662 = vmatpush1.msra.mxu0 0.0
  %5663 = vmatprep.subr.mxu0 0.0
  %5664 = vmatpush1.msra.mxu0 0.0
  %5665 = vmatprep.subr.mxu0 0.0
  %5666 = vmatpush1.msra.mxu0 0.0
  %5667 = vmatprep.subr.mxu0 0.0
  %5668 = vmatpush1.msra.mxu0 0.0
  %5669 = vmatprep.subr.mxu0 0.0
  %5670 = vmatpush1.msra.mxu0 0.0
  %5671 = vmatprep.subr.mxu0 0.0
  %5672 = vmatpush1.msra.mxu0 0.0
  %5673 = vmatprep.subr.mxu0 0.0
  %5674 = vmatpush1.msra.mxu0 0.0
  %5675 = vmatprep.subr.mxu0 0.0
  %5676 = vmatpush1.msra.mxu0 0.0
  %5677 = vmatprep.subr.mxu0 0.0
  %5678 = vmatpush1.msra.mxu0 0.0
  %5679 = vmatprep.subr.mxu0 0.0
  %5680 = vmatpush1.msra.mxu0 0.0
  %5681 = vmatprep.subr.mxu0 0.0
  %5682 = vmatpush1.msra.mxu0 0.0
  %5683 = vmatprep.subr.mxu0 0.0
  %5684 = vmatpush1.msra.mxu0 0.0
  %5685 = vmatprep.subr.mxu0 0.0
  %5686 = vmatpush1.msra.mxu0 0.0
  %5687 = vmatprep.subr.mxu0 0.0
  %5688 = vmatpush1.msra.mxu0 0.0
  %5689 = vmatprep.subr.mxu0 0.0
  %5690 = vmatpush1.msra.mxu0 0.0
  %5691 = vmatprep.subr.mxu0 0.0
  %5692 = vmatpush1.msra.mxu0 0.0
  %5693 = vmatprep.subr.mxu0 0.0
  %5694 = vmatpush1.msra.mxu0 0.0
  %5695 = vmatprep.mubr.f32.mxu0 0.0
  %5696 = vmatmul.mubr.f32.gmra.mrb[0].mxu0 %v5540
  %v5697 = vpop.f32.mrb[0].mxu0
  %v5698 = vadd.f32 0.0, %v5697
  %v5699 = vpop.f32.mrb[0].mxu0
  %5700 = vdwg.mxu0
  %v5702 = vrot.slane %v5698, 4
  %v5703 = vrot.slane %v5698, 5
  %5704 = vrot.lane.b32.xlu0 %v5702, 32
  %v5705 = vpop.permute.xlu0 %5704
  %5706 = vrot.lane.b32.xlu0 %v5703, 32
  %v5707 = vpop.permute.xlu0 %5706
  %v5710 = vadd.f32 %v2624, %v5705
  %v5711 = vadd.f32 %v2629, %v5707
  %v5712 = vxor.u32 %v5710, 2147483648
  %v5713 = vxor.u32 %v5711, 2147483648
  %v5714 = vmul.f32 %v5712, 1.442695
  %v5715 = vpow.pop %v5714
  %v5716 = vmul.f32 %v5713, 1.442695
  %v5717 = vpow.pop %v5716
  %v5718 = vadd.f32 %v5715, 1.0
  %v5719 = vadd.f32 %v5717, 1.0
  %v5720 = vrcp.pop %v5718
  %v5721 = vmul.f32 1.0, %v5720
  %v5722 = vrcp.pop %v5719
  %v5723 = vmul.f32 1.0, %v5722
  %5724 = vmatprep.subr.mxu0 0.0
  %5725 = vmatpush1.msra.mxu0 %v3270
  %5726 = vmatprep.subr.mxu0 0.0
  %5727 = vmatpush1.msra.mxu0 %v3272
  %5728 = vmatprep.subr.mxu0 0.0
  %5729 = vmatpush1.msra.mxu0 %v3274
  %5730 = vmatprep.subr.mxu0 0.0
  %5731 = vmatpush1.msra.mxu0 %v3276
  %5732 = vmatprep.subr.mxu0 0.0
  %5733 = vmatpush1.msra.mxu0 0.0
  %5734 = vmatprep.subr.mxu0 0.0
  %5735 = vmatpush1.msra.mxu0 0.0
  %5736 = vmatprep.subr.mxu0 0.0
  %5737 = vmatpush1.msra.mxu0 0.0
  %5738 = vmatprep.subr.mxu0 0.0
  %5739 = vmatpush1.msra.mxu0 0.0
  %5740 = vmatprep.subr.mxu0 0.0
  %5741 = vmatpush1.msra.mxu0 0.0
  %5742 = vmatprep.subr.mxu0 0.0
  %5743 = vmatpush1.msra.mxu0 0.0
  %5744 = vmatprep.subr.mxu0 0.0
  %5745 = vmatpush1.msra.mxu0 0.0
  %5746 = vmatprep.subr.mxu0 0.0
  %5747 = vmatpush1.msra.mxu0 0.0
  %5748 = vmatprep.subr.mxu0 0.0
  %5749 = vmatpush1.msra.mxu0 0.0
  %5750 = vmatprep.subr.mxu0 0.0
  %5751 = vmatpush1.msra.mxu0 0.0
  %5752 = vmatprep.subr.mxu0 0.0
  %5753 = vmatpush1.msra.mxu0 0.0
  %5754 = vmatprep.subr.mxu0 0.0
  %5755 = vmatpush1.msra.mxu0 0.0
  %5756 = vmatprep.subr.mxu0 0.0
  %5757 = vmatpush1.msra.mxu0 0.0
  %5758 = vmatprep.subr.mxu0 0.0
  %5759 = vmatpush1.msra.mxu0 0.0
  %5760 = vmatprep.subr.mxu0 0.0
  %5761 = vmatpush1.msra.mxu0 0.0
  %5762 = vmatprep.subr.mxu0 0.0
  %5763 = vmatpush1.msra.mxu0 0.0
  %5764 = vmatprep.subr.mxu0 0.0
  %5765 = vmatpush1.msra.mxu0 0.0
  %5766 = vmatprep.subr.mxu0 0.0
  %5767 = vmatpush1.msra.mxu0 0.0
  %5768 = vmatprep.subr.mxu0 0.0
  %5769 = vmatpush1.msra.mxu0 0.0
  %5770 = vmatprep.subr.mxu0 0.0
  %5771 = vmatpush1.msra.mxu0 0.0
  %5772 = vmatprep.subr.mxu0 0.0
  %5773 = vmatpush1.msra.mxu0 0.0
  %5774 = vmatprep.subr.mxu0 0.0
  %5775 = vmatpush1.msra.mxu0 0.0
  %5776 = vmatprep.subr.mxu0 0.0
  %5777 = vmatpush1.msra.mxu0 0.0
  %5778 = vmatprep.subr.mxu0 0.0
  %5779 = vmatpush1.msra.mxu0 0.0
  %5780 = vmatprep.subr.mxu0 0.0
  %5781 = vmatpush1.msra.mxu0 0.0
  %5782 = vmatprep.subr.mxu0 0.0
  %5783 = vmatpush1.msra.mxu0 0.0
  %5784 = vmatprep.subr.mxu0 0.0
  %5785 = vmatpush1.msra.mxu0 0.0
  %5786 = vmatprep.subr.mxu0 0.0
  %5787 = vmatpush1.msra.mxu0 0.0
  %5788 = vmatprep.mubr.f32.mxu0 0.0
  %5789 = vmatmul.mubr.f32.gmra.mrb[0].mxu0 %v5540
  %v5790 = vpop.f32.mrb[0].mxu0
  %v5791 = vadd.f32 0.0, %v5790
  %v5792 = vpop.f32.mrb[0].mxu0
  %5793 = vdwg.mxu0
  %v5795 = vrot.slane %v5791, 4
  %v5796 = vrot.slane %v5791, 5
  %5797 = vrot.lane.b32.xlu0 %v5795, 64
  %v5798 = vpop.permute.xlu0 %5797
  %5799 = vrot.lane.b32.xlu0 %v5796, 64
  %v5800 = vpop.permute.xlu0 %5799
  %v5803 = vadd.f32 %v2624, %v5798
  %v5804 = vadd.f32 %v2629, %v5800
  %v5805 = vtanh.pop %v5803
  %v5806 = vtanh.pop %v5804
  %5807 = vmatprep.subr.mxu0 0.0
  %5808 = vmatpush1.msra.mxu0 %v3365
  %5809 = vmatprep.subr.mxu0 0.0
  %5810 = vmatpush1.msra.mxu0 %v3367
  %5811 = vmatprep.subr.mxu0 0.0
  %5812 = vmatpush1.msra.mxu0 %v3369
  %5813 = vmatprep.subr.mxu0 0.0
  %5814 = vmatpush1.msra.mxu0 %v3371
  %5815 = vmatprep.subr.mxu0 0.0
  %5816 = vmatpush1.msra.mxu0 0.0
  %5817 = vmatprep.subr.mxu0 0.0
  %5818 = vmatpush1.msra.mxu0 0.0
  %5819 = vmatprep.subr.mxu0 0.0
  %5820 = vmatpush1.msra.mxu0 0.0
  %5821 = vmatprep.subr.mxu0 0.0
  %5822 = vmatpush1.msra.mxu0 0.0
  %5823 = vmatprep.subr.mxu0 0.0
  %5824 = vmatpush1.msra.mxu0 0.0
  %5825 = vmatprep.subr.mxu0 0.0
  %5826 = vmatpush1.msra.mxu0 0.0
  %5827 = vmatprep.subr.mxu0 0.0
  %5828 = vmatpush1.msra.mxu0 0.0
  %5829 = vmatprep.subr.mxu0 0.0
  %5830 = vmatpush1.msra.mxu0 0.0
  %5831 = vmatprep.subr.mxu0 0.0
  %5832 = vmatpush1.msra.mxu0 0.0
  %5833 = vmatprep.subr.mxu0 0.0
  %5834 = vmatpush1.msra.mxu0 0.0
  %5835 = vmatprep.subr.mxu0 0.0
  %5836 = vmatpush1.msra.mxu0 0.0
  %5837 = vmatprep.subr.mxu0 0.0
  %5838 = vmatpush1.msra.mxu0 0.0
  %5839 = vmatprep.subr.mxu0 0.0
  %5840 = vmatpush1.msra.mxu0 0.0
  %5841 = vmatprep.subr.mxu0 0.0
  %5842 = vmatpush1.msra.mxu0 0.0
  %5843 = vmatprep.subr.mxu0 0.0
  %5844 = vmatpush1.msra.mxu0 0.0
  %5845 = vmatprep.subr.mxu0 0.0
  %5846 = vmatpush1.msra.mxu0 0.0
  %5847 = vmatprep.subr.mxu0 0.0
  %5848 = vmatpush1.msra.mxu0 0.0
  %5849 = vmatprep.subr.mxu0 0.0
  %5850 = vmatpush1.msra.mxu0 0.0
  %5851 = vmatprep.subr.mxu0 0.0
  %5852 = vmatpush1.msra.mxu0 0.0
  %5853 = vmatprep.subr.mxu0 0.0
  %5854 = vmatpush1.msra.mxu0 0.0
  %5855 = vmatprep.subr.mxu0 0.0
  %5856 = vmatpush1.msra.mxu0 0.0
  %5857 = vmatprep.subr.mxu0 0.0
  %5858 = vmatpush1.msra.mxu0 0.0
  %5859 = vmatprep.subr.mxu0 0.0
  %5860 = vmatpush1.msra.mxu0 0.0
  %5861 = vmatprep.subr.mxu0 0.0
  %5862 = vmatpush1.msra.mxu0 0.0
  %5863 = vmatprep.subr.mxu0 0.0
  %5864 = vmatpush1.msra.mxu0 0.0
  %5865 = vmatprep.subr.mxu0 0.0
  %5866 = vmatpush1.msra.mxu0 0.0
  %5867 = vmatprep.subr.mxu0 0.0
  %5868 = vmatpush1.msra.mxu0 0.0
  %5869 = vmatprep.subr.mxu0 0.0
  %5870 = vmatpush1.msra.mxu0 0.0
  %5871 = vmatprep.mubr.f32.mxu0 0.0
  %5872 = vmatmul.mubr.f32.gmra.mrb[0].mxu0 %v5540
  %v5873 = vpop.f32.mrb[0].mxu0
  %v5874 = vadd.f32 0.0, %v5873
  %v5875 = vpop.f32.mrb[0].mxu0
  %5876 = vdwg.mxu0
  %v5878 = vrot.slane %v5874, 4
  %v5879 = vrot.slane %v5874, 5
  %5880 = vrot.lane.b32.xlu0 %v5878, 96
  %v5881 = vpop.permute.xlu0 %5880
  %5882 = vrot.lane.b32.xlu0 %v5879, 96
  %v5883 = vpop.permute.xlu0 %5882
  %v5886 = vadd.f32 %v2624, %v5881
  %v5887 = vadd.f32 %v2629, %v5883
  %v5888 = vxor.u32 %v5886, 2147483648
  %v5889 = vxor.u32 %v5887, 2147483648
  %v5890 = vmul.f32 %v5888, 1.442695
  %v5891 = vpow.pop %v5890
  %v5892 = vmul.f32 %v5889, 1.442695
  %v5893 = vpow.pop %v5892
  %v5894 = vadd.f32 %v5891, 1.0
  %v5895 = vadd.f32 %v5893, 1.0
  %v5896 = vrcp.pop %v5894
  %v5897 = vmul.f32 1.0, %v5896
  %v5898 = vrcp.pop %v5895
  %v5899 = vmul.f32 1.0, %v5898
  %v5902 = vrot.slane %v5112, 1
  %v5903 = vrot.slane %v5113, 1
  %v5906 = vmul.f32 %v5721, %v5902
  %v5907 = vmul.f32 %v5723, %v5903
  %5910 = vrot.lane.b32.xlu0 %v5805, 64
  %v5911 = vpop.permute.xlu0 %5910
  %5912 = vrot.lane.b32.xlu0 %v5806, 64
  %v5913 = vpop.permute.xlu0 %5912
  %v5916 = vmul.f32 %v5628, %v5911
  %v5917 = vmul.f32 %v5630, %v5913
  %5920 = vrot.lane.b32.xlu0 %v5916, 32
  %v5921 = vpop.permute.xlu0 %5920
  %5922 = vrot.lane.b32.xlu0 %v5917, 32
  %v5923 = vpop.permute.xlu0 %5922
  %v5926 = vadd.f32 %v5906, %v5921
  %v5927 = vadd.f32 %v5907, %v5923
  %v5928 = vtanh.pop %v5926
  %v5929 = vtanh.pop %v5927
  %5932 = vrot.lane.b32.xlu0 %v5928, 64
  %v5933 = vpop.permute.xlu0 %5932
  %5934 = vrot.lane.b32.xlu0 %v5929, 64
  %v5935 = vpop.permute.xlu0 %5934
  %v5938 = vmul.f32 %v5897, %v5933
  %v5939 = vmul.f32 %v5899, %v5935
  %v5942 = vrot.slane %v5531, 3
  %v5943 = vrot.slane %v5532, 2
  %v5944 = vsel %vm3506, %v5943, %v5942
  %5945 = vrot.lane.b32.xlu0 %v5944, 32
  %v5946 = vpop.permute.xlu0 %5945
  %v5947 = vsel %vm84, %v5946, 0
  %5949 = vmatprep.subr.mxu0 0.0
  %5950 = vmatpush1.msra.mxu0 %v2632
  %5951 = vmatprep.subr.mxu0 0.0
  %5952 = vmatpush1.msra.mxu0 %v2633
  %5953 = vmatprep.subr.mxu0 0.0
  %5954 = vmatpush1.msra.mxu0 %v2634
  %5955 = vmatprep.subr.mxu0 0.0
  %5956 = vmatpush1.msra.mxu0 %v2635
  %5957 = vmatprep.subr.mxu0 0.0
  %5958 = vmatpush1.msra.mxu0 0.0
  %5959 = vmatprep.subr.mxu0 0.0
  %5960 = vmatpush1.msra.mxu0 0.0
  %5961 = vmatprep.subr.mxu0 0.0
  %5962 = vmatpush1.msra.mxu0 0.0
  %5963 = vmatprep.subr.mxu0 0.0
  %5964 = vmatpush1.msra.mxu0 0.0
  %5965 = vmatprep.subr.mxu0 0.0
  %5966 = vmatpush1.msra.mxu0 0.0
  %5967 = vmatprep.subr.mxu0 0.0
  %5968 = vmatpush1.msra.mxu0 0.0
  %5969 = vmatprep.subr.mxu0 0.0
  %5970 = vmatpush1.msra.mxu0 0.0
  %5971 = vmatprep.subr.mxu0 0.0
  %5972 = vmatpush1.msra.mxu0 0.0
  %5973 = vmatprep.subr.mxu0 0.0
  %5974 = vmatpush1.msra.mxu0 0.0
  %5975 = vmatprep.subr.mxu0 0.0
  %5976 = vmatpush1.msra.mxu0 0.0
  %5977 = vmatprep.subr.mxu0 0.0
  %5978 = vmatpush1.msra.mxu0 0.0
  %5979 = vmatprep.subr.mxu0 0.0
  %5980 = vmatpush1.msra.mxu0 0.0
  %5981 = vmatprep.subr.mxu0 0.0
  %5982 = vmatpush1.msra.mxu0 0.0
  %5983 = vmatprep.subr.mxu0 0.0
  %5984 = vmatpush1.msra.mxu0 0.0
  %5985 = vmatprep.subr.mxu0 0.0
  %5986 = vmatpush1.msra.mxu0 0.0
  %5987 = vmatprep.subr.mxu0 0.0
  %5988 = vmatpush1.msra.mxu0 0.0
  %5989 = vmatprep.subr.mxu0 0.0
  %5990 = vmatpush1.msra.mxu0 0.0
  %5991 = vmatprep.subr.mxu0 0.0
  %5992 = vmatpush1.msra.mxu0 0.0
  %5993 = vmatprep.subr.mxu0 0.0
  %5994 = vmatpush1.msra.mxu0 0.0
  %5995 = vmatprep.subr.mxu0 0.0
  %5996 = vmatpush1.msra.mxu0 0.0
  %5997 = vmatprep.subr.mxu0 0.0
  %5998 = vmatpush1.msra.mxu0 0.0
  %5999 = vmatprep.subr.mxu0 0.0
  %6000 = vmatpush1.msra.mxu0 0.0
  %6001 = vmatprep.subr.mxu0 0.0
  %6002 = vmatpush1.msra.mxu0 0.0
  %6003 = vmatprep.subr.mxu0 0.0
  %6004 = vmatpush1.msra.mxu0 0.0
  %6005 = vmatprep.subr.mxu0 0.0
  %6006 = vmatpush1.msra.mxu0 0.0
  %6007 = vmatprep.subr.mxu0 0.0
  %6008 = vmatpush1.msra.mxu0 0.0
  %6009 = vmatprep.subr.mxu0 0.0
  %6010 = vmatpush1.msra.mxu0 0.0
  %6011 = vmatprep.subr.mxu0 0.0
  %6012 = vmatpush1.msra.mxu0 0.0
  %6013 = vmatprep.mubr.f32.mxu0 0.0
  %6014 = vmatmul.mubr.f32.gmra.mrb[0].mxu0 %v5947
  %v6015 = vpop.f32.mrb[0].mxu0
  %v6016 = vadd.f32 0.0, %v6015
  %v6017 = vpop.f32.mrb[0].mxu0
  %6018 = vdwg.mxu0
  %v6020 = vrot.slane %v6016, 4
  %v6021 = vrot.slane %v6016, 5
  %v6024 = vadd.f32 %v2538, %v6020
  %v6025 = vadd.f32 %v2543, %v6021
  %v6026 = vxor.u32 %v6024, 2147483648
  %v6027 = vxor.u32 %v6025, 2147483648
  %v6028 = vmul.f32 %v6026, 1.442695
  %v6029 = vpow.pop %v6028
  %v6030 = vmul.f32 %v6027, 1.442695
  %v6031 = vpow.pop %v6030
  %v6032 = vadd.f32 %v6029, 1.0
  %v6033 = vadd.f32 %v6031, 1.0
  %v6034 = vrcp.pop %v6032
  %v6035 = vmul.f32 1.0, %v6034
  %v6036 = vrcp.pop %v6033
  %v6037 = vmul.f32 1.0, %v6036
  %6038 = vmatprep.subr.mxu0 0.0
  %6039 = vmatpush1.msra.mxu0 %v2736
  %6040 = vmatprep.subr.mxu0 0.0
  %6041 = vmatpush1.msra.mxu0 %v2738
  %6042 = vmatprep.subr.mxu0 0.0
  %6043 = vmatpush1.msra.mxu0 %v2740
  %6044 = vmatprep.subr.mxu0 0.0
  %6045 = vmatpush1.msra.mxu0 %v2742
  %6046 = vmatprep.subr.mxu0 0.0
  %6047 = vmatpush1.msra.mxu0 0.0
  %6048 = vmatprep.subr.mxu0 0.0
  %6049 = vmatpush1.msra.mxu0 0.0
  %6050 = vmatprep.subr.mxu0 0.0
  %6051 = vmatpush1.msra.mxu0 0.0
  %6052 = vmatprep.subr.mxu0 0.0
  %6053 = vmatpush1.msra.mxu0 0.0
  %6054 = vmatprep.subr.mxu0 0.0
  %6055 = vmatpush1.msra.mxu0 0.0
  %6056 = vmatprep.subr.mxu0 0.0
  %6057 = vmatpush1.msra.mxu0 0.0
  %6058 = vmatprep.subr.mxu0 0.0
  %6059 = vmatpush1.msra.mxu0 0.0
  %6060 = vmatprep.subr.mxu0 0.0
  %6061 = vmatpush1.msra.mxu0 0.0
  %6062 = vmatprep.subr.mxu0 0.0
  %6063 = vmatpush1.msra.mxu0 0.0
  %6064 = vmatprep.subr.mxu0 0.0
  %6065 = vmatpush1.msra.mxu0 0.0
  %6066 = vmatprep.subr.mxu0 0.0
  %6067 = vmatpush1.msra.mxu0 0.0
  %6068 = vmatprep.subr.mxu0 0.0
  %6069 = vmatpush1.msra.mxu0 0.0
  %6070 = vmatprep.subr.mxu0 0.0
  %6071 = vmatpush1.msra.mxu0 0.0
  %6072 = vmatprep.subr.mxu0 0.0
  %6073 = vmatpush1.msra.mxu0 0.0
  %6074 = vmatprep.subr.mxu0 0.0
  %6075 = vmatpush1.msra.mxu0 0.0
  %6076 = vmatprep.subr.mxu0 0.0
  %6077 = vmatpush1.msra.mxu0 0.0
  %6078 = vmatprep.subr.mxu0 0.0
  %6079 = vmatpush1.msra.mxu0 0.0
  %6080 = vmatprep.subr.mxu0 0.0
  %6081 = vmatpush1.msra.mxu0 0.0
  %6082 = vmatprep.subr.mxu0 0.0
  %6083 = vmatpush1.msra.mxu0 0.0
  %6084 = vmatprep.subr.mxu0 0.0
  %6085 = vmatpush1.msra.mxu0 0.0
  %6086 = vmatprep.subr.mxu0 0.0
  %6087 = vmatpush1.msra.mxu0 0.0
  %6088 = vmatprep.subr.mxu0 0.0
  %6089 = vmatpush1.msra.mxu0 0.0
  %6090 = vmatprep.subr.mxu0 0.0
  %6091 = vmatpush1.msra.mxu0 0.0
  %6092 = vmatprep.subr.mxu0 0.0
  %6093 = vmatpush1.msra.mxu0 0.0
  %6094 = vmatprep.subr.mxu0 0.0
  %6095 = vmatpush1.msra.mxu0 0.0
  %6096 = vmatprep.subr.mxu0 0.0
  %6097 = vmatpush1.msra.mxu0 0.0
  %6098 = vmatprep.subr.mxu0 0.0
  %6099 = vmatpush1.msra.mxu0 0.0
  %6100 = vmatprep.subr.mxu0 0.0
  %6101 = vmatpush1.msra.mxu0 0.0
  %6102 = vmatprep.mubr.f32.mxu0 0.0
  %6103 = vmatmul.mubr.f32.gmra.mrb[0].mxu0 %v5947
  %v6104 = vpop.f32.mrb[0].mxu0
  %v6105 = vadd.f32 0.0, %v6104
  %v6106 = vpop.f32.mrb[0].mxu0
  %6107 = vdwg.mxu0
  %v6109 = vrot.slane %v6105, 4
  %v6110 = vrot.slane %v6105, 5
  %6111 = vrot.lane.b32.xlu0 %v6109, 32
  %v6112 = vpop.permute.xlu0 %6111
  %6113 = vrot.lane.b32.xlu0 %v6110, 32
  %v6114 = vpop.permute.xlu0 %6113
  %v6117 = vadd.f32 %v2538, %v6112
  %v6118 = vadd.f32 %v2543, %v6114
  %v6119 = vxor.u32 %v6117, 2147483648
  %v6120 = vxor.u32 %v6118, 2147483648
  %v6121 = vmul.f32 %v6119, 1.442695
  %v6122 = vpow.pop %v6121
  %v6123 = vmul.f32 %v6120, 1.442695
  %v6124 = vpow.pop %v6123
  %v6125 = vadd.f32 %v6122, 1.0
  %v6126 = vadd.f32 %v6124, 1.0
  %v6127 = vrcp.pop %v6125
  %v6128 = vmul.f32 1.0, %v6127
  %v6129 = vrcp.pop %v6126
  %v6130 = vmul.f32 1.0, %v6129
  %6131 = vmatprep.subr.mxu0 0.0
  %6132 = vmatpush1.msra.mxu0 %v2840
  %6133 = vmatprep.subr.mxu0 0.0
  %6134 = vmatpush1.msra.mxu0 %v2842
  %6135 = vmatprep.subr.mxu0 0.0
  %6136 = vmatpush1.msra.mxu0 %v2844
  %6137 = vmatprep.subr.mxu0 0.0
  %6138 = vmatpush1.msra.mxu0 %v2846
  %6139 = vmatprep.subr.mxu0 0.0
  %6140 = vmatpush1.msra.mxu0 0.0
  %6141 = vmatprep.subr.mxu0 0.0
  %6142 = vmatpush1.msra.mxu0 0.0
  %6143 = vmatprep.subr.mxu0 0.0
  %6144 = vmatpush1.msra.mxu0 0.0
  %6145 = vmatprep.subr.mxu0 0.0
  %6146 = vmatpush1.msra.mxu0 0.0
  %6147 = vmatprep.subr.mxu0 0.0
  %6148 = vmatpush1.msra.mxu0 0.0
  %6149 = vmatprep.subr.mxu0 0.0
  %6150 = vmatpush1.msra.mxu0 0.0
  %6151 = vmatprep.subr.mxu0 0.0
  %6152 = vmatpush1.msra.mxu0 0.0
  %6153 = vmatprep.subr.mxu0 0.0
  %6154 = vmatpush1.msra.mxu0 0.0
  %6155 = vmatprep.subr.mxu0 0.0
  %6156 = vmatpush1.msra.mxu0 0.0
  %6157 = vmatprep.subr.mxu0 0.0
  %6158 = vmatpush1.msra.mxu0 0.0
  %6159 = vmatprep.subr.mxu0 0.0
  %6160 = vmatpush1.msra.mxu0 0.0
  %6161 = vmatprep.subr.mxu0 0.0
  %6162 = vmatpush1.msra.mxu0 0.0
  %6163 = vmatprep.subr.mxu0 0.0
  %6164 = vmatpush1.msra.mxu0 0.0
  %6165 = vmatprep.subr.mxu0 0.0
  %6166 = vmatpush1.msra.mxu0 0.0
  %6167 = vmatprep.subr.mxu0 0.0
  %6168 = vmatpush1.msra.mxu0 0.0
  %6169 = vmatprep.subr.mxu0 0.0
  %6170 = vmatpush1.msra.mxu0 0.0
  %6171 = vmatprep.subr.mxu0 0.0
  %6172 = vmatpush1.msra.mxu0 0.0
  %6173 = vmatprep.subr.mxu0 0.0
  %6174 = vmatpush1.msra.mxu0 0.0
  %6175 = vmatprep.subr.mxu0 0.0
  %6176 = vmatpush1.msra.mxu0 0.0
  %6177 = vmatprep.subr.mxu0 0.0
  %6178 = vmatpush1.msra.mxu0 0.0
  %6179 = vmatprep.subr.mxu0 0.0
  %6180 = vmatpush1.msra.mxu0 0.0
  %6181 = vmatprep.subr.mxu0 0.0
  %6182 = vmatpush1.msra.mxu0 0.0
  %6183 = vmatprep.subr.mxu0 0.0
  %6184 = vmatpush1.msra.mxu0 0.0
  %6185 = vmatprep.subr.mxu0 0.0
  %6186 = vmatpush1.msra.mxu0 0.0
  %6187 = vmatprep.subr.mxu0 0.0
  %6188 = vmatpush1.msra.mxu0 0.0
  %6189 = vmatprep.subr.mxu0 0.0
  %6190 = vmatpush1.msra.mxu0 0.0
  %6191 = vmatprep.subr.mxu0 0.0
  %6192 = vmatpush1.msra.mxu0 0.0
  %6193 = vmatprep.subr.mxu0 0.0
  %6194 = vmatpush1.msra.mxu0 0.0
  %6195 = vmatprep.mubr.f32.mxu0 0.0
  %6196 = vmatmul.mubr.f32.gmra.mrb[0].mxu0 %v5947
  %v6197 = vpop.f32.mrb[0].mxu0
  %v6198 = vadd.f32 0.0, %v6197
  %v6199 = vpop.f32.mrb[0].mxu0
  %6200 = vdwg.mxu0
  %v6202 = vrot.slane %v6198, 4
  %v6203 = vrot.slane %v6198, 5
  %6204 = vrot.lane.b32.xlu0 %v6202, 64
  %v6205 = vpop.permute.xlu0 %6204
  %6206 = vrot.lane.b32.xlu0 %v6203, 64
  %v6207 = vpop.permute.xlu0 %6206
  %v6210 = vadd.f32 %v2538, %v6205
  %v6211 = vadd.f32 %v2543, %v6207
  %v6212 = vtanh.pop %v6210
  %v6213 = vtanh.pop %v6211
  %6214 = vmatprep.subr.mxu0 0.0
  %6215 = vmatpush1.msra.mxu0 %v2934
  %6216 = vmatprep.subr.mxu0 0.0
  %6217 = vmatpush1.msra.mxu0 %v2936
  %6218 = vmatprep.subr.mxu0 0.0
  %6219 = vmatpush1.msra.mxu0 %v2938
  %6220 = vmatprep.subr.mxu0 0.0
  %6221 = vmatpush1.msra.mxu0 %v2940
  %6222 = vmatprep.subr.mxu0 0.0
  %6223 = vmatpush1.msra.mxu0 0.0
  %6224 = vmatprep.subr.mxu0 0.0
  %6225 = vmatpush1.msra.mxu0 0.0
  %6226 = vmatprep.subr.mxu0 0.0
  %6227 = vmatpush1.msra.mxu0 0.0
  %6228 = vmatprep.subr.mxu0 0.0
  %6229 = vmatpush1.msra.mxu0 0.0
  %6230 = vmatprep.subr.mxu0 0.0
  %6231 = vmatpush1.msra.mxu0 0.0
  %6232 = vmatprep.subr.mxu0 0.0
  %6233 = vmatpush1.msra.mxu0 0.0
  %6234 = vmatprep.subr.mxu0 0.0
  %6235 = vmatpush1.msra.mxu0 0.0
  %6236 = vmatprep.subr.mxu0 0.0
  %6237 = vmatpush1.msra.mxu0 0.0
  %6238 = vmatprep.subr.mxu0 0.0
  %6239 = vmatpush1.msra.mxu0 0.0
  %6240 = vmatprep.subr.mxu0 0.0
  %6241 = vmatpush1.msra.mxu0 0.0
  %6242 = vmatprep.subr.mxu0 0.0
  %6243 = vmatpush1.msra.mxu0 0.0
  %6244 = vmatprep.subr.mxu0 0.0
  %6245 = vmatpush1.msra.mxu0 0.0
  %6246 = vmatprep.subr.mxu0 0.0
  %6247 = vmatpush1.msra.mxu0 0.0
  %6248 = vmatprep.subr.mxu0 0.0
  %6249 = vmatpush1.msra.mxu0 0.0
  %6250 = vmatprep.subr.mxu0 0.0
  %6251 = vmatpush1.msra.mxu0 0.0
  %6252 = vmatprep.subr.mxu0 0.0
  %6253 = vmatpush1.msra.mxu0 0.0
  %6254 = vmatprep.subr.mxu0 0.0
  %6255 = vmatpush1.msra.mxu0 0.0
  %6256 = vmatprep.subr.mxu0 0.0
  %6257 = vmatpush1.msra.mxu0 0.0
  %6258 = vmatprep.subr.mxu0 0.0
  %6259 = vmatpush1.msra.mxu0 0.0
  %6260 = vmatprep.subr.mxu0 0.0
  %6261 = vmatpush1.msra.mxu0 0.0
  %6262 = vmatprep.subr.mxu0 0.0
  %6263 = vmatpush1.msra.mxu0 0.0
  %6264 = vmatprep.subr.mxu0 0.0
  %6265 = vmatpush1.msra.mxu0 0.0
  %6266 = vmatprep.subr.mxu0 0.0
  %6267 = vmatpush1.msra.mxu0 0.0
  %6268 = vmatprep.subr.mxu0 0.0
  %6269 = vmatpush1.msra.mxu0 0.0
  %6270 = vmatprep.subr.mxu0 0.0
  %6271 = vmatpush1.msra.mxu0 0.0
  %6272 = vmatprep.subr.mxu0 0.0
  %6273 = vmatpush1.msra.mxu0 0.0
  %6274 = vmatprep.subr.mxu0 0.0
  %6275 = vmatpush1.msra.mxu0 0.0
  %6276 = vmatprep.subr.mxu0 0.0
  %6277 = vmatpush1.msra.mxu0 0.0
  %6278 = vmatprep.mubr.f32.mxu0 0.0
  %6279 = vmatmul.mubr.f32.gmra.mrb[0].mxu0 %v5947
  %v6280 = vpop.f32.mrb[0].mxu0
  %v6281 = vadd.f32 0.0, %v6280
  %v6282 = vpop.f32.mrb[0].mxu0
  %6283 = vdwg.mxu0
  %v6285 = vrot.slane %v6281, 4
  %v6286 = vrot.slane %v6281, 5
  %6287 = vrot.lane.b32.xlu0 %v6285, 96
  %v6288 = vpop.permute.xlu0 %6287
  %6289 = vrot.lane.b32.xlu0 %v6286, 96
  %v6290 = vpop.permute.xlu0 %6289
  %v6293 = vadd.f32 %v2538, %v6288
  %v6294 = vadd.f32 %v2543, %v6290
  %v6295 = vxor.u32 %v6293, 2147483648
  %v6296 = vxor.u32 %v6294, 2147483648
  %v6297 = vmul.f32 %v6295, 1.442695
  %v6298 = vpow.pop %v6297
  %v6299 = vmul.f32 %v6296, 1.442695
  %v6300 = vpow.pop %v6299
  %v6301 = vadd.f32 %v6298, 1.0
  %v6302 = vadd.f32 %v6300, 1.0
  %v6303 = vrcp.pop %v6301
  %v6304 = vmul.f32 1.0, %v6303
  %v6305 = vrcp.pop %v6302
  %v6306 = vmul.f32 1.0, %v6305
  %v6309 = vrot.slane %v5519, 7
  %v6310 = vrot.slane %v5520, 7
  %v6313 = vmul.f32 %v6128, %v6309
  %v6314 = vmul.f32 %v6130, %v6310
  %6317 = vrot.lane.b32.xlu0 %v6212, 64
  %v6318 = vpop.permute.xlu0 %6317
  %6319 = vrot.lane.b32.xlu0 %v6213, 64
  %v6320 = vpop.permute.xlu0 %6319
  %v6323 = vmul.f32 %v6035, %v6318
  %v6324 = vmul.f32 %v6037, %v6320
  %6327 = vrot.lane.b32.xlu0 %v6323, 32
  %v6328 = vpop.permute.xlu0 %6327
  %6329 = vrot.lane.b32.xlu0 %v6324, 32
  %v6330 = vpop.permute.xlu0 %6329
  %v6333 = vadd.f32 %v6313, %v6328
  %v6334 = vadd.f32 %v6314, %v6330
  %v6335 = vtanh.pop %v6333
  %v6336 = vtanh.pop %v6334
  %6339 = vrot.lane.b32.xlu0 %v6335, 64
  %v6340 = vpop.permute.xlu0 %6339
  %6341 = vrot.lane.b32.xlu0 %v6336, 64
  %v6342 = vpop.permute.xlu0 %6341
  %v6345 = vmul.f32 %v6304, %v6340
  %v6346 = vmul.f32 %v6306, %v6342
  %v6349 = vrot.slane %v5938, 4
  %v6350 = vrot.slane %v5939, 3
  %v6351 = vsel %vm3506, %v6350, %v6349
  %6352 = vrot.lane.b32.xlu0 %v6351, 32
  %v6353 = vpop.permute.xlu0 %6352
  %v6354 = vsel %vm84, %v6353, 0
  %6356 = vmatprep.subr.mxu0 0.0
  %6357 = vmatpush1.msra.mxu0 %v2636
  %6358 = vmatprep.subr.mxu0 0.0
  %6359 = vmatpush1.msra.mxu0 %v2637
  %6360 = vmatprep.subr.mxu0 0.0
  %6361 = vmatpush1.msra.mxu0 %v2638
  %6362 = vmatprep.subr.mxu0 0.0
  %6363 = vmatpush1.msra.mxu0 %v2639
  %6364 = vmatprep.subr.mxu0 0.0
  %6365 = vmatpush1.msra.mxu0 0.0
  %6366 = vmatprep.subr.mxu0 0.0
  %6367 = vmatpush1.msra.mxu0 0.0
  %6368 = vmatprep.subr.mxu0 0.0
  %6369 = vmatpush1.msra.mxu0 0.0
  %6370 = vmatprep.subr.mxu0 0.0
  %6371 = vmatpush1.msra.mxu0 0.0
  %6372 = vmatprep.subr.mxu0 0.0
  %6373 = vmatpush1.msra.mxu0 0.0
  %6374 = vmatprep.subr.mxu0 0.0
  %6375 = vmatpush1.msra.mxu0 0.0
  %6376 = vmatprep.subr.mxu0 0.0
  %6377 = vmatpush1.msra.mxu0 0.0
  %6378 = vmatprep.subr.mxu0 0.0
  %6379 = vmatpush1.msra.mxu0 0.0
  %6380 = vmatprep.subr.mxu0 0.0
  %6381 = vmatpush1.msra.mxu0 0.0
  %6382 = vmatprep.subr.mxu0 0.0
  %6383 = vmatpush1.msra.mxu0 0.0
  %6384 = vmatprep.subr.mxu0 0.0
  %6385 = vmatpush1.msra.mxu0 0.0
  %6386 = vmatprep.subr.mxu0 0.0
  %6387 = vmatpush1.msra.mxu0 0.0
  %6388 = vmatprep.subr.mxu0 0.0
  %6389 = vmatpush1.msra.mxu0 0.0
  %6390 = vmatprep.subr.mxu0 0.0
  %6391 = vmatpush1.msra.mxu0 0.0
  %6392 = vmatprep.subr.mxu0 0.0
  %6393 = vmatpush1.msra.mxu0 0.0
  %6394 = vmatprep.subr.mxu0 0.0
  %6395 = vmatpush1.msra.mxu0 0.0
  %6396 = vmatprep.subr.mxu0 0.0
  %6397 = vmatpush1.msra.mxu0 0.0
  %6398 = vmatprep.subr.mxu0 0.0
  %6399 = vmatpush1.msra.mxu0 0.0
  %6400 = vmatprep.subr.mxu0 0.0
  %6401 = vmatpush1.msra.mxu0 0.0
  %6402 = vmatprep.subr.mxu0 0.0
  %6403 = vmatpush1.msra.mxu0 0.0
  %6404 = vmatprep.subr.mxu0 0.0
  %6405 = vmatpush1.msra.mxu0 0.0
  %6406 = vmatprep.subr.mxu0 0.0
  %6407 = vmatpush1.msra.mxu0 0.0
  %6408 = vmatprep.subr.mxu0 0.0
  %6409 = vmatpush1.msra.mxu0 0.0
  %6410 = vmatprep.subr.mxu0 0.0
  %6411 = vmatpush1.msra.mxu0 0.0
  %6412 = vmatprep.subr.mxu0 0.0
  %6413 = vmatpush1.msra.mxu0 0.0
  %6414 = vmatprep.subr.mxu0 0.0
  %6415 = vmatpush1.msra.mxu0 0.0
  %6416 = vmatprep.subr.mxu0 0.0
  %6417 = vmatpush1.msra.mxu0 0.0
  %6418 = vmatprep.subr.mxu0 0.0
  %6419 = vmatpush1.msra.mxu0 0.0
  %6420 = vmatprep.mubr.f32.mxu0 0.0
  %6421 = vmatmul.mubr.f32.gmra.mrb[0].mxu0 %v6354
  %v6422 = vpop.f32.mrb[0].mxu0
  %v6423 = vadd.f32 0.0, %v6422
  %v6424 = vpop.f32.mrb[0].mxu0
  %6425 = vdwg.mxu0
  %v6427 = vrot.slane %v6423, 5
  %v6428 = vrot.slane %v6423, 6
  %v6431 = vadd.f32 %v2624, %v6427
  %v6432 = vadd.f32 %v2629, %v6428
  %v6433 = vxor.u32 %v6431, 2147483648
  %v6434 = vxor.u32 %v6432, 2147483648
  %v6435 = vmul.f32 %v6433, 1.442695
  %v6436 = vpow.pop %v6435
  %v6437 = vmul.f32 %v6434, 1.442695
  %v6438 = vpow.pop %v6437
  %v6439 = vadd.f32 %v6436, 1.0
  %v6440 = vadd.f32 %v6438, 1.0
  %v6441 = vrcp.pop %v6439
  %v6442 = vmul.f32 1.0, %v6441
  %v6443 = vrcp.pop %v6440
  %v6444 = vmul.f32 1.0, %v6443
  %6445 = vmatprep.subr.mxu0 0.0
  %6446 = vmatpush1.msra.mxu0 %v3165
  %6447 = vmatprep.subr.mxu0 0.0
  %6448 = vmatpush1.msra.mxu0 %v3167
  %6449 = vmatprep.subr.mxu0 0.0
  %6450 = vmatpush1.msra.mxu0 %v3169
  %6451 = vmatprep.subr.mxu0 0.0
  %6452 = vmatpush1.msra.mxu0 %v3171
  %6453 = vmatprep.subr.mxu0 0.0
  %6454 = vmatpush1.msra.mxu0 0.0
  %6455 = vmatprep.subr.mxu0 0.0
  %6456 = vmatpush1.msra.mxu0 0.0
  %6457 = vmatprep.subr.mxu0 0.0
  %6458 = vmatpush1.msra.mxu0 0.0
  %6459 = vmatprep.subr.mxu0 0.0
  %6460 = vmatpush1.msra.mxu0 0.0
  %6461 = vmatprep.subr.mxu0 0.0
  %6462 = vmatpush1.msra.mxu0 0.0
  %6463 = vmatprep.subr.mxu0 0.0
  %6464 = vmatpush1.msra.mxu0 0.0
  %6465 = vmatprep.subr.mxu0 0.0
  %6466 = vmatpush1.msra.mxu0 0.0
  %6467 = vmatprep.subr.mxu0 0.0
  %6468 = vmatpush1.msra.mxu0 0.0
  %6469 = vmatprep.subr.mxu0 0.0
  %6470 = vmatpush1.msra.mxu0 0.0
  %6471 = vmatprep.subr.mxu0 0.0
  %6472 = vmatpush1.msra.mxu0 0.0
  %6473 = vmatprep.subr.mxu0 0.0
  %6474 = vmatpush1.msra.mxu0 0.0
  %6475 = vmatprep.subr.mxu0 0.0
  %6476 = vmatpush1.msra.mxu0 0.0
  %6477 = vmatprep.subr.mxu0 0.0
  %6478 = vmatpush1.msra.mxu0 0.0
  %6479 = vmatprep.subr.mxu0 0.0
  %6480 = vmatpush1.msra.mxu0 0.0
  %6481 = vmatprep.subr.mxu0 0.0
  %6482 = vmatpush1.msra.mxu0 0.0
  %6483 = vmatprep.subr.mxu0 0.0
  %6484 = vmatpush1.msra.mxu0 0.0
  %6485 = vmatprep.subr.mxu0 0.0
  %6486 = vmatpush1.msra.mxu0 0.0
  %6487 = vmatprep.subr.mxu0 0.0
  %6488 = vmatpush1.msra.mxu0 0.0
  %6489 = vmatprep.subr.mxu0 0.0
  %6490 = vmatpush1.msra.mxu0 0.0
  %6491 = vmatprep.subr.mxu0 0.0
  %6492 = vmatpush1.msra.mxu0 0.0
  %6493 = vmatprep.subr.mxu0 0.0
  %6494 = vmatpush1.msra.mxu0 0.0
  %6495 = vmatprep.subr.mxu0 0.0
  %6496 = vmatpush1.msra.mxu0 0.0
  %6497 = vmatprep.subr.mxu0 0.0
  %6498 = vmatpush1.msra.mxu0 0.0
  %6499 = vmatprep.subr.mxu0 0.0
  %6500 = vmatpush1.msra.mxu0 0.0
  %6501 = vmatprep.subr.mxu0 0.0
  %6502 = vmatpush1.msra.mxu0 0.0
  %6503 = vmatprep.subr.mxu0 0.0
  %6504 = vmatpush1.msra.mxu0 0.0
  %6505 = vmatprep.subr.mxu0 0.0
  %6506 = vmatpush1.msra.mxu0 0.0
  %6507 = vmatprep.subr.mxu0 0.0
  %6508 = vmatpush1.msra.mxu0 0.0
  %6509 = vmatprep.mubr.f32.mxu0 0.0
  %6510 = vmatmul.mubr.f32.gmra.mrb[0].mxu0 %v6354
  %v6511 = vpop.f32.mrb[0].mxu0
  %v6512 = vadd.f32 0.0, %v6511
  %v6513 = vpop.f32.mrb[0].mxu0
  %6514 = vdwg.mxu0
  %v6516 = vrot.slane %v6512, 5
  %v6517 = vrot.slane %v6512, 6
  %6518 = vrot.lane.b32.xlu0 %v6516, 32
  %v6519 = vpop.permute.xlu0 %6518
  %6520 = vrot.lane.b32.xlu0 %v6517, 32
  %v6521 = vpop.permute.xlu0 %6520
  %v6524 = vadd.f32 %v2624, %v6519
  %v6525 = vadd.f32 %v2629, %v6521
  %v6526 = vxor.u32 %v6524, 2147483648
  %v6527 = vxor.u32 %v6525, 2147483648
  %v6528 = vmul.f32 %v6526, 1.442695
  %v6529 = vpow.pop %v6528
  %v6530 = vmul.f32 %v6527, 1.442695
  %v6531 = vpow.pop %v6530
  %v6532 = vadd.f32 %v6529, 1.0
  %v6533 = vadd.f32 %v6531, 1.0
  %v6534 = vrcp.pop %v6532
  %v6535 = vmul.f32 1.0, %v6534
  %v6536 = vrcp.pop %v6533
  %v6537 = vmul.f32 1.0, %v6536
  %6538 = vmatprep.subr.mxu0 0.0
  %6539 = vmatpush1.msra.mxu0 %v3270
  %6540 = vmatprep.subr.mxu0 0.0
  %6541 = vmatpush1.msra.mxu0 %v3272
  %6542 = vmatprep.subr.mxu0 0.0
  %6543 = vmatpush1.msra.mxu0 %v3274
  %6544 = vmatprep.subr.mxu0 0.0
  %6545 = vmatpush1.msra.mxu0 %v3276
  %6546 = vmatprep.subr.mxu0 0.0
  %6547 = vmatpush1.msra.mxu0 0.0
  %6548 = vmatprep.subr.mxu0 0.0
  %6549 = vmatpush1.msra.mxu0 0.0
  %6550 = vmatprep.subr.mxu0 0.0
  %6551 = vmatpush1.msra.mxu0 0.0
  %6552 = vmatprep.subr.mxu0 0.0
  %6553 = vmatpush1.msra.mxu0 0.0
  %6554 = vmatprep.subr.mxu0 0.0
  %6555 = vmatpush1.msra.mxu0 0.0
  %6556 = vmatprep.subr.mxu0 0.0
  %6557 = vmatpush1.msra.mxu0 0.0
  %6558 = vmatprep.subr.mxu0 0.0
  %6559 = vmatpush1.msra.mxu0 0.0
  %6560 = vmatprep.subr.mxu0 0.0
  %6561 = vmatpush1.msra.mxu0 0.0
  %6562 = vmatprep.subr.mxu0 0.0
  %6563 = vmatpush1.msra.mxu0 0.0
  %6564 = vmatprep.subr.mxu0 0.0
  %6565 = vmatpush1.msra.mxu0 0.0
  %6566 = vmatprep.subr.mxu0 0.0
  %6567 = vmatpush1.msra.mxu0 0.0
  %6568 = vmatprep.subr.mxu0 0.0
  %6569 = vmatpush1.msra.mxu0 0.0
  %6570 = vmatprep.subr.mxu0 0.0
  %6571 = vmatpush1.msra.mxu0 0.0
  %6572 = vmatprep.subr.mxu0 0.0
  %6573 = vmatpush1.msra.mxu0 0.0
  %6574 = vmatprep.subr.mxu0 0.0
  %6575 = vmatpush1.msra.mxu0 0.0
  %6576 = vmatprep.subr.mxu0 0.0
  %6577 = vmatpush1.msra.mxu0 0.0
  %6578 = vmatprep.subr.mxu0 0.0
  %6579 = vmatpush1.msra.mxu0 0.0
  %6580 = vmatprep.subr.mxu0 0.0
  %6581 = vmatpush1.msra.mxu0 0.0
  %6582 = vmatprep.subr.mxu0 0.0
  %6583 = vmatpush1.msra.mxu0 0.0
  %6584 = vmatprep.subr.mxu0 0.0
  %6585 = vmatpush1.msra.mxu0 0.0
  %6586 = vmatprep.subr.mxu0 0.0
  %6587 = vmatpush1.msra.mxu0 0.0
  %6588 = vmatprep.subr.mxu0 0.0
  %6589 = vmatpush1.msra.mxu0 0.0
  %6590 = vmatprep.subr.mxu0 0.0
  %6591 = vmatpush1.msra.mxu0 0.0
  %6592 = vmatprep.subr.mxu0 0.0
  %6593 = vmatpush1.msra.mxu0 0.0
  %6594 = vmatprep.subr.mxu0 0.0
  %6595 = vmatpush1.msra.mxu0 0.0
  %6596 = vmatprep.subr.mxu0 0.0
  %6597 = vmatpush1.msra.mxu0 0.0
  %6598 = vmatprep.subr.mxu0 0.0
  %6599 = vmatpush1.msra.mxu0 0.0
  %6600 = vmatprep.subr.mxu0 0.0
  %6601 = vmatpush1.msra.mxu0 0.0
  %6602 = vmatprep.mubr.f32.mxu0 0.0
  %6603 = vmatmul.mubr.f32.gmra.mrb[0].mxu0 %v6354
  %v6604 = vpop.f32.mrb[0].mxu0
  %v6605 = vadd.f32 0.0, %v6604
  %v6606 = vpop.f32.mrb[0].mxu0
  %6607 = vdwg.mxu0
  %v6609 = vrot.slane %v6605, 5
  %v6610 = vrot.slane %v6605, 6
  %6611 = vrot.lane.b32.xlu0 %v6609, 64
  %v6612 = vpop.permute.xlu0 %6611
  %6613 = vrot.lane.b32.xlu0 %v6610, 64
  %v6614 = vpop.permute.xlu0 %6613
  %v6617 = vadd.f32 %v2624, %v6612
  %v6618 = vadd.f32 %v2629, %v6614
  %v6619 = vtanh.pop %v6617
  %v6620 = vtanh.pop %v6618
  %6621 = vmatprep.subr.mxu0 0.0
  %6622 = vmatpush1.msra.mxu0 %v3365
  %6623 = vmatprep.subr.mxu0 0.0
  %6624 = vmatpush1.msra.mxu0 %v3367
  %6625 = vmatprep.subr.mxu0 0.0
  %6626 = vmatpush1.msra.mxu0 %v3369
  %6627 = vmatprep.subr.mxu0 0.0
  %6628 = vmatpush1.msra.mxu0 %v3371
  %6629 = vmatprep.subr.mxu0 0.0
  %6630 = vmatpush1.msra.mxu0 0.0
  %6631 = vmatprep.subr.mxu0 0.0
  %6632 = vmatpush1.msra.mxu0 0.0
  %6633 = vmatprep.subr.mxu0 0.0
  %6634 = vmatpush1.msra.mxu0 0.0
  %6635 = vmatprep.subr.mxu0 0.0
  %6636 = vmatpush1.msra.mxu0 0.0
  %6637 = vmatprep.subr.mxu0 0.0
  %6638 = vmatpush1.msra.mxu0 0.0
  %6639 = vmatprep.subr.mxu0 0.0
  %6640 = vmatpush1.msra.mxu0 0.0
  %6641 = vmatprep.subr.mxu0 0.0
  %6642 = vmatpush1.msra.mxu0 0.0
  %6643 = vmatprep.subr.mxu0 0.0
  %6644 = vmatpush1.msra.mxu0 0.0
  %6645 = vmatprep.subr.mxu0 0.0
  %6646 = vmatpush1.msra.mxu0 0.0
  %6647 = vmatprep.subr.mxu0 0.0
  %6648 = vmatpush1.msra.mxu0 0.0
  %6649 = vmatprep.subr.mxu0 0.0
  %6650 = vmatpush1.msra.mxu0 0.0
  %6651 = vmatprep.subr.mxu0 0.0
  %6652 = vmatpush1.msra.mxu0 0.0
  %6653 = vmatprep.subr.mxu0 0.0
  %6654 = vmatpush1.msra.mxu0 0.0
  %6655 = vmatprep.subr.mxu0 0.0
  %6656 = vmatpush1.msra.mxu0 0.0
  %6657 = vmatprep.subr.mxu0 0.0
  %6658 = vmatpush1.msra.mxu0 0.0
  %6659 = vmatprep.subr.mxu0 0.0
  %6660 = vmatpush1.msra.mxu0 0.0
  %6661 = vmatprep.subr.mxu0 0.0
  %6662 = vmatpush1.msra.mxu0 0.0
  %6663 = vmatprep.subr.mxu0 0.0
  %6664 = vmatpush1.msra.mxu0 0.0
  %6665 = vmatprep.subr.mxu0 0.0
  %6666 = vmatpush1.msra.mxu0 0.0
  %6667 = vmatprep.subr.mxu0 0.0
  %6668 = vmatpush1.msra.mxu0 0.0
  %6669 = vmatprep.subr.mxu0 0.0
  %6670 = vmatpush1.msra.mxu0 0.0
  %6671 = vmatprep.subr.mxu0 0.0
  %6672 = vmatpush1.msra.mxu0 0.0
  %6673 = vmatprep.subr.mxu0 0.0
  %6674 = vmatpush1.msra.mxu0 0.0
  %6675 = vmatprep.subr.mxu0 0.0
  %6676 = vmatpush1.msra.mxu0 0.0
  %6677 = vmatprep.subr.mxu0 0.0
  %6678 = vmatpush1.msra.mxu0 0.0
  %6679 = vmatprep.subr.mxu0 0.0
  %6680 = vmatpush1.msra.mxu0 0.0
  %6681 = vmatprep.subr.mxu0 0.0
  %6682 = vmatpush1.msra.mxu0 0.0
  %6683 = vmatprep.subr.mxu0 0.0
  %6684 = vmatpush1.msra.mxu0 0.0
  %6685 = vmatprep.mubr.f32.mxu0 0.0
  %6686 = vmatmul.mubr.f32.gmra.mrb[0].mxu0 %v6354
  %v6687 = vpop.f32.mrb[0].mxu0
  %v6688 = vadd.f32 0.0, %v6687
  %v6689 = vpop.f32.mrb[0].mxu0
  %6690 = vdwg.mxu0
  %v6692 = vrot.slane %v6688, 5
  %v6693 = vrot.slane %v6688, 6
  %6694 = vrot.lane.b32.xlu0 %v6692, 96
  %v6695 = vpop.permute.xlu0 %6694
  %6696 = vrot.lane.b32.xlu0 %v6693, 96
  %v6697 = vpop.permute.xlu0 %6696
  %v6700 = vadd.f32 %v2624, %v6695
  %v6701 = vadd.f32 %v2629, %v6697
  %v6702 = vxor.u32 %v6700, 2147483648
  %v6703 = vxor.u32 %v6701, 2147483648
  %v6704 = vmul.f32 %v6702, 1.442695
  %v6705 = vpow.pop %v6704
  %v6706 = vmul.f32 %v6703, 1.442695
  %v6707 = vpow.pop %v6706
  %v6708 = vadd.f32 %v6705, 1.0
  %v6709 = vadd.f32 %v6707, 1.0
  %v6710 = vrcp.pop %v6708
  %v6711 = vmul.f32 1.0, %v6710
  %v6712 = vrcp.pop %v6709
  %v6713 = vmul.f32 1.0, %v6712
  %v6716 = vrot.slane %v5926, 1
  %v6717 = vrot.slane %v5927, 1
  %v6720 = vmul.f32 %v6535, %v6716
  %v6721 = vmul.f32 %v6537, %v6717
  %6724 = vrot.lane.b32.xlu0 %v6619, 64
  %v6725 = vpop.permute.xlu0 %6724
  %6726 = vrot.lane.b32.xlu0 %v6620, 64
  %v6727 = vpop.permute.xlu0 %6726
  %v6730 = vmul.f32 %v6442, %v6725
  %v6731 = vmul.f32 %v6444, %v6727
  %6734 = vrot.lane.b32.xlu0 %v6730, 32
  %v6735 = vpop.permute.xlu0 %6734
  %6736 = vrot.lane.b32.xlu0 %v6731, 32
  %v6737 = vpop.permute.xlu0 %6736
  %v6740 = vadd.f32 %v6720, %v6735
  %v6741 = vadd.f32 %v6721, %v6737
  %v6742 = vtanh.pop %v6740
  %v6743 = vtanh.pop %v6741
  %6746 = vrot.lane.b32.xlu0 %v6742, 64
  %v6747 = vpop.permute.xlu0 %6746
  %6748 = vrot.lane.b32.xlu0 %v6743, 64
  %v6749 = vpop.permute.xlu0 %6748
  %v6752 = vmul.f32 %v6711, %v6747
  %v6753 = vmul.f32 %v6713, %v6749
  %v6756 = vrot.slane %v6345, 4
  %v6757 = vrot.slane %v6346, 3
  %v6758 = vsel %vm3506, %v6757, %v6756
  %6759 = vrot.lane.b32.xlu0 %v6758, 32
  %v6760 = vpop.permute.xlu0 %6759
  %v6761 = vsel %vm84, %v6760, 0
  %6763 = vmatprep.subr.mxu0 0.0
  %6764 = vmatpush1.msra.mxu0 %v2632
  %6765 = vmatprep.subr.mxu0 0.0
  %6766 = vmatpush1.msra.mxu0 %v2633
  %6767 = vmatprep.subr.mxu0 0.0
  %6768 = vmatpush1.msra.mxu0 %v2634
  %6769 = vmatprep.subr.mxu0 0.0
  %6770 = vmatpush1.msra.mxu0 %v2635
  %6771 = vmatprep.subr.mxu0 0.0
  %6772 = vmatpush1.msra.mxu0 0.0
  %6773 = vmatprep.subr.mxu0 0.0
  %6774 = vmatpush1.msra.mxu0 0.0
  %6775 = vmatprep.subr.mxu0 0.0
  %6776 = vmatpush1.msra.mxu0 0.0
  %6777 = vmatprep.subr.mxu0 0.0
  %6778 = vmatpush1.msra.mxu0 0.0
  %6779 = vmatprep.subr.mxu0 0.0
  %6780 = vmatpush1.msra.mxu0 0.0
  %6781 = vmatprep.subr.mxu0 0.0
  %6782 = vmatpush1.msra.mxu0 0.0
  %6783 = vmatprep.subr.mxu0 0.0
  %6784 = vmatpush1.msra.mxu0 0.0
  %6785 = vmatprep.subr.mxu0 0.0
  %6786 = vmatpush1.msra.mxu0 0.0
  %6787 = vmatprep.subr.mxu0 0.0
  %6788 = vmatpush1.msra.mxu0 0.0
  %6789 = vmatprep.subr.mxu0 0.0
  %6790 = vmatpush1.msra.mxu0 0.0
  %6791 = vmatprep.subr.mxu0 0.0
  %6792 = vmatpush1.msra.mxu0 0.0
  %6793 = vmatprep.subr.mxu0 0.0
  %6794 = vmatpush1.msra.mxu0 0.0
  %6795 = vmatprep.subr.mxu0 0.0
  %6796 = vmatpush1.msra.mxu0 0.0
  %6797 = vmatprep.subr.mxu0 0.0
  %6798 = vmatpush1.msra.mxu0 0.0
  %6799 = vmatprep.subr.mxu0 0.0
  %6800 = vmatpush1.msra.mxu0 0.0
  %6801 = vmatprep.subr.mxu0 0.0
  %6802 = vmatpush1.msra.mxu0 0.0
  %6803 = vmatprep.subr.mxu0 0.0
  %6804 = vmatpush1.msra.mxu0 0.0
  %6805 = vmatprep.subr.mxu0 0.0
  %6806 = vmatpush1.msra.mxu0 0.0
  %6807 = vmatprep.subr.mxu0 0.0
  %6808 = vmatpush1.msra.mxu0 0.0
  %6809 = vmatprep.subr.mxu0 0.0
  %6810 = vmatpush1.msra.mxu0 0.0
  %6811 = vmatprep.subr.mxu0 0.0
  %6812 = vmatpush1.msra.mxu0 0.0
  %6813 = vmatprep.subr.mxu0 0.0
  %6814 = vmatpush1.msra.mxu0 0.0
  %6815 = vmatprep.subr.mxu0 0.0
  %6816 = vmatpush1.msra.mxu0 0.0
  %6817 = vmatprep.subr.mxu0 0.0
  %6818 = vmatpush1.msra.mxu0 0.0
  %6819 = vmatprep.subr.mxu0 0.0
  %6820 = vmatpush1.msra.mxu0 0.0
  %6821 = vmatprep.subr.mxu0 0.0
  %6822 = vmatpush1.msra.mxu0 0.0
  %6823 = vmatprep.subr.mxu0 0.0
  %6824 = vmatpush1.msra.mxu0 0.0
  %6825 = vmatprep.subr.mxu0 0.0
  %6826 = vmatpush1.msra.mxu0 0.0
  %6827 = vmatprep.mubr.f32.mxu0 0.0
  %6828 = vmatmul.mubr.f32.gmra.mrb[0].mxu0 %v6761
  %v6829 = vpop.f32.mrb[0].mxu0
  %v6830 = vadd.f32 0.0, %v6829
  %v6831 = vpop.f32.mrb[0].mxu0
  %6832 = vdwg.mxu0
  %v6834 = vrot.slane %v6830, 3
  %v6835 = vrot.slane %v6830, 4
  %v6838 = vadd.f32 %v2538, %v6834
  %v6839 = vadd.f32 %v2543, %v6835
  %v6840 = vxor.u32 %v6838, 2147483648
  %v6841 = vxor.u32 %v6839, 2147483648
  %v6842 = vmul.f32 %v6840, 1.442695
  %v6843 = vpow.pop %v6842
  %v6844 = vmul.f32 %v6841, 1.442695
  %v6845 = vpow.pop %v6844
  %v6846 = vadd.f32 %v6843, 1.0
  %v6847 = vadd.f32 %v6845, 1.0
  %v6848 = vrcp.pop %v6846
  %v6849 = vmul.f32 1.0, %v6848
  %v6850 = vrcp.pop %v6847
  %v6851 = vmul.f32 1.0, %v6850
  %6852 = vmatprep.subr.mxu0 0.0
  %6853 = vmatpush1.msra.mxu0 %v2736
  %6854 = vmatprep.subr.mxu0 0.0
  %6855 = vmatpush1.msra.mxu0 %v2738
  %6856 = vmatprep.subr.mxu0 0.0
  %6857 = vmatpush1.msra.mxu0 %v2740
  %6858 = vmatprep.subr.mxu0 0.0
  %6859 = vmatpush1.msra.mxu0 %v2742
  %6860 = vmatprep.subr.mxu0 0.0
  %6861 = vmatpush1.msra.mxu0 0.0
  %6862 = vmatprep.subr.mxu0 0.0
  %6863 = vmatpush1.msra.mxu0 0.0
  %6864 = vmatprep.subr.mxu0 0.0
  %6865 = vmatpush1.msra.mxu0 0.0
  %6866 = vmatprep.subr.mxu0 0.0
  %6867 = vmatpush1.msra.mxu0 0.0
  %6868 = vmatprep.subr.mxu0 0.0
  %6869 = vmatpush1.msra.mxu0 0.0
  %6870 = vmatprep.subr.mxu0 0.0
  %6871 = vmatpush1.msra.mxu0 0.0
  %6872 = vmatprep.subr.mxu0 0.0
  %6873 = vmatpush1.msra.mxu0 0.0
  %6874 = vmatprep.subr.mxu0 0.0
  %6875 = vmatpush1.msra.mxu0 0.0
  %6876 = vmatprep.subr.mxu0 0.0
  %6877 = vmatpush1.msra.mxu0 0.0
  %6878 = vmatprep.subr.mxu0 0.0
  %6879 = vmatpush1.msra.mxu0 0.0
  %6880 = vmatprep.subr.mxu0 0.0
  %6881 = vmatpush1.msra.mxu0 0.0
  %6882 = vmatprep.subr.mxu0 0.0
  %6883 = vmatpush1.msra.mxu0 0.0
  %6884 = vmatprep.subr.mxu0 0.0
  %6885 = vmatpush1.msra.mxu0 0.0
  %6886 = vmatprep.subr.mxu0 0.0
  %6887 = vmatpush1.msra.mxu0 0.0
  %6888 = vmatprep.subr.mxu0 0.0
  %6889 = vmatpush1.msra.mxu0 0.0
  %6890 = vmatprep.subr.mxu0 0.0
  %6891 = vmatpush1.msra.mxu0 0.0
  %6892 = vmatprep.subr.mxu0 0.0
  %6893 = vmatpush1.msra.mxu0 0.0
  %6894 = vmatprep.subr.mxu0 0.0
  %6895 = vmatpush1.msra.mxu0 0.0
  %6896 = vmatprep.subr.mxu0 0.0
  %6897 = vmatpush1.msra.mxu0 0.0
  %6898 = vmatprep.subr.mxu0 0.0
  %6899 = vmatpush1.msra.mxu0 0.0
  %6900 = vmatprep.subr.mxu0 0.0
  %6901 = vmatpush1.msra.mxu0 0.0
  %6902 = vmatprep.subr.mxu0 0.0
  %6903 = vmatpush1.msra.mxu0 0.0
  %6904 = vmatprep.subr.mxu0 0.0
  %6905 = vmatpush1.msra.mxu0 0.0
  %6906 = vmatprep.subr.mxu0 0.0
  %6907 = vmatpush1.msra.mxu0 0.0
  %6908 = vmatprep.subr.mxu0 0.0
  %6909 = vmatpush1.msra.mxu0 0.0
  %6910 = vmatprep.subr.mxu0 0.0
  %6911 = vmatpush1.msra.mxu0 0.0
  %6912 = vmatprep.subr.mxu0 0.0
  %6913 = vmatpush1.msra.mxu0 0.0
  %6914 = vmatprep.subr.mxu0 0.0
  %6915 = vmatpush1.msra.mxu0 0.0
  %6916 = vmatprep.mubr.f32.mxu0 0.0
  %6917 = vmatmul.mubr.f32.gmra.mrb[0].mxu0 %v6761
  %v6918 = vpop.f32.mrb[0].mxu0
  %v6919 = vadd.f32 0.0, %v6918
  %v6920 = vpop.f32.mrb[0].mxu0
  %6921 = vdwg.mxu0
  %v6923 = vrot.slane %v6919, 3
  %v6924 = vrot.slane %v6919, 4
  %6925 = vrot.lane.b32.xlu0 %v6923, 32
  %v6926 = vpop.permute.xlu0 %6925
  %6927 = vrot.lane.b32.xlu0 %v6924, 32
  %v6928 = vpop.permute.xlu0 %6927
  %v6931 = vadd.f32 %v2538, %v6926
  %v6932 = vadd.f32 %v2543, %v6928
  %v6933 = vxor.u32 %v6931, 2147483648
  %v6934 = vxor.u32 %v6932, 2147483648
  %v6935 = vmul.f32 %v6933, 1.442695
  %v6936 = vpow.pop %v6935
  %v6937 = vmul.f32 %v6934, 1.442695
  %v6938 = vpow.pop %v6937
  %v6939 = vadd.f32 %v6936, 1.0
  %v6940 = vadd.f32 %v6938, 1.0
  %v6941 = vrcp.pop %v6939
  %v6942 = vmul.f32 1.0, %v6941
  %v6943 = vrcp.pop %v6940
  %v6944 = vmul.f32 1.0, %v6943
  %6945 = vmatprep.subr.mxu0 0.0
  %6946 = vmatpush1.msra.mxu0 %v2840
  %6947 = vmatprep.subr.mxu0 0.0
  %6948 = vmatpush1.msra.mxu0 %v2842
  %6949 = vmatprep.subr.mxu0 0.0
  %6950 = vmatpush1.msra.mxu0 %v2844
  %6951 = vmatprep.subr.mxu0 0.0
  %6952 = vmatpush1.msra.mxu0 %v2846
  %6953 = vmatprep.subr.mxu0 0.0
  %6954 = vmatpush1.msra.mxu0 0.0
  %6955 = vmatprep.subr.mxu0 0.0
  %6956 = vmatpush1.msra.mxu0 0.0
  %6957 = vmatprep.subr.mxu0 0.0
  %6958 = vmatpush1.msra.mxu0 0.0
  %6959 = vmatprep.subr.mxu0 0.0
  %6960 = vmatpush1.msra.mxu0 0.0
  %6961 = vmatprep.subr.mxu0 0.0
  %6962 = vmatpush1.msra.mxu0 0.0
  %6963 = vmatprep.subr.mxu0 0.0
  %6964 = vmatpush1.msra.mxu0 0.0
  %6965 = vmatprep.subr.mxu0 0.0
  %6966 = vmatpush1.msra.mxu0 0.0
  %6967 = vmatprep.subr.mxu0 0.0
  %6968 = vmatpush1.msra.mxu0 0.0
  %6969 = vmatprep.subr.mxu0 0.0
  %6970 = vmatpush1.msra.mxu0 0.0
  %6971 = vmatprep.subr.mxu0 0.0
  %6972 = vmatpush1.msra.mxu0 0.0
  %6973 = vmatprep.subr.mxu0 0.0
  %6974 = vmatpush1.msra.mxu0 0.0
  %6975 = vmatprep.subr.mxu0 0.0
  %6976 = vmatpush1.msra.mxu0 0.0
  %6977 = vmatprep.subr.mxu0 0.0
  %6978 = vmatpush1.msra.mxu0 0.0
  %6979 = vmatprep.subr.mxu0 0.0
  %6980 = vmatpush1.msra.mxu0 0.0
  %6981 = vmatprep.subr.mxu0 0.0
  %6982 = vmatpush1.msra.mxu0 0.0
  %6983 = vmatprep.subr.mxu0 0.0
  %6984 = vmatpush1.msra.mxu0 0.0
  %6985 = vmatprep.subr.mxu0 0.0
  %6986 = vmatpush1.msra.mxu0 0.0
  %6987 = vmatprep.subr.mxu0 0.0
  %6988 = vmatpush1.msra.mxu0 0.0
  %6989 = vmatprep.subr.mxu0 0.0
  %6990 = vmatpush1.msra.mxu0 0.0
  %6991 = vmatprep.subr.mxu0 0.0
  %6992 = vmatpush1.msra.mxu0 0.0
  %6993 = vmatprep.subr.mxu0 0.0
  %6994 = vmatpush1.msra.mxu0 0.0
  %6995 = vmatprep.subr.mxu0 0.0
  %6996 = vmatpush1.msra.mxu0 0.0
  %6997 = vmatprep.subr.mxu0 0.0
  %6998 = vmatpush1.msra.mxu0 0.0
  %6999 = vmatprep.subr.mxu0 0.0
  %7000 = vmatpush1.msra.mxu0 0.0
  %7001 = vmatprep.subr.mxu0 0.0
  %7002 = vmatpush1.msra.mxu0 0.0
  %7003 = vmatprep.subr.mxu0 0.0
  %7004 = vmatpush1.msra.mxu0 0.0
  %7005 = vmatprep.subr.mxu0 0.0
  %7006 = vmatpush1.msra.mxu0 0.0
  %7007 = vmatprep.subr.mxu0 0.0
  %7008 = vmatpush1.msra.mxu0 0.0
  %7009 = vmatprep.mubr.f32.mxu0 0.0
  %7010 = vmatmul.mubr.f32.gmra.mrb[0].mxu0 %v6761
  %v7011 = vpop.f32.mrb[0].mxu0
  %v7012 = vadd.f32 0.0, %v7011
  %v7013 = vpop.f32.mrb[0].mxu0
  %7014 = vdwg.mxu0
  %v7016 = vrot.slane %v7012, 3
  %v7017 = vrot.slane %v7012, 4
  %7018 = vrot.lane.b32.xlu0 %v7016, 64
  %v7019 = vpop.permute.xlu0 %7018
  %7020 = vrot.lane.b32.xlu0 %v7017, 64
  %v7021 = vpop.permute.xlu0 %7020
  %v7024 = vadd.f32 %v2538, %v7019
  %v7025 = vadd.f32 %v2543, %v7021
  %v7026 = vtanh.pop %v7024
  %v7027 = vtanh.pop %v7025
  %7028 = vmatprep.subr.mxu0 0.0
  %7029 = vmatpush1.msra.mxu0 %v2934
  %7030 = vmatprep.subr.mxu0 0.0
  %7031 = vmatpush1.msra.mxu0 %v2936
  %7032 = vmatprep.subr.mxu0 0.0
  %7033 = vmatpush1.msra.mxu0 %v2938
  %7034 = vmatprep.subr.mxu0 0.0
  %7035 = vmatpush1.msra.mxu0 %v2940
  %7036 = vmatprep.subr.mxu0 0.0
  %7037 = vmatpush1.msra.mxu0 0.0
  %7038 = vmatprep.subr.mxu0 0.0
  %7039 = vmatpush1.msra.mxu0 0.0
  %7040 = vmatprep.subr.mxu0 0.0
  %7041 = vmatpush1.msra.mxu0 0.0
  %7042 = vmatprep.subr.mxu0 0.0
  %7043 = vmatpush1.msra.mxu0 0.0
  %7044 = vmatprep.subr.mxu0 0.0
  %7045 = vmatpush1.msra.mxu0 0.0
  %7046 = vmatprep.subr.mxu0 0.0
  %7047 = vmatpush1.msra.mxu0 0.0
  %7048 = vmatprep.subr.mxu0 0.0
  %7049 = vmatpush1.msra.mxu0 0.0
  %7050 = vmatprep.subr.mxu0 0.0
  %7051 = vmatpush1.msra.mxu0 0.0
  %7052 = vmatprep.subr.mxu0 0.0
  %7053 = vmatpush1.msra.mxu0 0.0
  %7054 = vmatprep.subr.mxu0 0.0
  %7055 = vmatpush1.msra.mxu0 0.0
  %7056 = vmatprep.subr.mxu0 0.0
  %7057 = vmatpush1.msra.mxu0 0.0
  %7058 = vmatprep.subr.mxu0 0.0
  %7059 = vmatpush1.msra.mxu0 0.0
  %7060 = vmatprep.subr.mxu0 0.0
  %7061 = vmatpush1.msra.mxu0 0.0
  %7062 = vmatprep.subr.mxu0 0.0
  %7063 = vmatpush1.msra.mxu0 0.0
  %7064 = vmatprep.subr.mxu0 0.0
  %7065 = vmatpush1.msra.mxu0 0.0
  %7066 = vmatprep.subr.mxu0 0.0
  %7067 = vmatpush1.msra.mxu0 0.0
  %7068 = vmatprep.subr.mxu0 0.0
  %7069 = vmatpush1.msra.mxu0 0.0
  %7070 = vmatprep.subr.mxu0 0.0
  %7071 = vmatpush1.msra.mxu0 0.0
  %7072 = vmatprep.subr.mxu0 0.0
  %7073 = vmatpush1.msra.mxu0 0.0
  %7074 = vmatprep.subr.mxu0 0.0
  %7075 = vmatpush1.msra.mxu0 0.0
  %7076 = vmatprep.subr.mxu0 0.0
  %7077 = vmatpush1.msra.mxu0 0.0
  %7078 = vmatprep.subr.mxu0 0.0
  %7079 = vmatpush1.msra.mxu0 0.0
  %7080 = vmatprep.subr.mxu0 0.0
  %7081 = vmatpush1.msra.mxu0 0.0
  %7082 = vmatprep.subr.mxu0 0.0
  %7083 = vmatpush1.msra.mxu0 0.0
  %7084 = vmatprep.subr.mxu0 0.0
  %7085 = vmatpush1.msra.mxu0 0.0
  %7086 = vmatprep.subr.mxu0 0.0
  %7087 = vmatpush1.msra.mxu0 0.0
  %7088 = vmatprep.subr.mxu0 0.0
  %7089 = vmatpush1.msra.mxu0 0.0
  %7090 = vmatprep.subr.mxu0 0.0
  %7091 = vmatpush1.msra.mxu0 0.0
  %7092 = vmatprep.mubr.f32.mxu0 0.0
  %7093 = vmatmul.mubr.f32.gmra.mrb[0].mxu0 %v6761
  %v7094 = vpop.f32.mrb[0].mxu0
  %v7095 = vadd.f32 0.0, %v7094
  %v7096 = vpop.f32.mrb[0].mxu0
  %7097 = vdwg.mxu0
  %v7099 = vrot.slane %v7095, 3
  %v7100 = vrot.slane %v7095, 4
  %7101 = vrot.lane.b32.xlu0 %v7099, 96
  %v7102 = vpop.permute.xlu0 %7101
  %7103 = vrot.lane.b32.xlu0 %v7100, 96
  %v7104 = vpop.permute.xlu0 %7103
  %v7107 = vadd.f32 %v2538, %v7102
  %v7108 = vadd.f32 %v2543, %v7104
  %v7109 = vxor.u32 %v7107, 2147483648
  %v7110 = vxor.u32 %v7108, 2147483648
  %v7111 = vmul.f32 %v7109, 1.442695
  %v7112 = vpow.pop %v7111
  %v7113 = vmul.f32 %v7110, 1.442695
  %v7114 = vpow.pop %v7113
  %v7115 = vadd.f32 %v7112, 1.0
  %v7116 = vadd.f32 %v7114, 1.0
  %v7117 = vrcp.pop %v7115
  %v7118 = vmul.f32 1.0, %v7117
  %v7119 = vrcp.pop %v7116
  %v7120 = vmul.f32 1.0, %v7119
  %v7123 = vrot.slane %v6333, 7
  %v7124 = vrot.slane %v6334, 7
  %v7127 = vmul.f32 %v6942, %v7123
  %v7128 = vmul.f32 %v6944, %v7124
  %7131 = vrot.lane.b32.xlu0 %v7026, 64
  %v7132 = vpop.permute.xlu0 %7131
  %7133 = vrot.lane.b32.xlu0 %v7027, 64
  %v7134 = vpop.permute.xlu0 %7133
  %v7137 = vmul.f32 %v6849, %v7132
  %v7138 = vmul.f32 %v6851, %v7134
  %7141 = vrot.lane.b32.xlu0 %v7137, 32
  %v7142 = vpop.permute.xlu0 %7141
  %7143 = vrot.lane.b32.xlu0 %v7138, 32
  %v7144 = vpop.permute.xlu0 %7143
  %v7147 = vadd.f32 %v7127, %v7142
  %v7148 = vadd.f32 %v7128, %v7144
  %v7149 = vtanh.pop %v7147
  %v7150 = vtanh.pop %v7148
  %7153 = vrot.lane.b32.xlu0 %v7149, 64
  %v7154 = vpop.permute.xlu0 %7153
  %7155 = vrot.lane.b32.xlu0 %v7150, 64
  %v7156 = vpop.permute.xlu0 %7155
  %v7159 = vmul.f32 %v7118, %v7154
  %v7160 = vmul.f32 %v7120, %v7156
  %v7163 = vrot.slane %v6752, 3
  %v7164 = vrot.slane %v6753, 2
  %v7165 = vsel %vm3506, %v7164, %v7163
  %7166 = vrot.lane.b32.xlu0 %v7165, 32
  %v7167 = vpop.permute.xlu0 %7166
  %v7168 = vsel %vm84, %v7167, 0
  %7170 = vmatprep.subr.mxu0 0.0
  %7171 = vmatpush1.msra.mxu0 %v2636
  %7172 = vmatprep.subr.mxu0 0.0
  %7173 = vmatpush1.msra.mxu0 %v2637
  %7174 = vmatprep.subr.mxu0 0.0
  %7175 = vmatpush1.msra.mxu0 %v2638
  %7176 = vmatprep.subr.mxu0 0.0
  %7177 = vmatpush1.msra.mxu0 %v2639
  %7178 = vmatprep.subr.mxu0 0.0
  %7179 = vmatpush1.msra.mxu0 0.0
  %7180 = vmatprep.subr.mxu0 0.0
  %7181 = vmatpush1.msra.mxu0 0.0
  %7182 = vmatprep.subr.mxu0 0.0
  %7183 = vmatpush1.msra.mxu0 0.0
  %7184 = vmatprep.subr.mxu0 0.0
  %7185 = vmatpush1.msra.mxu0 0.0
  %7186 = vmatprep.subr.mxu0 0.0
  %7187 = vmatpush1.msra.mxu0 0.0
  %7188 = vmatprep.subr.mxu0 0.0
  %7189 = vmatpush1.msra.mxu0 0.0
  %7190 = vmatprep.subr.mxu0 0.0
  %7191 = vmatpush1.msra.mxu0 0.0
  %7192 = vmatprep.subr.mxu0 0.0
  %7193 = vmatpush1.msra.mxu0 0.0
  %7194 = vmatprep.subr.mxu0 0.0
  %7195 = vmatpush1.msra.mxu0 0.0
  %7196 = vmatprep.subr.mxu0 0.0
  %7197 = vmatpush1.msra.mxu0 0.0
  %7198 = vmatprep.subr.mxu0 0.0
  %7199 = vmatpush1.msra.mxu0 0.0
  %7200 = vmatprep.subr.mxu0 0.0
  %7201 = vmatpush1.msra.mxu0 0.0
  %7202 = vmatprep.subr.mxu0 0.0
  %7203 = vmatpush1.msra.mxu0 0.0
  %7204 = vmatprep.subr.mxu0 0.0
  %7205 = vmatpush1.msra.mxu0 0.0
  %7206 = vmatprep.subr.mxu0 0.0
  %7207 = vmatpush1.msra.mxu0 0.0
  %7208 = vmatprep.subr.mxu0 0.0
  %7209 = vmatpush1.msra.mxu0 0.0
  %7210 = vmatprep.subr.mxu0 0.0
  %7211 = vmatpush1.msra.mxu0 0.0
  %7212 = vmatprep.subr.mxu0 0.0
  %7213 = vmatpush1.msra.mxu0 0.0
  %7214 = vmatprep.subr.mxu0 0.0
  %7215 = vmatpush1.msra.mxu0 0.0
  %7216 = vmatprep.subr.mxu0 0.0
  %7217 = vmatpush1.msra.mxu0 0.0
  %7218 = vmatprep.subr.mxu0 0.0
  %7219 = vmatpush1.msra.mxu0 0.0
  %7220 = vmatprep.subr.mxu0 0.0
  %7221 = vmatpush1.msra.mxu0 0.0
  %7222 = vmatprep.subr.mxu0 0.0
  %7223 = vmatpush1.msra.mxu0 0.0
  %7224 = vmatprep.subr.mxu0 0.0
  %7225 = vmatpush1.msra.mxu0 0.0
  %7226 = vmatprep.subr.mxu0 0.0
  %7227 = vmatpush1.msra.mxu0 0.0
  %7228 = vmatprep.subr.mxu0 0.0
  %7229 = vmatpush1.msra.mxu0 0.0
  %7230 = vmatprep.subr.mxu0 0.0
  %7231 = vmatpush1.msra.mxu0 0.0
  %7232 = vmatprep.subr.mxu0 0.0
  %7233 = vmatpush1.msra.mxu0 0.0
  %7234 = vmatprep.mubr.f32.mxu0 0.0
  %7235 = vmatmul.mubr.f32.gmra.mrb[0].mxu0 %v7168
  %v7236 = vpop.f32.mrb[0].mxu0
  %v7237 = vadd.f32 0.0, %v7236
  %v7238 = vpop.f32.mrb[0].mxu0
  %7239 = vdwg.mxu0
  %v7241 = vrot.slane %v7237, 6
  %v7242 = vrot.slane %v7237, 7
  %v7245 = vadd.f32 %v2624, %v7241
  %v7246 = vadd.f32 %v2629, %v7242
  %v7247 = vxor.u32 %v7245, 2147483648
  %v7248 = vxor.u32 %v7246, 2147483648
  %v7249 = vmul.f32 %v7247, 1.442695
  %v7250 = vpow.pop %v7249
  %v7251 = vmul.f32 %v7248, 1.442695
  %v7252 = vpow.pop %v7251
  %v7253 = vadd.f32 %v7250, 1.0
  %v7254 = vadd.f32 %v7252, 1.0
  %v7255 = vrcp.pop %v7253
  %v7256 = vmul.f32 1.0, %v7255
  %v7257 = vrcp.pop %v7254
  %v7258 = vmul.f32 1.0, %v7257
  %7259 = vmatprep.subr.mxu0 0.0
  %7260 = vmatpush1.msra.mxu0 %v3165
  %7261 = vmatprep.subr.mxu0 0.0
  %7262 = vmatpush1.msra.mxu0 %v3167
  %7263 = vmatprep.subr.mxu0 0.0
  %7264 = vmatpush1.msra.mxu0 %v3169
  %7265 = vmatprep.subr.mxu0 0.0
  %7266 = vmatpush1.msra.mxu0 %v3171
  %7267 = vmatprep.subr.mxu0 0.0
  %7268 = vmatpush1.msra.mxu0 0.0
  %7269 = vmatprep.subr.mxu0 0.0
  %7270 = vmatpush1.msra.mxu0 0.0
  %7271 = vmatprep.subr.mxu0 0.0
  %7272 = vmatpush1.msra.mxu0 0.0
  %7273 = vmatprep.subr.mxu0 0.0
  %7274 = vmatpush1.msra.mxu0 0.0
  %7275 = vmatprep.subr.mxu0 0.0
  %7276 = vmatpush1.msra.mxu0 0.0
  %7277 = vmatprep.subr.mxu0 0.0
  %7278 = vmatpush1.msra.mxu0 0.0
  %7279 = vmatprep.subr.mxu0 0.0
  %7280 = vmatpush1.msra.mxu0 0.0
  %7281 = vmatprep.subr.mxu0 0.0
  %7282 = vmatpush1.msra.mxu0 0.0
  %7283 = vmatprep.subr.mxu0 0.0
  %7284 = vmatpush1.msra.mxu0 0.0
  %7285 = vmatprep.subr.mxu0 0.0
  %7286 = vmatpush1.msra.mxu0 0.0
  %7287 = vmatprep.subr.mxu0 0.0
  %7288 = vmatpush1.msra.mxu0 0.0
  %7289 = vmatprep.subr.mxu0 0.0
  %7290 = vmatpush1.msra.mxu0 0.0
  %7291 = vmatprep.subr.mxu0 0.0
  %7292 = vmatpush1.msra.mxu0 0.0
  %7293 = vmatprep.subr.mxu0 0.0
  %7294 = vmatpush1.msra.mxu0 0.0
  %7295 = vmatprep.subr.mxu0 0.0
  %7296 = vmatpush1.msra.mxu0 0.0
  %7297 = vmatprep.subr.mxu0 0.0
  %7298 = vmatpush1.msra.mxu0 0.0
  %7299 = vmatprep.subr.mxu0 0.0
  %7300 = vmatpush1.msra.mxu0 0.0
  %7301 = vmatprep.subr.mxu0 0.0
  %7302 = vmatpush1.msra.mxu0 0.0
  %7303 = vmatprep.subr.mxu0 0.0
  %7304 = vmatpush1.msra.mxu0 0.0
  %7305 = vmatprep.subr.mxu0 0.0
  %7306 = vmatpush1.msra.mxu0 0.0
  %7307 = vmatprep.subr.mxu0 0.0
  %7308 = vmatpush1.msra.mxu0 0.0
  %7309 = vmatprep.subr.mxu0 0.0
  %7310 = vmatpush1.msra.mxu0 0.0
  %7311 = vmatprep.subr.mxu0 0.0
  %7312 = vmatpush1.msra.mxu0 0.0
  %7313 = vmatprep.subr.mxu0 0.0
  %7314 = vmatpush1.msra.mxu0 0.0
  %7315 = vmatprep.subr.mxu0 0.0
  %7316 = vmatpush1.msra.mxu0 0.0
  %7317 = vmatprep.subr.mxu0 0.0
  %7318 = vmatpush1.msra.mxu0 0.0
  %7319 = vmatprep.subr.mxu0 0.0
  %7320 = vmatpush1.msra.mxu0 0.0
  %7321 = vmatprep.subr.mxu0 0.0
  %7322 = vmatpush1.msra.mxu0 0.0
  %7323 = vmatprep.mubr.f32.mxu0 0.0
  %7324 = vmatmul.mubr.f32.gmra.mrb[0].mxu0 %v7168
  %v7325 = vpop.f32.mrb[0].mxu0
  %v7326 = vadd.f32 0.0, %v7325
  %v7327 = vpop.f32.mrb[0].mxu0
  %7328 = vdwg.mxu0
  %v7330 = vrot.slane %v7326, 6
  %v7331 = vrot.slane %v7326, 7
  %7332 = vrot.lane.b32.xlu0 %v7330, 32
  %v7333 = vpop.permute.xlu0 %7332
  %7334 = vrot.lane.b32.xlu0 %v7331, 32
  %v7335 = vpop.permute.xlu0 %7334
  %v7338 = vadd.f32 %v2624, %v7333
  %v7339 = vadd.f32 %v2629, %v7335
  %v7340 = vxor.u32 %v7338, 2147483648
  %v7341 = vxor.u32 %v7339, 2147483648
  %v7342 = vmul.f32 %v7340, 1.442695
  %v7343 = vpow.pop %v7342
  %v7344 = vmul.f32 %v7341, 1.442695
  %v7345 = vpow.pop %v7344
  %v7346 = vadd.f32 %v7343, 1.0
  %v7347 = vadd.f32 %v7345, 1.0
  %v7348 = vrcp.pop %v7346
  %v7349 = vmul.f32 1.0, %v7348
  %v7350 = vrcp.pop %v7347
  %v7351 = vmul.f32 1.0, %v7350
  %7352 = vmatprep.subr.mxu0 0.0
  %7353 = vmatpush1.msra.mxu0 %v3270
  %7354 = vmatprep.subr.mxu0 0.0
  %7355 = vmatpush1.msra.mxu0 %v3272
  %7356 = vmatprep.subr.mxu0 0.0
  %7357 = vmatpush1.msra.mxu0 %v3274
  %7358 = vmatprep.subr.mxu0 0.0
  %7359 = vmatpush1.msra.mxu0 %v3276
  %7360 = vmatprep.subr.mxu0 0.0
  %7361 = vmatpush1.msra.mxu0 0.0
  %7362 = vmatprep.subr.mxu0 0.0
  %7363 = vmatpush1.msra.mxu0 0.0
  %7364 = vmatprep.subr.mxu0 0.0
  %7365 = vmatpush1.msra.mxu0 0.0
  %7366 = vmatprep.subr.mxu0 0.0
  %7367 = vmatpush1.msra.mxu0 0.0
  %7368 = vmatprep.subr.mxu0 0.0
  %7369 = vmatpush1.msra.mxu0 0.0
  %7370 = vmatprep.subr.mxu0 0.0
  %7371 = vmatpush1.msra.mxu0 0.0
  %7372 = vmatprep.subr.mxu0 0.0
  %7373 = vmatpush1.msra.mxu0 0.0
  %7374 = vmatprep.subr.mxu0 0.0
  %7375 = vmatpush1.msra.mxu0 0.0
  %7376 = vmatprep.subr.mxu0 0.0
  %7377 = vmatpush1.msra.mxu0 0.0
  %7378 = vmatprep.subr.mxu0 0.0
  %7379 = vmatpush1.msra.mxu0 0.0
  %7380 = vmatprep.subr.mxu0 0.0
  %7381 = vmatpush1.msra.mxu0 0.0
  %7382 = vmatprep.subr.mxu0 0.0
  %7383 = vmatpush1.msra.mxu0 0.0
  %7384 = vmatprep.subr.mxu0 0.0
  %7385 = vmatpush1.msra.mxu0 0.0
  %7386 = vmatprep.subr.mxu0 0.0
  %7387 = vmatpush1.msra.mxu0 0.0
  %7388 = vmatprep.subr.mxu0 0.0
  %7389 = vmatpush1.msra.mxu0 0.0
  %7390 = vmatprep.subr.mxu0 0.0
  %7391 = vmatpush1.msra.mxu0 0.0
  %7392 = vmatprep.subr.mxu0 0.0
  %7393 = vmatpush1.msra.mxu0 0.0
  %7394 = vmatprep.subr.mxu0 0.0
  %7395 = vmatpush1.msra.mxu0 0.0
  %7396 = vmatprep.subr.mxu0 0.0
  %7397 = vmatpush1.msra.mxu0 0.0
  %7398 = vmatprep.subr.mxu0 0.0
  %7399 = vmatpush1.msra.mxu0 0.0
  %7400 = vmatprep.subr.mxu0 0.0
  %7401 = vmatpush1.msra.mxu0 0.0
  %7402 = vmatprep.subr.mxu0 0.0
  %7403 = vmatpush1.msra.mxu0 0.0
  %7404 = vmatprep.subr.mxu0 0.0
  %7405 = vmatpush1.msra.mxu0 0.0
  %7406 = vmatprep.subr.mxu0 0.0
  %7407 = vmatpush1.msra.mxu0 0.0
  %7408 = vmatprep.subr.mxu0 0.0
  %7409 = vmatpush1.msra.mxu0 0.0
  %7410 = vmatprep.subr.mxu0 0.0
  %7411 = vmatpush1.msra.mxu0 0.0
  %7412 = vmatprep.subr.mxu0 0.0
  %7413 = vmatpush1.msra.mxu0 0.0
  %7414 = vmatprep.subr.mxu0 0.0
  %7415 = vmatpush1.msra.mxu0 0.0
  %7416 = vmatprep.mubr.f32.mxu0 0.0
  %7417 = vmatmul.mubr.f32.gmra.mrb[0].mxu0 %v7168
  %v7418 = vpop.f32.mrb[0].mxu0
  %v7419 = vadd.f32 0.0, %v7418
  %v7420 = vpop.f32.mrb[0].mxu0
  %7421 = vdwg.mxu0
  %v7423 = vrot.slane %v7419, 6
  %v7424 = vrot.slane %v7419, 7
  %7425 = vrot.lane.b32.xlu0 %v7423, 64
  %v7426 = vpop.permute.xlu0 %7425
  %7427 = vrot.lane.b32.xlu0 %v7424, 64
  %v7428 = vpop.permute.xlu0 %7427
  %v7431 = vadd.f32 %v2624, %v7426
  %v7432 = vadd.f32 %v2629, %v7428
  %v7433 = vtanh.pop %v7431
  %v7434 = vtanh.pop %v7432
  %7435 = vmatprep.subr.mxu0 0.0
  %7436 = vmatpush1.msra.mxu0 %v3365
  %7437 = vmatprep.subr.mxu0 0.0
  %7438 = vmatpush1.msra.mxu0 %v3367
  %7439 = vmatprep.subr.mxu0 0.0
  %7440 = vmatpush1.msra.mxu0 %v3369
  %7441 = vmatprep.subr.mxu0 0.0
  %7442 = vmatpush1.msra.mxu0 %v3371
  %7443 = vmatprep.subr.mxu0 0.0
  %7444 = vmatpush1.msra.mxu0 0.0
  %7445 = vmatprep.subr.mxu0 0.0
  %7446 = vmatpush1.msra.mxu0 0.0
  %7447 = vmatprep.subr.mxu0 0.0
  %7448 = vmatpush1.msra.mxu0 0.0
  %7449 = vmatprep.subr.mxu0 0.0
  %7450 = vmatpush1.msra.mxu0 0.0
  %7451 = vmatprep.subr.mxu0 0.0
  %7452 = vmatpush1.msra.mxu0 0.0
  %7453 = vmatprep.subr.mxu0 0.0
  %7454 = vmatpush1.msra.mxu0 0.0
  %7455 = vmatprep.subr.mxu0 0.0
  %7456 = vmatpush1.msra.mxu0 0.0
  %7457 = vmatprep.subr.mxu0 0.0
  %7458 = vmatpush1.msra.mxu0 0.0
  %7459 = vmatprep.subr.mxu0 0.0
  %7460 = vmatpush1.msra.mxu0 0.0
  %7461 = vmatprep.subr.mxu0 0.0
  %7462 = vmatpush1.msra.mxu0 0.0
  %7463 = vmatprep.subr.mxu0 0.0
  %7464 = vmatpush1.msra.mxu0 0.0
  %7465 = vmatprep.subr.mxu0 0.0
  %7466 = vmatpush1.msra.mxu0 0.0
  %7467 = vmatprep.subr.mxu0 0.0
  %7468 = vmatpush1.msra.mxu0 0.0
  %7469 = vmatprep.subr.mxu0 0.0
  %7470 = vmatpush1.msra.mxu0 0.0
  %7471 = vmatprep.subr.mxu0 0.0
  %7472 = vmatpush1.msra.mxu0 0.0
  %7473 = vmatprep.subr.mxu0 0.0
  %7474 = vmatpush1.msra.mxu0 0.0
  %7475 = vmatprep.subr.mxu0 0.0
  %7476 = vmatpush1.msra.mxu0 0.0
  %7477 = vmatprep.subr.mxu0 0.0
  %7478 = vmatpush1.msra.mxu0 0.0
  %7479 = vmatprep.subr.mxu0 0.0
  %7480 = vmatpush1.msra.mxu0 0.0
  %7481 = vmatprep.subr.mxu0 0.0
  %7482 = vmatpush1.msra.mxu0 0.0
  %7483 = vmatprep.subr.mxu0 0.0
  %7484 = vmatpush1.msra.mxu0 0.0
  %7485 = vmatprep.subr.mxu0 0.0
  %7486 = vmatpush1.msra.mxu0 0.0
  %7487 = vmatprep.subr.mxu0 0.0
  %7488 = vmatpush1.msra.mxu0 0.0
  %7489 = vmatprep.subr.mxu0 0.0
  %7490 = vmatpush1.msra.mxu0 0.0
  %7491 = vmatprep.subr.mxu0 0.0
  %7492 = vmatpush1.msra.mxu0 0.0
  %7493 = vmatprep.subr.mxu0 0.0
  %7494 = vmatpush1.msra.mxu0 0.0
  %7495 = vmatprep.subr.mxu0 0.0
  %7496 = vmatpush1.msra.mxu0 0.0
  %7497 = vmatprep.subr.mxu0 0.0
  %7498 = vmatpush1.msra.mxu0 0.0
  %7499 = vmatprep.mubr.f32.mxu0 0.0
  %7500 = vmatmul.mubr.f32.gmra.mrb[0].mxu0 %v7168
  %v7501 = vpop.f32.mrb[0].mxu0
  %v7502 = vadd.f32 0.0, %v7501
  %v7503 = vpop.f32.mrb[0].mxu0
  %7504 = vdwg.mxu0
  %v7506 = vrot.slane %v7502, 6
  %v7507 = vrot.slane %v7502, 7
  %7508 = vrot.lane.b32.xlu0 %v7506, 96
  %v7509 = vpop.permute.xlu0 %7508
  %7510 = vrot.lane.b32.xlu0 %v7507, 96
  %v7511 = vpop.permute.xlu0 %7510
  %v7514 = vadd.f32 %v2624, %v7509
  %v7515 = vadd.f32 %v2629, %v7511
  %v7516 = vxor.u32 %v7514, 2147483648
  %v7517 = vxor.u32 %v7515, 2147483648
  %v7518 = vmul.f32 %v7516, 1.442695
  %v7519 = vpow.pop %v7518
  %v7520 = vmul.f32 %v7517, 1.442695
  %v7521 = vpow.pop %v7520
  %v7522 = vadd.f32 %v7519, 1.0
  %v7523 = vadd.f32 %v7521, 1.0
  %v7524 = vrcp.pop %v7522
  %v7525 = vmul.f32 1.0, %v7524
  %v7526 = vrcp.pop %v7523
  %v7527 = vmul.f32 1.0, %v7526
  %v7530 = vrot.slane %v6740, 1
  %v7531 = vrot.slane %v6741, 1
  %v7534 = vmul.f32 %v7349, %v7530
  %v7535 = vmul.f32 %v7351, %v7531
  %7538 = vrot.lane.b32.xlu0 %v7433, 64
  %v7539 = vpop.permute.xlu0 %7538
  %7540 = vrot.lane.b32.xlu0 %v7434, 64
  %v7541 = vpop.permute.xlu0 %7540
  %v7544 = vmul.f32 %v7256, %v7539
  %v7545 = vmul.f32 %v7258, %v7541
  %7548 = vrot.lane.b32.xlu0 %v7544, 32
  %v7549 = vpop.permute.xlu0 %7548
  %7550 = vrot.lane.b32.xlu0 %v7545, 32
  %v7551 = vpop.permute.xlu0 %7550
  %v7554 = vadd.f32 %v7534, %v7549
  %v7555 = vadd.f32 %v7535, %v7551
  %v7556 = vtanh.pop %v7554
  %v7557 = vtanh.pop %v7555
  %7560 = vrot.lane.b32.xlu0 %v7556, 64
  %v7561 = vpop.permute.xlu0 %7560
  %7562 = vrot.lane.b32.xlu0 %v7557, 64
  %v7563 = vpop.permute.xlu0 %7562
  %v7566 = vmul.f32 %v7525, %v7561
  %v7567 = vmul.f32 %v7527, %v7563
  %v7570 = vrot.slane %v7159, 5
  %v7571 = vrot.slane %v7160, 4
  %v7572 = vsel %vm3506, %v7571, %v7570
  %7573 = vrot.lane.b32.xlu0 %v7572, 32
  %v7574 = vpop.permute.xlu0 %7573
  %v7575 = vsel %vm84, %v7574, 0
  %7577 = vmatprep.subr.mxu0 0.0
  %7578 = vmatpush1.msra.mxu0 %v2632
  %7579 = vmatprep.subr.mxu0 0.0
  %7580 = vmatpush1.msra.mxu0 %v2633
  %7581 = vmatprep.subr.mxu0 0.0
  %7582 = vmatpush1.msra.mxu0 %v2634
  %7583 = vmatprep.subr.mxu0 0.0
  %7584 = vmatpush1.msra.mxu0 %v2635
  %7585 = vmatprep.subr.mxu0 0.0
  %7586 = vmatpush1.msra.mxu0 0.0
  %7587 = vmatprep.subr.mxu0 0.0
  %7588 = vmatpush1.msra.mxu0 0.0
  %7589 = vmatprep.subr.mxu0 0.0
  %7590 = vmatpush1.msra.mxu0 0.0
  %7591 = vmatprep.subr.mxu0 0.0
  %7592 = vmatpush1.msra.mxu0 0.0
  %7593 = vmatprep.subr.mxu0 0.0
  %7594 = vmatpush1.msra.mxu0 0.0
  %7595 = vmatprep.subr.mxu0 0.0
  %7596 = vmatpush1.msra.mxu0 0.0
  %7597 = vmatprep.subr.mxu0 0.0
  %7598 = vmatpush1.msra.mxu0 0.0
  %7599 = vmatprep.subr.mxu0 0.0
  %7600 = vmatpush1.msra.mxu0 0.0
  %7601 = vmatprep.subr.mxu0 0.0
  %7602 = vmatpush1.msra.mxu0 0.0
  %7603 = vmatprep.subr.mxu0 0.0
  %7604 = vmatpush1.msra.mxu0 0.0
  %7605 = vmatprep.subr.mxu0 0.0
  %7606 = vmatpush1.msra.mxu0 0.0
  %7607 = vmatprep.subr.mxu0 0.0
  %7608 = vmatpush1.msra.mxu0 0.0
  %7609 = vmatprep.subr.mxu0 0.0
  %7610 = vmatpush1.msra.mxu0 0.0
  %7611 = vmatprep.subr.mxu0 0.0
  %7612 = vmatpush1.msra.mxu0 0.0
  %7613 = vmatprep.subr.mxu0 0.0
  %7614 = vmatpush1.msra.mxu0 0.0
  %7615 = vmatprep.subr.mxu0 0.0
  %7616 = vmatpush1.msra.mxu0 0.0
  %7617 = vmatprep.subr.mxu0 0.0
  %7618 = vmatpush1.msra.mxu0 0.0
  %7619 = vmatprep.subr.mxu0 0.0
  %7620 = vmatpush1.msra.mxu0 0.0
  %7621 = vmatprep.subr.mxu0 0.0
  %7622 = vmatpush1.msra.mxu0 0.0
  %7623 = vmatprep.subr.mxu0 0.0
  %7624 = vmatpush1.msra.mxu0 0.0
  %7625 = vmatprep.subr.mxu0 0.0
  %7626 = vmatpush1.msra.mxu0 0.0
  %7627 = vmatprep.subr.mxu0 0.0
  %7628 = vmatpush1.msra.mxu0 0.0
  %7629 = vmatprep.subr.mxu0 0.0
  %7630 = vmatpush1.msra.mxu0 0.0
  %7631 = vmatprep.subr.mxu0 0.0
  %7632 = vmatpush1.msra.mxu0 0.0
  %7633 = vmatprep.subr.mxu0 0.0
  %7634 = vmatpush1.msra.mxu0 0.0
  %7635 = vmatprep.subr.mxu0 0.0
  %7636 = vmatpush1.msra.mxu0 0.0
  %7637 = vmatprep.subr.mxu0 0.0
  %7638 = vmatpush1.msra.mxu0 0.0
  %7639 = vmatprep.subr.mxu0 0.0
  %7640 = vmatpush1.msra.mxu0 0.0
  %7641 = vmatprep.mubr.f32.mxu0 0.0
  %7642 = vmatmul.mubr.f32.gmra.mrb[0].mxu0 %v7575
  %v7643 = vpop.f32.mrb[0].mxu0
  %v7644 = vadd.f32 0.0, %v7643
  %v7645 = vpop.f32.mrb[0].mxu0
  %7646 = vdwg.mxu0
  %v7648 = vrot.slane %v7644, 2
  %v7649 = vrot.slane %v7644, 3
  %v7652 = vadd.f32 %v2538, %v7648
  %v7653 = vadd.f32 %v2543, %v7649
  %v7654 = vxor.u32 %v7652, 2147483648
  %v7655 = vxor.u32 %v7653, 2147483648
  %v7656 = vmul.f32 %v7654, 1.442695
  %v7657 = vpow.pop %v7656
  %v7658 = vmul.f32 %v7655, 1.442695
  %v7659 = vpow.pop %v7658
  %v7660 = vadd.f32 %v7657, 1.0
  %v7661 = vadd.f32 %v7659, 1.0
  %v7662 = vrcp.pop %v7660
  %v7663 = vmul.f32 1.0, %v7662
  %v7664 = vrcp.pop %v7661
  %v7665 = vmul.f32 1.0, %v7664
  %7666 = vmatprep.subr.mxu0 0.0
  %7667 = vmatpush1.msra.mxu0 %v2736
  %7668 = vmatprep.subr.mxu0 0.0
  %7669 = vmatpush1.msra.mxu0 %v2738
  %7670 = vmatprep.subr.mxu0 0.0
  %7671 = vmatpush1.msra.mxu0 %v2740
  %7672 = vmatprep.subr.mxu0 0.0
  %7673 = vmatpush1.msra.mxu0 %v2742
  %7674 = vmatprep.subr.mxu0 0.0
  %7675 = vmatpush1.msra.mxu0 0.0
  %7676 = vmatprep.subr.mxu0 0.0
  %7677 = vmatpush1.msra.mxu0 0.0
  %7678 = vmatprep.subr.mxu0 0.0
  %7679 = vmatpush1.msra.mxu0 0.0
  %7680 = vmatprep.subr.mxu0 0.0
  %7681 = vmatpush1.msra.mxu0 0.0
  %7682 = vmatprep.subr.mxu0 0.0
  %7683 = vmatpush1.msra.mxu0 0.0
  %7684 = vmatprep.subr.mxu0 0.0
  %7685 = vmatpush1.msra.mxu0 0.0
  %7686 = vmatprep.subr.mxu0 0.0
  %7687 = vmatpush1.msra.mxu0 0.0
  %7688 = vmatprep.subr.mxu0 0.0
  %7689 = vmatpush1.msra.mxu0 0.0
  %7690 = vmatprep.subr.mxu0 0.0
  %7691 = vmatpush1.msra.mxu0 0.0
  %7692 = vmatprep.subr.mxu0 0.0
  %7693 = vmatpush1.msra.mxu0 0.0
  %7694 = vmatprep.subr.mxu0 0.0
  %7695 = vmatpush1.msra.mxu0 0.0
  %7696 = vmatprep.subr.mxu0 0.0
  %7697 = vmatpush1.msra.mxu0 0.0
  %7698 = vmatprep.subr.mxu0 0.0
  %7699 = vmatpush1.msra.mxu0 0.0
  %7700 = vmatprep.subr.mxu0 0.0
  %7701 = vmatpush1.msra.mxu0 0.0
  %7702 = vmatprep.subr.mxu0 0.0
  %7703 = vmatpush1.msra.mxu0 0.0
  %7704 = vmatprep.subr.mxu0 0.0
  %7705 = vmatpush1.msra.mxu0 0.0
  %7706 = vmatprep.subr.mxu0 0.0
  %7707 = vmatpush1.msra.mxu0 0.0
  %7708 = vmatprep.subr.mxu0 0.0
  %7709 = vmatpush1.msra.mxu0 0.0
  %7710 = vmatprep.subr.mxu0 0.0
  %7711 = vmatpush1.msra.mxu0 0.0
  %7712 = vmatprep.subr.mxu0 0.0
  %7713 = vmatpush1.msra.mxu0 0.0
  %7714 = vmatprep.subr.mxu0 0.0
  %7715 = vmatpush1.msra.mxu0 0.0
  %7716 = vmatprep.subr.mxu0 0.0
  %7717 = vmatpush1.msra.mxu0 0.0
  %7718 = vmatprep.subr.mxu0 0.0
  %7719 = vmatpush1.msra.mxu0 0.0
  %7720 = vmatprep.subr.mxu0 0.0
  %7721 = vmatpush1.msra.mxu0 0.0
  %7722 = vmatprep.subr.mxu0 0.0
  %7723 = vmatpush1.msra.mxu0 0.0
  %7724 = vmatprep.subr.mxu0 0.0
  %7725 = vmatpush1.msra.mxu0 0.0
  %7726 = vmatprep.subr.mxu0 0.0
  %7727 = vmatpush1.msra.mxu0 0.0
  %7728 = vmatprep.subr.mxu0 0.0
  %7729 = vmatpush1.msra.mxu0 0.0
  %7730 = vmatprep.mubr.f32.mxu0 0.0
  %7731 = vmatmul.mubr.f32.gmra.mrb[0].mxu0 %v7575
  %v7732 = vpop.f32.mrb[0].mxu0
  %v7733 = vadd.f32 0.0, %v7732
  %v7734 = vpop.f32.mrb[0].mxu0
  %7735 = vdwg.mxu0
  %v7737 = vrot.slane %v7733, 2
  %v7738 = vrot.slane %v7733, 3
  %7739 = vrot.lane.b32.xlu0 %v7737, 32
  %v7740 = vpop.permute.xlu0 %7739
  %7741 = vrot.lane.b32.xlu0 %v7738, 32
  %v7742 = vpop.permute.xlu0 %7741
  %v7745 = vadd.f32 %v2538, %v7740
  %v7746 = vadd.f32 %v2543, %v7742
  %v7747 = vxor.u32 %v7745, 2147483648
  %v7748 = vxor.u32 %v7746, 2147483648
  %v7749 = vmul.f32 %v7747, 1.442695
  %v7750 = vpow.pop %v7749
  %v7751 = vmul.f32 %v7748, 1.442695
  %v7752 = vpow.pop %v7751
  %v7753 = vadd.f32 %v7750, 1.0
  %v7754 = vadd.f32 %v7752, 1.0
  %v7755 = vrcp.pop %v7753
  %v7756 = vmul.f32 1.0, %v7755
  %v7757 = vrcp.pop %v7754
  %v7758 = vmul.f32 1.0, %v7757
  %7759 = vmatprep.subr.mxu0 0.0
  %7760 = vmatpush1.msra.mxu0 %v2840
  %7761 = vmatprep.subr.mxu0 0.0
  %7762 = vmatpush1.msra.mxu0 %v2842
  %7763 = vmatprep.subr.mxu0 0.0
  %7764 = vmatpush1.msra.mxu0 %v2844
  %7765 = vmatprep.subr.mxu0 0.0
  %7766 = vmatpush1.msra.mxu0 %v2846
  %7767 = vmatprep.subr.mxu0 0.0
  %7768 = vmatpush1.msra.mxu0 0.0
  %7769 = vmatprep.subr.mxu0 0.0
  %7770 = vmatpush1.msra.mxu0 0.0
  %7771 = vmatprep.subr.mxu0 0.0
  %7772 = vmatpush1.msra.mxu0 0.0
  %7773 = vmatprep.subr.mxu0 0.0
  %7774 = vmatpush1.msra.mxu0 0.0
  %7775 = vmatprep.subr.mxu0 0.0
  %7776 = vmatpush1.msra.mxu0 0.0
  %7777 = vmatprep.subr.mxu0 0.0
  %7778 = vmatpush1.msra.mxu0 0.0
  %7779 = vmatprep.subr.mxu0 0.0
  %7780 = vmatpush1.msra.mxu0 0.0
  %7781 = vmatprep.subr.mxu0 0.0
  %7782 = vmatpush1.msra.mxu0 0.0
  %7783 = vmatprep.subr.mxu0 0.0
  %7784 = vmatpush1.msra.mxu0 0.0
  %7785 = vmatprep.subr.mxu0 0.0
  %7786 = vmatpush1.msra.mxu0 0.0
  %7787 = vmatprep.subr.mxu0 0.0
  %7788 = vmatpush1.msra.mxu0 0.0
  %7789 = vmatprep.subr.mxu0 0.0
  %7790 = vmatpush1.msra.mxu0 0.0
  %7791 = vmatprep.subr.mxu0 0.0
  %7792 = vmatpush1.msra.mxu0 0.0
  %7793 = vmatprep.subr.mxu0 0.0
  %7794 = vmatpush1.msra.mxu0 0.0
  %7795 = vmatprep.subr.mxu0 0.0
  %7796 = vmatpush1.msra.mxu0 0.0
  %7797 = vmatprep.subr.mxu0 0.0
  %7798 = vmatpush1.msra.mxu0 0.0
  %7799 = vmatprep.subr.mxu0 0.0
  %7800 = vmatpush1.msra.mxu0 0.0
  %7801 = vmatprep.subr.mxu0 0.0
  %7802 = vmatpush1.msra.mxu0 0.0
  %7803 = vmatprep.subr.mxu0 0.0
  %7804 = vmatpush1.msra.mxu0 0.0
  %7805 = vmatprep.subr.mxu0 0.0
  %7806 = vmatpush1.msra.mxu0 0.0
  %7807 = vmatprep.subr.mxu0 0.0
  %7808 = vmatpush1.msra.mxu0 0.0
  %7809 = vmatprep.subr.mxu0 0.0
  %7810 = vmatpush1.msra.mxu0 0.0
  %7811 = vmatprep.subr.mxu0 0.0
  %7812 = vmatpush1.msra.mxu0 0.0
  %7813 = vmatprep.subr.mxu0 0.0
  %7814 = vmatpush1.msra.mxu0 0.0
  %7815 = vmatprep.subr.mxu0 0.0
  %7816 = vmatpush1.msra.mxu0 0.0
  %7817 = vmatprep.subr.mxu0 0.0
  %7818 = vmatpush1.msra.mxu0 0.0
  %7819 = vmatprep.subr.mxu0 0.0
  %7820 = vmatpush1.msra.mxu0 0.0
  %7821 = vmatprep.subr.mxu0 0.0
  %7822 = vmatpush1.msra.mxu0 0.0
  %7823 = vmatprep.mubr.f32.mxu0 0.0
  %7824 = vmatmul.mubr.f32.gmra.mrb[0].mxu0 %v7575
  %v7825 = vpop.f32.mrb[0].mxu0
  %v7826 = vadd.f32 0.0, %v7825
  %v7827 = vpop.f32.mrb[0].mxu0
  %7828 = vdwg.mxu0
  %v7830 = vrot.slane %v7826, 2
  %v7831 = vrot.slane %v7826, 3
  %7832 = vrot.lane.b32.xlu0 %v7830, 64
  %v7833 = vpop.permute.xlu0 %7832
  %7834 = vrot.lane.b32.xlu0 %v7831, 64
  %v7835 = vpop.permute.xlu0 %7834
  %v7838 = vadd.f32 %v2538, %v7833
  %v7839 = vadd.f32 %v2543, %v7835
  %v7840 = vtanh.pop %v7838
  %v7841 = vtanh.pop %v7839
  %7842 = vmatprep.subr.mxu0 0.0
  %7843 = vmatpush1.msra.mxu0 %v2934
  %7844 = vmatprep.subr.mxu0 0.0
  %7845 = vmatpush1.msra.mxu0 %v2936
  %7846 = vmatprep.subr.mxu0 0.0
  %7847 = vmatpush1.msra.mxu0 %v2938
  %7848 = vmatprep.subr.mxu0 0.0
  %7849 = vmatpush1.msra.mxu0 %v2940
  %7850 = vmatprep.subr.mxu0 0.0
  %7851 = vmatpush1.msra.mxu0 0.0
  %7852 = vmatprep.subr.mxu0 0.0
  %7853 = vmatpush1.msra.mxu0 0.0
  %7854 = vmatprep.subr.mxu0 0.0
  %7855 = vmatpush1.msra.mxu0 0.0
  %7856 = vmatprep.subr.mxu0 0.0
  %7857 = vmatpush1.msra.mxu0 0.0
  %7858 = vmatprep.subr.mxu0 0.0
  %7859 = vmatpush1.msra.mxu0 0.0
  %7860 = vmatprep.subr.mxu0 0.0
  %7861 = vmatpush1.msra.mxu0 0.0
  %7862 = vmatprep.subr.mxu0 0.0
  %7863 = vmatpush1.msra.mxu0 0.0
  %7864 = vmatprep.subr.mxu0 0.0
  %7865 = vmatpush1.msra.mxu0 0.0
  %7866 = vmatprep.subr.mxu0 0.0
  %7867 = vmatpush1.msra.mxu0 0.0
  %7868 = vmatprep.subr.mxu0 0.0
  %7869 = vmatpush1.msra.mxu0 0.0
  %7870 = vmatprep.subr.mxu0 0.0
  %7871 = vmatpush1.msra.mxu0 0.0
  %7872 = vmatprep.subr.mxu0 0.0
  %7873 = vmatpush1.msra.mxu0 0.0
  %7874 = vmatprep.subr.mxu0 0.0
  %7875 = vmatpush1.msra.mxu0 0.0
  %7876 = vmatprep.subr.mxu0 0.0
  %7877 = vmatpush1.msra.mxu0 0.0
  %7878 = vmatprep.subr.mxu0 0.0
  %7879 = vmatpush1.msra.mxu0 0.0
  %7880 = vmatprep.subr.mxu0 0.0
  %7881 = vmatpush1.msra.mxu0 0.0
  %7882 = vmatprep.subr.mxu0 0.0
  %7883 = vmatpush1.msra.mxu0 0.0
  %7884 = vmatprep.subr.mxu0 0.0
  %7885 = vmatpush1.msra.mxu0 0.0
  %7886 = vmatprep.subr.mxu0 0.0
  %7887 = vmatpush1.msra.mxu0 0.0
  %7888 = vmatprep.subr.mxu0 0.0
  %7889 = vmatpush1.msra.mxu0 0.0
  %7890 = vmatprep.subr.mxu0 0.0
  %7891 = vmatpush1.msra.mxu0 0.0
  %7892 = vmatprep.subr.mxu0 0.0
  %7893 = vmatpush1.msra.mxu0 0.0
  %7894 = vmatprep.subr.mxu0 0.0
  %7895 = vmatpush1.msra.mxu0 0.0
  %7896 = vmatprep.subr.mxu0 0.0
  %7897 = vmatpush1.msra.mxu0 0.0
  %7898 = vmatprep.subr.mxu0 0.0
  %7899 = vmatpush1.msra.mxu0 0.0
  %7900 = vmatprep.subr.mxu0 0.0
  %7901 = vmatpush1.msra.mxu0 0.0
  %7902 = vmatprep.subr.mxu0 0.0
  %7903 = vmatpush1.msra.mxu0 0.0
  %7904 = vmatprep.subr.mxu0 0.0
  %7905 = vmatpush1.msra.mxu0 0.0
  %7906 = vmatprep.mubr.f32.mxu0 0.0
  %7907 = vmatmul.mubr.f32.gmra.mrb[0].mxu0 %v7575
  %v7908 = vpop.f32.mrb[0].mxu0
  %v7909 = vadd.f32 0.0, %v7908
  %v7910 = vpop.f32.mrb[0].mxu0
  %7911 = vdwg.mxu0
  %v7913 = vrot.slane %v7909, 2
  %v7914 = vrot.slane %v7909, 3
  %7915 = vrot.lane.b32.xlu0 %v7913, 96
  %v7916 = vpop.permute.xlu0 %7915
  %7917 = vrot.lane.b32.xlu0 %v7914, 96
  %v7918 = vpop.permute.xlu0 %7917
  %v7921 = vadd.f32 %v2538, %v7916
  %v7922 = vadd.f32 %v2543, %v7918
  %v7923 = vxor.u32 %v7921, 2147483648
  %v7924 = vxor.u32 %v7922, 2147483648
  %v7925 = vmul.f32 %v7923, 1.442695
  %v7926 = vpow.pop %v7925
  %v7927 = vmul.f32 %v7924, 1.442695
  %v7928 = vpow.pop %v7927
  %v7929 = vadd.f32 %v7926, 1.0
  %v7930 = vadd.f32 %v7928, 1.0
  %v7931 = vrcp.pop %v7929
  %v7932 = vmul.f32 1.0, %v7931
  %v7933 = vrcp.pop %v7930
  %v7934 = vmul.f32 1.0, %v7933
  %v7937 = vrot.slane %v7147, 7
  %v7938 = vrot.slane %v7148, 7
  %v7941 = vmul.f32 %v7756, %v7937
  %v7942 = vmul.f32 %v7758, %v7938
  %7945 = vrot.lane.b32.xlu0 %v7840, 64
  %v7946 = vpop.permute.xlu0 %7945
  %7947 = vrot.lane.b32.xlu0 %v7841, 64
  %v7948 = vpop.permute.xlu0 %7947
  %v7951 = vmul.f32 %v7663, %v7946
  %v7952 = vmul.f32 %v7665, %v7948
  %7955 = vrot.lane.b32.xlu0 %v7951, 32
  %v7956 = vpop.permute.xlu0 %7955
  %7957 = vrot.lane.b32.xlu0 %v7952, 32
  %v7958 = vpop.permute.xlu0 %7957
  %v7961 = vadd.f32 %v7941, %v7956
  %v7962 = vadd.f32 %v7942, %v7958
  %v7963 = vtanh.pop %v7961
  %v7964 = vtanh.pop %v7962
  %7967 = vrot.lane.b32.xlu0 %v7963, 64
  %v7968 = vpop.permute.xlu0 %7967
  %7969 = vrot.lane.b32.xlu0 %v7964, 64
  %v7970 = vpop.permute.xlu0 %7969
  %v7973 = vmul.f32 %v7932, %v7968
  %v7974 = vmul.f32 %v7934, %v7970
  %v7977 = vrot.slane %v7566, 2
  %v7978 = vrot.slane %v7567, 1
  %v7979 = vsel %vm3506, %v7978, %v7977
  %7980 = vrot.lane.b32.xlu0 %v7979, 32
  %v7981 = vpop.permute.xlu0 %7980
  %v7982 = vsel %vm84, %v7981, 0
  %7984 = vmatprep.subr.mxu0 0.0
  %7985 = vmatpush1.msra.mxu0 %v2636
  %7986 = vmatprep.subr.mxu0 0.0
  %7987 = vmatpush1.msra.mxu0 %v2637
  %7988 = vmatprep.subr.mxu0 0.0
  %7989 = vmatpush1.msra.mxu0 %v2638
  %7990 = vmatprep.subr.mxu0 0.0
  %7991 = vmatpush1.msra.mxu0 %v2639
  %7992 = vmatprep.subr.mxu0 0.0
  %7993 = vmatpush1.msra.mxu0 0.0
  %7994 = vmatprep.subr.mxu0 0.0
  %7995 = vmatpush1.msra.mxu0 0.0
  %7996 = vmatprep.subr.mxu0 0.0
  %7997 = vmatpush1.msra.mxu0 0.0
  %7998 = vmatprep.subr.mxu0 0.0
  %7999 = vmatpush1.msra.mxu0 0.0
  %8000 = vmatprep.subr.mxu0 0.0
  %8001 = vmatpush1.msra.mxu0 0.0
  %8002 = vmatprep.subr.mxu0 0.0
  %8003 = vmatpush1.msra.mxu0 0.0
  %8004 = vmatprep.subr.mxu0 0.0
  %8005 = vmatpush1.msra.mxu0 0.0
  %8006 = vmatprep.subr.mxu0 0.0
  %8007 = vmatpush1.msra.mxu0 0.0
  %8008 = vmatprep.subr.mxu0 0.0
  %8009 = vmatpush1.msra.mxu0 0.0
  %8010 = vmatprep.subr.mxu0 0.0
  %8011 = vmatpush1.msra.mxu0 0.0
  %8012 = vmatprep.subr.mxu0 0.0
  %8013 = vmatpush1.msra.mxu0 0.0
  %8014 = vmatprep.subr.mxu0 0.0
  %8015 = vmatpush1.msra.mxu0 0.0
  %8016 = vmatprep.subr.mxu0 0.0
  %8017 = vmatpush1.msra.mxu0 0.0
  %8018 = vmatprep.subr.mxu0 0.0
  %8019 = vmatpush1.msra.mxu0 0.0
  %8020 = vmatprep.subr.mxu0 0.0
  %8021 = vmatpush1.msra.mxu0 0.0
  %8022 = vmatprep.subr.mxu0 0.0
  %8023 = vmatpush1.msra.mxu0 0.0
  %8024 = vmatprep.subr.mxu0 0.0
  %8025 = vmatpush1.msra.mxu0 0.0
  %8026 = vmatprep.subr.mxu0 0.0
  %8027 = vmatpush1.msra.mxu0 0.0
  %8028 = vmatprep.subr.mxu0 0.0
  %8029 = vmatpush1.msra.mxu0 0.0
  %8030 = vmatprep.subr.mxu0 0.0
  %8031 = vmatpush1.msra.mxu0 0.0
  %8032 = vmatprep.subr.mxu0 0.0
  %8033 = vmatpush1.msra.mxu0 0.0
  %8034 = vmatprep.subr.mxu0 0.0
  %8035 = vmatpush1.msra.mxu0 0.0
  %8036 = vmatprep.subr.mxu0 0.0
  %8037 = vmatpush1.msra.mxu0 0.0
  %8038 = vmatprep.subr.mxu0 0.0
  %8039 = vmatpush1.msra.mxu0 0.0
  %8040 = vmatprep.subr.mxu0 0.0
  %8041 = vmatpush1.msra.mxu0 0.0
  %8042 = vmatprep.subr.mxu0 0.0
  %8043 = vmatpush1.msra.mxu0 0.0
  %8044 = vmatprep.subr.mxu0 0.0
  %8045 = vmatpush1.msra.mxu0 0.0
  %8046 = vmatprep.subr.mxu0 0.0
  %8047 = vmatpush1.msra.mxu0 0.0
  %8048 = vmatprep.mubr.f32.mxu0 0.0
  %8049 = vmatmul.mubr.f32.gmra.mrb[0].mxu0 %v7982
  %v8050 = vpop.f32.mrb[0].mxu0
  %v8051 = vadd.f32 0.0, %v8050
  %v8052 = vpop.f32.mrb[0].mxu0
  %8053 = vdwg.mxu0
  %v8055 = vrot.slane %v8051, 7
  %v8058 = vadd.f32 %v2624, %v8055
  %v8059 = vadd.f32 %v2629, %v8051
  %v8060 = vxor.u32 %v8058, 2147483648
  %v8061 = vxor.u32 %v8059, 2147483648
  %v8062 = vmul.f32 %v8060, 1.442695
  %v8063 = vpow.pop %v8062
  %v8064 = vmul.f32 %v8061, 1.442695
  %v8065 = vpow.pop %v8064
  %v8066 = vadd.f32 %v8063, 1.0
  %v8067 = vadd.f32 %v8065, 1.0
  %v8068 = vrcp.pop %v8066
  %v8069 = vmul.f32 1.0, %v8068
  %v8070 = vrcp.pop %v8067
  %v8071 = vmul.f32 1.0, %v8070
  %8072 = vmatprep.subr.mxu0 0.0
  %8073 = vmatpush1.msra.mxu0 %v3165
  %8074 = vmatprep.subr.mxu0 0.0
  %8075 = vmatpush1.msra.mxu0 %v3167
  %8076 = vmatprep.subr.mxu0 0.0
  %8077 = vmatpush1.msra.mxu0 %v3169
  %8078 = vmatprep.subr.mxu0 0.0
  %8079 = vmatpush1.msra.mxu0 %v3171
  %8080 = vmatprep.subr.mxu0 0.0
  %8081 = vmatpush1.msra.mxu0 0.0
  %8082 = vmatprep.subr.mxu0 0.0
  %8083 = vmatpush1.msra.mxu0 0.0
  %8084 = vmatprep.subr.mxu0 0.0
  %8085 = vmatpush1.msra.mxu0 0.0
  %8086 = vmatprep.subr.mxu0 0.0
  %8087 = vmatpush1.msra.mxu0 0.0
  %8088 = vmatprep.subr.mxu0 0.0
  %8089 = vmatpush1.msra.mxu0 0.0
  %8090 = vmatprep.subr.mxu0 0.0
  %8091 = vmatpush1.msra.mxu0 0.0
  %8092 = vmatprep.subr.mxu0 0.0
  %8093 = vmatpush1.msra.mxu0 0.0
  %8094 = vmatprep.subr.mxu0 0.0
  %8095 = vmatpush1.msra.mxu0 0.0
  %8096 = vmatprep.subr.mxu0 0.0
  %8097 = vmatpush1.msra.mxu0 0.0
  %8098 = vmatprep.subr.mxu0 0.0
  %8099 = vmatpush1.msra.mxu0 0.0
  %8100 = vmatprep.subr.mxu0 0.0
  %8101 = vmatpush1.msra.mxu0 0.0
  %8102 = vmatprep.subr.mxu0 0.0
  %8103 = vmatpush1.msra.mxu0 0.0
  %8104 = vmatprep.subr.mxu0 0.0
  %8105 = vmatpush1.msra.mxu0 0.0
  %8106 = vmatprep.subr.mxu0 0.0
  %8107 = vmatpush1.msra.mxu0 0.0
  %8108 = vmatprep.subr.mxu0 0.0
  %8109 = vmatpush1.msra.mxu0 0.0
  %8110 = vmatprep.subr.mxu0 0.0
  %8111 = vmatpush1.msra.mxu0 0.0
  %8112 = vmatprep.subr.mxu0 0.0
  %8113 = vmatpush1.msra.mxu0 0.0
  %8114 = vmatprep.subr.mxu0 0.0
  %8115 = vmatpush1.msra.mxu0 0.0
  %8116 = vmatprep.subr.mxu0 0.0
  %8117 = vmatpush1.msra.mxu0 0.0
  %8118 = vmatprep.subr.mxu0 0.0
  %8119 = vmatpush1.msra.mxu0 0.0
  %8120 = vmatprep.subr.mxu0 0.0
  %8121 = vmatpush1.msra.mxu0 0.0
  %8122 = vmatprep.subr.mxu0 0.0
  %8123 = vmatpush1.msra.mxu0 0.0
  %8124 = vmatprep.subr.mxu0 0.0
  %8125 = vmatpush1.msra.mxu0 0.0
  %8126 = vmatprep.subr.mxu0 0.0
  %8127 = vmatpush1.msra.mxu0 0.0
  %8128 = vmatprep.subr.mxu0 0.0
  %8129 = vmatpush1.msra.mxu0 0.0
  %8130 = vmatprep.subr.mxu0 0.0
  %8131 = vmatpush1.msra.mxu0 0.0
  %8132 = vmatprep.subr.mxu0 0.0
  %8133 = vmatpush1.msra.mxu0 0.0
  %8134 = vmatprep.subr.mxu0 0.0
  %8135 = vmatpush1.msra.mxu0 0.0
  %8136 = vmatprep.mubr.f32.mxu0 0.0
  %8137 = vmatmul.mubr.f32.gmra.mrb[0].mxu0 %v7982
  %v8138 = vpop.f32.mrb[0].mxu0
  %v8139 = vadd.f32 0.0, %v8138
  %v8140 = vpop.f32.mrb[0].mxu0
  %8141 = vdwg.mxu0
  %v8143 = vrot.slane %v8139, 7
  %8144 = vrot.lane.b32.xlu0 %v8143, 32
  %v8145 = vpop.permute.xlu0 %8144
  %8146 = vrot.lane.b32.xlu0 %v8139, 32
  %v8147 = vpop.permute.xlu0 %8146
  %v8150 = vadd.f32 %v2624, %v8145
  %v8151 = vadd.f32 %v2629, %v8147
  %v8152 = vxor.u32 %v8150, 2147483648
  %v8153 = vxor.u32 %v8151, 2147483648
  %v8154 = vmul.f32 %v8152, 1.442695
  %v8155 = vpow.pop %v8154
  %v8156 = vmul.f32 %v8153, 1.442695
  %v8157 = vpow.pop %v8156
  %v8158 = vadd.f32 %v8155, 1.0
  %v8159 = vadd.f32 %v8157, 1.0
  %v8160 = vrcp.pop %v8158
  %v8161 = vmul.f32 1.0, %v8160
  %v8162 = vrcp.pop %v8159
  %v8163 = vmul.f32 1.0, %v8162
  %8164 = vmatprep.subr.mxu0 0.0
  %8165 = vmatpush1.msra.mxu0 %v3270
  %8166 = vmatprep.subr.mxu0 0.0
  %8167 = vmatpush1.msra.mxu0 %v3272
  %8168 = vmatprep.subr.mxu0 0.0
  %8169 = vmatpush1.msra.mxu0 %v3274
  %8170 = vmatprep.subr.mxu0 0.0
  %8171 = vmatpush1.msra.mxu0 %v3276
  %8172 = vmatprep.subr.mxu0 0.0
  %8173 = vmatpush1.msra.mxu0 0.0
  %8174 = vmatprep.subr.mxu0 0.0
  %8175 = vmatpush1.msra.mxu0 0.0
  %8176 = vmatprep.subr.mxu0 0.0
  %8177 = vmatpush1.msra.mxu0 0.0
  %8178 = vmatprep.subr.mxu0 0.0
  %8179 = vmatpush1.msra.mxu0 0.0
  %8180 = vmatprep.subr.mxu0 0.0
  %8181 = vmatpush1.msra.mxu0 0.0
  %8182 = vmatprep.subr.mxu0 0.0
  %8183 = vmatpush1.msra.mxu0 0.0
  %8184 = vmatprep.subr.mxu0 0.0
  %8185 = vmatpush1.msra.mxu0 0.0
  %8186 = vmatprep.subr.mxu0 0.0
  %8187 = vmatpush1.msra.mxu0 0.0
  %8188 = vmatprep.subr.mxu0 0.0
  %8189 = vmatpush1.msra.mxu0 0.0
  %8190 = vmatprep.subr.mxu0 0.0
  %8191 = vmatpush1.msra.mxu0 0.0
  %8192 = vmatprep.subr.mxu0 0.0
  %8193 = vmatpush1.msra.mxu0 0.0
  %8194 = vmatprep.subr.mxu0 0.0
  %8195 = vmatpush1.msra.mxu0 0.0
  %8196 = vmatprep.subr.mxu0 0.0
  %8197 = vmatpush1.msra.mxu0 0.0
  %8198 = vmatprep.subr.mxu0 0.0
  %8199 = vmatpush1.msra.mxu0 0.0
  %8200 = vmatprep.subr.mxu0 0.0
  %8201 = vmatpush1.msra.mxu0 0.0
  %8202 = vmatprep.subr.mxu0 0.0
  %8203 = vmatpush1.msra.mxu0 0.0
  %8204 = vmatprep.subr.mxu0 0.0
  %8205 = vmatpush1.msra.mxu0 0.0
  %8206 = vmatprep.subr.mxu0 0.0
  %8207 = vmatpush1.msra.mxu0 0.0
  %8208 = vmatprep.subr.mxu0 0.0
  %8209 = vmatpush1.msra.mxu0 0.0
  %8210 = vmatprep.subr.mxu0 0.0
  %8211 = vmatpush1.msra.mxu0 0.0
  %8212 = vmatprep.subr.mxu0 0.0
  %8213 = vmatpush1.msra.mxu0 0.0
  %8214 = vmatprep.subr.mxu0 0.0
  %8215 = vmatpush1.msra.mxu0 0.0
  %8216 = vmatprep.subr.mxu0 0.0
  %8217 = vmatpush1.msra.mxu0 0.0
  %8218 = vmatprep.subr.mxu0 0.0
  %8219 = vmatpush1.msra.mxu0 0.0
  %8220 = vmatprep.subr.mxu0 0.0
  %8221 = vmatpush1.msra.mxu0 0.0
  %8222 = vmatprep.subr.mxu0 0.0
  %8223 = vmatpush1.msra.mxu0 0.0
  %8224 = vmatprep.subr.mxu0 0.0
  %8225 = vmatpush1.msra.mxu0 0.0
  %8226 = vmatprep.subr.mxu0 0.0
  %8227 = vmatpush1.msra.mxu0 0.0
  %8228 = vmatprep.mubr.f32.mxu0 0.0
  %8229 = vmatmul.mubr.f32.gmra.mrb[0].mxu0 %v7982
  %v8230 = vpop.f32.mrb[0].mxu0
  %v8231 = vadd.f32 0.0, %v8230
  %v8232 = vpop.f32.mrb[0].mxu0
  %8233 = vdwg.mxu0
  %v8235 = vrot.slane %v8231, 7
  %8236 = vrot.lane.b32.xlu0 %v8235, 64
  %v8237 = vpop.permute.xlu0 %8236
  %8238 = vrot.lane.b32.xlu0 %v8231, 64
  %v8239 = vpop.permute.xlu0 %8238
  %v8242 = vadd.f32 %v2624, %v8237
  %v8243 = vadd.f32 %v2629, %v8239
  %v8244 = vtanh.pop %v8242
  %v8245 = vtanh.pop %v8243
  %8246 = vmatprep.subr.mxu0 0.0
  %8247 = vmatpush1.msra.mxu0 %v3365
  %8248 = vmatprep.subr.mxu0 0.0
  %8249 = vmatpush1.msra.mxu0 %v3367
  %8250 = vmatprep.subr.mxu0 0.0
  %8251 = vmatpush1.msra.mxu0 %v3369
  %8252 = vmatprep.subr.mxu0 0.0
  %8253 = vmatpush1.msra.mxu0 %v3371
  %8254 = vmatprep.subr.mxu0 0.0
  %8255 = vmatpush1.msra.mxu0 0.0
  %8256 = vmatprep.subr.mxu0 0.0
  %8257 = vmatpush1.msra.mxu0 0.0
  %8258 = vmatprep.subr.mxu0 0.0
  %8259 = vmatpush1.msra.mxu0 0.0
  %8260 = vmatprep.subr.mxu0 0.0
  %8261 = vmatpush1.msra.mxu0 0.0
  %8262 = vmatprep.subr.mxu0 0.0
  %8263 = vmatpush1.msra.mxu0 0.0
  %8264 = vmatprep.subr.mxu0 0.0
  %8265 = vmatpush1.msra.mxu0 0.0
  %8266 = vmatprep.subr.mxu0 0.0
  %8267 = vmatpush1.msra.mxu0 0.0
  %8268 = vmatprep.subr.mxu0 0.0
  %8269 = vmatpush1.msra.mxu0 0.0
  %8270 = vmatprep.subr.mxu0 0.0
  %8271 = vmatpush1.msra.mxu0 0.0
  %8272 = vmatprep.subr.mxu0 0.0
  %8273 = vmatpush1.msra.mxu0 0.0
  %8274 = vmatprep.subr.mxu0 0.0
  %8275 = vmatpush1.msra.mxu0 0.0
  %8276 = vmatprep.subr.mxu0 0.0
  %8277 = vmatpush1.msra.mxu0 0.0
  %8278 = vmatprep.subr.mxu0 0.0
  %8279 = vmatpush1.msra.mxu0 0.0
  %8280 = vmatprep.subr.mxu0 0.0
  %8281 = vmatpush1.msra.mxu0 0.0
  %8282 = vmatprep.subr.mxu0 0.0
  %8283 = vmatpush1.msra.mxu0 0.0
  %8284 = vmatprep.subr.mxu0 0.0
  %8285 = vmatpush1.msra.mxu0 0.0
  %8286 = vmatprep.subr.mxu0 0.0
  %8287 = vmatpush1.msra.mxu0 0.0
  %8288 = vmatprep.subr.mxu0 0.0
  %8289 = vmatpush1.msra.mxu0 0.0
  %8290 = vmatprep.subr.mxu0 0.0
  %8291 = vmatpush1.msra.mxu0 0.0
  %8292 = vmatprep.subr.mxu0 0.0
  %8293 = vmatpush1.msra.mxu0 0.0
  %8294 = vmatprep.subr.mxu0 0.0
  %8295 = vmatpush1.msra.mxu0 0.0
  %8296 = vmatprep.subr.mxu0 0.0
  %8297 = vmatpush1.msra.mxu0 0.0
  %8298 = vmatprep.subr.mxu0 0.0
  %8299 = vmatpush1.msra.mxu0 0.0
  %8300 = vmatprep.subr.mxu0 0.0
  %8301 = vmatpush1.msra.mxu0 0.0
  %8302 = vmatprep.subr.mxu0 0.0
  %8303 = vmatpush1.msra.mxu0 0.0
  %8304 = vmatprep.subr.mxu0 0.0
  %8305 = vmatpush1.msra.mxu0 0.0
  %8306 = vmatprep.subr.mxu0 0.0
  %8307 = vmatpush1.msra.mxu0 0.0
  %8308 = vmatprep.subr.mxu0 0.0
  %8309 = vmatpush1.msra.mxu0 0.0
  %8310 = vmatprep.mubr.f32.mxu0 0.0
  %8311 = vmatmul.mubr.f32.gmra.mrb[0].mxu0 %v7982
  %v8312 = vpop.f32.mrb[0].mxu0
  %v8313 = vadd.f32 0.0, %v8312
  %v8314 = vpop.f32.mrb[0].mxu0
  %8315 = vdwg.mxu0
  %v8317 = vrot.slane %v8313, 7
  %8318 = vrot.lane.b32.xlu0 %v8317, 96
  %v8319 = vpop.permute.xlu0 %8318
  %8320 = vrot.lane.b32.xlu0 %v8313, 96
  %v8321 = vpop.permute.xlu0 %8320
  %v8324 = vadd.f32 %v2624, %v8319
  %v8325 = vadd.f32 %v2629, %v8321
  %v8326 = vxor.u32 %v8324, 2147483648
  %v8327 = vxor.u32 %v8325, 2147483648
  %v8328 = vmul.f32 %v8326, 1.442695
  %v8329 = vpow.pop %v8328
  %v8330 = vmul.f32 %v8327, 1.442695
  %v8331 = vpow.pop %v8330
  %v8332 = vadd.f32 %v8329, 1.0
  %v8333 = vadd.f32 %v8331, 1.0
  %v8334 = vrcp.pop %v8332
  %v8335 = vmul.f32 1.0, %v8334
  %v8336 = vrcp.pop %v8333
  %v8337 = vmul.f32 1.0, %v8336
  %v8340 = vrot.slane %v7554, 1
  %v8341 = vrot.slane %v7555, 1
  %v8344 = vmul.f32 %v8161, %v8340
  %v8345 = vmul.f32 %v8163, %v8341
  %8348 = vrot.lane.b32.xlu0 %v8244, 64
  %v8349 = vpop.permute.xlu0 %8348
  %8350 = vrot.lane.b32.xlu0 %v8245, 64
  %v8351 = vpop.permute.xlu0 %8350
  %v8354 = vmul.f32 %v8069, %v8349
  %v8355 = vmul.f32 %v8071, %v8351
  %8358 = vrot.lane.b32.xlu0 %v8354, 32
  %v8359 = vpop.permute.xlu0 %8358
  %8360 = vrot.lane.b32.xlu0 %v8355, 32
  %v8361 = vpop.permute.xlu0 %8360
  %v8364 = vadd.f32 %v8344, %v8359
  %v8365 = vadd.f32 %v8345, %v8361
  %v8366 = vtanh.pop %v8364
  %v8367 = vtanh.pop %v8365
  %8370 = vrot.lane.b32.xlu0 %v8366, 64
  %v8371 = vpop.permute.xlu0 %8370
  %8372 = vrot.lane.b32.xlu0 %v8367, 64
  %v8373 = vpop.permute.xlu0 %8372
  %v8376 = vmul.f32 %v8335, %v8371
  %v8377 = vmul.f32 %v8337, %v8373
  %v8380 = vrot.slane %v7973, 6
  %v8381 = vrot.slane %v7974, 5
  %v8382 = vsel %vm3506, %v8381, %v8380
  %8383 = vrot.lane.b32.xlu0 %v8382, 32
  %v8384 = vpop.permute.xlu0 %8383
  %v8385 = vsel %vm84, %v8384, 0
  %8387 = vmatprep.subr.mxu0 0.0
  %8388 = vmatpush1.msra.mxu0 %v2632
  %8389 = vmatprep.subr.mxu0 0.0
  %8390 = vmatpush1.msra.mxu0 %v2633
  %8391 = vmatprep.subr.mxu0 0.0
  %8392 = vmatpush1.msra.mxu0 %v2634
  %8393 = vmatprep.subr.mxu0 0.0
  %8394 = vmatpush1.msra.mxu0 %v2635
  %8395 = vmatprep.subr.mxu0 0.0
  %8396 = vmatpush1.msra.mxu0 0.0
  %8397 = vmatprep.subr.mxu0 0.0
  %8398 = vmatpush1.msra.mxu0 0.0
  %8399 = vmatprep.subr.mxu0 0.0
  %8400 = vmatpush1.msra.mxu0 0.0
  %8401 = vmatprep.subr.mxu0 0.0
  %8402 = vmatpush1.msra.mxu0 0.0
  %8403 = vmatprep.subr.mxu0 0.0
  %8404 = vmatpush1.msra.mxu0 0.0
  %8405 = vmatprep.subr.mxu0 0.0
  %8406 = vmatpush1.msra.mxu0 0.0
  %8407 = vmatprep.subr.mxu0 0.0
  %8408 = vmatpush1.msra.mxu0 0.0
  %8409 = vmatprep.subr.mxu0 0.0
  %8410 = vmatpush1.msra.mxu0 0.0
  %8411 = vmatprep.subr.mxu0 0.0
  %8412 = vmatpush1.msra.mxu0 0.0
  %8413 = vmatprep.subr.mxu0 0.0
  %8414 = vmatpush1.msra.mxu0 0.0
  %8415 = vmatprep.subr.mxu0 0.0
  %8416 = vmatpush1.msra.mxu0 0.0
  %8417 = vmatprep.subr.mxu0 0.0
  %8418 = vmatpush1.msra.mxu0 0.0
  %8419 = vmatprep.subr.mxu0 0.0
  %8420 = vmatpush1.msra.mxu0 0.0
  %8421 = vmatprep.subr.mxu0 0.0
  %8422 = vmatpush1.msra.mxu0 0.0
  %8423 = vmatprep.subr.mxu0 0.0
  %8424 = vmatpush1.msra.mxu0 0.0
  %8425 = vmatprep.subr.mxu0 0.0
  %8426 = vmatpush1.msra.mxu0 0.0
  %8427 = vmatprep.subr.mxu0 0.0
  %8428 = vmatpush1.msra.mxu0 0.0
  %8429 = vmatprep.subr.mxu0 0.0
  %8430 = vmatpush1.msra.mxu0 0.0
  %8431 = vmatprep.subr.mxu0 0.0
  %8432 = vmatpush1.msra.mxu0 0.0
  %8433 = vmatprep.subr.mxu0 0.0
  %8434 = vmatpush1.msra.mxu0 0.0
  %8435 = vmatprep.subr.mxu0 0.0
  %8436 = vmatpush1.msra.mxu0 0.0
  %8437 = vmatprep.subr.mxu0 0.0
  %8438 = vmatpush1.msra.mxu0 0.0
  %8439 = vmatprep.subr.mxu0 0.0
  %8440 = vmatpush1.msra.mxu0 0.0
  %8441 = vmatprep.subr.mxu0 0.0
  %8442 = vmatpush1.msra.mxu0 0.0
  %8443 = vmatprep.subr.mxu0 0.0
  %8444 = vmatpush1.msra.mxu0 0.0
  %8445 = vmatprep.subr.mxu0 0.0
  %8446 = vmatpush1.msra.mxu0 0.0
  %8447 = vmatprep.subr.mxu0 0.0
  %8448 = vmatpush1.msra.mxu0 0.0
  %8449 = vmatprep.subr.mxu0 0.0
  %8450 = vmatpush1.msra.mxu0 0.0
  %8451 = vmatprep.mubr.f32.mxu0 0.0
  %8452 = vmatmul.mubr.f32.gmra.mrb[0].mxu0 %v8385
  %v8453 = vpop.f32.mrb[0].mxu0
  %v8454 = vadd.f32 0.0, %v8453
  %v8455 = vpop.f32.mrb[0].mxu0
  %8456 = vdwg.mxu0
  %v8458 = vrot.slane %v8454, 1
  %v8459 = vrot.slane %v8454, 2
  %v8462 = vadd.f32 %v2538, %v8458
  %v8463 = vadd.f32 %v2543, %v8459
  %v8464 = vxor.u32 %v8462, 2147483648
  %v8465 = vxor.u32 %v8463, 2147483648
  %v8466 = vmul.f32 %v8464, 1.442695
  %v8467 = vpow.pop %v8466
  %v8468 = vmul.f32 %v8465, 1.442695
  %v8469 = vpow.pop %v8468
  %v8470 = vadd.f32 %v8467, 1.0
  %v8471 = vadd.f32 %v8469, 1.0
  %v8472 = vrcp.pop %v8470
  %v8473 = vmul.f32 1.0, %v8472
  %v8474 = vrcp.pop %v8471
  %v8475 = vmul.f32 1.0, %v8474
  %8476 = vmatprep.subr.mxu0 0.0
  %8477 = vmatpush1.msra.mxu0 %v2736
  %8478 = vmatprep.subr.mxu0 0.0
  %8479 = vmatpush1.msra.mxu0 %v2738
  %8480 = vmatprep.subr.mxu0 0.0
  %8481 = vmatpush1.msra.mxu0 %v2740
  %8482 = vmatprep.subr.mxu0 0.0
  %8483 = vmatpush1.msra.mxu0 %v2742
  %8484 = vmatprep.subr.mxu0 0.0
  %8485 = vmatpush1.msra.mxu0 0.0
  %8486 = vmatprep.subr.mxu0 0.0
  %8487 = vmatpush1.msra.mxu0 0.0
  %8488 = vmatprep.subr.mxu0 0.0
  %8489 = vmatpush1.msra.mxu0 0.0
  %8490 = vmatprep.subr.mxu0 0.0
  %8491 = vmatpush1.msra.mxu0 0.0
  %8492 = vmatprep.subr.mxu0 0.0
  %8493 = vmatpush1.msra.mxu0 0.0
  %8494 = vmatprep.subr.mxu0 0.0
  %8495 = vmatpush1.msra.mxu0 0.0
  %8496 = vmatprep.subr.mxu0 0.0
  %8497 = vmatpush1.msra.mxu0 0.0
  %8498 = vmatprep.subr.mxu0 0.0
  %8499 = vmatpush1.msra.mxu0 0.0
  %8500 = vmatprep.subr.mxu0 0.0
  %8501 = vmatpush1.msra.mxu0 0.0
  %8502 = vmatprep.subr.mxu0 0.0
  %8503 = vmatpush1.msra.mxu0 0.0
  %8504 = vmatprep.subr.mxu0 0.0
  %8505 = vmatpush1.msra.mxu0 0.0
  %8506 = vmatprep.subr.mxu0 0.0
  %8507 = vmatpush1.msra.mxu0 0.0
  %8508 = vmatprep.subr.mxu0 0.0
  %8509 = vmatpush1.msra.mxu0 0.0
  %8510 = vmatprep.subr.mxu0 0.0
  %8511 = vmatpush1.msra.mxu0 0.0
  %8512 = vmatprep.subr.mxu0 0.0
  %8513 = vmatpush1.msra.mxu0 0.0
  %8514 = vmatprep.subr.mxu0 0.0
  %8515 = vmatpush1.msra.mxu0 0.0
  %8516 = vmatprep.subr.mxu0 0.0
  %8517 = vmatpush1.msra.mxu0 0.0
  %8518 = vmatprep.subr.mxu0 0.0
  %8519 = vmatpush1.msra.mxu0 0.0
  %8520 = vmatprep.subr.mxu0 0.0
  %8521 = vmatpush1.msra.mxu0 0.0
  %8522 = vmatprep.subr.mxu0 0.0
  %8523 = vmatpush1.msra.mxu0 0.0
  %8524 = vmatprep.subr.mxu0 0.0
  %8525 = vmatpush1.msra.mxu0 0.0
  %8526 = vmatprep.subr.mxu0 0.0
  %8527 = vmatpush1.msra.mxu0 0.0
  %8528 = vmatprep.subr.mxu0 0.0
  %8529 = vmatpush1.msra.mxu0 0.0
  %8530 = vmatprep.subr.mxu0 0.0
  %8531 = vmatpush1.msra.mxu0 0.0
  %8532 = vmatprep.subr.mxu0 0.0
  %8533 = vmatpush1.msra.mxu0 0.0
  %8534 = vmatprep.subr.mxu0 0.0
  %8535 = vmatpush1.msra.mxu0 0.0
  %8536 = vmatprep.subr.mxu0 0.0
  %8537 = vmatpush1.msra.mxu0 0.0
  %8538 = vmatprep.subr.mxu0 0.0
  %8539 = vmatpush1.msra.mxu0 0.0
  %8540 = vmatprep.mubr.f32.mxu0 0.0
  %8541 = vmatmul.mubr.f32.gmra.mrb[0].mxu0 %v8385
  %v8542 = vpop.f32.mrb[0].mxu0
  %v8543 = vadd.f32 0.0, %v8542
  %v8544 = vpop.f32.mrb[0].mxu0
  %8545 = vdwg.mxu0
  %v8547 = vrot.slane %v8543, 1
  %v8548 = vrot.slane %v8543, 2
  %8549 = vrot.lane.b32.xlu0 %v8547, 32
  %v8550 = vpop.permute.xlu0 %8549
  %8551 = vrot.lane.b32.xlu0 %v8548, 32
  %v8552 = vpop.permute.xlu0 %8551
  %v8555 = vadd.f32 %v2538, %v8550
  %v8556 = vadd.f32 %v2543, %v8552
  %v8557 = vxor.u32 %v8555, 2147483648
  %v8558 = vxor.u32 %v8556, 2147483648
  %v8559 = vmul.f32 %v8557, 1.442695
  %v8560 = vpow.pop %v8559
  %v8561 = vmul.f32 %v8558, 1.442695
  %v8562 = vpow.pop %v8561
  %v8563 = vadd.f32 %v8560, 1.0
  %v8564 = vadd.f32 %v8562, 1.0
  %v8565 = vrcp.pop %v8563
  %v8566 = vmul.f32 1.0, %v8565
  %v8567 = vrcp.pop %v8564
  %v8568 = vmul.f32 1.0, %v8567
  %8569 = vmatprep.subr.mxu0 0.0
  %8570 = vmatpush1.msra.mxu0 %v2840
  %8571 = vmatprep.subr.mxu0 0.0
  %8572 = vmatpush1.msra.mxu0 %v2842
  %8573 = vmatprep.subr.mxu0 0.0
  %8574 = vmatpush1.msra.mxu0 %v2844
  %8575 = vmatprep.subr.mxu0 0.0
  %8576 = vmatpush1.msra.mxu0 %v2846
  %8577 = vmatprep.subr.mxu0 0.0
  %8578 = vmatpush1.msra.mxu0 0.0
  %8579 = vmatprep.subr.mxu0 0.0
  %8580 = vmatpush1.msra.mxu0 0.0
  %8581 = vmatprep.subr.mxu0 0.0
  %8582 = vmatpush1.msra.mxu0 0.0
  %8583 = vmatprep.subr.mxu0 0.0
  %8584 = vmatpush1.msra.mxu0 0.0
  %8585 = vmatprep.subr.mxu0 0.0
  %8586 = vmatpush1.msra.mxu0 0.0
  %8587 = vmatprep.subr.mxu0 0.0
  %8588 = vmatpush1.msra.mxu0 0.0
  %8589 = vmatprep.subr.mxu0 0.0
  %8590 = vmatpush1.msra.mxu0 0.0
  %8591 = vmatprep.subr.mxu0 0.0
  %8592 = vmatpush1.msra.mxu0 0.0
  %8593 = vmatprep.subr.mxu0 0.0
  %8594 = vmatpush1.msra.mxu0 0.0
  %8595 = vmatprep.subr.mxu0 0.0
  %8596 = vmatpush1.msra.mxu0 0.0
  %8597 = vmatprep.subr.mxu0 0.0
  %8598 = vmatpush1.msra.mxu0 0.0
  %8599 = vmatprep.subr.mxu0 0.0
  %8600 = vmatpush1.msra.mxu0 0.0
  %8601 = vmatprep.subr.mxu0 0.0
  %8602 = vmatpush1.msra.mxu0 0.0
  %8603 = vmatprep.subr.mxu0 0.0
  %8604 = vmatpush1.msra.mxu0 0.0
  %8605 = vmatprep.subr.mxu0 0.0
  %8606 = vmatpush1.msra.mxu0 0.0
  %8607 = vmatprep.subr.mxu0 0.0
  %8608 = vmatpush1.msra.mxu0 0.0
  %8609 = vmatprep.subr.mxu0 0.0
  %8610 = vmatpush1.msra.mxu0 0.0
  %8611 = vmatprep.subr.mxu0 0.0
  %8612 = vmatpush1.msra.mxu0 0.0
  %8613 = vmatprep.subr.mxu0 0.0
  %8614 = vmatpush1.msra.mxu0 0.0
  %8615 = vmatprep.subr.mxu0 0.0
  %8616 = vmatpush1.msra.mxu0 0.0
  %8617 = vmatprep.subr.mxu0 0.0
  %8618 = vmatpush1.msra.mxu0 0.0
  %8619 = vmatprep.subr.mxu0 0.0
  %8620 = vmatpush1.msra.mxu0 0.0
  %8621 = vmatprep.subr.mxu0 0.0
  %8622 = vmatpush1.msra.mxu0 0.0
  %8623 = vmatprep.subr.mxu0 0.0
  %8624 = vmatpush1.msra.mxu0 0.0
  %8625 = vmatprep.subr.mxu0 0.0
  %8626 = vmatpush1.msra.mxu0 0.0
  %8627 = vmatprep.subr.mxu0 0.0
  %8628 = vmatpush1.msra.mxu0 0.0
  %8629 = vmatprep.subr.mxu0 0.0
  %8630 = vmatpush1.msra.mxu0 0.0
  %8631 = vmatprep.subr.mxu0 0.0
  %8632 = vmatpush1.msra.mxu0 0.0
  %8633 = vmatprep.mubr.f32.mxu0 0.0
  %8634 = vmatmul.mubr.f32.gmra.mrb[0].mxu0 %v8385
  %v8635 = vpop.f32.mrb[0].mxu0
  %v8636 = vadd.f32 0.0, %v8635
  %v8637 = vpop.f32.mrb[0].mxu0
  %8638 = vdwg.mxu0
  %v8640 = vrot.slane %v8636, 1
  %v8641 = vrot.slane %v8636, 2
  %8642 = vrot.lane.b32.xlu0 %v8640, 64
  %v8643 = vpop.permute.xlu0 %8642
  %8644 = vrot.lane.b32.xlu0 %v8641, 64
  %v8645 = vpop.permute.xlu0 %8644
  %v8648 = vadd.f32 %v2538, %v8643
  %v8649 = vadd.f32 %v2543, %v8645
  %v8650 = vtanh.pop %v8648
  %v8651 = vtanh.pop %v8649
  %8652 = vmatprep.subr.mxu0 0.0
  %8653 = vmatpush1.msra.mxu0 %v2934
  %8654 = vmatprep.subr.mxu0 0.0
  %8655 = vmatpush1.msra.mxu0 %v2936
  %8656 = vmatprep.subr.mxu0 0.0
  %8657 = vmatpush1.msra.mxu0 %v2938
  %8658 = vmatprep.subr.mxu0 0.0
  %8659 = vmatpush1.msra.mxu0 %v2940
  %8660 = vmatprep.subr.mxu0 0.0
  %8661 = vmatpush1.msra.mxu0 0.0
  %8662 = vmatprep.subr.mxu0 0.0
  %8663 = vmatpush1.msra.mxu0 0.0
  %8664 = vmatprep.subr.mxu0 0.0
  %8665 = vmatpush1.msra.mxu0 0.0
  %8666 = vmatprep.subr.mxu0 0.0
  %8667 = vmatpush1.msra.mxu0 0.0
  %8668 = vmatprep.subr.mxu0 0.0
  %8669 = vmatpush1.msra.mxu0 0.0
  %8670 = vmatprep.subr.mxu0 0.0
  %8671 = vmatpush1.msra.mxu0 0.0
  %8672 = vmatprep.subr.mxu0 0.0
  %8673 = vmatpush1.msra.mxu0 0.0
  %8674 = vmatprep.subr.mxu0 0.0
  %8675 = vmatpush1.msra.mxu0 0.0
  %8676 = vmatprep.subr.mxu0 0.0
  %8677 = vmatpush1.msra.mxu0 0.0
  %8678 = vmatprep.subr.mxu0 0.0
  %8679 = vmatpush1.msra.mxu0 0.0
  %8680 = vmatprep.subr.mxu0 0.0
  %8681 = vmatpush1.msra.mxu0 0.0
  %8682 = vmatprep.subr.mxu0 0.0
  %8683 = vmatpush1.msra.mxu0 0.0
  %8684 = vmatprep.subr.mxu0 0.0
  %8685 = vmatpush1.msra.mxu0 0.0
  %8686 = vmatprep.subr.mxu0 0.0
  %8687 = vmatpush1.msra.mxu0 0.0
  %8688 = vmatprep.subr.mxu0 0.0
  %8689 = vmatpush1.msra.mxu0 0.0
  %8690 = vmatprep.subr.mxu0 0.0
  %8691 = vmatpush1.msra.mxu0 0.0
  %8692 = vmatprep.subr.mxu0 0.0
  %8693 = vmatpush1.msra.mxu0 0.0
  %8694 = vmatprep.subr.mxu0 0.0
  %8695 = vmatpush1.msra.mxu0 0.0
  %8696 = vmatprep.subr.mxu0 0.0
  %8697 = vmatpush1.msra.mxu0 0.0
  %8698 = vmatprep.subr.mxu0 0.0
  %8699 = vmatpush1.msra.mxu0 0.0
  %8700 = vmatprep.subr.mxu0 0.0
  %8701 = vmatpush1.msra.mxu0 0.0
  %8702 = vmatprep.subr.mxu0 0.0
  %8703 = vmatpush1.msra.mxu0 0.0
  %8704 = vmatprep.subr.mxu0 0.0
  %8705 = vmatpush1.msra.mxu0 0.0
  %8706 = vmatprep.subr.mxu0 0.0
  %8707 = vmatpush1.msra.mxu0 0.0
  %8708 = vmatprep.subr.mxu0 0.0
  %8709 = vmatpush1.msra.mxu0 0.0
  %8710 = vmatprep.subr.mxu0 0.0
  %8711 = vmatpush1.msra.mxu0 0.0
  %8712 = vmatprep.subr.mxu0 0.0
  %8713 = vmatpush1.msra.mxu0 0.0
  %8714 = vmatprep.subr.mxu0 0.0
  %8715 = vmatpush1.msra.mxu0 0.0
  %8716 = vmatprep.mubr.f32.mxu0 0.0
  %8717 = vmatmul.mubr.f32.gmra.mrb[0].mxu0 %v8385
  %v8718 = vpop.f32.mrb[0].mxu0
  %v8719 = vadd.f32 0.0, %v8718
  %v8720 = vpop.f32.mrb[0].mxu0
  %8721 = vdwg.mxu0
  %v8723 = vrot.slane %v8719, 1
  %v8724 = vrot.slane %v8719, 2
  %8725 = vrot.lane.b32.xlu0 %v8723, 96
  %v8726 = vpop.permute.xlu0 %8725
  %8727 = vrot.lane.b32.xlu0 %v8724, 96
  %v8728 = vpop.permute.xlu0 %8727
  %v8731 = vadd.f32 %v2538, %v8726
  %v8732 = vadd.f32 %v2543, %v8728
  %v8733 = vxor.u32 %v8731, 2147483648
  %v8734 = vxor.u32 %v8732, 2147483648
  %v8735 = vmul.f32 %v8733, 1.442695
  %v8736 = vpow.pop %v8735
  %v8737 = vmul.f32 %v8734, 1.442695
  %v8738 = vpow.pop %v8737
  %v8739 = vadd.f32 %v8736, 1.0
  %v8740 = vadd.f32 %v8738, 1.0
  %v8741 = vrcp.pop %v8739
  %v8742 = vmul.f32 1.0, %v8741
  %v8743 = vrcp.pop %v8740
  %v8744 = vmul.f32 1.0, %v8743
  %v8747 = vrot.slane %v7961, 7
  %v8748 = vrot.slane %v7962, 7
  %v8751 = vmul.f32 %v8566, %v8747
  %v8752 = vmul.f32 %v8568, %v8748
  %8755 = vrot.lane.b32.xlu0 %v8650, 64
  %v8756 = vpop.permute.xlu0 %8755
  %8757 = vrot.lane.b32.xlu0 %v8651, 64
  %v8758 = vpop.permute.xlu0 %8757
  %v8761 = vmul.f32 %v8473, %v8756
  %v8762 = vmul.f32 %v8475, %v8758
  %8765 = vrot.lane.b32.xlu0 %v8761, 32
  %v8766 = vpop.permute.xlu0 %8765
  %8767 = vrot.lane.b32.xlu0 %v8762, 32
  %v8768 = vpop.permute.xlu0 %8767
  %v8771 = vadd.f32 %v8751, %v8766
  %v8772 = vadd.f32 %v8752, %v8768
  %v8773 = vtanh.pop %v8771
  %v8774 = vtanh.pop %v8772
  %8777 = vrot.lane.b32.xlu0 %v8773, 64
  %v8778 = vpop.permute.xlu0 %8777
  %8779 = vrot.lane.b32.xlu0 %v8774, 64
  %v8780 = vpop.permute.xlu0 %8779
  %v8783 = vmul.f32 %v8742, %v8778
  %v8784 = vmul.f32 %v8744, %v8780
  %v8787 = vrot.slane %v8376, 1
  %v8788 = vsel %vm3506, %v8377, %v8787
  %8789 = vrot.lane.b32.xlu0 %v8788, 32
  %v8790 = vpop.permute.xlu0 %8789
  %v8791 = vsel %vm84, %v8790, 0
  %8793 = vmatprep.subr.mxu0 0.0
  %8794 = vmatpush1.msra.mxu0 %v2636
  %8795 = vmatprep.subr.mxu0 0.0
  %8796 = vmatpush1.msra.mxu0 %v2637
  %8797 = vmatprep.subr.mxu0 0.0
  %8798 = vmatpush1.msra.mxu0 %v2638
  %8799 = vmatprep.subr.mxu0 0.0
  %8800 = vmatpush1.msra.mxu0 %v2639
  %8801 = vmatprep.subr.mxu0 0.0
  %8802 = vmatpush1.msra.mxu0 0.0
  %8803 = vmatprep.subr.mxu0 0.0
  %8804 = vmatpush1.msra.mxu0 0.0
  %8805 = vmatprep.subr.mxu0 0.0
  %8806 = vmatpush1.msra.mxu0 0.0
  %8807 = vmatprep.subr.mxu0 0.0
  %8808 = vmatpush1.msra.mxu0 0.0
  %8809 = vmatprep.subr.mxu0 0.0
  %8810 = vmatpush1.msra.mxu0 0.0
  %8811 = vmatprep.subr.mxu0 0.0
  %8812 = vmatpush1.msra.mxu0 0.0
  %8813 = vmatprep.subr.mxu0 0.0
  %8814 = vmatpush1.msra.mxu0 0.0
  %8815 = vmatprep.subr.mxu0 0.0
  %8816 = vmatpush1.msra.mxu0 0.0
  %8817 = vmatprep.subr.mxu0 0.0
  %8818 = vmatpush1.msra.mxu0 0.0
  %8819 = vmatprep.subr.mxu0 0.0
  %8820 = vmatpush1.msra.mxu0 0.0
  %8821 = vmatprep.subr.mxu0 0.0
  %8822 = vmatpush1.msra.mxu0 0.0
  %8823 = vmatprep.subr.mxu0 0.0
  %8824 = vmatpush1.msra.mxu0 0.0
  %8825 = vmatprep.subr.mxu0 0.0
  %8826 = vmatpush1.msra.mxu0 0.0
  %8827 = vmatprep.subr.mxu0 0.0
  %8828 = vmatpush1.msra.mxu0 0.0
  %8829 = vmatprep.subr.mxu0 0.0
  %8830 = vmatpush1.msra.mxu0 0.0
  %8831 = vmatprep.subr.mxu0 0.0
  %8832 = vmatpush1.msra.mxu0 0.0
  %8833 = vmatprep.subr.mxu0 0.0
  %8834 = vmatpush1.msra.mxu0 0.0
  %8835 = vmatprep.subr.mxu0 0.0
  %8836 = vmatpush1.msra.mxu0 0.0
  %8837 = vmatprep.subr.mxu0 0.0
  %8838 = vmatpush1.msra.mxu0 0.0
  %8839 = vmatprep.subr.mxu0 0.0
  %8840 = vmatpush1.msra.mxu0 0.0
  %8841 = vmatprep.subr.mxu0 0.0
  %8842 = vmatpush1.msra.mxu0 0.0
  %8843 = vmatprep.subr.mxu0 0.0
  %8844 = vmatpush1.msra.mxu0 0.0
  %8845 = vmatprep.subr.mxu0 0.0
  %8846 = vmatpush1.msra.mxu0 0.0
  %8847 = vmatprep.subr.mxu0 0.0
  %8848 = vmatpush1.msra.mxu0 0.0
  %8849 = vmatprep.subr.mxu0 0.0
  %8850 = vmatpush1.msra.mxu0 0.0
  %8851 = vmatprep.subr.mxu0 0.0
  %8852 = vmatpush1.msra.mxu0 0.0
  %8853 = vmatprep.subr.mxu0 0.0
  %8854 = vmatpush1.msra.mxu0 0.0
  %8855 = vmatprep.subr.mxu0 0.0
  %8856 = vmatpush1.msra.mxu0 0.0
  %8857 = vmatprep.mubr.f32.mxu0 0.0
  %8858 = vmatmul.mubr.f32.gmra.mrb[0].mxu0 %v8791
  %v8859 = vpop.f32.mrb[0].mxu0
  %v8860 = vadd.f32 0.0, %v8859
  %v8861 = vpop.f32.mrb[0].mxu0
  %8862 = vdwg.mxu0
  %v8864 = vrot.slane %v8860, 1
  %v8867 = vadd.f32 %v2624, %v8860
  %v8868 = vadd.f32 %v2629, %v8864
  %v8869 = vxor.u32 %v8867, 2147483648
  %v8870 = vxor.u32 %v8868, 2147483648
  %v8871 = vmul.f32 %v8869, 1.442695
  %v8872 = vpow.pop %v8871
  %v8873 = vmul.f32 %v8870, 1.442695
  %v8874 = vpow.pop %v8873
  %v8875 = vadd.f32 %v8872, 1.0
  %v8876 = vadd.f32 %v8874, 1.0
  %v8877 = vrcp.pop %v8875
  %v8878 = vmul.f32 1.0, %v8877
  %v8879 = vrcp.pop %v8876
  %v8880 = vmul.f32 1.0, %v8879
  %8881 = vmatprep.subr.mxu0 0.0
  %8882 = vmatpush1.msra.mxu0 %v3165
  %8883 = vmatprep.subr.mxu0 0.0
  %8884 = vmatpush1.msra.mxu0 %v3167
  %8885 = vmatprep.subr.mxu0 0.0
  %8886 = vmatpush1.msra.mxu0 %v3169
  %8887 = vmatprep.subr.mxu0 0.0
  %8888 = vmatpush1.msra.mxu0 %v3171
  %8889 = vmatprep.subr.mxu0 0.0
  %8890 = vmatpush1.msra.mxu0 0.0
  %8891 = vmatprep.subr.mxu0 0.0
  %8892 = vmatpush1.msra.mxu0 0.0
  %8893 = vmatprep.subr.mxu0 0.0
  %8894 = vmatpush1.msra.mxu0 0.0
  %8895 = vmatprep.subr.mxu0 0.0
  %8896 = vmatpush1.msra.mxu0 0.0
  %8897 = vmatprep.subr.mxu0 0.0
  %8898 = vmatpush1.msra.mxu0 0.0
  %8899 = vmatprep.subr.mxu0 0.0
  %8900 = vmatpush1.msra.mxu0 0.0
  %8901 = vmatprep.subr.mxu0 0.0
  %8902 = vmatpush1.msra.mxu0 0.0
  %8903 = vmatprep.subr.mxu0 0.0
  %8904 = vmatpush1.msra.mxu0 0.0
  %8905 = vmatprep.subr.mxu0 0.0
  %8906 = vmatpush1.msra.mxu0 0.0
  %8907 = vmatprep.subr.mxu0 0.0
  %8908 = vmatpush1.msra.mxu0 0.0
  %8909 = vmatprep.subr.mxu0 0.0
  %8910 = vmatpush1.msra.mxu0 0.0
  %8911 = vmatprep.subr.mxu0 0.0
  %8912 = vmatpush1.msra.mxu0 0.0
  %8913 = vmatprep.subr.mxu0 0.0
  %8914 = vmatpush1.msra.mxu0 0.0
  %8915 = vmatprep.subr.mxu0 0.0
  %8916 = vmatpush1.msra.mxu0 0.0
  %8917 = vmatprep.subr.mxu0 0.0
  %8918 = vmatpush1.msra.mxu0 0.0
  %8919 = vmatprep.subr.mxu0 0.0
  %8920 = vmatpush1.msra.mxu0 0.0
  %8921 = vmatprep.subr.mxu0 0.0
  %8922 = vmatpush1.msra.mxu0 0.0
  %8923 = vmatprep.subr.mxu0 0.0
  %8924 = vmatpush1.msra.mxu0 0.0
  %8925 = vmatprep.subr.mxu0 0.0
  %8926 = vmatpush1.msra.mxu0 0.0
  %8927 = vmatprep.subr.mxu0 0.0
  %8928 = vmatpush1.msra.mxu0 0.0
  %8929 = vmatprep.subr.mxu0 0.0
  %8930 = vmatpush1.msra.mxu0 0.0
  %8931 = vmatprep.subr.mxu0 0.0
  %8932 = vmatpush1.msra.mxu0 0.0
  %8933 = vmatprep.subr.mxu0 0.0
  %8934 = vmatpush1.msra.mxu0 0.0
  %8935 = vmatprep.subr.mxu0 0.0
  %8936 = vmatpush1.msra.mxu0 0.0
  %8937 = vmatprep.subr.mxu0 0.0
  %8938 = vmatpush1.msra.mxu0 0.0
  %8939 = vmatprep.subr.mxu0 0.0
  %8940 = vmatpush1.msra.mxu0 0.0
  %8941 = vmatprep.subr.mxu0 0.0
  %8942 = vmatpush1.msra.mxu0 0.0
  %8943 = vmatprep.subr.mxu0 0.0
  %8944 = vmatpush1.msra.mxu0 0.0
  %8945 = vmatprep.mubr.f32.mxu0 0.0
  %8946 = vmatmul.mubr.f32.gmra.mrb[0].mxu0 %v8791
  %v8947 = vpop.f32.mrb[0].mxu0
  %v8948 = vadd.f32 0.0, %v8947
  %v8949 = vpop.f32.mrb[0].mxu0
  %8950 = vdwg.mxu0
  %v8952 = vrot.slane %v8948, 1
  %8953 = vrot.lane.b32.xlu0 %v8948, 32
  %v8954 = vpop.permute.xlu0 %8953
  %8955 = vrot.lane.b32.xlu0 %v8952, 32
  %v8956 = vpop.permute.xlu0 %8955
  %v8959 = vadd.f32 %v2624, %v8954
  %v8960 = vadd.f32 %v2629, %v8956
  %v8961 = vxor.u32 %v8959, 2147483648
  %v8962 = vxor.u32 %v8960, 2147483648
  %v8963 = vmul.f32 %v8961, 1.442695
  %v8964 = vpow.pop %v8963
  %v8965 = vmul.f32 %v8962, 1.442695
  %v8966 = vpow.pop %v8965
  %v8967 = vadd.f32 %v8964, 1.0
  %v8968 = vadd.f32 %v8966, 1.0
  %v8969 = vrcp.pop %v8967
  %v8970 = vmul.f32 1.0, %v8969
  %v8971 = vrcp.pop %v8968
  %v8972 = vmul.f32 1.0, %v8971
  %8973 = vmatprep.subr.mxu0 0.0
  %8974 = vmatpush1.msra.mxu0 %v3270
  %8975 = vmatprep.subr.mxu0 0.0
  %8976 = vmatpush1.msra.mxu0 %v3272
  %8977 = vmatprep.subr.mxu0 0.0
  %8978 = vmatpush1.msra.mxu0 %v3274
  %8979 = vmatprep.subr.mxu0 0.0
  %8980 = vmatpush1.msra.mxu0 %v3276
  %8981 = vmatprep.subr.mxu0 0.0
  %8982 = vmatpush1.msra.mxu0 0.0
  %8983 = vmatprep.subr.mxu0 0.0
  %8984 = vmatpush1.msra.mxu0 0.0
  %8985 = vmatprep.subr.mxu0 0.0
  %8986 = vmatpush1.msra.mxu0 0.0
  %8987 = vmatprep.subr.mxu0 0.0
  %8988 = vmatpush1.msra.mxu0 0.0
  %8989 = vmatprep.subr.mxu0 0.0
  %8990 = vmatpush1.msra.mxu0 0.0
  %8991 = vmatprep.subr.mxu0 0.0
  %8992 = vmatpush1.msra.mxu0 0.0
  %8993 = vmatprep.subr.mxu0 0.0
  %8994 = vmatpush1.msra.mxu0 0.0
  %8995 = vmatprep.subr.mxu0 0.0
  %8996 = vmatpush1.msra.mxu0 0.0
  %8997 = vmatprep.subr.mxu0 0.0
  %8998 = vmatpush1.msra.mxu0 0.0
  %8999 = vmatprep.subr.mxu0 0.0
  %9000 = vmatpush1.msra.mxu0 0.0
  %9001 = vmatprep.subr.mxu0 0.0
  %9002 = vmatpush1.msra.mxu0 0.0
  %9003 = vmatprep.subr.mxu0 0.0
  %9004 = vmatpush1.msra.mxu0 0.0
  %9005 = vmatprep.subr.mxu0 0.0
  %9006 = vmatpush1.msra.mxu0 0.0
  %9007 = vmatprep.subr.mxu0 0.0
  %9008 = vmatpush1.msra.mxu0 0.0
  %9009 = vmatprep.subr.mxu0 0.0
  %9010 = vmatpush1.msra.mxu0 0.0
  %9011 = vmatprep.subr.mxu0 0.0
  %9012 = vmatpush1.msra.mxu0 0.0
  %9013 = vmatprep.subr.mxu0 0.0
  %9014 = vmatpush1.msra.mxu0 0.0
  %9015 = vmatprep.subr.mxu0 0.0
  %9016 = vmatpush1.msra.mxu0 0.0
  %9017 = vmatprep.subr.mxu0 0.0
  %9018 = vmatpush1.msra.mxu0 0.0
  %9019 = vmatprep.subr.mxu0 0.0
  %9020 = vmatpush1.msra.mxu0 0.0
  %9021 = vmatprep.subr.mxu0 0.0
  %9022 = vmatpush1.msra.mxu0 0.0
  %9023 = vmatprep.subr.mxu0 0.0
  %9024 = vmatpush1.msra.mxu0 0.0
  %9025 = vmatprep.subr.mxu0 0.0
  %9026 = vmatpush1.msra.mxu0 0.0
  %9027 = vmatprep.subr.mxu0 0.0
  %9028 = vmatpush1.msra.mxu0 0.0
  %9029 = vmatprep.subr.mxu0 0.0
  %9030 = vmatpush1.msra.mxu0 0.0
  %9031 = vmatprep.subr.mxu0 0.0
  %9032 = vmatpush1.msra.mxu0 0.0
  %9033 = vmatprep.subr.mxu0 0.0
  %9034 = vmatpush1.msra.mxu0 0.0
  %9035 = vmatprep.subr.mxu0 0.0
  %9036 = vmatpush1.msra.mxu0 0.0
  %9037 = vmatprep.mubr.f32.mxu0 0.0
  %9038 = vmatmul.mubr.f32.gmra.mrb[0].mxu0 %v8791
  %v9039 = vpop.f32.mrb[0].mxu0
  %v9040 = vadd.f32 0.0, %v9039
  %v9041 = vpop.f32.mrb[0].mxu0
  %9042 = vdwg.mxu0
  %v9044 = vrot.slane %v9040, 1
  %9045 = vrot.lane.b32.xlu0 %v9040, 64
  %v9046 = vpop.permute.xlu0 %9045
  %9047 = vrot.lane.b32.xlu0 %v9044, 64
  %v9048 = vpop.permute.xlu0 %9047
  %v9051 = vadd.f32 %v2624, %v9046
  %v9052 = vadd.f32 %v2629, %v9048
  %v9053 = vtanh.pop %v9051
  %v9054 = vtanh.pop %v9052
  %9055 = vmatprep.subr.mxu0 0.0
  %9056 = vmatpush1.msra.mxu0 %v3365
  %9057 = vmatprep.subr.mxu0 0.0
  %9058 = vmatpush1.msra.mxu0 %v3367
  %9059 = vmatprep.subr.mxu0 0.0
  %9060 = vmatpush1.msra.mxu0 %v3369
  %9061 = vmatprep.subr.mxu0 0.0
  %9062 = vmatpush1.msra.mxu0 %v3371
  %9063 = vmatprep.subr.mxu0 0.0
  %9064 = vmatpush1.msra.mxu0 0.0
  %9065 = vmatprep.subr.mxu0 0.0
  %9066 = vmatpush1.msra.mxu0 0.0
  %9067 = vmatprep.subr.mxu0 0.0
  %9068 = vmatpush1.msra.mxu0 0.0
  %9069 = vmatprep.subr.mxu0 0.0
  %9070 = vmatpush1.msra.mxu0 0.0
  %9071 = vmatprep.subr.mxu0 0.0
  %9072 = vmatpush1.msra.mxu0 0.0
  %9073 = vmatprep.subr.mxu0 0.0
  %9074 = vmatpush1.msra.mxu0 0.0
  %9075 = vmatprep.subr.mxu0 0.0
  %9076 = vmatpush1.msra.mxu0 0.0
  %9077 = vmatprep.subr.mxu0 0.0
  %9078 = vmatpush1.msra.mxu0 0.0
  %9079 = vmatprep.subr.mxu0 0.0
  %9080 = vmatpush1.msra.mxu0 0.0
  %9081 = vmatprep.subr.mxu0 0.0
  %9082 = vmatpush1.msra.mxu0 0.0
  %9083 = vmatprep.subr.mxu0 0.0
  %9084 = vmatpush1.msra.mxu0 0.0
  %9085 = vmatprep.subr.mxu0 0.0
  %9086 = vmatpush1.msra.mxu0 0.0
  %9087 = vmatprep.subr.mxu0 0.0
  %9088 = vmatpush1.msra.mxu0 0.0
  %9089 = vmatprep.subr.mxu0 0.0
  %9090 = vmatpush1.msra.mxu0 0.0
  %9091 = vmatprep.subr.mxu0 0.0
  %9092 = vmatpush1.msra.mxu0 0.0
  %9093 = vmatprep.subr.mxu0 0.0
  %9094 = vmatpush1.msra.mxu0 0.0
  %9095 = vmatprep.subr.mxu0 0.0
  %9096 = vmatpush1.msra.mxu0 0.0
  %9097 = vmatprep.subr.mxu0 0.0
  %9098 = vmatpush1.msra.mxu0 0.0
  %9099 = vmatprep.subr.mxu0 0.0
  %9100 = vmatpush1.msra.mxu0 0.0
  %9101 = vmatprep.subr.mxu0 0.0
  %9102 = vmatpush1.msra.mxu0 0.0
  %9103 = vmatprep.subr.mxu0 0.0
  %9104 = vmatpush1.msra.mxu0 0.0
  %9105 = vmatprep.subr.mxu0 0.0
  %9106 = vmatpush1.msra.mxu0 0.0
  %9107 = vmatprep.subr.mxu0 0.0
  %9108 = vmatpush1.msra.mxu0 0.0
  %9109 = vmatprep.subr.mxu0 0.0
  %9110 = vmatpush1.msra.mxu0 0.0
  %9111 = vmatprep.subr.mxu0 0.0
  %9112 = vmatpush1.msra.mxu0 0.0
  %9113 = vmatprep.subr.mxu0 0.0
  %9114 = vmatpush1.msra.mxu0 0.0
  %9115 = vmatprep.subr.mxu0 0.0
  %9116 = vmatpush1.msra.mxu0 0.0
  %9117 = vmatprep.subr.mxu0 0.0
  %9118 = vmatpush1.msra.mxu0 0.0
  %9119 = vmatprep.mubr.f32.mxu0 0.0
  %9120 = vmatmul.mubr.f32.gmra.mrb[0].mxu0 %v8791
  %v9121 = vpop.f32.mrb[0].mxu0
  %v9122 = vadd.f32 0.0, %v9121
  %v9123 = vpop.f32.mrb[0].mxu0
  %9124 = vdwg.mxu0
  %v9126 = vrot.slane %v9122, 1
  %9127 = vrot.lane.b32.xlu0 %v9122, 96
  %v9128 = vpop.permute.xlu0 %9127
  %9129 = vrot.lane.b32.xlu0 %v9126, 96
  %v9130 = vpop.permute.xlu0 %9129
  %v9133 = vadd.f32 %v2624, %v9128
  %v9134 = vadd.f32 %v2629, %v9130
  %v9135 = vxor.u32 %v9133, 2147483648
  %v9136 = vxor.u32 %v9134, 2147483648
  %v9137 = vmul.f32 %v9135, 1.442695
  %v9138 = vpow.pop %v9137
  %v9139 = vmul.f32 %v9136, 1.442695
  %v9140 = vpow.pop %v9139
  %v9141 = vadd.f32 %v9138, 1.0
  %v9142 = vadd.f32 %v9140, 1.0
  %v9143 = vrcp.pop %v9141
  %v9144 = vmul.f32 1.0, %v9143
  %v9145 = vrcp.pop %v9142
  %v9146 = vmul.f32 1.0, %v9145
  %v9149 = vrot.slane %v8364, 1
  %v9150 = vrot.slane %v8365, 1
  %v9153 = vmul.f32 %v8970, %v9149
  %v9154 = vmul.f32 %v8972, %v9150
  %9157 = vrot.lane.b32.xlu0 %v9053, 64
  %v9158 = vpop.permute.xlu0 %9157
  %9159 = vrot.lane.b32.xlu0 %v9054, 64
  %v9160 = vpop.permute.xlu0 %9159
  %v9163 = vmul.f32 %v8878, %v9158
  %v9164 = vmul.f32 %v8880, %v9160
  %9167 = vrot.lane.b32.xlu0 %v9163, 32
  %v9168 = vpop.permute.xlu0 %9167
  %9169 = vrot.lane.b32.xlu0 %v9164, 32
  %v9170 = vpop.permute.xlu0 %9169
  %v9173 = vadd.f32 %v9153, %v9168
  %v9174 = vadd.f32 %v9154, %v9170
  %v9175 = vtanh.pop %v9173
  %v9176 = vtanh.pop %v9174
  %9179 = vrot.lane.b32.xlu0 %v9175, 64
  %v9180 = vpop.permute.xlu0 %9179
  %9181 = vrot.lane.b32.xlu0 %v9176, 64
  %v9182 = vpop.permute.xlu0 %9181
  %v9185 = vmul.f32 %v9144, %v9180
  %v9186 = vmul.f32 %v9146, %v9182
  %v9188 = vrot.slane %v3904, 7
  %v9189 = vrot.slane %v3905, 6
  %vm9190 = vcmask 1043459
  %v9191 = vsel %vm9190, %v9189, %v9188
  %v9193 = vrot.slane %v4717, 6
  %v9194 = vrot.slane %v4718, 5
  %vm9195 = vcmask 1045509
  %v9196 = vsel %vm9195, %v9194, %v9193
  %v9198 = vrot.slane %v5531, 5
  %v9199 = vrot.slane %v5532, 4
  %vm9200 = vcmask 1047559
  %v9201 = vsel %vm9200, %v9199, %v9198
  %v9204 = vrot.slane %v7159, 3
  %v9205 = vrot.slane %v7160, 2
  %v9206 = vsel %vm9190, %v9205, %v9204
  %v9208 = vrot.slane %v7973, 2
  %v9209 = vrot.slane %v7974, 1
  %v9210 = vsel %vm9195, %v9209, %v9208
  %v9214 = vrot.slane %v8783, 1
  %v9215 = vsel %vm9200, %v8784, %v9214
  %vm9217 = vcmask 1041408
  %v9218 = vsel %vm9217, %v3507, %v9191
  %vm9219 = vcmask 1043456
  %v9220 = vsel %vm9219, %v9218, %v9196
  %vm9221 = vcmask 1045504
  %v9222 = vsel %vm9221, %v9220, %v9201
  %v9223 = vsel %vm9217, %v6758, %v9206
  %v9224 = vsel %vm9219, %v9223, %v9210
  %v9225 = vsel %vm9221, %v9224, %v9215
  %v9228 = vrot.slane %v9186, 7
  %v9229 = vsel %vm3506, %v9228, %v9185
  %v9231 = vrot.slane %v8376, 7
  %v9232 = vrot.slane %v8377, 6
  %v9233 = vsel %vm9190, %v9232, %v9231
  %v9235 = vrot.slane %v7566, 6
  %v9236 = vrot.slane %v7567, 5
  %v9237 = vsel %vm9195, %v9236, %v9235
  %v9239 = vrot.slane %v6752, 5
  %v9240 = vrot.slane %v6753, 4
  %v9241 = vsel %vm9200, %v9240, %v9239
  %v9244 = vrot.slane %v5124, 3
  %v9245 = vrot.slane %v5125, 2
  %v9246 = vsel %vm9190, %v9245, %v9244
  %v9248 = vrot.slane %v4311, 2
  %v9249 = vrot.slane %v4312, 1
  %v9250 = vsel %vm9195, %v9249, %v9248
  %v9252 = vrot.slane %v3501, 1
  %v9253 = vsel %vm9200, %v3502, %v9252
  %v9255 = vsel %vm9217, %v9229, %v9233
  %v9256 = vsel %vm9219, %v9255, %v9237
  %v9257 = vsel %vm9221, %v9256, %v9241
  %v9258 = vsel %vm9217, %v6351, %v9246
  %v9259 = vsel %vm9219, %v9258, %v9250
  %v9260 = vsel %vm9221, %v9259, %v9253
  %v9261 = vld [vmem:[%s22] sm:$0xff]
  %v9262 = vld [vmem:[%s22 + $0x8] sm:$0xff]
  %v9263 = vld [vmem:[%s22 + $0x10] sm:$0xff]
  %v9264 = vld [vmem:[%s22 + $0x18] sm:$0xff]
  %v9265 = vld [vmem:[%s23] sm:$0xff]
  %v9266 = vld [vmem:[%s23 + $0x8] sm:$0xff]
  %v9267 = vld [vmem:[%s23 + $0x10] sm:$0xff]
  %v9268 = vld [vmem:[%s23 + $0x18] sm:$0xff]
  %9271 = vrot.lane.b32.xlu0 %v9257, 32
  %v9272 = vpop.permute.xlu0 %9271
  %9273 = vrot.lane.b32.xlu0 %v9260, 32
  %v9274 = vpop.permute.xlu0 %9273
  %v9275 = vsel %vm84, %v9272, 0
  %v9277 = vsel %vm84, %v9274, 0
  %9279 = vmatprep.subr.mxu0 0.0
  %9280 = vmatpush1.msra.mxu0 %v9265
  %9281 = vmatprep.subr.mxu0 0.0
  %9282 = vmatpush1.msra.mxu0 %v9266
  %9283 = vmatprep.subr.mxu0 0.0
  %9284 = vmatpush1.msra.mxu0 %v9267
  %9285 = vmatprep.subr.mxu0 0.0
  %9286 = vmatpush1.msra.mxu0 %v9268
  %9287 = vmatprep.subr.mxu0 0.0
  %9288 = vmatpush1.msra.mxu0 0.0
  %9289 = vmatprep.subr.mxu0 0.0
  %9290 = vmatpush1.msra.mxu0 0.0
  %9291 = vmatprep.subr.mxu0 0.0
  %9292 = vmatpush1.msra.mxu0 0.0
  %9293 = vmatprep.subr.mxu0 0.0
  %9294 = vmatpush1.msra.mxu0 0.0
  %9295 = vmatprep.subr.mxu0 0.0
  %9296 = vmatpush1.msra.mxu0 0.0
  %9297 = vmatprep.subr.mxu0 0.0
  %9298 = vmatpush1.msra.mxu0 0.0
  %9299 = vmatprep.subr.mxu0 0.0
  %9300 = vmatpush1.msra.mxu0 0.0
  %9301 = vmatprep.subr.mxu0 0.0
  %9302 = vmatpush1.msra.mxu0 0.0
  %9303 = vmatprep.subr.mxu0 0.0
  %9304 = vmatpush1.msra.mxu0 0.0
  %9305 = vmatprep.subr.mxu0 0.0
  %9306 = vmatpush1.msra.mxu0 0.0
  %9307 = vmatprep.subr.mxu0 0.0
  %9308 = vmatpush1.msra.mxu0 0.0
  %9309 = vmatprep.subr.mxu0 0.0
  %9310 = vmatpush1.msra.mxu0 0.0
  %9311 = vmatprep.subr.mxu0 0.0
  %9312 = vmatpush1.msra.mxu0 0.0
  %9313 = vmatprep.subr.mxu0 0.0
  %9314 = vmatpush1.msra.mxu0 0.0
  %9315 = vmatprep.subr.mxu0 0.0
  %9316 = vmatpush1.msra.mxu0 0.0
  %9317 = vmatprep.subr.mxu0 0.0
  %9318 = vmatpush1.msra.mxu0 0.0
  %9319 = vmatprep.subr.mxu0 0.0
  %9320 = vmatpush1.msra.mxu0 0.0
  %9321 = vmatprep.subr.mxu0 0.0
  %9322 = vmatpush1.msra.mxu0 0.0
  %9323 = vmatprep.subr.mxu0 0.0
  %9324 = vmatpush1.msra.mxu0 0.0
  %9325 = vmatprep.subr.mxu0 0.0
  %9326 = vmatpush1.msra.mxu0 0.0
  %9327 = vmatprep.subr.mxu0 0.0
  %9328 = vmatpush1.msra.mxu0 0.0
  %9329 = vmatprep.subr.mxu0 0.0
  %9330 = vmatpush1.msra.mxu0 0.0
  %9331 = vmatprep.subr.mxu0 0.0
  %9332 = vmatpush1.msra.mxu0 0.0
  %9333 = vmatprep.subr.mxu0 0.0
  %9334 = vmatpush1.msra.mxu0 0.0
  %9335 = vmatprep.subr.mxu0 0.0
  %9336 = vmatpush1.msra.mxu0 0.0
  %9337 = vmatprep.subr.mxu0 0.0
  %9338 = vmatpush1.msra.mxu0 0.0
  %9339 = vmatprep.subr.mxu0 0.0
  %9340 = vmatpush1.msra.mxu0 0.0
  %9341 = vmatprep.subr.mxu0 0.0
  %9342 = vmatpush1.msra.mxu0 0.0
  %9343 = vmatprep.mubr.f32.mxu0 0.0
  %9344 = vmatmul.mubr.f32.gmra.mrb[0].mxu0 %v9275
  %v9345 = vpop.f32.mrb[0].mxu0
  %v9346 = vadd.f32 0.0, %v9345
  %v9347 = vpop.f32.mrb[0].mxu0
  %9348 = vmatprep.mubr.f32.mxu0 0.0
  %9349 = vmatmul.mubr.f32.gmra.mrb[0].mxu0 %v9277
  %v9350 = vpop.f32.mrb[0].mxu0
  %v9351 = vadd.f32 0.0, %v9350
  %v9352 = vpop.f32.mrb[0].mxu0
  %9353 = vdwg.mxu0
  %9356 = vrot.lane.b32.xlu0 %v9222, 32
  %v9357 = vpop.permute.xlu0 %9356
  %9358 = vrot.lane.b32.xlu0 %v9225, 32
  %v9359 = vpop.permute.xlu0 %9358
  %v9360 = vsel %vm84, %v9357, 0
  %v9362 = vsel %vm84, %v9359, 0
  %9364 = vmatprep.subr.mxu0 0.0
  %9365 = vmatpush1.msra.mxu0 %v9261
  %9366 = vmatprep.subr.mxu0 0.0
  %9367 = vmatpush1.msra.mxu0 %v9262
  %9368 = vmatprep.subr.mxu0 0.0
  %9369 = vmatpush1.msra.mxu0 %v9263
  %9370 = vmatprep.subr.mxu0 0.0
  %9371 = vmatpush1.msra.mxu0 %v9264
  %9372 = vmatprep.subr.mxu0 0.0
  %9373 = vmatpush1.msra.mxu0 0.0
  %9374 = vmatprep.subr.mxu0 0.0
  %9375 = vmatpush1.msra.mxu0 0.0
  %9376 = vmatprep.subr.mxu0 0.0
  %9377 = vmatpush1.msra.mxu0 0.0
  %9378 = vmatprep.subr.mxu0 0.0
  %9379 = vmatpush1.msra.mxu0 0.0
  %9380 = vmatprep.subr.mxu0 0.0
  %9381 = vmatpush1.msra.mxu0 0.0
  %9382 = vmatprep.subr.mxu0 0.0
  %9383 = vmatpush1.msra.mxu0 0.0
  %9384 = vmatprep.subr.mxu0 0.0
  %9385 = vmatpush1.msra.mxu0 0.0
  %9386 = vmatprep.subr.mxu0 0.0
  %9387 = vmatpush1.msra.mxu0 0.0
  %9388 = vmatprep.subr.mxu0 0.0
  %9389 = vmatpush1.msra.mxu0 0.0
  %9390 = vmatprep.subr.mxu0 0.0
  %9391 = vmatpush1.msra.mxu0 0.0
  %9392 = vmatprep.subr.mxu0 0.0
  %9393 = vmatpush1.msra.mxu0 0.0
  %9394 = vmatprep.subr.mxu0 0.0
  %9395 = vmatpush1.msra.mxu0 0.0
  %9396 = vmatprep.subr.mxu0 0.0
  %9397 = vmatpush1.msra.mxu0 0.0
  %9398 = vmatprep.subr.mxu0 0.0
  %9399 = vmatpush1.msra.mxu0 0.0
  %9400 = vmatprep.subr.mxu0 0.0
  %9401 = vmatpush1.msra.mxu0 0.0
  %9402 = vmatprep.subr.mxu0 0.0
  %9403 = vmatpush1.msra.mxu0 0.0
  %9404 = vmatprep.subr.mxu0 0.0
  %9405 = vmatpush1.msra.mxu0 0.0
  %9406 = vmatprep.subr.mxu0 0.0
  %9407 = vmatpush1.msra.mxu0 0.0
  %9408 = vmatprep.subr.mxu0 0.0
  %9409 = vmatpush1.msra.mxu0 0.0
  %9410 = vmatprep.subr.mxu0 0.0
  %9411 = vmatpush1.msra.mxu0 0.0
  %9412 = vmatprep.subr.mxu0 0.0
  %9413 = vmatpush1.msra.mxu0 0.0
  %9414 = vmatprep.subr.mxu0 0.0
  %9415 = vmatpush1.msra.mxu0 0.0
  %9416 = vmatprep.subr.mxu0 0.0
  %9417 = vmatpush1.msra.mxu0 0.0
  %9418 = vmatprep.subr.mxu0 0.0
  %9419 = vmatpush1.msra.mxu0 0.0
  %9420 = vmatprep.subr.mxu0 0.0
  %9421 = vmatpush1.msra.mxu0 0.0
  %9422 = vmatprep.subr.mxu0 0.0
  %9423 = vmatpush1.msra.mxu0 0.0
  %9424 = vmatprep.subr.mxu0 0.0
  %9425 = vmatpush1.msra.mxu0 0.0
  %9426 = vmatprep.subr.mxu0 0.0
  %9427 = vmatpush1.msra.mxu0 0.0
  %9428 = vmatprep.mubr.f32.mxu0 0.0
  %9429 = vmatmul.mubr.f32.gmra.mrb[0].mxu0 %v9360
  %v9430 = vpop.f32.mrb[0].mxu0
  %v9431 = vadd.f32 %v9346, %v9430
  %v9432 = vpop.f32.mrb[0].mxu0
  %9433 = vmatprep.mubr.f32.mxu0 0.0
  %9434 = vmatmul.mubr.f32.gmra.mrb[0].mxu0 %v9362
  %v9435 = vpop.f32.mrb[0].mxu0
  %v9436 = vadd.f32 %v9351, %v9435
  %v9437 = vpop.f32.mrb[0].mxu0
  %9438 = vdwg.mxu0
  %v9439 = vld [vmem:[%s24] sm:$0x1]
  %v9441 = vlaneseq
  %v9442 = vshrl.u32 %v9441, 7
  %v9443 = vsub.s32 0, %v9442
  %v9444 = vrot.slane %v9439, %v9443
  %v9446 = vadd.f32 %v9431, %v9444
  %v9447 = vadd.f32 %v9436, %v9444
  %vm9448 = vcmask 15360
  %9449 = vst.msk [vmem:[%s25] sm:$0xff] %vm9448, %v9446
  %9450 = vst.msk [vmem:[%s25 + $0x8] sm:$0xff] %vm9448, %v9447
  // Predicated region
  $region102: #{hesitator_forward.1} parent=0 // pred_check
    _
  $region103: #{hesitator_forward.1} parent=0 // pred_check_branch
    %9452 = sbr.rel (0) target = $region105
  $region104: #{hesitator_forward.1} parent=0 // pred_region
    _
  $region105: #{hesitator_forward.1} parent=0 // pred_fallthru
    _
  // Predicated region
  $region106: #{hesitator_forward.1} parent=0 // pred_check
    _
  $region107: #{hesitator_forward.1} parent=0 // pred_check_branch
    %9454 = sbr.rel (0) target = $region109
  $region108: #{hesitator_forward.1} parent=0 // pred_region
    _
  $region109: #{hesitator_forward.1} parent=0 // pred_fallthru
    _

</llo_original>
